<compile_context>
chip_gen: v6e
topology: v6e:2x2x1
jax: 0.10.0
libtpu: 0.0.40
codegen_flags: <defaults>
</compile_context>

<pallas_src>
import functools

import jax
import jax.numpy as jnp
from jax import lax
from jax.experimental import pallas as pl
from jax.experimental.pallas import tpu as pltpu

RND_FEATURE_SIZE = 128
STATE_SIZE = (3 * 2, 32, 32)          # (C, H, W) as in the torch module
_IN_FEATS = 32 * 32 * 6               # flattened NHWC input  (= 6144 = 48*128)
_STRIP = 8 * 32 * 6                   # one 8-row input strip (= 1536 = 12*128)
_ROW_STRIDE = 4 * 32 * 6              # conv1 stride-4 rows   (=  768 =  6*128)
_CHUNK = 128                          # conv1 strip output: 7*16 = 112, padded to 128
_N_STRIPS = 6                         # conv1 rows 0..5 (row/col 6 never reach conv2)
_N_PARAMS = {True: 10, False: 6}      # packed arrays per network


def _leaky_relu(v):
    return jnp.where(v > 0, v, 0.01 * v)   # torch default negative_slope=0.01


# ---------------------------------------------------------------------------
# Fused forward kernel: x block + VMEM-resident weights -> features
# ---------------------------------------------------------------------------
def _net_features(x_ref, p, is_predictor):
    """One RND network on the current batch tile. p = packed weight refs."""
    tb = x_ref.shape[0]
    w1 = p[0][...]                                    # [1536, 128] bf16 (shared per strip)
    b1 = p[1][...]                                    # [1, 128]    f32
    b2 = p[3][...]                                    # [1, 128]    f32
    acc = jnp.zeros((tb, _CHUNK), jnp.float32)        # conv2 pre-activation accumulator
    for ho in range(_N_STRIPS):
        # 128-aligned lane slice of the flattened NHWC input: rows 4*ho .. 4*ho+7
        xs = x_ref[:, _ROW_STRIDE * ho:_ROW_STRIDE * ho + _STRIP]       # [tb, 1536] bf16
        h1 = jnp.dot(xs, w1, preferred_element_type=jnp.float32) + b1   # conv1 row ho
        h1 = _leaky_relu(h1).astype(jnp.bfloat16)                       # lanes = (wo, c1)
        acc = acc + jnp.dot(h1, p[2][ho], preferred_element_type=jnp.float32)
    h = _leaky_relu(acc + b2).astype(jnp.bfloat16)    # [tb, 128] == torch NCHW flatten of conv2
    if is_predictor:
        h = jnp.maximum(jnp.dot(h, p[4][...], preferred_element_type=jnp.float32) + p[5][...], 0.0)
        h = h.astype(jnp.bfloat16)
        h = jnp.maximum(jnp.dot(h, p[6][...], preferred_element_type=jnp.float32) + p[7][...], 0.0)
        h = h.astype(jnp.bfloat16)
    return jnp.dot(h, p[-2][...], preferred_element_type=jnp.float32) + p[-1][...]


def _rnd_fused_kernel(*refs, flags):
    # refs = (x_ref, *param_refs_for_all_nets, *out_refs)
    n_nets = len(flags)
    x_ref = refs[0]
    out_refs = refs[len(refs) - n_nets:]
    p_refs = refs[1:len(refs) - n_nets]
    pos = 0
    for is_pred, o_ref in zip(flags, out_refs):
        n = _N_PARAMS[bool(is_pred)]
        o_ref[...] = _net_features(x_ref, p_refs[pos:pos + n], is_pred).astype(o_ref.dtype)
        pos += n


# ---------------------------------------------------------------------------
# pallas_call wrapper
# ---------------------------------------------------------------------------
def _resident_spec(arr):
    shape = tuple(arr.shape)
    return pl.BlockSpec(shape, lambda i, _nd=len(shape): (0,) * _nd)


def rnd_apply(x_nhwc, nets, *, batch_tile=128):
    """Run one or more RND networks on NHWC x [B, 32, 32, 6] in ONE pallas_call.

    nets: sequence of (packed_params, is_predictor).
    Returns a tuple of [B, RND_FEATURE_SIZE] float32 feature arrays.
    """
    B = x_nhwc.shape[0]
    x_flat = x_nhwc.reshape(B, _IN_FEATS).astype(jnp.bfloat16)   # contiguous (h, w, c) flatten
    tb = batch_tile if B >= batch_tile else 8 * pl.cdiv(B, 8)    # sublane-aligned batch tile
    Bp = tb * pl.cdiv(B, tb)
    if Bp != B:
        x_flat = jnp.pad(x_flat, ((0, Bp - B), (0, 0)))

    flags = tuple(bool(is_pred) for _, is_pred in nets)
    flat_params = []
    for packed, is_pred in nets:
        assert len(packed) == _N_PARAMS[bool(is_pred)]
        flat_params.extend(packed)

    in_specs = [pl.BlockSpec((tb, _IN_FEATS), lambda i: (i, 0))]
    in_specs += [_resident_spec(a) for a in flat_params]
    out_specs = [pl.BlockSpec((tb, RND_FEATURE_SIZE), lambda i: (i, 0)) for _ in nets]
    out_shape = [jax.ShapeDtypeStruct((Bp, RND_FEATURE_SIZE), jnp.float32) for _ in nets]

    outs = pl.pallas_call(
        functools.partial(_rnd_fused_kernel, flags=flags),
        grid=(Bp // tb,),
        in_specs=in_specs,
        out_specs=out_specs,
        out_shape=out_shape,
        compiler_params=pltpu.CompilerParams(dimension_semantics=("parallel",)),
    )(x_flat, *flat_params)
    if not isinstance(outs, (list, tuple)):
        outs = [outs]
    return tuple(o[:B] for o in outs)


def rnd_forward(packed_params, x_nhwc, is_predictor, **kwargs):
    """Single-network forward (mirrors RNDNetwork.forward)."""
    return rnd_apply(x_nhwc, [(packed_params, is_predictor)], **kwargs)[0]


# ---------------------------------------------------------------------------
# Parameter init (torch default U(-1/sqrt(fan_in), ..)) and packing
# ---------------------------------------------------------------------------
def _linear_init(key, fan_in, fan_out):
    bound = 1.0 / float(fan_in) ** 0.5
    kw, kb = jax.random.split(key)
    w = jax.random.uniform(kw, (fan_in, fan_out), jnp.float32, -bound, bound)  # [in, out]
    b = jax.random.uniform(kb, (fan_out,), jnp.float32, -bound, bound)
    return w, b


def _conv_init(key, cout, cin, k):
    bound = 1.0 / float(cin * k * k) ** 0.5
    kw, kb = jax.random.split(key)
    w = jax.random.uniform(kw, (cout, cin, k, k), jnp.float32, -bound, bound)  # torch OIHW
    b = jax.random.uniform(kb, (cout,), jnp.float32, -bound, bound)
    return w, b


def init_rnd_params(key, is_predictor):
    """torch-layout parameters (conv: OIHW; linear: [in, out])."""
    C, H, W = STATE_SIZE
    dim1 = ((H - 8) // 4 + 1, (W - 8) // 4 + 1)               # (7, 7)
    dim2 = ((dim1[0] - 4) // 2 + 1, (dim1[1] - 4) // 2 + 1)   # (2, 2)
    flat = 32 * dim2[0] * dim2[1]                             # 128
    keys = jax.random.split(key, 5)
    params = {"conv1": _conv_init(keys[0], 16, C, 8),
              "conv2": _conv_init(keys[1], 32, 16, 4)}
    if is_predictor:
        params["d1"] = _linear_init(keys[2], flat, 128)
        params["d2"] = _linear_init(keys[3], 128, 128)
        params["feature"] = _linear_init(keys[4], 128, RND_FEATURE_SIZE)
    else:
        params["feature"] = _linear_init(keys[2], flat, RND_FEATURE_SIZE)
    return params


def pack_rnd_params(params, is_predictor):
    """Fold conv1/conv2 into lane-dense bf16 matmul weights + f32 (1, N) biases."""
    w1, b1 = params["conv1"]            # [16, 6, 8, 8], [16]
    w2, b2 = params["conv2"]            # [32, 16, 4, 4], [32]

    # conv1: one [1536, 112->128] matrix shared by every 8-row input strip.
    # rows = (h_local, w, c_in) of the NHWC strip, cols = (wo, c_out).
    w1_t = jnp.transpose(w1, (2, 3, 1, 0))                     # [kh, kw, c_in, c_out]
    W1 = jnp.zeros((8, 32, 6, 7, 16), jnp.float32)
    for wo in range(7):
        W1 = W1.at[:, 4 * wo:4 * wo + 8, :, wo, :].set(w1_t)
    W1 = jnp.pad(W1.reshape(_STRIP, 112), ((0, 0), (0, 16)))   # [1536, 128]
    b1p = jnp.pad(jnp.tile(b1, 7), (0, 16)).reshape(1, _CHUNK)

    # conv2: six [112->128, 128] matrices, one per conv1 output row ho = 0..5.
    # rows = (wo, c1) of that conv1 row, cols = torch NCHW flatten (c2, oh, ow).
    w2_t = jnp.transpose(w2, (2, 3, 1, 0))                     # [kh, kw, c1, c2]
    W2 = jnp.zeros((_N_STRIPS, 7, 16, 32, 2, 2), jnp.float32)  # [ho, wo, c1, c2, oh, ow]
    for oh in range(2):
        for ow in range(2):
            W2 = W2.at[2 * oh:2 * oh + 4, 2 * ow:2 * ow + 4, :, :, oh, ow].set(w2_t)
    W2 = jnp.pad(W2.reshape(_N_STRIPS, 112, 128), ((0, 0), (0, 16), (0, 0)))
    b2p = jnp.repeat(b2, 4).reshape(1, _CHUNK)                 # col = c2*4 + oh*2 + ow

    packed = [W1.astype(jnp.bfloat16), b1p, W2.astype(jnp.bfloat16), b2p]
    names = ("d1", "d2", "feature") if is_predictor else ("feature",)
    for name in names:
        w, b = params[name]                                    # [in, out], [out]
        packed += [w.astype(jnp.bfloat16), b.reshape(1, -1).astype(jnp.float32)]
    return tuple(packed)


# ---------------------------------------------------------------------------
# Plain-JAX f32 reference (exactly the torch module) for validation
# ---------------------------------------------------------------------------
def rnd_forward_reference(params, x_nhwc, is_predictor):
    x = jnp.transpose(x_nhwc, (0, 3, 1, 2))                    # NHWC -> NCHW
    dn = ("NCHW", "OIHW", "NCHW")
    (w1, b1), (w2, b2) = params["conv1"], params["conv2"]
    y = lax.conv_general_dilated(x, w1, (4, 4), "VALID", dimension_numbers=dn)
    y = _leaky_relu(y + b1[None, :, None, None])
    y = lax.conv_general_dilated(y, w2, (2, 2), "VALID", dimension_numbers=dn)
    y = _leaky_relu(y + b2[None, :, None, None])
    h = y.reshape(y.shape[0], -1)                              # NCHW flatten
    if is_predictor:
        h = jnp.maximum(h @ params["d1"][0] + params["d1"][1], 0.0)
        h = jnp.maximum(h @ params["d2"][0] + params["d2"][1], 0.0)
    return h @ params["feature"][0] + params["feature"][1]


if __name__ == "__main__":
    key = jax.random.PRNGKey(0)
    kx, kp, kt = jax.random.split(key, 3)

    B = 2
    x = jax.random.normal(kx, (B, 32, 32, 6), jnp.float32)     # NHWC, state_size = [6, 32, 32]

    pred_raw = init_rnd_params(kp, is_predictor=True)
    targ_raw = init_rnd_params(kt, is_predictor=False)
    pred_packed = pack_rnd_params(pred_raw, True)
    targ_packed = pack_rnd_params(targ_raw, False)

    # Predictor + target features in ONE fused pallas_call (shared input / launch).
    pred_feat, targ_feat = rnd_apply(x, [(pred_packed, True), (targ_packed, False)])
    jax.block_until_ready((pred_feat, targ_feat))

    assert pred_feat.shape == (B, RND_FEATURE_SIZE) and pred_feat.dtype == jnp.float32
    assert targ_feat.shape == (B, RND_FEATURE_SIZE) and targ_feat.dtype == jnp.float32

    # Validate against the plain-JAX f32 reference (tolerance covers bf16 MXU inputs).
    for out, raw, is_pred in ((pred_feat, pred_raw, True), (targ_feat, targ_raw, False)):
        ref = rnd_forward_reference(raw, x, is_pred)
        err = float(jnp.max(jnp.abs(out - ref)))
        tol = 1e-2 + 5e-2 * float(jnp.max(jnp.abs(ref)))
        assert err <= tol, f"is_predictor={is_pred}: max|err|={err:.3e} > tol={tol:.3e}"

    print("KERNEL_OK")
</pallas_src>

<mosaic_0001>
module attributes {stable_mosaic.version = 11 : i64} {
  func.func @_rnd_fused_kernel(%arg0: i32, %arg1: memref<8x6144xbf16, #tpu.memory_space<vmem>>, %arg2: memref<1536x128xbf16, #tpu.memory_space<vmem>>, %arg3: memref<1x128xf32, #tpu.memory_space<vmem>>, %arg4: memref<6x128x128xbf16, #tpu.memory_space<vmem>>, %arg5: memref<1x128xf32, #tpu.memory_space<vmem>>, %arg6: memref<128x128xbf16, #tpu.memory_space<vmem>>, %arg7: memref<1x128xf32, #tpu.memory_space<vmem>>, %arg8: memref<128x128xbf16, #tpu.memory_space<vmem>>, %arg9: memref<1x128xf32, #tpu.memory_space<vmem>>, %arg10: memref<128x128xbf16, #tpu.memory_space<vmem>>, %arg11: memref<1x128xf32, #tpu.memory_space<vmem>>, %arg12: memref<1536x128xbf16, #tpu.memory_space<vmem>>, %arg13: memref<1x128xf32, #tpu.memory_space<vmem>>, %arg14: memref<6x128x128xbf16, #tpu.memory_space<vmem>>, %arg15: memref<1x128xf32, #tpu.memory_space<vmem>>, %arg16: memref<128x128xbf16, #tpu.memory_space<vmem>>, %arg17: memref<1x128xf32, #tpu.memory_space<vmem>>, %arg18: memref<8x128xf32, #tpu.memory_space<vmem>>, %arg19: memref<8x128xf32, #tpu.memory_space<vmem>>) attributes {dimension_semantics = [#tpu.dimension_semantics<parallel>], iteration_bounds = array<i64: 1>, scalar_prefetch = 0 : i64, scratch_operands = 0 : i64, tpu.core_type = #tpu.core_type<tc>, window_params = [{transform_indices = @transform_0, window_bounds = array<i64: 8, 6144>}, {pipeline_mode = #tpu.pipeline_mode<synchronous>, transform_indices = @transform_1, window_bounds = array<i64: 1536, 128>}, {pipeline_mode = #tpu.pipeline_mode<synchronous>, transform_indices = @transform_2, window_bounds = array<i64: 1, 128>}, {pipeline_mode = #tpu.pipeline_mode<synchronous>, transform_indices = @transform_3, window_bounds = array<i64: 6, 128, 128>}, {pipeline_mode = #tpu.pipeline_mode<synchronous>, transform_indices = @transform_4, window_bounds = array<i64: 1, 128>}, {pipeline_mode = #tpu.pipeline_mode<synchronous>, transform_indices = @transform_5, window_bounds = array<i64: 128, 128>}, {pipeline_mode = #tpu.pipeline_mode<synchronous>, transform_indices = @transform_6, window_bounds = array<i64: 1, 128>}, {pipeline_mode = #tpu.pipeline_mode<synchronous>, transform_indices = @transform_7, window_bounds = array<i64: 128, 128>}, {pipeline_mode = #tpu.pipeline_mode<synchronous>, transform_indices = @transform_8, window_bounds = array<i64: 1, 128>}, {pipeline_mode = #tpu.pipeline_mode<synchronous>, transform_indices = @transform_9, window_bounds = array<i64: 128, 128>}, {pipeline_mode = #tpu.pipeline_mode<synchronous>, transform_indices = @transform_10, window_bounds = array<i64: 1, 128>}, {pipeline_mode = #tpu.pipeline_mode<synchronous>, transform_indices = @transform_11, window_bounds = array<i64: 1536, 128>}, {pipeline_mode = #tpu.pipeline_mode<synchronous>, transform_indices = @transform_12, window_bounds = array<i64: 1, 128>}, {pipeline_mode = #tpu.pipeline_mode<synchronous>, transform_indices = @transform_13, window_bounds = array<i64: 6, 128, 128>}, {pipeline_mode = #tpu.pipeline_mode<synchronous>, transform_indices = @transform_14, window_bounds = array<i64: 1, 128>}, {pipeline_mode = #tpu.pipeline_mode<synchronous>, transform_indices = @transform_15, window_bounds = array<i64: 128, 128>}, {pipeline_mode = #tpu.pipeline_mode<synchronous>, transform_indices = @transform_16, window_bounds = array<i64: 1, 128>}, {transform_indices = @transform_17, window_bounds = array<i64: 8, 128>}, {transform_indices = @transform_18, window_bounds = array<i64: 8, 128>}]} {
    %c0 = arith.constant 0 : index
    %c0_0 = arith.constant 0 : index
    %0 = vector.load %arg2[%c0, %c0_0] : memref<1536x128xbf16, #tpu.memory_space<vmem>>, vector<1536x128xbf16>
    %c0_1 = arith.constant 0 : index
    %c0_2 = arith.constant 0 : index
    %1 = vector.load %arg3[%c0_1, %c0_2] : memref<1x128xf32, #tpu.memory_space<vmem>>, vector<1x128xf32>
    %c0_3 = arith.constant 0 : index
    %c0_4 = arith.constant 0 : index
    %2 = vector.load %arg5[%c0_3, %c0_4] : memref<1x128xf32, #tpu.memory_space<vmem>>, vector<1x128xf32>
    %cst = arith.constant 0.000000e+00 : f32
    %3 = vector.broadcast %cst : f32 to vector<8x128xf32>
    %c0_5 = arith.constant 0 : index
    %c0_6 = arith.constant 0 : index
    %4 = vector.load %arg1[%c0_5, %c0_6] : memref<8x6144xbf16, #tpu.memory_space<vmem>>, vector<8x1536xbf16>
    %cst_7 = arith.constant dense<0.000000e+00> : vector<8x128xf32>
    %5 = tpu.matmul %4, %0, %cst_7 {dimension_numbers = #tpu.dot_dimension_numbers<[1], [0], [0], [1], [0, 0, 1, 1], [], []>} : vector<8x1536xbf16>, vector<1536x128xbf16>, vector<8x128xf32> -> vector<8x128xf32>
    %6 = vector.broadcast %1 : vector<1x128xf32> to vector<8x128xf32>
    %7 = arith.addf %5, %6 : vector<8x128xf32>
    %cst_8 = arith.constant 0.000000e+00 : f32
    %8 = vector.broadcast %cst_8 : f32 to vector<8x128xf32>
    %9 = arith.cmpf ogt, %7, %8 : vector<8x128xf32>
    %cst_9 = arith.constant 0.00999999977 : f32
    %10 = vector.broadcast %cst_9 : f32 to vector<8x128xf32>
    %11 = arith.mulf %10, %7 : vector<8x128xf32>
    %12 = arith.select %9, %7, %11 : vector<8x128xi1>, vector<8x128xf32>
    %13 = arith.truncf %12 : vector<8x128xf32> to vector<8x128xbf16>
    %c0_10 = arith.constant 0 : index
    %c0_11 = arith.constant 0 : index
    %c0_12 = arith.constant 0 : index
    %14 = vector.load %arg4[%c0_10, %c0_11, %c0_12] : memref<6x128x128xbf16, #tpu.memory_space<vmem>>, vector<1x128x128xbf16>
    %15 = vector.shape_cast %14 : vector<1x128x128xbf16> to vector<128x128xbf16>
    %cst_13 = arith.constant dense<0.000000e+00> : vector<8x128xf32>
    %16 = tpu.matmul %13, %15, %cst_13 {dimension_numbers = #tpu.dot_dimension_numbers<[1], [0], [0], [1], [0, 0, 1, 1], [], []>} : vector<8x128xbf16>, vector<128x128xbf16>, vector<8x128xf32> -> vector<8x128xf32>
    %17 = arith.addf %3, %16 : vector<8x128xf32>
    %c0_14 = arith.constant 0 : index
    %c768 = arith.constant 768 : index
    %18 = vector.load %arg1[%c0_14, %c768] : memref<8x6144xbf16, #tpu.memory_space<vmem>>, vector<8x1536xbf16>
    %cst_15 = arith.constant dense<0.000000e+00> : vector<8x128xf32>
    %19 = tpu.matmul %18, %0, %cst_15 {dimension_numbers = #tpu.dot_dimension_numbers<[1], [0], [0], [1], [0, 0, 1, 1], [], []>} : vector<8x1536xbf16>, vector<1536x128xbf16>, vector<8x128xf32> -> vector<8x128xf32>
    %20 = vector.broadcast %1 : vector<1x128xf32> to vector<8x128xf32>
    %21 = arith.addf %19, %20 : vector<8x128xf32>
    %cst_16 = arith.constant 0.000000e+00 : f32
    %22 = vector.broadcast %cst_16 : f32 to vector<8x128xf32>
    %23 = arith.cmpf ogt, %21, %22 : vector<8x128xf32>
    %cst_17 = arith.constant 0.00999999977 : f32
    %24 = vector.broadcast %cst_17 : f32 to vector<8x128xf32>
    %25 = arith.mulf %24, %21 : vector<8x128xf32>
    %26 = arith.select %23, %21, %25 : vector<8x128xi1>, vector<8x128xf32>
    %27 = arith.truncf %26 : vector<8x128xf32> to vector<8x128xbf16>
    %c1 = arith.constant 1 : index
    %c0_18 = arith.constant 0 : index
    %c0_19 = arith.constant 0 : index
    %28 = vector.load %arg4[%c1, %c0_18, %c0_19] : memref<6x128x128xbf16, #tpu.memory_space<vmem>>, vector<1x128x128xbf16>
    %29 = vector.shape_cast %28 : vector<1x128x128xbf16> to vector<128x128xbf16>
    %cst_20 = arith.constant dense<0.000000e+00> : vector<8x128xf32>
    %30 = tpu.matmul %27, %29, %cst_20 {dimension_numbers = #tpu.dot_dimension_numbers<[1], [0], [0], [1], [0, 0, 1, 1], [], []>} : vector<8x128xbf16>, vector<128x128xbf16>, vector<8x128xf32> -> vector<8x128xf32>
    %31 = arith.addf %17, %30 : vector<8x128xf32>
    %c0_21 = arith.constant 0 : index
    %c1536 = arith.constant 1536 : index
    %32 = vector.load %arg1[%c0_21, %c1536] : memref<8x6144xbf16, #tpu.memory_space<vmem>>, vector<8x1536xbf16>
    %cst_22 = arith.constant dense<0.000000e+00> : vector<8x128xf32>
    %33 = tpu.matmul %32, %0, %cst_22 {dimension_numbers = #tpu.dot_dimension_numbers<[1], [0], [0], [1], [0, 0, 1, 1], [], []>} : vector<8x1536xbf16>, vector<1536x128xbf16>, vector<8x128xf32> -> vector<8x128xf32>
    %34 = vector.broadcast %1 : vector<1x128xf32> to vector<8x128xf32>
    %35 = arith.addf %33, %34 : vector<8x128xf32>
    %cst_23 = arith.constant 0.000000e+00 : f32
    %36 = vector.broadcast %cst_23 : f32 to vector<8x128xf32>
    %37 = arith.cmpf ogt, %35, %36 : vector<8x128xf32>
    %cst_24 = arith.constant 0.00999999977 : f32
    %38 = vector.broadcast %cst_24 : f32 to vector<8x128xf32>
    %39 = arith.mulf %38, %35 : vector<8x128xf32>
    %40 = arith.select %37, %35, %39 : vector<8x128xi1>, vector<8x128xf32>
    %41 = arith.truncf %40 : vector<8x128xf32> to vector<8x128xbf16>
    %c2 = arith.constant 2 : index
    %c0_25 = arith.constant 0 : index
    %c0_26 = arith.constant 0 : index
    %42 = vector.load %arg4[%c2, %c0_25, %c0_26] : memref<6x128x128xbf16, #tpu.memory_space<vmem>>, vector<1x128x128xbf16>
    %43 = vector.shape_cast %42 : vector<1x128x128xbf16> to vector<128x128xbf16>
    %cst_27 = arith.constant dense<0.000000e+00> : vector<8x128xf32>
    %44 = tpu.matmul %41, %43, %cst_27 {dimension_numbers = #tpu.dot_dimension_numbers<[1], [0], [0], [1], [0, 0, 1, 1], [], []>} : vector<8x128xbf16>, vector<128x128xbf16>, vector<8x128xf32> -> vector<8x128xf32>
    %45 = arith.addf %31, %44 : vector<8x128xf32>
    %c0_28 = arith.constant 0 : index
    %c2304 = arith.constant 2304 : index
    %46 = vector.load %arg1[%c0_28, %c2304] : memref<8x6144xbf16, #tpu.memory_space<vmem>>, vector<8x1536xbf16>
    %cst_29 = arith.constant dense<0.000000e+00> : vector<8x128xf32>
    %47 = tpu.matmul %46, %0, %cst_29 {dimension_numbers = #tpu.dot_dimension_numbers<[1], [0], [0], [1], [0, 0, 1, 1], [], []>} : vector<8x1536xbf16>, vector<1536x128xbf16>, vector<8x128xf32> -> vector<8x128xf32>
    %48 = vector.broadcast %1 : vector<1x128xf32> to vector<8x128xf32>
    %49 = arith.addf %47, %48 : vector<8x128xf32>
    %cst_30 = arith.constant 0.000000e+00 : f32
    %50 = vector.broadcast %cst_30 : f32 to vector<8x128xf32>
    %51 = arith.cmpf ogt, %49, %50 : vector<8x128xf32>
    %cst_31 = arith.constant 0.00999999977 : f32
    %52 = vector.broadcast %cst_31 : f32 to vector<8x128xf32>
    %53 = arith.mulf %52, %49 : vector<8x128xf32>
    %54 = arith.select %51, %49, %53 : vector<8x128xi1>, vector<8x128xf32>
    %55 = arith.truncf %54 : vector<8x128xf32> to vector<8x128xbf16>
    %c3 = arith.constant 3 : index
    %c0_32 = arith.constant 0 : index
    %c0_33 = arith.constant 0 : index
    %56 = vector.load %arg4[%c3, %c0_32, %c0_33] : memref<6x128x128xbf16, #tpu.memory_space<vmem>>, vector<1x128x128xbf16>
    %57 = vector.shape_cast %56 : vector<1x128x128xbf16> to vector<128x128xbf16>
    %cst_34 = arith.constant dense<0.000000e+00> : vector<8x128xf32>
    %58 = tpu.matmul %55, %57, %cst_34 {dimension_numbers = #tpu.dot_dimension_numbers<[1], [0], [0], [1], [0, 0, 1, 1], [], []>} : vector<8x128xbf16>, vector<128x128xbf16>, vector<8x128xf32> -> vector<8x128xf32>
    %59 = arith.addf %45, %58 : vector<8x128xf32>
    %c0_35 = arith.constant 0 : index
    %c3072 = arith.constant 3072 : index
    %60 = vector.load %arg1[%c0_35, %c3072] : memref<8x6144xbf16, #tpu.memory_space<vmem>>, vector<8x1536xbf16>
    %cst_36 = arith.constant dense<0.000000e+00> : vector<8x128xf32>
    %61 = tpu.matmul %60, %0, %cst_36 {dimension_numbers = #tpu.dot_dimension_numbers<[1], [0], [0], [1], [0, 0, 1, 1], [], []>} : vector<8x1536xbf16>, vector<1536x128xbf16>, vector<8x128xf32> -> vector<8x128xf32>
    %62 = vector.broadcast %1 : vector<1x128xf32> to vector<8x128xf32>
    %63 = arith.addf %61, %62 : vector<8x128xf32>
    %cst_37 = arith.constant 0.000000e+00 : f32
    %64 = vector.broadcast %cst_37 : f32 to vector<8x128xf32>
    %65 = arith.cmpf ogt, %63, %64 : vector<8x128xf32>
    %cst_38 = arith.constant 0.00999999977 : f32
    %66 = vector.broadcast %cst_38 : f32 to vector<8x128xf32>
    %67 = arith.mulf %66, %63 : vector<8x128xf32>
    %68 = arith.select %65, %63, %67 : vector<8x128xi1>, vector<8x128xf32>
    %69 = arith.truncf %68 : vector<8x128xf32> to vector<8x128xbf16>
    %c4 = arith.constant 4 : index
    %c0_39 = arith.constant 0 : index
    %c0_40 = arith.constant 0 : index
    %70 = vector.load %arg4[%c4, %c0_39, %c0_40] : memref<6x128x128xbf16, #tpu.memory_space<vmem>>, vector<1x128x128xbf16>
    %71 = vector.shape_cast %70 : vector<1x128x128xbf16> to vector<128x128xbf16>
    %cst_41 = arith.constant dense<0.000000e+00> : vector<8x128xf32>
    %72 = tpu.matmul %69, %71, %cst_41 {dimension_numbers = #tpu.dot_dimension_numbers<[1], [0], [0], [1], [0, 0, 1, 1], [], []>} : vector<8x128xbf16>, vector<128x128xbf16>, vector<8x128xf32> -> vector<8x128xf32>
    %73 = arith.addf %59, %72 : vector<8x128xf32>
    %c0_42 = arith.constant 0 : index
    %c3840 = arith.constant 3840 : index
    %74 = vector.load %arg1[%c0_42, %c3840] : memref<8x6144xbf16, #tpu.memory_space<vmem>>, vector<8x1536xbf16>
    %cst_43 = arith.constant dense<0.000000e+00> : vector<8x128xf32>
    %75 = tpu.matmul %74, %0, %cst_43 {dimension_numbers = #tpu.dot_dimension_numbers<[1], [0], [0], [1], [0, 0, 1, 1], [], []>} : vector<8x1536xbf16>, vector<1536x128xbf16>, vector<8x128xf32> -> vector<8x128xf32>
    %76 = vector.broadcast %1 : vector<1x128xf32> to vector<8x128xf32>
    %77 = arith.addf %75, %76 : vector<8x128xf32>
    %cst_44 = arith.constant 0.000000e+00 : f32
    %78 = vector.broadcast %cst_44 : f32 to vector<8x128xf32>
    %79 = arith.cmpf ogt, %77, %78 : vector<8x128xf32>
    %cst_45 = arith.constant 0.00999999977 : f32
    %80 = vector.broadcast %cst_45 : f32 to vector<8x128xf32>
    %81 = arith.mulf %80, %77 : vector<8x128xf32>
    %82 = arith.select %79, %77, %81 : vector<8x128xi1>, vector<8x128xf32>
    %83 = arith.truncf %82 : vector<8x128xf32> to vector<8x128xbf16>
    %c5 = arith.constant 5 : index
    %c0_46 = arith.constant 0 : index
    %c0_47 = arith.constant 0 : index
    %84 = vector.load %arg4[%c5, %c0_46, %c0_47] : memref<6x128x128xbf16, #tpu.memory_space<vmem>>, vector<1x128x128xbf16>
    %85 = vector.shape_cast %84 : vector<1x128x128xbf16> to vector<128x128xbf16>
    %cst_48 = arith.constant dense<0.000000e+00> : vector<8x128xf32>
    %86 = tpu.matmul %83, %85, %cst_48 {dimension_numbers = #tpu.dot_dimension_numbers<[1], [0], [0], [1], [0, 0, 1, 1], [], []>} : vector<8x128xbf16>, vector<128x128xbf16>, vector<8x128xf32> -> vector<8x128xf32>
    %87 = arith.addf %73, %86 : vector<8x128xf32>
    %88 = vector.broadcast %2 : vector<1x128xf32> to vector<8x128xf32>
    %89 = arith.addf %87, %88 : vector<8x128xf32>
    %cst_49 = arith.constant 0.000000e+00 : f32
    %90 = vector.broadcast %cst_49 : f32 to vector<8x128xf32>
    %91 = arith.cmpf ogt, %89, %90 : vector<8x128xf32>
    %cst_50 = arith.constant 0.00999999977 : f32
    %92 = vector.broadcast %cst_50 : f32 to vector<8x128xf32>
    %93 = arith.mulf %92, %89 : vector<8x128xf32>
    %94 = arith.select %91, %89, %93 : vector<8x128xi1>, vector<8x128xf32>
    %95 = arith.truncf %94 : vector<8x128xf32> to vector<8x128xbf16>
    %c0_51 = arith.constant 0 : index
    %c0_52 = arith.constant 0 : index
    %96 = vector.load %arg6[%c0_51, %c0_52] : memref<128x128xbf16, #tpu.memory_space<vmem>>, vector<128x128xbf16>
    %cst_53 = arith.constant dense<0.000000e+00> : vector<8x128xf32>
    %97 = tpu.matmul %95, %96, %cst_53 {dimension_numbers = #tpu.dot_dimension_numbers<[1], [0], [0], [1], [0, 0, 1, 1], [], []>} : vector<8x128xbf16>, vector<128x128xbf16>, vector<8x128xf32> -> vector<8x128xf32>
    %c0_54 = arith.constant 0 : index
    %c0_55 = arith.constant 0 : index
    %98 = vector.load %arg7[%c0_54, %c0_55] : memref<1x128xf32, #tpu.memory_space<vmem>>, vector<1x128xf32>
    %99 = vector.broadcast %98 : vector<1x128xf32> to vector<8x128xf32>
    %100 = arith.addf %97, %99 : vector<8x128xf32>
    %cst_56 = arith.constant 0.000000e+00 : f32
    %101 = vector.broadcast %cst_56 : f32 to vector<8x128xf32>
    %102 = arith.maximumf %100, %101 : vector<8x128xf32>
    %103 = arith.truncf %102 : vector<8x128xf32> to vector<8x128xbf16>
    %c0_57 = arith.constant 0 : index
    %c0_58 = arith.constant 0 : index
    %104 = vector.load %arg8[%c0_57, %c0_58] : memref<128x128xbf16, #tpu.memory_space<vmem>>, vector<128x128xbf16>
    %cst_59 = arith.constant dense<0.000000e+00> : vector<8x128xf32>
    %105 = tpu.matmul %103, %104, %cst_59 {dimension_numbers = #tpu.dot_dimension_numbers<[1], [0], [0], [1], [0, 0, 1, 1], [], []>} : vector<8x128xbf16>, vector<128x128xbf16>, vector<8x128xf32> -> vector<8x128xf32>
    %c0_60 = arith.constant 0 : index
    %c0_61 = arith.constant 0 : index
    %106 = vector.load %arg9[%c0_60, %c0_61] : memref<1x128xf32, #tpu.memory_space<vmem>>, vector<1x128xf32>
    %107 = vector.broadcast %106 : vector<1x128xf32> to vector<8x128xf32>
    %108 = arith.addf %105, %107 : vector<8x128xf32>
    %cst_62 = arith.constant 0.000000e+00 : f32
    %109 = vector.broadcast %cst_62 : f32 to vector<8x128xf32>
    %110 = arith.maximumf %108, %109 : vector<8x128xf32>
    %111 = arith.truncf %110 : vector<8x128xf32> to vector<8x128xbf16>
    %c0_63 = arith.constant 0 : index
    %c0_64 = arith.constant 0 : index
    %112 = vector.load %arg10[%c0_63, %c0_64] : memref<128x128xbf16, #tpu.memory_space<vmem>>, vector<128x128xbf16>
    %cst_65 = arith.constant dense<0.000000e+00> : vector<8x128xf32>
    %113 = tpu.matmul %111, %112, %cst_65 {dimension_numbers = #tpu.dot_dimension_numbers<[1], [0], [0], [1], [0, 0, 1, 1], [], []>} : vector<8x128xbf16>, vector<128x128xbf16>, vector<8x128xf32> -> vector<8x128xf32>
    %c0_66 = arith.constant 0 : index
    %c0_67 = arith.constant 0 : index
    %114 = vector.load %arg11[%c0_66, %c0_67] : memref<1x128xf32, #tpu.memory_space<vmem>>, vector<1x128xf32>
    %115 = vector.broadcast %114 : vector<1x128xf32> to vector<8x128xf32>
    %116 = arith.addf %113, %115 : vector<8x128xf32>
    %c0_68 = arith.constant 0 : index
    %c0_69 = arith.constant 0 : index
    %117 = vector.load %arg18[%c0_68, %c0_69] : memref<8x128xf32, #tpu.memory_space<vmem>>, vector<8x128xf32>
    tpu.vector_store %arg18[%c0_68, %c0_69], %116 {strides = array<i32>} : memref<8x128xf32, #tpu.memory_space<vmem>>, vector<8x128xf32>,
    %c0_70 = arith.constant 0 : index
    %c0_71 = arith.constant 0 : index
    %118 = vector.load %arg12[%c0_70, %c0_71] : memref<1536x128xbf16, #tpu.memory_space<vmem>>, vector<1536x128xbf16>
    %c0_72 = arith.constant 0 : index
    %c0_73 = arith.constant 0 : index
    %119 = vector.load %arg13[%c0_72, %c0_73] : memref<1x128xf32, #tpu.memory_space<vmem>>, vector<1x128xf32>
    %c0_74 = arith.constant 0 : index
    %c0_75 = arith.constant 0 : index
    %120 = vector.load %arg15[%c0_74, %c0_75] : memref<1x128xf32, #tpu.memory_space<vmem>>, vector<1x128xf32>
    %cst_76 = arith.constant 0.000000e+00 : f32
    %121 = vector.broadcast %cst_76 : f32 to vector<8x128xf32>
    %c0_77 = arith.constant 0 : index
    %c0_78 = arith.constant 0 : index
    %122 = vector.load %arg1[%c0_77, %c0_78] : memref<8x6144xbf16, #tpu.memory_space<vmem>>, vector<8x1536xbf16>
    %cst_79 = arith.constant dense<0.000000e+00> : vector<8x128xf32>
    %123 = tpu.matmul %122, %118, %cst_79 {dimension_numbers = #tpu.dot_dimension_numbers<[1], [0], [0], [1], [0, 0, 1, 1], [], []>} : vector<8x1536xbf16>, vector<1536x128xbf16>, vector<8x128xf32> -> vector<8x128xf32>
    %124 = vector.broadcast %119 : vector<1x128xf32> to vector<8x128xf32>
    %125 = arith.addf %123, %124 : vector<8x128xf32>
    %cst_80 = arith.constant 0.000000e+00 : f32
    %126 = vector.broadcast %cst_80 : f32 to vector<8x128xf32>
    %127 = arith.cmpf ogt, %125, %126 : vector<8x128xf32>
    %cst_81 = arith.constant 0.00999999977 : f32
    %128 = vector.broadcast %cst_81 : f32 to vector<8x128xf32>
    %129 = arith.mulf %128, %125 : vector<8x128xf32>
    %130 = arith.select %127, %125, %129 : vector<8x128xi1>, vector<8x128xf32>
    %131 = arith.truncf %130 : vector<8x128xf32> to vector<8x128xbf16>
    %c0_82 = arith.constant 0 : index
    %c0_83 = arith.constant 0 : index
    %c0_84 = arith.constant 0 : index
    %132 = vector.load %arg14[%c0_82, %c0_83, %c0_84] : memref<6x128x128xbf16, #tpu.memory_space<vmem>>, vector<1x128x128xbf16>
    %133 = vector.shape_cast %132 : vector<1x128x128xbf16> to vector<128x128xbf16>
    %cst_85 = arith.constant dense<0.000000e+00> : vector<8x128xf32>
    %134 = tpu.matmul %131, %133, %cst_85 {dimension_numbers = #tpu.dot_dimension_numbers<[1], [0], [0], [1], [0, 0, 1, 1], [], []>} : vector<8x128xbf16>, vector<128x128xbf16>, vector<8x128xf32> -> vector<8x128xf32>
    %135 = arith.addf %121, %134 : vector<8x128xf32>
    %c0_86 = arith.constant 0 : index
    %c768_87 = arith.constant 768 : index
    %136 = vector.load %arg1[%c0_86, %c768_87] : memref<8x6144xbf16, #tpu.memory_space<vmem>>, vector<8x1536xbf16>
    %cst_88 = arith.constant dense<0.000000e+00> : vector<8x128xf32>
    %137 = tpu.matmul %136, %118, %cst_88 {dimension_numbers = #tpu.dot_dimension_numbers<[1], [0], [0], [1], [0, 0, 1, 1], [], []>} : vector<8x1536xbf16>, vector<1536x128xbf16>, vector<8x128xf32> -> vector<8x128xf32>
    %138 = vector.broadcast %119 : vector<1x128xf32> to vector<8x128xf32>
    %139 = arith.addf %137, %138 : vector<8x128xf32>
    %cst_89 = arith.constant 0.000000e+00 : f32
    %140 = vector.broadcast %cst_89 : f32 to vector<8x128xf32>
    %141 = arith.cmpf ogt, %139, %140 : vector<8x128xf32>
    %cst_90 = arith.constant 0.00999999977 : f32
    %142 = vector.broadcast %cst_90 : f32 to vector<8x128xf32>
    %143 = arith.mulf %142, %139 : vector<8x128xf32>
    %144 = arith.select %141, %139, %143 : vector<8x128xi1>, vector<8x128xf32>
    %145 = arith.truncf %144 : vector<8x128xf32> to vector<8x128xbf16>
    %c1_91 = arith.constant 1 : index
    %c0_92 = arith.constant 0 : index
    %c0_93 = arith.constant 0 : index
    %146 = vector.load %arg14[%c1_91, %c0_92, %c0_93] : memref<6x128x128xbf16, #tpu.memory_space<vmem>>, vector<1x128x128xbf16>
    %147 = vector.shape_cast %146 : vector<1x128x128xbf16> to vector<128x128xbf16>
    %cst_94 = arith.constant dense<0.000000e+00> : vector<8x128xf32>
    %148 = tpu.matmul %145, %147, %cst_94 {dimension_numbers = #tpu.dot_dimension_numbers<[1], [0], [0], [1], [0, 0, 1, 1], [], []>} : vector<8x128xbf16>, vector<128x128xbf16>, vector<8x128xf32> -> vector<8x128xf32>
    %149 = arith.addf %135, %148 : vector<8x128xf32>
    %c0_95 = arith.constant 0 : index
    %c1536_96 = arith.constant 1536 : index
    %150 = vector.load %arg1[%c0_95, %c1536_96] : memref<8x6144xbf16, #tpu.memory_space<vmem>>, vector<8x1536xbf16>
    %cst_97 = arith.constant dense<0.000000e+00> : vector<8x128xf32>
    %151 = tpu.matmul %150, %118, %cst_97 {dimension_numbers = #tpu.dot_dimension_numbers<[1], [0], [0], [1], [0, 0, 1, 1], [], []>} : vector<8x1536xbf16>, vector<1536x128xbf16>, vector<8x128xf32> -> vector<8x128xf32>
    %152 = vector.broadcast %119 : vector<1x128xf32> to vector<8x128xf32>
    %153 = arith.addf %151, %152 : vector<8x128xf32>
    %cst_98 = arith.constant 0.000000e+00 : f32
    %154 = vector.broadcast %cst_98 : f32 to vector<8x128xf32>
    %155 = arith.cmpf ogt, %153, %154 : vector<8x128xf32>
    %cst_99 = arith.constant 0.00999999977 : f32
    %156 = vector.broadcast %cst_99 : f32 to vector<8x128xf32>
    %157 = arith.mulf %156, %153 : vector<8x128xf32>
    %158 = arith.select %155, %153, %157 : vector<8x128xi1>, vector<8x128xf32>
    %159 = arith.truncf %158 : vector<8x128xf32> to vector<8x128xbf16>
    %c2_100 = arith.constant 2 : index
    %c0_101 = arith.constant 0 : index
    %c0_102 = arith.constant 0 : index
    %160 = vector.load %arg14[%c2_100, %c0_101, %c0_102] : memref<6x128x128xbf16, #tpu.memory_space<vmem>>, vector<1x128x128xbf16>
    %161 = vector.shape_cast %160 : vector<1x128x128xbf16> to vector<128x128xbf16>
    %cst_103 = arith.constant dense<0.000000e+00> : vector<8x128xf32>
    %162 = tpu.matmul %159, %161, %cst_103 {dimension_numbers = #tpu.dot_dimension_numbers<[1], [0], [0], [1], [0, 0, 1, 1], [], []>} : vector<8x128xbf16>, vector<128x128xbf16>, vector<8x128xf32> -> vector<8x128xf32>
    %163 = arith.addf %149, %162 : vector<8x128xf32>
    %c0_104 = arith.constant 0 : index
    %c2304_105 = arith.constant 2304 : index
    %164 = vector.load %arg1[%c0_104, %c2304_105] : memref<8x6144xbf16, #tpu.memory_space<vmem>>, vector<8x1536xbf16>
    %cst_106 = arith.constant dense<0.000000e+00> : vector<8x128xf32>
    %165 = tpu.matmul %164, %118, %cst_106 {dimension_numbers = #tpu.dot_dimension_numbers<[1], [0], [0], [1], [0, 0, 1, 1], [], []>} : vector<8x1536xbf16>, vector<1536x128xbf16>, vector<8x128xf32> -> vector<8x128xf32>
    %166 = vector.broadcast %119 : vector<1x128xf32> to vector<8x128xf32>
    %167 = arith.addf %165, %166 : vector<8x128xf32>
    %cst_107 = arith.constant 0.000000e+00 : f32
    %168 = vector.broadcast %cst_107 : f32 to vector<8x128xf32>
    %169 = arith.cmpf ogt, %167, %168 : vector<8x128xf32>
    %cst_108 = arith.constant 0.00999999977 : f32
    %170 = vector.broadcast %cst_108 : f32 to vector<8x128xf32>
    %171 = arith.mulf %170, %167 : vector<8x128xf32>
    %172 = arith.select %169, %167, %171 : vector<8x128xi1>, vector<8x128xf32>
    %173 = arith.truncf %172 : vector<8x128xf32> to vector<8x128xbf16>
    %c3_109 = arith.constant 3 : index
    %c0_110 = arith.constant 0 : index
    %c0_111 = arith.constant 0 : index
    %174 = vector.load %arg14[%c3_109, %c0_110, %c0_111] : memref<6x128x128xbf16, #tpu.memory_space<vmem>>, vector<1x128x128xbf16>
    %175 = vector.shape_cast %174 : vector<1x128x128xbf16> to vector<128x128xbf16>
    %cst_112 = arith.constant dense<0.000000e+00> : vector<8x128xf32>
    %176 = tpu.matmul %173, %175, %cst_112 {dimension_numbers = #tpu.dot_dimension_numbers<[1], [0], [0], [1], [0, 0, 1, 1], [], []>} : vector<8x128xbf16>, vector<128x128xbf16>, vector<8x128xf32> -> vector<8x128xf32>
    %177 = arith.addf %163, %176 : vector<8x128xf32>
    %c0_113 = arith.constant 0 : index
    %c3072_114 = arith.constant 3072 : index
    %178 = vector.load %arg1[%c0_113, %c3072_114] : memref<8x6144xbf16, #tpu.memory_space<vmem>>, vector<8x1536xbf16>
    %cst_115 = arith.constant dense<0.000000e+00> : vector<8x128xf32>
    %179 = tpu.matmul %178, %118, %cst_115 {dimension_numbers = #tpu.dot_dimension_numbers<[1], [0], [0], [1], [0, 0, 1, 1], [], []>} : vector<8x1536xbf16>, vector<1536x128xbf16>, vector<8x128xf32> -> vector<8x128xf32>
    %180 = vector.broadcast %119 : vector<1x128xf32> to vector<8x128xf32>
    %181 = arith.addf %179, %180 : vector<8x128xf32>
    %cst_116 = arith.constant 0.000000e+00 : f32
    %182 = vector.broadcast %cst_116 : f32 to vector<8x128xf32>
    %183 = arith.cmpf ogt, %181, %182 : vector<8x128xf32>
    %cst_117 = arith.constant 0.00999999977 : f32
    %184 = vector.broadcast %cst_117 : f32 to vector<8x128xf32>
    %185 = arith.mulf %184, %181 : vector<8x128xf32>
    %186 = arith.select %183, %181, %185 : vector<8x128xi1>, vector<8x128xf32>
    %187 = arith.truncf %186 : vector<8x128xf32> to vector<8x128xbf16>
    %c4_118 = arith.constant 4 : index
    %c0_119 = arith.constant 0 : index
    %c0_120 = arith.constant 0 : index
    %188 = vector.load %arg14[%c4_118, %c0_119, %c0_120] : memref<6x128x128xbf16, #tpu.memory_space<vmem>>, vector<1x128x128xbf16>
    %189 = vector.shape_cast %188 : vector<1x128x128xbf16> to vector<128x128xbf16>
    %cst_121 = arith.constant dense<0.000000e+00> : vector<8x128xf32>
    %190 = tpu.matmul %187, %189, %cst_121 {dimension_numbers = #tpu.dot_dimension_numbers<[1], [0], [0], [1], [0, 0, 1, 1], [], []>} : vector<8x128xbf16>, vector<128x128xbf16>, vector<8x128xf32> -> vector<8x128xf32>
    %191 = arith.addf %177, %190 : vector<8x128xf32>
    %c0_122 = arith.constant 0 : index
    %c3840_123 = arith.constant 3840 : index
    %192 = vector.load %arg1[%c0_122, %c3840_123] : memref<8x6144xbf16, #tpu.memory_space<vmem>>, vector<8x1536xbf16>
    %cst_124 = arith.constant dense<0.000000e+00> : vector<8x128xf32>
    %193 = tpu.matmul %192, %118, %cst_124 {dimension_numbers = #tpu.dot_dimension_numbers<[1], [0], [0], [1], [0, 0, 1, 1], [], []>} : vector<8x1536xbf16>, vector<1536x128xbf16>, vector<8x128xf32> -> vector<8x128xf32>
    %194 = vector.broadcast %119 : vector<1x128xf32> to vector<8x128xf32>
    %195 = arith.addf %193, %194 : vector<8x128xf32>
    %cst_125 = arith.constant 0.000000e+00 : f32
    %196 = vector.broadcast %cst_125 : f32 to vector<8x128xf32>
    %197 = arith.cmpf ogt, %195, %196 : vector<8x128xf32>
    %cst_126 = arith.constant 0.00999999977 : f32
    %198 = vector.broadcast %cst_126 : f32 to vector<8x128xf32>
    %199 = arith.mulf %198, %195 : vector<8x128xf32>
    %200 = arith.select %197, %195, %199 : vector<8x128xi1>, vector<8x128xf32>
    %201 = arith.truncf %200 : vector<8x128xf32> to vector<8x128xbf16>
    %c5_127 = arith.constant 5 : index
    %c0_128 = arith.constant 0 : index
    %c0_129 = arith.constant 0 : index
    %202 = vector.load %arg14[%c5_127, %c0_128, %c0_129] : memref<6x128x128xbf16, #tpu.memory_space<vmem>>, vector<1x128x128xbf16>
    %203 = vector.shape_cast %202 : vector<1x128x128xbf16> to vector<128x128xbf16>
    %cst_130 = arith.constant dense<0.000000e+00> : vector<8x128xf32>
    %204 = tpu.matmul %201, %203, %cst_130 {dimension_numbers = #tpu.dot_dimension_numbers<[1], [0], [0], [1], [0, 0, 1, 1], [], []>} : vector<8x128xbf16>, vector<128x128xbf16>, vector<8x128xf32> -> vector<8x128xf32>
    %205 = arith.addf %191, %204 : vector<8x128xf32>
    %206 = vector.broadcast %120 : vector<1x128xf32> to vector<8x128xf32>
    %207 = arith.addf %205, %206 : vector<8x128xf32>
    %cst_131 = arith.constant 0.000000e+00 : f32
    %208 = vector.broadcast %cst_131 : f32 to vector<8x128xf32>
    %209 = arith.cmpf ogt, %207, %208 : vector<8x128xf32>
    %cst_132 = arith.constant 0.00999999977 : f32
    %210 = vector.broadcast %cst_132 : f32 to vector<8x128xf32>
    %211 = arith.mulf %210, %207 : vector<8x128xf32>
    %212 = arith.select %209, %207, %211 : vector<8x128xi1>, vector<8x128xf32>
    %213 = arith.truncf %212 : vector<8x128xf32> to vector<8x128xbf16>
    %c0_133 = arith.constant 0 : index
    %c0_134 = arith.constant 0 : index
    %214 = vector.load %arg16[%c0_133, %c0_134] : memref<128x128xbf16, #tpu.memory_space<vmem>>, vector<128x128xbf16>
    %cst_135 = arith.constant dense<0.000000e+00> : vector<8x128xf32>
    %215 = tpu.matmul %213, %214, %cst_135 {dimension_numbers = #tpu.dot_dimension_numbers<[1], [0], [0], [1], [0, 0, 1, 1], [], []>} : vector<8x128xbf16>, vector<128x128xbf16>, vector<8x128xf32> -> vector<8x128xf32>
    %c0_136 = arith.constant 0 : index
    %c0_137 = arith.constant 0 : index
    %216 = vector.load %arg17[%c0_136, %c0_137] : memref<1x128xf32, #tpu.memory_space<vmem>>, vector<1x128xf32>
    %217 = vector.broadcast %216 : vector<1x128xf32> to vector<8x128xf32>
    %218 = arith.addf %215, %217 : vector<8x128xf32>
    %c0_138 = arith.constant 0 : index
    %c0_139 = arith.constant 0 : index
    %219 = vector.load %arg19[%c0_138, %c0_139] : memref<8x128xf32, #tpu.memory_space<vmem>>, vector<8x128xf32>
    tpu.vector_store %arg19[%c0_138, %c0_139], %218 {strides = array<i32>} : memref<8x128xf32, #tpu.memory_space<vmem>>, vector<8x128xf32>,
    return
  }
  func.func @transform_0(%arg0: i32) -> (i32, i32) {
    %c0_i32 = arith.constant 0 : i32
    %c0_i32_0 = arith.constant 0 : i32
    return %arg0, %c0_i32 : i32, i32
  }
  func.func @transform_1(%arg0: i32) -> (i32, i32) {
    %c0_i32 = arith.constant 0 : i32
    %c0_i32_0 = arith.constant 0 : i32
    %c0_i32_1 = arith.constant 0 : i32
    return %c0_i32, %c0_i32_0 : i32, i32
  }
  func.func @transform_2(%arg0: i32) -> (i32, i32) {
    %c0_i32 = arith.constant 0 : i32
    %c0_i32_0 = arith.constant 0 : i32
    %c0_i32_1 = arith.constant 0 : i32
    return %c0_i32, %c0_i32_0 : i32, i32
  }
  func.func @transform_3(%arg0: i32) -> (i32, i32, i32) {
    %c0_i32 = arith.constant 0 : i32
    %c0_i32_0 = arith.constant 0 : i32
    %c0_i32_1 = arith.constant 0 : i32
    %c0_i32_2 = arith.constant 0 : i32
    return %c0_i32, %c0_i32_0, %c0_i32_1 : i32, i32, i32
  }
  func.func @transform_4(%arg0: i32) -> (i32, i32) {
    %c0_i32 = arith.constant 0 : i32
    %c0_i32_0 = arith.constant 0 : i32
    %c0_i32_1 = arith.constant 0 : i32
    return %c0_i32, %c0_i32_0 : i32, i32
  }
  func.func @transform_5(%arg0: i32) -> (i32, i32) {
    %c0_i32 = arith.constant 0 : i32
    %c0_i32_0 = arith.constant 0 : i32
    %c0_i32_1 = arith.constant 0 : i32
    return %c0_i32, %c0_i32_0 : i32, i32
  }
  func.func @transform_6(%arg0: i32) -> (i32, i32) {
    %c0_i32 = arith.constant 0 : i32
    %c0_i32_0 = arith.constant 0 : i32
    %c0_i32_1 = arith.constant 0 : i32
    return %c0_i32, %c0_i32_0 : i32, i32
  }
  func.func @transform_7(%arg0: i32) -> (i32, i32) {
    %c0_i32 = arith.constant 0 : i32
    %c0_i32_0 = arith.constant 0 : i32
    %c0_i32_1 = arith.constant 0 : i32
    return %c0_i32, %c0_i32_0 : i32, i32
  }
  func.func @transform_8(%arg0: i32) -> (i32, i32) {
    %c0_i32 = arith.constant 0 : i32
    %c0_i32_0 = arith.constant 0 : i32
    %c0_i32_1 = arith.constant 0 : i32
    return %c0_i32, %c0_i32_0 : i32, i32
  }
  func.func @transform_9(%arg0: i32) -> (i32, i32) {
    %c0_i32 = arith.constant 0 : i32
    %c0_i32_0 = arith.constant 0 : i32
    %c0_i32_1 = arith.constant 0 : i32
    return %c0_i32, %c0_i32_0 : i32, i32
  }
  func.func @transform_10(%arg0: i32) -> (i32, i32) {
    %c0_i32 = arith.constant 0 : i32
    %c0_i32_0 = arith.constant 0 : i32
    %c0_i32_1 = arith.constant 0 : i32
    return %c0_i32, %c0_i32_0 : i32, i32
  }
  func.func @transform_11(%arg0: i32) -> (i32, i32) {
    %c0_i32 = arith.constant 0 : i32
    %c0_i32_0 = arith.constant 0 : i32
    %c0_i32_1 = arith.constant 0 : i32
    return %c0_i32, %c0_i32_0 : i32, i32
  }
  func.func @transform_12(%arg0: i32) -> (i32, i32) {
    %c0_i32 = arith.constant 0 : i32
    %c0_i32_0 = arith.constant 0 : i32
    %c0_i32_1 = arith.constant 0 : i32
    return %c0_i32, %c0_i32_0 : i32, i32
  }
  func.func @transform_13(%arg0: i32) -> (i32, i32, i32) {
    %c0_i32 = arith.constant 0 : i32
    %c0_i32_0 = arith.constant 0 : i32
    %c0_i32_1 = arith.constant 0 : i32
    %c0_i32_2 = arith.constant 0 : i32
    return %c0_i32, %c0_i32_0, %c0_i32_1 : i32, i32, i32
  }
  func.func @transform_14(%arg0: i32) -> (i32, i32) {
    %c0_i32 = arith.constant 0 : i32
    %c0_i32_0 = arith.constant 0 : i32
    %c0_i32_1 = arith.constant 0 : i32
    return %c0_i32, %c0_i32_0 : i32, i32
  }
  func.func @transform_15(%arg0: i32) -> (i32, i32) {
    %c0_i32 = arith.constant 0 : i32
    %c0_i32_0 = arith.constant 0 : i32
    %c0_i32_1 = arith.constant 0 : i32
    return %c0_i32, %c0_i32_0 : i32, i32
  }
  func.func @transform_16(%arg0: i32) -> (i32, i32) {
    %c0_i32 = arith.constant 0 : i32
    %c0_i32_0 = arith.constant 0 : i32
    %c0_i32_1 = arith.constant 0 : i32
    return %c0_i32, %c0_i32_0 : i32, i32
  }
  func.func @transform_17(%arg0: i32) -> (i32, i32) {
    %c0_i32 = arith.constant 0 : i32
    %c0_i32_0 = arith.constant 0 : i32
    return %arg0, %c0_i32 : i32, i32
  }
  func.func @transform_18(%arg0: i32) -> (i32, i32) {
    %c0_i32 = arith.constant 0 : i32
    %c0_i32_0 = arith.constant 0 : i32
    return %arg0, %c0_i32 : i32, i32
  }
}

</mosaic_0001>

<llo_original>
// kernel: tpu_custom_call.1
$region0: #{tpu_custom_call.1}
  #allocation0 [shape = 'u32[]', space=smem, size = 0x4, offset = 0x4, fixed_abs, tag = 'smem constant byte address 0x4 - core index']
  #allocation1 [shape = 'u32[144,128]{1,0:T(1,128)}', space=vmem, size = 0x12000, scoped, tag = 'internal scratch']
  %s0 = inlined_call_operand.hbm [shape: bf16[8,6144], index: 0, kind: input, shape index: {}]
  %s1 = inlined_call_operand.hbm [shape: bf16[1536,128], index: 1, kind: input, shape index: {}]
  %s2 = inlined_call_operand.vmem [shape: f32[1,128], index: 2, kind: input, shape index: {}]
  %s3 = inlined_call_operand.hbm [shape: bf16[6,128,128], index: 3, kind: input, shape index: {}]
  %s4 = inlined_call_operand.vmem [shape: f32[1,128], index: 4, kind: input, shape index: {}]
  %s5 = inlined_call_operand.hbm [shape: bf16[128,128], index: 5, kind: input, shape index: {}]
  %s6 = inlined_call_operand.vmem [shape: f32[1,128], index: 6, kind: input, shape index: {}]
  %s7 = inlined_call_operand.hbm [shape: bf16[128,128], index: 7, kind: input, shape index: {}]
  %s8 = inlined_call_operand.vmem [shape: f32[1,128], index: 8, kind: input, shape index: {}]
  %s9 = inlined_call_operand.hbm [shape: bf16[128,128], index: 9, kind: input, shape index: {}]
  %s10 = inlined_call_operand.vmem [shape: f32[1,128], index: 10, kind: input, shape index: {}]
  %s11 = inlined_call_operand.hbm [shape: bf16[1536,128], index: 11, kind: input, shape index: {}]
  %s12 = inlined_call_operand.vmem [shape: f32[1,128], index: 12, kind: input, shape index: {}]
  %s13 = inlined_call_operand.hbm [shape: bf16[6,128,128], index: 13, kind: input, shape index: {}]
  %s14 = inlined_call_operand.vmem [shape: f32[1,128], index: 14, kind: input, shape index: {}]
  %s15 = inlined_call_operand.hbm [shape: bf16[128,128], index: 15, kind: input, shape index: {}]
  %s16 = inlined_call_operand.vmem [shape: f32[1,128], index: 16, kind: input, shape index: {}]
  %s17 = inlined_call_operand.hbm [shape: f32[8,128], index: 17, kind: output, shape index: {0}]
  %s18 = inlined_call_operand.hbm [shape: f32[8,128], index: 18, kind: output, shape index: {1}]
  %19 = xla_tuple %s17, %s18
  %s20 = sld [smem:[#allocation0]]
  $region122: #{tpu_custom_call.1} parent=0
    _
  %s22 = ssub.s32 1, %s20
  %s23 = scalar_select 0, %s22, %s20
  $region1: #{tpu_custom_call.1} parent=0
    #allocation2 [shape = 'u8[98304]{0}', space=vmem, size = 0x18000, scoped, tag = 'input window, operand 0, single buffered']
    #allocation3 [shape = 's32[1]{0}', space=sflag, size = 0x4, scoped, tag = 'scoped memory for tpu_custom_call.1']
    #allocation4 [shape = 's32[1]{0}', space=sflag, size = 0x4, scoped, tag = 'scoped memory for tpu_custom_call.1']
    #allocation5 [shape = 'u8[393216]{0}', space=vmem, size = 0x60000, scoped, tag = 'input window, operand 1, single buffered']
    #allocation6 [shape = 's32[1]{0}', space=sflag, size = 0x4, scoped, tag = 'scoped memory for tpu_custom_call.1']
    #allocation7 [shape = 'u8[196608]{0}', space=vmem, size = 0x30000, scoped, tag = 'input window, operand 3, single buffered']
    #allocation8 [shape = 'u8[32768]{0}', space=vmem, size = 0x8000, scoped, tag = 'input window, operand 5, single buffered']
    #allocation9 [shape = 's32[1]{0}', space=sflag, size = 0x4, scoped, tag = 'scoped memory for tpu_custom_call.1']
    #allocation10 [shape = 'u8[32768]{0}', space=vmem, size = 0x8000, scoped, tag = 'input window, operand 7, single buffered']
    #allocation11 [shape = 'u8[32768]{0}', space=vmem, size = 0x8000, scoped, tag = 'input window, operand 9, single buffered']
    #allocation12 [shape = 's32[1]{0}', space=sflag, size = 0x4, scoped, tag = 'scoped memory for tpu_custom_call.1']
    #allocation13 [shape = 'u8[393216]{0}', space=vmem, size = 0x60000, scoped, tag = 'input window, operand 11, single buffered']
    #allocation14 [shape = 'u8[196608]{0}', space=vmem, size = 0x30000, scoped, tag = 'input window, operand 13, single buffered']
    #allocation15 [shape = 's32[1]{0}', space=sflag, size = 0x4, scoped, tag = 'scoped memory for tpu_custom_call.1']
    #allocation16 [shape = 'u8[32768]{0}', space=vmem, size = 0x8000, scoped, tag = 'input window, operand 15, single buffered']
    #allocation17 [shape = 'u8[4096]{0}', space=vmem, size = 0x1000, scoped, tag = 'output window, operand 0, single buffered']
    #allocation18 [shape = 'u8[4096]{0}', space=vmem, size = 0x1000, scoped, tag = 'output window, operand 1, single buffered']
    #allocation19 [shape = 's32[1]{0}', space=sflag, size = 0x4, scoped, tag = 'scoped memory for tpu_custom_call.1']
    %24 = vsyncpa [#allocation3], 0
    %25 = vsyncpa [#allocation6], 0
    %26 = vsyncpa [#allocation9], 0
    %27 = vsyncpa [#allocation12], 0
    %28 = vsyncpa [#allocation15], 0
    %29 = vsyncpa [#allocation4], 0
    %30 = vsyncpa [#allocation19], 0
    // Predicated region
    $region2: #{tpu_custom_call.1} parent=1 // pred_check
      _
    $region3: #{tpu_custom_call.1} parent=1 // pred_check_branch
      %32 = sbr.rel (0) target = $region5
    $region4: #{tpu_custom_call.1} parent=1 // pred_region
      %s34 = ssub.s32 3072, 3072
      %35 = vsyncadd [#allocation3], %s34
      %s37 = sshll.u32 [#allocation2], 4
      %s38 = int_to_ptr.vmem [resolvable:$true] %s37
      %40 = dma.hbm_to_vmem [thread:$0]  %s0, 3072, %s38, [#allocation3]
    $region5: #{tpu_custom_call.1} parent=1 // pred_fallthru
      _
    // Predicated region
    $region6: #{tpu_custom_call.1} parent=1 // pred_check
      _
    $region7: #{tpu_custom_call.1} parent=1 // pred_check_branch
      %42 = sbr.rel (0) target = $region9
    $region8: #{tpu_custom_call.1} parent=1 // pred_region
      %s44 = ssub.s32 12288, 12288
      %45 = vsyncadd [#allocation6], %s44
      %s46 = sshll.u32 [#allocation5], 4
      %s47 = int_to_ptr.vmem [resolvable:$true] %s46
      %52 = dma.hbm_to_vmem [thread:$0]  %s1, 12288, %s47, [#allocation6], 64, 64, 4
    $region9: #{tpu_custom_call.1} parent=1 // pred_fallthru
      _
    // Predicated region
    $region10: #{tpu_custom_call.1} parent=1 // pred_check
      _
    $region11: #{tpu_custom_call.1} parent=1 // pred_check_branch
      %54 = sbr.rel (0) target = $region13
    $region12: #{tpu_custom_call.1} parent=1 // pred_region
      _
    $region13: #{tpu_custom_call.1} parent=1 // pred_fallthru
      _
    // Predicated region
    $region14: #{tpu_custom_call.1} parent=1 // pred_check
      _
    $region15: #{tpu_custom_call.1} parent=1 // pred_check_branch
      %56 = sbr.rel (0) target = $region17
    $region16: #{tpu_custom_call.1} parent=1 // pred_region
      %s58 = ssub.s32 6144, 6144
      %59 = vsyncadd [#allocation6], %s58
      %s60 = sshll.u32 [#allocation7], 4
      %s61 = int_to_ptr.vmem [resolvable:$true] %s60
      %66 = dma.hbm_to_vmem [thread:$0]  %s3, 6144, %s61, [#allocation6], 64, 64, 4
    $region17: #{tpu_custom_call.1} parent=1 // pred_fallthru
      _
    // Predicated region
    $region18: #{tpu_custom_call.1} parent=1 // pred_check
      _
    $region19: #{tpu_custom_call.1} parent=1 // pred_check_branch
      %68 = sbr.rel (0) target = $region21
    $region20: #{tpu_custom_call.1} parent=1 // pred_region
      _
    $region21: #{tpu_custom_call.1} parent=1 // pred_fallthru
      _
    // Predicated region
    $region22: #{tpu_custom_call.1} parent=1 // pred_check
      _
    $region23: #{tpu_custom_call.1} parent=1 // pred_check_branch
      %70 = sbr.rel (0) target = $region25
    $region24: #{tpu_custom_call.1} parent=1 // pred_region
      %s72 = ssub.s32 1024, 1024
      %73 = vsyncadd [#allocation9], %s72
      %s74 = sshll.u32 [#allocation8], 4
      %s75 = int_to_ptr.vmem [resolvable:$true] %s74
      %80 = dma.hbm_to_vmem [thread:$0]  %s5, 1024, %s75, [#allocation9], 64, 64, 4
    $region25: #{tpu_custom_call.1} parent=1 // pred_fallthru
      _
    // Predicated region
    $region26: #{tpu_custom_call.1} parent=1 // pred_check
      _
    $region27: #{tpu_custom_call.1} parent=1 // pred_check_branch
      %82 = sbr.rel (0) target = $region29
    $region28: #{tpu_custom_call.1} parent=1 // pred_region
      _
    $region29: #{tpu_custom_call.1} parent=1 // pred_fallthru
      _
    // Predicated region
    $region30: #{tpu_custom_call.1} parent=1 // pred_check
      _
    $region31: #{tpu_custom_call.1} parent=1 // pred_check_branch
      %84 = sbr.rel (0) target = $region33
    $region32: #{tpu_custom_call.1} parent=1 // pred_region
      %s86 = ssub.s32 1024, 1024
      %87 = vsyncadd [#allocation9], %s86
      %s88 = sshll.u32 [#allocation10], 4
      %s89 = int_to_ptr.vmem [resolvable:$true] %s88
      %94 = dma.hbm_to_vmem [thread:$0]  %s7, 1024, %s89, [#allocation9], 64, 64, 4
    $region33: #{tpu_custom_call.1} parent=1 // pred_fallthru
      _
    // Predicated region
    $region34: #{tpu_custom_call.1} parent=1 // pred_check
      _
    $region35: #{tpu_custom_call.1} parent=1 // pred_check_branch
      %96 = sbr.rel (0) target = $region37
    $region36: #{tpu_custom_call.1} parent=1 // pred_region
      _
    $region37: #{tpu_custom_call.1} parent=1 // pred_fallthru
      _
    // Predicated region
    $region38: #{tpu_custom_call.1} parent=1 // pred_check
      _
    $region39: #{tpu_custom_call.1} parent=1 // pred_check_branch
      %98 = sbr.rel (0) target = $region41
    $region40: #{tpu_custom_call.1} parent=1 // pred_region
      %s100 = ssub.s32 1024, 1024
      %101 = vsyncadd [#allocation12], %s100
      %s102 = sshll.u32 [#allocation11], 4
      %s103 = int_to_ptr.vmem [resolvable:$true] %s102
      %108 = dma.hbm_to_vmem [thread:$0]  %s9, 1024, %s103, [#allocation12], 64, 64, 4
    $region41: #{tpu_custom_call.1} parent=1 // pred_fallthru
      _
    // Predicated region
    $region42: #{tpu_custom_call.1} parent=1 // pred_check
      _
    $region43: #{tpu_custom_call.1} parent=1 // pred_check_branch
      %110 = sbr.rel (0) target = $region45
    $region44: #{tpu_custom_call.1} parent=1 // pred_region
      _
    $region45: #{tpu_custom_call.1} parent=1 // pred_fallthru
      _
    // Predicated region
    $region46: #{tpu_custom_call.1} parent=1 // pred_check
      _
    $region47: #{tpu_custom_call.1} parent=1 // pred_check_branch
      %112 = sbr.rel (0) target = $region49
    $region48: #{tpu_custom_call.1} parent=1 // pred_region
      %s114 = ssub.s32 12288, 12288
      %115 = vsyncadd [#allocation12], %s114
      %s116 = sshll.u32 [#allocation13], 4
      %s117 = int_to_ptr.vmem [resolvable:$true] %s116
      %122 = dma.hbm_to_vmem [thread:$0]  %s11, 12288, %s117, [#allocation12], 64, 64, 4
    $region49: #{tpu_custom_call.1} parent=1 // pred_fallthru
      _
    // Predicated region
    $region50: #{tpu_custom_call.1} parent=1 // pred_check
      _
    $region51: #{tpu_custom_call.1} parent=1 // pred_check_branch
      %124 = sbr.rel (0) target = $region53
    $region52: #{tpu_custom_call.1} parent=1 // pred_region
      _
    $region53: #{tpu_custom_call.1} parent=1 // pred_fallthru
      _
    // Predicated region
    $region54: #{tpu_custom_call.1} parent=1 // pred_check
      _
    $region55: #{tpu_custom_call.1} parent=1 // pred_check_branch
      %126 = sbr.rel (0) target = $region57
    $region56: #{tpu_custom_call.1} parent=1 // pred_region
      %s128 = ssub.s32 6144, 6144
      %129 = vsyncadd [#allocation15], %s128
      %s130 = sshll.u32 [#allocation14], 4
      %s131 = int_to_ptr.vmem [resolvable:$true] %s130
      %136 = dma.hbm_to_vmem [thread:$0]  %s13, 6144, %s131, [#allocation15], 64, 64, 4
    $region57: #{tpu_custom_call.1} parent=1 // pred_fallthru
      _
    // Predicated region
    $region58: #{tpu_custom_call.1} parent=1 // pred_check
      _
    $region59: #{tpu_custom_call.1} parent=1 // pred_check_branch
      %138 = sbr.rel (0) target = $region61
    $region60: #{tpu_custom_call.1} parent=1 // pred_region
      _
    $region61: #{tpu_custom_call.1} parent=1 // pred_fallthru
      _
    // Predicated region
    $region62: #{tpu_custom_call.1} parent=1 // pred_check
      _
    $region63: #{tpu_custom_call.1} parent=1 // pred_check_branch
      %140 = sbr.rel (0) target = $region65
    $region64: #{tpu_custom_call.1} parent=1 // pred_region
      %s142 = ssub.s32 1024, 1024
      %143 = vsyncadd [#allocation15], %s142
      %s144 = sshll.u32 [#allocation16], 4
      %s145 = int_to_ptr.vmem [resolvable:$true] %s144
      %150 = dma.hbm_to_vmem [thread:$0]  %s15, 1024, %s145, [#allocation15], 64, 64, 4
    $region65: #{tpu_custom_call.1} parent=1 // pred_fallthru
      _
    // Predicated region
    $region66: #{tpu_custom_call.1} parent=1 // pred_check
      _
    $region67: #{tpu_custom_call.1} parent=1 // pred_check_branch
      %152 = sbr.rel (0) target = $region69
    $region68: #{tpu_custom_call.1} parent=1 // pred_region
      _
    $region69: #{tpu_custom_call.1} parent=1 // pred_fallthru
      _
    // Predicated region
    $region70: #{tpu_custom_call.1} parent=1 // pred_check
      _
    $region71: #{tpu_custom_call.1} parent=1 // pred_check_branch
      %154 = sbr.rel (0) target = $region73
    $region72: #{tpu_custom_call.1} parent=1 // pred_region
      %155 = dma.done [#allocation3], 3072
    $region73: #{tpu_custom_call.1} parent=1 // pred_fallthru
      _
    // Predicated region
    $region74: #{tpu_custom_call.1} parent=1 // pred_check
      _
    $region75: #{tpu_custom_call.1} parent=1 // pred_check_branch
      %157 = sbr.rel (0) target = $region77
    $region76: #{tpu_custom_call.1} parent=1 // pred_region
      %158 = dma.done [#allocation6], 12288
    $region77: #{tpu_custom_call.1} parent=1 // pred_fallthru
      _
    // Predicated region
    $region78: #{tpu_custom_call.1} parent=1 // pred_check
      _
    $region79: #{tpu_custom_call.1} parent=1 // pred_check_branch
      %160 = sbr.rel (0) target = $region81
    $region80: #{tpu_custom_call.1} parent=1 // pred_region
      %161 = dma.done [#allocation6], 6144
    $region81: #{tpu_custom_call.1} parent=1 // pred_fallthru
      _
    // Predicated region
    $region82: #{tpu_custom_call.1} parent=1 // pred_check
      _
    $region83: #{tpu_custom_call.1} parent=1 // pred_check_branch
      %163 = sbr.rel (0) target = $region85
    $region84: #{tpu_custom_call.1} parent=1 // pred_region
      %164 = dma.done [#allocation9], 1024
    $region85: #{tpu_custom_call.1} parent=1 // pred_fallthru
      _
    // Predicated region
    $region86: #{tpu_custom_call.1} parent=1 // pred_check
      _
    $region87: #{tpu_custom_call.1} parent=1 // pred_check_branch
      %166 = sbr.rel (0) target = $region89
    $region88: #{tpu_custom_call.1} parent=1 // pred_region
      %167 = dma.done [#allocation9], 1024
    $region89: #{tpu_custom_call.1} parent=1 // pred_fallthru
      _
    // Predicated region
    $region90: #{tpu_custom_call.1} parent=1 // pred_check
      _
    $region91: #{tpu_custom_call.1} parent=1 // pred_check_branch
      %169 = sbr.rel (0) target = $region93
    $region92: #{tpu_custom_call.1} parent=1 // pred_region
      %170 = dma.done [#allocation12], 1024
    $region93: #{tpu_custom_call.1} parent=1 // pred_fallthru
      _
    // Predicated region
    $region94: #{tpu_custom_call.1} parent=1 // pred_check
      _
    $region95: #{tpu_custom_call.1} parent=1 // pred_check_branch
      %172 = sbr.rel (0) target = $region97
    $region96: #{tpu_custom_call.1} parent=1 // pred_region
      %173 = dma.done [#allocation12], 12288
    $region97: #{tpu_custom_call.1} parent=1 // pred_fallthru
      _
    // Predicated region
    $region98: #{tpu_custom_call.1} parent=1 // pred_check
      _
    $region99: #{tpu_custom_call.1} parent=1 // pred_check_branch
      %175 = sbr.rel (0) target = $region101
    $region100: #{tpu_custom_call.1} parent=1 // pred_region
      %176 = dma.done [#allocation15], 6144
    $region101: #{tpu_custom_call.1} parent=1 // pred_fallthru
      _
    // Predicated region
    $region102: #{tpu_custom_call.1} parent=1 // pred_check
      _
    $region103: #{tpu_custom_call.1} parent=1 // pred_check_branch
      %178 = sbr.rel (0) target = $region105
    $region104: #{tpu_custom_call.1} parent=1 // pred_region
      %179 = dma.done [#allocation15], 1024
    $region105: #{tpu_custom_call.1} parent=1 // pred_fallthru
      _
    %v181 = vld [vmem:[#allocation5] sm:$0xf]
    %v182 = vld [vmem:[#allocation5 + $0x4] sm:$0xf]
    %v183 = vld [vmem:[#allocation5 + $0x8] sm:$0xf]
    %v184 = vld [vmem:[#allocation5 + $0xc] sm:$0xf]
    %v185 = vld [vmem:[#allocation5 + $0x10] sm:$0xf]
    %v186 = vld [vmem:[#allocation5 + $0x14] sm:$0xf]
    %v187 = vld [vmem:[#allocation5 + $0x18] sm:$0xf]
    %v188 = vld [vmem:[#allocation5 + $0x1c] sm:$0xf]
    %v189 = vld [vmem:[#allocation5 + $0x20] sm:$0xf]
    %v190 = vld [vmem:[#allocation5 + $0x24] sm:$0xf]
    %v191 = vld [vmem:[#allocation5 + $0x28] sm:$0xf]
    %v192 = vld [vmem:[#allocation5 + $0x2c] sm:$0xf]
    %v193 = vld [vmem:[#allocation5 + $0x30] sm:$0xf]
    %v194 = vld [vmem:[#allocation5 + $0x34] sm:$0xf]
    %v195 = vld [vmem:[#allocation5 + $0x38] sm:$0xf]
    %v196 = vld [vmem:[#allocation5 + $0x3c] sm:$0xf]
    %v197 = vld [vmem:[#allocation5 + $0x40] sm:$0xf]
    %v198 = vld [vmem:[#allocation5 + $0x44] sm:$0xf]
    %v199 = vld [vmem:[#allocation5 + $0x48] sm:$0xf]
    %v200 = vld [vmem:[#allocation5 + $0x4c] sm:$0xf]
    %v201 = vld [vmem:[#allocation5 + $0x50] sm:$0xf]
    %v202 = vld [vmem:[#allocation5 + $0x54] sm:$0xf]
    %v203 = vld [vmem:[#allocation5 + $0x58] sm:$0xf]
    %v204 = vld [vmem:[#allocation5 + $0x5c] sm:$0xf]
    %v205 = vld [vmem:[#allocation5 + $0x60] sm:$0xf]
    %v206 = vld [vmem:[#allocation5 + $0x64] sm:$0xf]
    %v207 = vld [vmem:[#allocation5 + $0x68] sm:$0xf]
    %v208 = vld [vmem:[#allocation5 + $0x6c] sm:$0xf]
    %v209 = vld [vmem:[#allocation5 + $0x70] sm:$0xf]
    %v210 = vld [vmem:[#allocation5 + $0x74] sm:$0xf]
    %v211 = vld [vmem:[#allocation5 + $0x78] sm:$0xf]
    %v212 = vld [vmem:[#allocation5 + $0x7c] sm:$0xf]
    %v213 = vld [vmem:[#allocation5 + $0x80] sm:$0xf]
    %v214 = vld [vmem:[#allocation5 + $0x84] sm:$0xf]
    %v215 = vld [vmem:[#allocation5 + $0x88] sm:$0xf]
    %v216 = vld [vmem:[#allocation5 + $0x8c] sm:$0xf]
    %v217 = vld [vmem:[#allocation5 + $0x90] sm:$0xf]
    %v218 = vld [vmem:[#allocation5 + $0x94] sm:$0xf]
    %v219 = vld [vmem:[#allocation5 + $0x98] sm:$0xf]
    %v220 = vld [vmem:[#allocation5 + $0x9c] sm:$0xf]
    %v221 = vld [vmem:[#allocation5 + $0xa0] sm:$0xf]
    %v222 = vld [vmem:[#allocation5 + $0xa4] sm:$0xf]
    %v223 = vld [vmem:[#allocation5 + $0xa8] sm:$0xf]
    %v224 = vld [vmem:[#allocation5 + $0xac] sm:$0xf]
    %v225 = vld [vmem:[#allocation5 + $0xb0] sm:$0xf]
    %v226 = vld [vmem:[#allocation5 + $0xb4] sm:$0xf]
    %v227 = vld [vmem:[#allocation5 + $0xb8] sm:$0xf]
    %v228 = vld [vmem:[#allocation5 + $0xbc] sm:$0xf]
    %v229 = vld [vmem:[#allocation5 + $0xc0] sm:$0xf]
    %v230 = vld [vmem:[#allocation5 + $0xc4] sm:$0xf]
    %v231 = vld [vmem:[#allocation5 + $0xc8] sm:$0xf]
    %v232 = vld [vmem:[#allocation5 + $0xcc] sm:$0xf]
    %v233 = vld [vmem:[#allocation5 + $0xd0] sm:$0xf]
    %v234 = vld [vmem:[#allocation5 + $0xd4] sm:$0xf]
    %v235 = vld [vmem:[#allocation5 + $0xd8] sm:$0xf]
    %v236 = vld [vmem:[#allocation5 + $0xdc] sm:$0xf]
    %v237 = vld [vmem:[#allocation5 + $0xe0] sm:$0xf]
    %v238 = vld [vmem:[#allocation5 + $0xe4] sm:$0xf]
    %v239 = vld [vmem:[#allocation5 + $0xe8] sm:$0xf]
    %v240 = vld [vmem:[#allocation5 + $0xec] sm:$0xf]
    %v241 = vld [vmem:[#allocation5 + $0xf0] sm:$0xf]
    %v242 = vld [vmem:[#allocation5 + $0xf4] sm:$0xf]
    %v243 = vld [vmem:[#allocation5 + $0xf8] sm:$0xf]
    %v244 = vld [vmem:[#allocation5 + $0xfc] sm:$0xf]
    %v245 = vld [vmem:[#allocation5 + $0x100] sm:$0xf]
    %v246 = vld [vmem:[#allocation5 + $0x104] sm:$0xf]
    %v247 = vld [vmem:[#allocation5 + $0x108] sm:$0xf]
    %v248 = vld [vmem:[#allocation5 + $0x10c] sm:$0xf]
    %v249 = vld [vmem:[#allocation5 + $0x110] sm:$0xf]
    %v250 = vld [vmem:[#allocation5 + $0x114] sm:$0xf]
    %v251 = vld [vmem:[#allocation5 + $0x118] sm:$0xf]
    %v252 = vld [vmem:[#allocation5 + $0x11c] sm:$0xf]
    %v253 = vld [vmem:[#allocation5 + $0x120] sm:$0xf]
    %v254 = vld [vmem:[#allocation5 + $0x124] sm:$0xf]
    %v255 = vld [vmem:[#allocation5 + $0x128] sm:$0xf]
    %v256 = vld [vmem:[#allocation5 + $0x12c] sm:$0xf]
    %v257 = vld [vmem:[#allocation5 + $0x130] sm:$0xf]
    %v258 = vld [vmem:[#allocation5 + $0x134] sm:$0xf]
    %v259 = vld [vmem:[#allocation5 + $0x138] sm:$0xf]
    %v260 = vld [vmem:[#allocation5 + $0x13c] sm:$0xf]
    %v261 = vld [vmem:[#allocation5 + $0x140] sm:$0xf]
    %v262 = vld [vmem:[#allocation5 + $0x144] sm:$0xf]
    %v263 = vld [vmem:[#allocation5 + $0x148] sm:$0xf]
    %v264 = vld [vmem:[#allocation5 + $0x14c] sm:$0xf]
    %v265 = vld [vmem:[#allocation5 + $0x150] sm:$0xf]
    %v266 = vld [vmem:[#allocation5 + $0x154] sm:$0xf]
    %v267 = vld [vmem:[#allocation5 + $0x158] sm:$0xf]
    %v268 = vld [vmem:[#allocation5 + $0x15c] sm:$0xf]
    %v269 = vld [vmem:[#allocation5 + $0x160] sm:$0xf]
    %v270 = vld [vmem:[#allocation5 + $0x164] sm:$0xf]
    %v271 = vld [vmem:[#allocation5 + $0x168] sm:$0xf]
    %v272 = vld [vmem:[#allocation5 + $0x16c] sm:$0xf]
    %v273 = vld [vmem:[#allocation5 + $0x170] sm:$0xf]
    %v274 = vld [vmem:[#allocation5 + $0x174] sm:$0xf]
    %v275 = vld [vmem:[#allocation5 + $0x178] sm:$0xf]
    %v276 = vld [vmem:[#allocation5 + $0x17c] sm:$0xf]
    %v277 = vld [vmem:[#allocation5 + $0x180] sm:$0xf]
    %v278 = vld [vmem:[#allocation5 + $0x184] sm:$0xf]
    %v279 = vld [vmem:[#allocation5 + $0x188] sm:$0xf]
    %v280 = vld [vmem:[#allocation5 + $0x18c] sm:$0xf]
    %v281 = vld [vmem:[#allocation5 + $0x190] sm:$0xf]
    %v282 = vld [vmem:[#allocation5 + $0x194] sm:$0xf]
    %v283 = vld [vmem:[#allocation5 + $0x198] sm:$0xf]
    %v284 = vld [vmem:[#allocation5 + $0x19c] sm:$0xf]
    %v285 = vld [vmem:[#allocation5 + $0x1a0] sm:$0xf]
    %v286 = vld [vmem:[#allocation5 + $0x1a4] sm:$0xf]
    %v287 = vld [vmem:[#allocation5 + $0x1a8] sm:$0xf]
    %v288 = vld [vmem:[#allocation5 + $0x1ac] sm:$0xf]
    %v289 = vld [vmem:[#allocation5 + $0x1b0] sm:$0xf]
    %v290 = vld [vmem:[#allocation5 + $0x1b4] sm:$0xf]
    %v291 = vld [vmem:[#allocation5 + $0x1b8] sm:$0xf]
    %v292 = vld [vmem:[#allocation5 + $0x1bc] sm:$0xf]
    %v293 = vld [vmem:[#allocation5 + $0x1c0] sm:$0xf]
    %v294 = vld [vmem:[#allocation5 + $0x1c4] sm:$0xf]
    %v295 = vld [vmem:[#allocation5 + $0x1c8] sm:$0xf]
    %v296 = vld [vmem:[#allocation5 + $0x1cc] sm:$0xf]
    %v297 = vld [vmem:[#allocation5 + $0x1d0] sm:$0xf]
    %v298 = vld [vmem:[#allocation5 + $0x1d4] sm:$0xf]
    %v299 = vld [vmem:[#allocation5 + $0x1d8] sm:$0xf]
    %v300 = vld [vmem:[#allocation5 + $0x1dc] sm:$0xf]
    %v301 = vld [vmem:[#allocation5 + $0x1e0] sm:$0xf]
    %v302 = vld [vmem:[#allocation5 + $0x1e4] sm:$0xf]
    %v303 = vld [vmem:[#allocation5 + $0x1e8] sm:$0xf]
    %v304 = vld [vmem:[#allocation5 + $0x1ec] sm:$0xf]
    %v305 = vld [vmem:[#allocation5 + $0x1f0] sm:$0xf]
    %v306 = vld [vmem:[#allocation5 + $0x1f4] sm:$0xf]
    %v307 = vld [vmem:[#allocation5 + $0x1f8] sm:$0xf]
    %v308 = vld [vmem:[#allocation5 + $0x1fc] sm:$0xf]
    %v309 = vld [vmem:[#allocation5 + $0x200] sm:$0xf]
    %v310 = vld [vmem:[#allocation5 + $0x204] sm:$0xf]
    %v311 = vld [vmem:[#allocation5 + $0x208] sm:$0xf]
    %v312 = vld [vmem:[#allocation5 + $0x20c] sm:$0xf]
    %v313 = vld [vmem:[#allocation5 + $0x210] sm:$0xf]
    %v314 = vld [vmem:[#allocation5 + $0x214] sm:$0xf]
    %v315 = vld [vmem:[#allocation5 + $0x218] sm:$0xf]
    %v316 = vld [vmem:[#allocation5 + $0x21c] sm:$0xf]
    %v317 = vld [vmem:[#allocation5 + $0x220] sm:$0xf]
    %v318 = vld [vmem:[#allocation5 + $0x224] sm:$0xf]
    %v319 = vld [vmem:[#allocation5 + $0x228] sm:$0xf]
    %v320 = vld [vmem:[#allocation5 + $0x22c] sm:$0xf]
    %v321 = vld [vmem:[#allocation5 + $0x230] sm:$0xf]
    %v322 = vld [vmem:[#allocation5 + $0x234] sm:$0xf]
    %v323 = vld [vmem:[#allocation5 + $0x238] sm:$0xf]
    %v324 = vld [vmem:[#allocation5 + $0x23c] sm:$0xf]
    %v325 = vld [vmem:[#allocation5 + $0x240] sm:$0xf]
    %v326 = vld [vmem:[#allocation5 + $0x244] sm:$0xf]
    %v327 = vld [vmem:[#allocation5 + $0x248] sm:$0xf]
    %v328 = vld [vmem:[#allocation5 + $0x24c] sm:$0xf]
    %v329 = vld [vmem:[#allocation5 + $0x250] sm:$0xf]
    %v330 = vld [vmem:[#allocation5 + $0x254] sm:$0xf]
    %v331 = vld [vmem:[#allocation5 + $0x258] sm:$0xf]
    %v332 = vld [vmem:[#allocation5 + $0x25c] sm:$0xf]
    %v333 = vld [vmem:[#allocation5 + $0x260] sm:$0xf]
    %v334 = vld [vmem:[#allocation5 + $0x264] sm:$0xf]
    %v335 = vld [vmem:[#allocation5 + $0x268] sm:$0xf]
    %v336 = vld [vmem:[#allocation5 + $0x26c] sm:$0xf]
    %v337 = vld [vmem:[#allocation5 + $0x270] sm:$0xf]
    %v338 = vld [vmem:[#allocation5 + $0x274] sm:$0xf]
    %v339 = vld [vmem:[#allocation5 + $0x278] sm:$0xf]
    %v340 = vld [vmem:[#allocation5 + $0x27c] sm:$0xf]
    %v341 = vld [vmem:[#allocation5 + $0x280] sm:$0xf]
    %v342 = vld [vmem:[#allocation5 + $0x284] sm:$0xf]
    %v343 = vld [vmem:[#allocation5 + $0x288] sm:$0xf]
    %v344 = vld [vmem:[#allocation5 + $0x28c] sm:$0xf]
    %v345 = vld [vmem:[#allocation5 + $0x290] sm:$0xf]
    %v346 = vld [vmem:[#allocation5 + $0x294] sm:$0xf]
    %v347 = vld [vmem:[#allocation5 + $0x298] sm:$0xf]
    %v348 = vld [vmem:[#allocation5 + $0x29c] sm:$0xf]
    %v349 = vld [vmem:[#allocation5 + $0x2a0] sm:$0xf]
    %v350 = vld [vmem:[#allocation5 + $0x2a4] sm:$0xf]
    %v351 = vld [vmem:[#allocation5 + $0x2a8] sm:$0xf]
    %v352 = vld [vmem:[#allocation5 + $0x2ac] sm:$0xf]
    %v353 = vld [vmem:[#allocation5 + $0x2b0] sm:$0xf]
    %v354 = vld [vmem:[#allocation5 + $0x2b4] sm:$0xf]
    %v355 = vld [vmem:[#allocation5 + $0x2b8] sm:$0xf]
    %v356 = vld [vmem:[#allocation5 + $0x2bc] sm:$0xf]
    %v357 = vld [vmem:[#allocation5 + $0x2c0] sm:$0xf]
    %v358 = vld [vmem:[#allocation5 + $0x2c4] sm:$0xf]
    %v359 = vld [vmem:[#allocation5 + $0x2c8] sm:$0xf]
    %v360 = vld [vmem:[#allocation5 + $0x2cc] sm:$0xf]
    %v361 = vld [vmem:[#allocation5 + $0x2d0] sm:$0xf]
    %v362 = vld [vmem:[#allocation5 + $0x2d4] sm:$0xf]
    %v363 = vld [vmem:[#allocation5 + $0x2d8] sm:$0xf]
    %v364 = vld [vmem:[#allocation5 + $0x2dc] sm:$0xf]
    %v365 = vld [vmem:[#allocation5 + $0x2e0] sm:$0xf]
    %v366 = vld [vmem:[#allocation5 + $0x2e4] sm:$0xf]
    %v367 = vld [vmem:[#allocation5 + $0x2e8] sm:$0xf]
    %v368 = vld [vmem:[#allocation5 + $0x2ec] sm:$0xf]
    %v369 = vld [vmem:[#allocation5 + $0x2f0] sm:$0xf]
    %v370 = vld [vmem:[#allocation5 + $0x2f4] sm:$0xf]
    %v371 = vld [vmem:[#allocation5 + $0x2f8] sm:$0xf]
    %v372 = vld [vmem:[#allocation5 + $0x2fc] sm:$0xf]
    %v373 = vld [vmem:[%s2] sm:$0x1]
    %v374 = vld [vmem:[%s4] sm:$0x1]
    %v375 = vld [vmem:[#allocation2] sm:$0xff]
    %v376 = vld [vmem:[#allocation2 + $0x8] sm:$0xff]
    %v377 = vld [vmem:[#allocation2 + $0x10] sm:$0xff]
    %v378 = vld [vmem:[#allocation2 + $0x18] sm:$0xff]
    %v379 = vld [vmem:[#allocation2 + $0x20] sm:$0xff]
    %v380 = vld [vmem:[#allocation2 + $0x28] sm:$0xff]
    %v382 = vlaneseq
    %v383 = vshrl.u32 %v382, 7
    %v384 = vsub.s32 0, %v383
    %v385 = vrot.slane %v373, %v384
    %v393 = vunpack.c.l.b16 %v375
    %v394 = vunpack.c.h.b16 %v375
    %v395 = vunpack.c.l.b16 %v376
    %v396 = vunpack.c.h.b16 %v376
    %v397 = vunpack.c.l.b16 %v377
    %v398 = vunpack.c.h.b16 %v377
    %v399 = vunpack.c.l.b16 %v378
    %v400 = vunpack.c.h.b16 %v378
    %v401 = vunpack.c.l.b16 %v379
    %v402 = vunpack.c.h.b16 %v379
    %v403 = vunpack.c.l.b16 %v380
    %v404 = vunpack.c.h.b16 %v380
    %v405 = vpack.c.b16 %v393, %v393
    %v406 = vpack.c.b16 %v394, %v394
    %v407 = vpack.c.b16 %v395, %v395
    %v408 = vpack.c.b16 %v396, %v396
    %v409 = vpack.c.b16 %v397, %v397
    %v410 = vpack.c.b16 %v398, %v398
    %v411 = vpack.c.b16 %v399, %v399
    %v412 = vpack.c.b16 %v400, %v400
    %v413 = vpack.c.b16 %v401, %v401
    %v414 = vpack.c.b16 %v402, %v402
    %v415 = vpack.c.b16 %v403, %v403
    %v416 = vpack.c.b16 %v404, %v404
    %v621 = vunpack.c.l.b16 %v181
    %v622 = vunpack.c.l.b16 %v182
    %v623 = vunpack.c.l.b16 %v183
    %v624 = vunpack.c.l.b16 %v184
    %v625 = vunpack.c.l.b16 %v185
    %v626 = vunpack.c.l.b16 %v186
    %v627 = vunpack.c.l.b16 %v187
    %v628 = vunpack.c.l.b16 %v188
    %v629 = vunpack.c.l.b16 %v189
    %v630 = vunpack.c.l.b16 %v190
    %v631 = vunpack.c.l.b16 %v191
    %v632 = vunpack.c.l.b16 %v192
    %v633 = vunpack.c.l.b16 %v193
    %v634 = vunpack.c.l.b16 %v194
    %v635 = vunpack.c.l.b16 %v195
    %v636 = vunpack.c.l.b16 %v196
    %v637 = vunpack.c.l.b16 %v197
    %v638 = vunpack.c.l.b16 %v198
    %v639 = vunpack.c.l.b16 %v199
    %v640 = vunpack.c.l.b16 %v200
    %v641 = vunpack.c.l.b16 %v201
    %v642 = vunpack.c.l.b16 %v202
    %v643 = vunpack.c.l.b16 %v203
    %v644 = vunpack.c.l.b16 %v204
    %v645 = vunpack.c.l.b16 %v205
    %v646 = vunpack.c.l.b16 %v206
    %v647 = vunpack.c.l.b16 %v207
    %v648 = vunpack.c.l.b16 %v208
    %v649 = vunpack.c.l.b16 %v209
    %v650 = vunpack.c.l.b16 %v210
    %v651 = vunpack.c.l.b16 %v211
    %v652 = vunpack.c.l.b16 %v212
    %v653 = vunpack.c.l.b16 %v213
    %v654 = vunpack.c.l.b16 %v214
    %v655 = vunpack.c.l.b16 %v215
    %v656 = vunpack.c.l.b16 %v216
    %v657 = vunpack.c.l.b16 %v217
    %v658 = vunpack.c.l.b16 %v218
    %v659 = vunpack.c.l.b16 %v219
    %v660 = vunpack.c.l.b16 %v220
    %v661 = vunpack.c.l.b16 %v221
    %v662 = vunpack.c.l.b16 %v222
    %v663 = vunpack.c.l.b16 %v223
    %v664 = vunpack.c.l.b16 %v224
    %v665 = vunpack.c.l.b16 %v225
    %v666 = vunpack.c.l.b16 %v226
    %v667 = vunpack.c.l.b16 %v227
    %v668 = vunpack.c.l.b16 %v228
    %v669 = vunpack.c.l.b16 %v229
    %v670 = vunpack.c.l.b16 %v230
    %v671 = vunpack.c.l.b16 %v231
    %v672 = vunpack.c.l.b16 %v232
    %v673 = vunpack.c.l.b16 %v233
    %v674 = vunpack.c.l.b16 %v234
    %v675 = vunpack.c.l.b16 %v235
    %v676 = vunpack.c.l.b16 %v236
    %v677 = vunpack.c.l.b16 %v237
    %v678 = vunpack.c.l.b16 %v238
    %v679 = vunpack.c.l.b16 %v239
    %v680 = vunpack.c.l.b16 %v240
    %v681 = vunpack.c.l.b16 %v241
    %v682 = vunpack.c.l.b16 %v242
    %v683 = vunpack.c.l.b16 %v243
    %v684 = vunpack.c.l.b16 %v244
    %v685 = vunpack.c.l.b16 %v245
    %v686 = vunpack.c.l.b16 %v246
    %v687 = vunpack.c.l.b16 %v247
    %v688 = vunpack.c.l.b16 %v248
    %v689 = vunpack.c.l.b16 %v249
    %v690 = vunpack.c.l.b16 %v250
    %v691 = vunpack.c.l.b16 %v251
    %v692 = vunpack.c.l.b16 %v252
    %v693 = vunpack.c.l.b16 %v253
    %v694 = vunpack.c.l.b16 %v254
    %v695 = vunpack.c.l.b16 %v255
    %v696 = vunpack.c.l.b16 %v256
    %v697 = vunpack.c.l.b16 %v257
    %v698 = vunpack.c.l.b16 %v258
    %v699 = vunpack.c.l.b16 %v259
    %v700 = vunpack.c.l.b16 %v260
    %v701 = vunpack.c.l.b16 %v261
    %v702 = vunpack.c.l.b16 %v262
    %v703 = vunpack.c.l.b16 %v263
    %v704 = vunpack.c.l.b16 %v264
    %v705 = vunpack.c.l.b16 %v265
    %v706 = vunpack.c.l.b16 %v266
    %v707 = vunpack.c.l.b16 %v267
    %v708 = vunpack.c.l.b16 %v268
    %v709 = vunpack.c.l.b16 %v269
    %v710 = vunpack.c.l.b16 %v270
    %v711 = vunpack.c.l.b16 %v271
    %v712 = vunpack.c.l.b16 %v272
    %v713 = vunpack.c.l.b16 %v273
    %v714 = vunpack.c.l.b16 %v274
    %v715 = vunpack.c.l.b16 %v275
    %v716 = vunpack.c.l.b16 %v276
    %v717 = vunpack.c.l.b16 %v277
    %v718 = vunpack.c.l.b16 %v278
    %v719 = vunpack.c.l.b16 %v279
    %v720 = vunpack.c.l.b16 %v280
    %v721 = vunpack.c.l.b16 %v281
    %v722 = vunpack.c.l.b16 %v282
    %v723 = vunpack.c.l.b16 %v283
    %v724 = vunpack.c.l.b16 %v284
    %v725 = vunpack.c.l.b16 %v285
    %v726 = vunpack.c.l.b16 %v286
    %v727 = vunpack.c.l.b16 %v287
    %v728 = vunpack.c.l.b16 %v288
    %v729 = vunpack.c.l.b16 %v289
    %v730 = vunpack.c.l.b16 %v290
    %v731 = vunpack.c.l.b16 %v291
    %v732 = vunpack.c.l.b16 %v292
    %v733 = vunpack.c.l.b16 %v293
    %v734 = vunpack.c.l.b16 %v294
    %v735 = vunpack.c.l.b16 %v295
    %v736 = vunpack.c.l.b16 %v296
    %v737 = vunpack.c.l.b16 %v297
    %v738 = vunpack.c.l.b16 %v298
    %v739 = vunpack.c.l.b16 %v299
    %v740 = vunpack.c.l.b16 %v300
    %v741 = vunpack.c.l.b16 %v301
    %v742 = vunpack.c.l.b16 %v302
    %v743 = vunpack.c.l.b16 %v303
    %v744 = vunpack.c.l.b16 %v304
    %v745 = vunpack.c.l.b16 %v305
    %v746 = vunpack.c.l.b16 %v306
    %v747 = vunpack.c.l.b16 %v307
    %v748 = vunpack.c.l.b16 %v308
    %v749 = vunpack.c.l.b16 %v309
    %v750 = vunpack.c.l.b16 %v310
    %v751 = vunpack.c.l.b16 %v311
    %v752 = vunpack.c.l.b16 %v312
    %v753 = vunpack.c.l.b16 %v313
    %v754 = vunpack.c.l.b16 %v314
    %v755 = vunpack.c.l.b16 %v315
    %v756 = vunpack.c.l.b16 %v316
    %v757 = vunpack.c.l.b16 %v317
    %v758 = vunpack.c.l.b16 %v318
    %v759 = vunpack.c.l.b16 %v319
    %v760 = vunpack.c.l.b16 %v320
    %v761 = vunpack.c.l.b16 %v321
    %v762 = vunpack.c.l.b16 %v322
    %v763 = vunpack.c.l.b16 %v323
    %v764 = vunpack.c.l.b16 %v324
    %v765 = vunpack.c.l.b16 %v325
    %v766 = vunpack.c.l.b16 %v326
    %v767 = vunpack.c.l.b16 %v327
    %v768 = vunpack.c.l.b16 %v328
    %v769 = vunpack.c.l.b16 %v329
    %v770 = vunpack.c.l.b16 %v330
    %v771 = vunpack.c.l.b16 %v331
    %v772 = vunpack.c.l.b16 %v332
    %v773 = vunpack.c.l.b16 %v333
    %v774 = vunpack.c.l.b16 %v334
    %v775 = vunpack.c.l.b16 %v335
    %v776 = vunpack.c.l.b16 %v336
    %v777 = vunpack.c.l.b16 %v337
    %v778 = vunpack.c.l.b16 %v338
    %v779 = vunpack.c.l.b16 %v339
    %v780 = vunpack.c.l.b16 %v340
    %v781 = vunpack.c.l.b16 %v341
    %v782 = vunpack.c.l.b16 %v342
    %v783 = vunpack.c.l.b16 %v343
    %v784 = vunpack.c.l.b16 %v344
    %v785 = vunpack.c.l.b16 %v345
    %v786 = vunpack.c.l.b16 %v346
    %v787 = vunpack.c.l.b16 %v347
    %v788 = vunpack.c.l.b16 %v348
    %v789 = vunpack.c.l.b16 %v349
    %v790 = vunpack.c.l.b16 %v350
    %v791 = vunpack.c.l.b16 %v351
    %v792 = vunpack.c.l.b16 %v352
    %v793 = vunpack.c.l.b16 %v353
    %v794 = vunpack.c.l.b16 %v354
    %v795 = vunpack.c.l.b16 %v355
    %v796 = vunpack.c.l.b16 %v356
    %v797 = vunpack.c.l.b16 %v357
    %v798 = vunpack.c.l.b16 %v358
    %v799 = vunpack.c.l.b16 %v359
    %v800 = vunpack.c.l.b16 %v360
    %v801 = vunpack.c.l.b16 %v361
    %v802 = vunpack.c.l.b16 %v362
    %v803 = vunpack.c.l.b16 %v363
    %v804 = vunpack.c.l.b16 %v364
    %v805 = vunpack.c.l.b16 %v365
    %v806 = vunpack.c.l.b16 %v366
    %v807 = vunpack.c.l.b16 %v367
    %v808 = vunpack.c.l.b16 %v368
    %v809 = vunpack.c.l.b16 %v369
    %v810 = vunpack.c.l.b16 %v370
    %v811 = vunpack.c.l.b16 %v371
    %v812 = vunpack.c.l.b16 %v372
    %v813 = vpack.c.b16 %v622, %v621
    %v814 = vpack.c.b16 %v624, %v623
    %v815 = vpack.c.b16 %v626, %v625
    %v816 = vpack.c.b16 %v628, %v627
    %v817 = vpack.c.b16 %v630, %v629
    %v818 = vpack.c.b16 %v632, %v631
    %v819 = vpack.c.b16 %v634, %v633
    %v820 = vpack.c.b16 %v636, %v635
    %v821 = vpack.c.b16 %v638, %v637
    %v822 = vpack.c.b16 %v640, %v639
    %v823 = vpack.c.b16 %v642, %v641
    %v824 = vpack.c.b16 %v644, %v643
    %v825 = vpack.c.b16 %v646, %v645
    %v826 = vpack.c.b16 %v648, %v647
    %v827 = vpack.c.b16 %v650, %v649
    %v828 = vpack.c.b16 %v652, %v651
    %v829 = vpack.c.b16 %v654, %v653
    %v830 = vpack.c.b16 %v656, %v655
    %v831 = vpack.c.b16 %v658, %v657
    %v832 = vpack.c.b16 %v660, %v659
    %v833 = vpack.c.b16 %v662, %v661
    %v834 = vpack.c.b16 %v664, %v663
    %v835 = vpack.c.b16 %v666, %v665
    %v836 = vpack.c.b16 %v668, %v667
    %v837 = vpack.c.b16 %v670, %v669
    %v838 = vpack.c.b16 %v672, %v671
    %v839 = vpack.c.b16 %v674, %v673
    %v840 = vpack.c.b16 %v676, %v675
    %v841 = vpack.c.b16 %v678, %v677
    %v842 = vpack.c.b16 %v680, %v679
    %v843 = vpack.c.b16 %v682, %v681
    %v844 = vpack.c.b16 %v684, %v683
    %v845 = vpack.c.b16 %v686, %v685
    %v846 = vpack.c.b16 %v688, %v687
    %v847 = vpack.c.b16 %v690, %v689
    %v848 = vpack.c.b16 %v692, %v691
    %v849 = vpack.c.b16 %v694, %v693
    %v850 = vpack.c.b16 %v696, %v695
    %v851 = vpack.c.b16 %v698, %v697
    %v852 = vpack.c.b16 %v700, %v699
    %v853 = vpack.c.b16 %v702, %v701
    %v854 = vpack.c.b16 %v704, %v703
    %v855 = vpack.c.b16 %v706, %v705
    %v856 = vpack.c.b16 %v708, %v707
    %v857 = vpack.c.b16 %v710, %v709
    %v858 = vpack.c.b16 %v712, %v711
    %v859 = vpack.c.b16 %v714, %v713
    %v860 = vpack.c.b16 %v716, %v715
    %v861 = vpack.c.b16 %v718, %v717
    %v862 = vpack.c.b16 %v720, %v719
    %v863 = vpack.c.b16 %v722, %v721
    %v864 = vpack.c.b16 %v724, %v723
    %v865 = vpack.c.b16 %v726, %v725
    %v866 = vpack.c.b16 %v728, %v727
    %v867 = vpack.c.b16 %v730, %v729
    %v868 = vpack.c.b16 %v732, %v731
    %v869 = vpack.c.b16 %v734, %v733
    %v870 = vpack.c.b16 %v736, %v735
    %v871 = vpack.c.b16 %v738, %v737
    %v872 = vpack.c.b16 %v740, %v739
    %v873 = vpack.c.b16 %v742, %v741
    %v874 = vpack.c.b16 %v744, %v743
    %v875 = vpack.c.b16 %v746, %v745
    %v876 = vpack.c.b16 %v748, %v747
    %v877 = vpack.c.b16 %v750, %v749
    %v878 = vpack.c.b16 %v752, %v751
    %v879 = vpack.c.b16 %v754, %v753
    %v880 = vpack.c.b16 %v756, %v755
    %v881 = vpack.c.b16 %v758, %v757
    %v882 = vpack.c.b16 %v760, %v759
    %v883 = vpack.c.b16 %v762, %v761
    %v884 = vpack.c.b16 %v764, %v763
    %v885 = vpack.c.b16 %v766, %v765
    %v886 = vpack.c.b16 %v768, %v767
    %v887 = vpack.c.b16 %v770, %v769
    %v888 = vpack.c.b16 %v772, %v771
    %v889 = vpack.c.b16 %v774, %v773
    %v890 = vpack.c.b16 %v776, %v775
    %v891 = vpack.c.b16 %v778, %v777
    %v892 = vpack.c.b16 %v780, %v779
    %v893 = vpack.c.b16 %v782, %v781
    %v894 = vpack.c.b16 %v784, %v783
    %v895 = vpack.c.b16 %v786, %v785
    %v896 = vpack.c.b16 %v788, %v787
    %v897 = vpack.c.b16 %v790, %v789
    %v898 = vpack.c.b16 %v792, %v791
    %v899 = vpack.c.b16 %v794, %v793
    %v900 = vpack.c.b16 %v796, %v795
    %v901 = vpack.c.b16 %v798, %v797
    %v902 = vpack.c.b16 %v800, %v799
    %v903 = vpack.c.b16 %v802, %v801
    %v904 = vpack.c.b16 %v804, %v803
    %v905 = vpack.c.b16 %v806, %v805
    %v906 = vpack.c.b16 %v808, %v807
    %v907 = vpack.c.b16 %v810, %v809
    %v908 = vpack.c.b16 %v812, %v811
    %1005 = vmatprep.subr.bf16.mxu0 0
    %1006 = vmatpush1.bf16.msra.mxu0 %v820
    %1007 = vmatprep.subr.bf16.mxu0 0
    %1008 = vmatpush1.bf16.msra.mxu0 %v819
    %1009 = vmatprep.subr.bf16.mxu0 0
    %1010 = vmatpush1.bf16.msra.mxu0 %v818
    %1011 = vmatprep.subr.bf16.mxu0 0
    %1012 = vmatpush1.bf16.msra.mxu0 %v817
    %1013 = vmatprep.subr.bf16.mxu0 0
    %1014 = vmatpush1.bf16.msra.mxu0 %v816
    %1015 = vmatprep.subr.bf16.mxu0 0
    %1016 = vmatpush1.bf16.msra.mxu0 %v815
    %1017 = vmatprep.subr.bf16.mxu0 0
    %1018 = vmatpush1.bf16.msra.mxu0 %v814
    %1019 = vmatprep.subr.bf16.mxu0 0
    %1020 = vmatpush1.bf16.msra.mxu0 %v813
    %1021 = vmatprep.subr.bf16.mxu0 0
    %1022 = vmatpush2.bf16.msra.mxu0 %v828
    %1023 = vmatprep.subr.bf16.mxu0 0
    %1024 = vmatpush2.bf16.msra.mxu0 %v827
    %1025 = vmatprep.subr.bf16.mxu0 0
    %1026 = vmatpush2.bf16.msra.mxu0 %v826
    %1027 = vmatprep.subr.bf16.mxu0 0
    %1028 = vmatpush2.bf16.msra.mxu0 %v825
    %1029 = vmatprep.subr.bf16.mxu0 0
    %1030 = vmatpush2.bf16.msra.mxu0 %v824
    %1031 = vmatprep.subr.bf16.mxu0 0
    %1032 = vmatpush2.bf16.msra.mxu0 %v823
    %1033 = vmatprep.subr.bf16.mxu0 0
    %1034 = vmatpush2.bf16.msra.mxu0 %v822
    %1035 = vmatprep.subr.bf16.mxu0 0
    %1036 = vmatpush2.bf16.msra.mxu0 %v821
    %1037 = vmatprep.mubr.bf16.mxu0 %v406
    %1038 = vmatmul.mubr.bf16.gmra.mxu0 %v405
    %v1039 = vpop.f32.mrf.mxu0
    %v1040 = vadd.f32 %v385, %v1039
    %v1041 = vpop.f32.mrf.mxu0
    %v1042 = vpop.f32.mrf.mxu0
    %v1043 = vpop.f32.mrf.mxu0
    %1044 = vdwg.mxu0
    %1045 = vmatprep.subr.bf16.mxu0 0
    %1046 = vmatpush1.bf16.msra.mxu0 %v836
    %1047 = vmatprep.subr.bf16.mxu0 0
    %1048 = vmatpush1.bf16.msra.mxu0 %v835
    %1049 = vmatprep.subr.bf16.mxu0 0
    %1050 = vmatpush1.bf16.msra.mxu0 %v834
    %1051 = vmatprep.subr.bf16.mxu0 0
    %1052 = vmatpush1.bf16.msra.mxu0 %v833
    %1053 = vmatprep.subr.bf16.mxu0 0
    %1054 = vmatpush1.bf16.msra.mxu0 %v832
    %1055 = vmatprep.subr.bf16.mxu0 0
    %1056 = vmatpush1.bf16.msra.mxu0 %v831
    %1057 = vmatprep.subr.bf16.mxu0 0
    %1058 = vmatpush1.bf16.msra.mxu0 %v830
    %1059 = vmatprep.subr.bf16.mxu0 0
    %1060 = vmatpush1.bf16.msra.mxu0 %v829
    %1061 = vmatprep.subr.bf16.mxu0 0
    %1062 = vmatpush2.bf16.msra.mxu0 %v844
    %1063 = vmatprep.subr.bf16.mxu0 0
    %1064 = vmatpush2.bf16.msra.mxu0 %v843
    %1065 = vmatprep.subr.bf16.mxu0 0
    %1066 = vmatpush2.bf16.msra.mxu0 %v842
    %1067 = vmatprep.subr.bf16.mxu0 0
    %1068 = vmatpush2.bf16.msra.mxu0 %v841
    %1069 = vmatprep.subr.bf16.mxu0 0
    %1070 = vmatpush2.bf16.msra.mxu0 %v840
    %1071 = vmatprep.subr.bf16.mxu0 0
    %1072 = vmatpush2.bf16.msra.mxu0 %v839
    %1073 = vmatprep.subr.bf16.mxu0 0
    %1074 = vmatpush2.bf16.msra.mxu0 %v838
    %1075 = vmatprep.subr.bf16.mxu0 0
    %1076 = vmatpush2.bf16.msra.mxu0 %v837
    %1077 = vmatprep.mubr.bf16.mxu0 %v408
    %1078 = vmatmul.mubr.bf16.gmra.mxu0 %v407
    %v1079 = vpop.f32.mrf.mxu0
    %v1080 = vadd.f32 %v1040, %v1079
    %v1081 = vpop.f32.mrf.mxu0
    %v1082 = vpop.f32.mrf.mxu0
    %v1083 = vpop.f32.mrf.mxu0
    %1084 = vdwg.mxu0
    %1085 = vmatprep.subr.bf16.mxu0 0
    %1086 = vmatpush1.bf16.msra.mxu0 %v852
    %1087 = vmatprep.subr.bf16.mxu0 0
    %1088 = vmatpush1.bf16.msra.mxu0 %v851
    %1089 = vmatprep.subr.bf16.mxu0 0
    %1090 = vmatpush1.bf16.msra.mxu0 %v850
    %1091 = vmatprep.subr.bf16.mxu0 0
    %1092 = vmatpush1.bf16.msra.mxu0 %v849
    %1093 = vmatprep.subr.bf16.mxu0 0
    %1094 = vmatpush1.bf16.msra.mxu0 %v848
    %1095 = vmatprep.subr.bf16.mxu0 0
    %1096 = vmatpush1.bf16.msra.mxu0 %v847
    %1097 = vmatprep.subr.bf16.mxu0 0
    %1098 = vmatpush1.bf16.msra.mxu0 %v846
    %1099 = vmatprep.subr.bf16.mxu0 0
    %1100 = vmatpush1.bf16.msra.mxu0 %v845
    %1101 = vmatprep.subr.bf16.mxu0 0
    %1102 = vmatpush2.bf16.msra.mxu0 %v860
    %1103 = vmatprep.subr.bf16.mxu0 0
    %1104 = vmatpush2.bf16.msra.mxu0 %v859
    %1105 = vmatprep.subr.bf16.mxu0 0
    %1106 = vmatpush2.bf16.msra.mxu0 %v858
    %1107 = vmatprep.subr.bf16.mxu0 0
    %1108 = vmatpush2.bf16.msra.mxu0 %v857
    %1109 = vmatprep.subr.bf16.mxu0 0
    %1110 = vmatpush2.bf16.msra.mxu0 %v856
    %1111 = vmatprep.subr.bf16.mxu0 0
    %1112 = vmatpush2.bf16.msra.mxu0 %v855
    %1113 = vmatprep.subr.bf16.mxu0 0
    %1114 = vmatpush2.bf16.msra.mxu0 %v854
    %1115 = vmatprep.subr.bf16.mxu0 0
    %1116 = vmatpush2.bf16.msra.mxu0 %v853
    %1117 = vmatprep.mubr.bf16.mxu0 %v410
    %1118 = vmatmul.mubr.bf16.gmra.mxu0 %v409
    %v1119 = vpop.f32.mrf.mxu0
    %v1120 = vadd.f32 %v1080, %v1119
    %v1121 = vpop.f32.mrf.mxu0
    %v1122 = vpop.f32.mrf.mxu0
    %v1123 = vpop.f32.mrf.mxu0
    %1124 = vdwg.mxu0
    %1125 = vmatprep.subr.bf16.mxu0 0
    %1126 = vmatpush1.bf16.msra.mxu0 %v868
    %1127 = vmatprep.subr.bf16.mxu0 0
    %1128 = vmatpush1.bf16.msra.mxu0 %v867
    %1129 = vmatprep.subr.bf16.mxu0 0
    %1130 = vmatpush1.bf16.msra.mxu0 %v866
    %1131 = vmatprep.subr.bf16.mxu0 0
    %1132 = vmatpush1.bf16.msra.mxu0 %v865
    %1133 = vmatprep.subr.bf16.mxu0 0
    %1134 = vmatpush1.bf16.msra.mxu0 %v864
    %1135 = vmatprep.subr.bf16.mxu0 0
    %1136 = vmatpush1.bf16.msra.mxu0 %v863
    %1137 = vmatprep.subr.bf16.mxu0 0
    %1138 = vmatpush1.bf16.msra.mxu0 %v862
    %1139 = vmatprep.subr.bf16.mxu0 0
    %1140 = vmatpush1.bf16.msra.mxu0 %v861
    %1141 = vmatprep.subr.bf16.mxu0 0
    %1142 = vmatpush2.bf16.msra.mxu0 %v876
    %1143 = vmatprep.subr.bf16.mxu0 0
    %1144 = vmatpush2.bf16.msra.mxu0 %v875
    %1145 = vmatprep.subr.bf16.mxu0 0
    %1146 = vmatpush2.bf16.msra.mxu0 %v874
    %1147 = vmatprep.subr.bf16.mxu0 0
    %1148 = vmatpush2.bf16.msra.mxu0 %v873
    %1149 = vmatprep.subr.bf16.mxu0 0
    %1150 = vmatpush2.bf16.msra.mxu0 %v872
    %1151 = vmatprep.subr.bf16.mxu0 0
    %1152 = vmatpush2.bf16.msra.mxu0 %v871
    %1153 = vmatprep.subr.bf16.mxu0 0
    %1154 = vmatpush2.bf16.msra.mxu0 %v870
    %1155 = vmatprep.subr.bf16.mxu0 0
    %1156 = vmatpush2.bf16.msra.mxu0 %v869
    %1157 = vmatprep.mubr.bf16.mxu0 %v412
    %1158 = vmatmul.mubr.bf16.gmra.mxu0 %v411
    %v1159 = vpop.f32.mrf.mxu0
    %v1160 = vadd.f32 %v1120, %v1159
    %v1161 = vpop.f32.mrf.mxu0
    %v1162 = vpop.f32.mrf.mxu0
    %v1163 = vpop.f32.mrf.mxu0
    %1164 = vdwg.mxu0
    %1165 = vmatprep.subr.bf16.mxu0 0
    %1166 = vmatpush1.bf16.msra.mxu0 %v884
    %1167 = vmatprep.subr.bf16.mxu0 0
    %1168 = vmatpush1.bf16.msra.mxu0 %v883
    %1169 = vmatprep.subr.bf16.mxu0 0
    %1170 = vmatpush1.bf16.msra.mxu0 %v882
    %1171 = vmatprep.subr.bf16.mxu0 0
    %1172 = vmatpush1.bf16.msra.mxu0 %v881
    %1173 = vmatprep.subr.bf16.mxu0 0
    %1174 = vmatpush1.bf16.msra.mxu0 %v880
    %1175 = vmatprep.subr.bf16.mxu0 0
    %1176 = vmatpush1.bf16.msra.mxu0 %v879
    %1177 = vmatprep.subr.bf16.mxu0 0
    %1178 = vmatpush1.bf16.msra.mxu0 %v878
    %1179 = vmatprep.subr.bf16.mxu0 0
    %1180 = vmatpush1.bf16.msra.mxu0 %v877
    %1181 = vmatprep.subr.bf16.mxu0 0
    %1182 = vmatpush2.bf16.msra.mxu0 %v892
    %1183 = vmatprep.subr.bf16.mxu0 0
    %1184 = vmatpush2.bf16.msra.mxu0 %v891
    %1185 = vmatprep.subr.bf16.mxu0 0
    %1186 = vmatpush2.bf16.msra.mxu0 %v890
    %1187 = vmatprep.subr.bf16.mxu0 0
    %1188 = vmatpush2.bf16.msra.mxu0 %v889
    %1189 = vmatprep.subr.bf16.mxu0 0
    %1190 = vmatpush2.bf16.msra.mxu0 %v888
    %1191 = vmatprep.subr.bf16.mxu0 0
    %1192 = vmatpush2.bf16.msra.mxu0 %v887
    %1193 = vmatprep.subr.bf16.mxu0 0
    %1194 = vmatpush2.bf16.msra.mxu0 %v886
    %1195 = vmatprep.subr.bf16.mxu0 0
    %1196 = vmatpush2.bf16.msra.mxu0 %v885
    %1197 = vmatprep.mubr.bf16.mxu0 %v414
    %1198 = vmatmul.mubr.bf16.gmra.mxu0 %v413
    %v1199 = vpop.f32.mrf.mxu0
    %v1200 = vadd.f32 %v1160, %v1199
    %v1201 = vpop.f32.mrf.mxu0
    %v1202 = vpop.f32.mrf.mxu0
    %v1203 = vpop.f32.mrf.mxu0
    %1204 = vdwg.mxu0
    %1205 = vmatprep.subr.bf16.mxu0 0
    %1206 = vmatpush1.bf16.msra.mxu0 %v900
    %1207 = vmatprep.subr.bf16.mxu0 0
    %1208 = vmatpush1.bf16.msra.mxu0 %v899
    %1209 = vmatprep.subr.bf16.mxu0 0
    %1210 = vmatpush1.bf16.msra.mxu0 %v898
    %1211 = vmatprep.subr.bf16.mxu0 0
    %1212 = vmatpush1.bf16.msra.mxu0 %v897
    %1213 = vmatprep.subr.bf16.mxu0 0
    %1214 = vmatpush1.bf16.msra.mxu0 %v896
    %1215 = vmatprep.subr.bf16.mxu0 0
    %1216 = vmatpush1.bf16.msra.mxu0 %v895
    %1217 = vmatprep.subr.bf16.mxu0 0
    %1218 = vmatpush1.bf16.msra.mxu0 %v894
    %1219 = vmatprep.subr.bf16.mxu0 0
    %1220 = vmatpush1.bf16.msra.mxu0 %v893
    %1221 = vmatprep.subr.bf16.mxu0 0
    %1222 = vmatpush2.bf16.msra.mxu0 %v908
    %1223 = vmatprep.subr.bf16.mxu0 0
    %1224 = vmatpush2.bf16.msra.mxu0 %v907
    %1225 = vmatprep.subr.bf16.mxu0 0
    %1226 = vmatpush2.bf16.msra.mxu0 %v906
    %1227 = vmatprep.subr.bf16.mxu0 0
    %1228 = vmatpush2.bf16.msra.mxu0 %v905
    %1229 = vmatprep.subr.bf16.mxu0 0
    %1230 = vmatpush2.bf16.msra.mxu0 %v904
    %1231 = vmatprep.subr.bf16.mxu0 0
    %1232 = vmatpush2.bf16.msra.mxu0 %v903
    %1233 = vmatprep.subr.bf16.mxu0 0
    %1234 = vmatpush2.bf16.msra.mxu0 %v902
    %1235 = vmatprep.subr.bf16.mxu0 0
    %1236 = vmatpush2.bf16.msra.mxu0 %v901
    %1237 = vmatprep.mubr.bf16.mxu0 %v416
    %1238 = vmatmul.mubr.bf16.gmra.mxu0 %v415
    %v1239 = vpop.f32.mrf.mxu0
    %v1240 = vadd.f32 %v1200, %v1239
    %v1241 = vpop.f32.mrf.mxu0
    %v1242 = vpop.f32.mrf.mxu0
    %v1243 = vpop.f32.mrf.mxu0
    %1244 = vdwg.mxu0
    %vm1245 = vcmp.gt.f32.partialorder %v1240, 0.0
    %v1246 = vmul.f32 %v1240, 0.01
    %v1247 = vsel %vm1245, %v1240, %v1246
    %v1248 = vpack.c.bf16 %v1247, %v1247
    %v1249 = vld [vmem:[#allocation7] sm:$0xf]
    %v1250 = vld [vmem:[#allocation7 + $0x4] sm:$0xf]
    %v1251 = vld [vmem:[#allocation7 + $0x8] sm:$0xf]
    %v1252 = vld [vmem:[#allocation7 + $0xc] sm:$0xf]
    %v1253 = vld [vmem:[#allocation7 + $0x10] sm:$0xf]
    %v1254 = vld [vmem:[#allocation7 + $0x14] sm:$0xf]
    %v1255 = vld [vmem:[#allocation7 + $0x18] sm:$0xf]
    %v1256 = vld [vmem:[#allocation7 + $0x1c] sm:$0xf]
    %v1257 = vld [vmem:[#allocation7 + $0x20] sm:$0xf]
    %v1258 = vld [vmem:[#allocation7 + $0x24] sm:$0xf]
    %v1259 = vld [vmem:[#allocation7 + $0x28] sm:$0xf]
    %v1260 = vld [vmem:[#allocation7 + $0x2c] sm:$0xf]
    %v1261 = vld [vmem:[#allocation7 + $0x30] sm:$0xf]
    %v1262 = vld [vmem:[#allocation7 + $0x34] sm:$0xf]
    %v1263 = vld [vmem:[#allocation7 + $0x38] sm:$0xf]
    %v1264 = vld [vmem:[#allocation7 + $0x3c] sm:$0xf]
    %v1265 = vld [vmem:[#allocation2 + $0x18] sm:$0xff]
    %v1266 = vld [vmem:[#allocation2 + $0x20] sm:$0xff]
    %v1267 = vld [vmem:[#allocation2 + $0x28] sm:$0xff]
    %v1268 = vld [vmem:[#allocation2 + $0x30] sm:$0xff]
    %v1269 = vld [vmem:[#allocation2 + $0x38] sm:$0xff]
    %v1270 = vld [vmem:[#allocation2 + $0x40] sm:$0xff]
    %v1277 = vunpack.c.l.b16 %v1265
    %v1278 = vunpack.c.h.b16 %v1265
    %v1279 = vunpack.c.l.b16 %v1266
    %v1280 = vunpack.c.h.b16 %v1266
    %v1281 = vunpack.c.l.b16 %v1267
    %v1282 = vunpack.c.h.b16 %v1267
    %v1283 = vunpack.c.l.b16 %v1268
    %v1284 = vunpack.c.h.b16 %v1268
    %v1285 = vunpack.c.l.b16 %v1269
    %v1286 = vunpack.c.h.b16 %v1269
    %v1287 = vunpack.c.l.b16 %v1270
    %v1288 = vunpack.c.h.b16 %v1270
    %v1289 = vpack.c.b16 %v1277, %v1277
    %v1290 = vpack.c.b16 %v1278, %v1278
    %v1291 = vpack.c.b16 %v1279, %v1279
    %v1292 = vpack.c.b16 %v1280, %v1280
    %v1293 = vpack.c.b16 %v1281, %v1281
    %v1294 = vpack.c.b16 %v1282, %v1282
    %v1295 = vpack.c.b16 %v1283, %v1283
    %v1296 = vpack.c.b16 %v1284, %v1284
    %v1297 = vpack.c.b16 %v1285, %v1285
    %v1298 = vpack.c.b16 %v1286, %v1286
    %v1299 = vpack.c.b16 %v1287, %v1287
    %v1300 = vpack.c.b16 %v1288, %v1288
    %1313 = vmatprep.subr.bf16.mxu0 0
    %1314 = vmatpush1.bf16.msra.mxu0 %v820
    %1315 = vmatprep.subr.bf16.mxu0 0
    %1316 = vmatpush1.bf16.msra.mxu0 %v819
    %1317 = vmatprep.subr.bf16.mxu0 0
    %1318 = vmatpush1.bf16.msra.mxu0 %v818
    %1319 = vmatprep.subr.bf16.mxu0 0
    %1320 = vmatpush1.bf16.msra.mxu0 %v817
    %1321 = vmatprep.subr.bf16.mxu0 0
    %1322 = vmatpush1.bf16.msra.mxu0 %v816
    %1323 = vmatprep.subr.bf16.mxu0 0
    %1324 = vmatpush1.bf16.msra.mxu0 %v815
    %1325 = vmatprep.subr.bf16.mxu0 0
    %1326 = vmatpush1.bf16.msra.mxu0 %v814
    %1327 = vmatprep.subr.bf16.mxu0 0
    %1328 = vmatpush1.bf16.msra.mxu0 %v813
    %1329 = vmatprep.subr.bf16.mxu0 0
    %1330 = vmatpush2.bf16.msra.mxu0 %v828
    %1331 = vmatprep.subr.bf16.mxu0 0
    %1332 = vmatpush2.bf16.msra.mxu0 %v827
    %1333 = vmatprep.subr.bf16.mxu0 0
    %1334 = vmatpush2.bf16.msra.mxu0 %v826
    %1335 = vmatprep.subr.bf16.mxu0 0
    %1336 = vmatpush2.bf16.msra.mxu0 %v825
    %1337 = vmatprep.subr.bf16.mxu0 0
    %1338 = vmatpush2.bf16.msra.mxu0 %v824
    %1339 = vmatprep.subr.bf16.mxu0 0
    %1340 = vmatpush2.bf16.msra.mxu0 %v823
    %1341 = vmatprep.subr.bf16.mxu0 0
    %1342 = vmatpush2.bf16.msra.mxu0 %v822
    %1343 = vmatprep.subr.bf16.mxu0 0
    %1344 = vmatpush2.bf16.msra.mxu0 %v821
    %1345 = vmatprep.mubr.bf16.mxu0 %v1290
    %1346 = vmatmul.mubr.bf16.gmra.mxu0 %v1289
    %v1347 = vpop.f32.mrf.mxu0
    %v1348 = vadd.f32 %v385, %v1347
    %v1349 = vpop.f32.mrf.mxu0
    %v1350 = vpop.f32.mrf.mxu0
    %v1351 = vpop.f32.mrf.mxu0
    %1352 = vdwg.mxu0
    %1353 = vmatprep.subr.bf16.mxu0 0
    %1354 = vmatpush1.bf16.msra.mxu0 %v836
    %1355 = vmatprep.subr.bf16.mxu0 0
    %1356 = vmatpush1.bf16.msra.mxu0 %v835
    %1357 = vmatprep.subr.bf16.mxu0 0
    %1358 = vmatpush1.bf16.msra.mxu0 %v834
    %1359 = vmatprep.subr.bf16.mxu0 0
    %1360 = vmatpush1.bf16.msra.mxu0 %v833
    %1361 = vmatprep.subr.bf16.mxu0 0
    %1362 = vmatpush1.bf16.msra.mxu0 %v832
    %1363 = vmatprep.subr.bf16.mxu0 0
    %1364 = vmatpush1.bf16.msra.mxu0 %v831
    %1365 = vmatprep.subr.bf16.mxu0 0
    %1366 = vmatpush1.bf16.msra.mxu0 %v830
    %1367 = vmatprep.subr.bf16.mxu0 0
    %1368 = vmatpush1.bf16.msra.mxu0 %v829
    %1369 = vmatprep.subr.bf16.mxu0 0
    %1370 = vmatpush2.bf16.msra.mxu0 %v844
    %1371 = vmatprep.subr.bf16.mxu0 0
    %1372 = vmatpush2.bf16.msra.mxu0 %v843
    %1373 = vmatprep.subr.bf16.mxu0 0
    %1374 = vmatpush2.bf16.msra.mxu0 %v842
    %1375 = vmatprep.subr.bf16.mxu0 0
    %1376 = vmatpush2.bf16.msra.mxu0 %v841
    %1377 = vmatprep.subr.bf16.mxu0 0
    %1378 = vmatpush2.bf16.msra.mxu0 %v840
    %1379 = vmatprep.subr.bf16.mxu0 0
    %1380 = vmatpush2.bf16.msra.mxu0 %v839
    %1381 = vmatprep.subr.bf16.mxu0 0
    %1382 = vmatpush2.bf16.msra.mxu0 %v838
    %1383 = vmatprep.subr.bf16.mxu0 0
    %1384 = vmatpush2.bf16.msra.mxu0 %v837
    %1385 = vmatprep.mubr.bf16.mxu0 %v1292
    %1386 = vmatmul.mubr.bf16.gmra.mxu0 %v1291
    %v1387 = vpop.f32.mrf.mxu0
    %v1388 = vadd.f32 %v1348, %v1387
    %v1389 = vpop.f32.mrf.mxu0
    %v1390 = vpop.f32.mrf.mxu0
    %v1391 = vpop.f32.mrf.mxu0
    %1392 = vdwg.mxu0
    %1393 = vmatprep.subr.bf16.mxu0 0
    %1394 = vmatpush1.bf16.msra.mxu0 %v852
    %1395 = vmatprep.subr.bf16.mxu0 0
    %1396 = vmatpush1.bf16.msra.mxu0 %v851
    %1397 = vmatprep.subr.bf16.mxu0 0
    %1398 = vmatpush1.bf16.msra.mxu0 %v850
    %1399 = vmatprep.subr.bf16.mxu0 0
    %1400 = vmatpush1.bf16.msra.mxu0 %v849
    %1401 = vmatprep.subr.bf16.mxu0 0
    %1402 = vmatpush1.bf16.msra.mxu0 %v848
    %1403 = vmatprep.subr.bf16.mxu0 0
    %1404 = vmatpush1.bf16.msra.mxu0 %v847
    %1405 = vmatprep.subr.bf16.mxu0 0
    %1406 = vmatpush1.bf16.msra.mxu0 %v846
    %1407 = vmatprep.subr.bf16.mxu0 0
    %1408 = vmatpush1.bf16.msra.mxu0 %v845
    %1409 = vmatprep.subr.bf16.mxu0 0
    %1410 = vmatpush2.bf16.msra.mxu0 %v860
    %1411 = vmatprep.subr.bf16.mxu0 0
    %1412 = vmatpush2.bf16.msra.mxu0 %v859
    %1413 = vmatprep.subr.bf16.mxu0 0
    %1414 = vmatpush2.bf16.msra.mxu0 %v858
    %1415 = vmatprep.subr.bf16.mxu0 0
    %1416 = vmatpush2.bf16.msra.mxu0 %v857
    %1417 = vmatprep.subr.bf16.mxu0 0
    %1418 = vmatpush2.bf16.msra.mxu0 %v856
    %1419 = vmatprep.subr.bf16.mxu0 0
    %1420 = vmatpush2.bf16.msra.mxu0 %v855
    %1421 = vmatprep.subr.bf16.mxu0 0
    %1422 = vmatpush2.bf16.msra.mxu0 %v854
    %1423 = vmatprep.subr.bf16.mxu0 0
    %1424 = vmatpush2.bf16.msra.mxu0 %v853
    %1425 = vmatprep.mubr.bf16.mxu0 %v1294
    %1426 = vmatmul.mubr.bf16.gmra.mxu0 %v1293
    %v1427 = vpop.f32.mrf.mxu0
    %v1428 = vadd.f32 %v1388, %v1427
    %v1429 = vpop.f32.mrf.mxu0
    %v1430 = vpop.f32.mrf.mxu0
    %v1431 = vpop.f32.mrf.mxu0
    %1432 = vdwg.mxu0
    %1433 = vmatprep.subr.bf16.mxu0 0
    %1434 = vmatpush1.bf16.msra.mxu0 %v868
    %1435 = vmatprep.subr.bf16.mxu0 0
    %1436 = vmatpush1.bf16.msra.mxu0 %v867
    %1437 = vmatprep.subr.bf16.mxu0 0
    %1438 = vmatpush1.bf16.msra.mxu0 %v866
    %1439 = vmatprep.subr.bf16.mxu0 0
    %1440 = vmatpush1.bf16.msra.mxu0 %v865
    %1441 = vmatprep.subr.bf16.mxu0 0
    %1442 = vmatpush1.bf16.msra.mxu0 %v864
    %1443 = vmatprep.subr.bf16.mxu0 0
    %1444 = vmatpush1.bf16.msra.mxu0 %v863
    %1445 = vmatprep.subr.bf16.mxu0 0
    %1446 = vmatpush1.bf16.msra.mxu0 %v862
    %1447 = vmatprep.subr.bf16.mxu0 0
    %1448 = vmatpush1.bf16.msra.mxu0 %v861
    %1449 = vmatprep.subr.bf16.mxu0 0
    %1450 = vmatpush2.bf16.msra.mxu0 %v876
    %1451 = vmatprep.subr.bf16.mxu0 0
    %1452 = vmatpush2.bf16.msra.mxu0 %v875
    %1453 = vmatprep.subr.bf16.mxu0 0
    %1454 = vmatpush2.bf16.msra.mxu0 %v874
    %1455 = vmatprep.subr.bf16.mxu0 0
    %1456 = vmatpush2.bf16.msra.mxu0 %v873
    %1457 = vmatprep.subr.bf16.mxu0 0
    %1458 = vmatpush2.bf16.msra.mxu0 %v872
    %1459 = vmatprep.subr.bf16.mxu0 0
    %1460 = vmatpush2.bf16.msra.mxu0 %v871
    %1461 = vmatprep.subr.bf16.mxu0 0
    %1462 = vmatpush2.bf16.msra.mxu0 %v870
    %1463 = vmatprep.subr.bf16.mxu0 0
    %1464 = vmatpush2.bf16.msra.mxu0 %v869
    %1465 = vmatprep.mubr.bf16.mxu0 %v1296
    %1466 = vmatmul.mubr.bf16.gmra.mxu0 %v1295
    %v1467 = vpop.f32.mrf.mxu0
    %v1468 = vadd.f32 %v1428, %v1467
    %v1469 = vpop.f32.mrf.mxu0
    %v1470 = vpop.f32.mrf.mxu0
    %v1471 = vpop.f32.mrf.mxu0
    %1472 = vdwg.mxu0
    %1473 = vmatprep.subr.bf16.mxu0 0
    %1474 = vmatpush1.bf16.msra.mxu0 %v884
    %1475 = vmatprep.subr.bf16.mxu0 0
    %1476 = vmatpush1.bf16.msra.mxu0 %v883
    %1477 = vmatprep.subr.bf16.mxu0 0
    %1478 = vmatpush1.bf16.msra.mxu0 %v882
    %1479 = vmatprep.subr.bf16.mxu0 0
    %1480 = vmatpush1.bf16.msra.mxu0 %v881
    %1481 = vmatprep.subr.bf16.mxu0 0
    %1482 = vmatpush1.bf16.msra.mxu0 %v880
    %1483 = vmatprep.subr.bf16.mxu0 0
    %1484 = vmatpush1.bf16.msra.mxu0 %v879
    %1485 = vmatprep.subr.bf16.mxu0 0
    %1486 = vmatpush1.bf16.msra.mxu0 %v878
    %1487 = vmatprep.subr.bf16.mxu0 0
    %1488 = vmatpush1.bf16.msra.mxu0 %v877
    %1489 = vmatprep.subr.bf16.mxu0 0
    %1490 = vmatpush2.bf16.msra.mxu0 %v892
    %1491 = vmatprep.subr.bf16.mxu0 0
    %1492 = vmatpush2.bf16.msra.mxu0 %v891
    %1493 = vmatprep.subr.bf16.mxu0 0
    %1494 = vmatpush2.bf16.msra.mxu0 %v890
    %1495 = vmatprep.subr.bf16.mxu0 0
    %1496 = vmatpush2.bf16.msra.mxu0 %v889
    %1497 = vmatprep.subr.bf16.mxu0 0
    %1498 = vmatpush2.bf16.msra.mxu0 %v888
    %1499 = vmatprep.subr.bf16.mxu0 0
    %1500 = vmatpush2.bf16.msra.mxu0 %v887
    %1501 = vmatprep.subr.bf16.mxu0 0
    %1502 = vmatpush2.bf16.msra.mxu0 %v886
    %1503 = vmatprep.subr.bf16.mxu0 0
    %1504 = vmatpush2.bf16.msra.mxu0 %v885
    %1505 = vmatprep.mubr.bf16.mxu0 %v1298
    %1506 = vmatmul.mubr.bf16.gmra.mxu0 %v1297
    %v1507 = vpop.f32.mrf.mxu0
    %v1508 = vadd.f32 %v1468, %v1507
    %v1509 = vpop.f32.mrf.mxu0
    %v1510 = vpop.f32.mrf.mxu0
    %v1511 = vpop.f32.mrf.mxu0
    %1512 = vdwg.mxu0
    %1513 = vmatprep.subr.bf16.mxu0 0
    %1514 = vmatpush1.bf16.msra.mxu0 %v900
    %1515 = vmatprep.subr.bf16.mxu0 0
    %1516 = vmatpush1.bf16.msra.mxu0 %v899
    %1517 = vmatprep.subr.bf16.mxu0 0
    %1518 = vmatpush1.bf16.msra.mxu0 %v898
    %1519 = vmatprep.subr.bf16.mxu0 0
    %1520 = vmatpush1.bf16.msra.mxu0 %v897
    %1521 = vmatprep.subr.bf16.mxu0 0
    %1522 = vmatpush1.bf16.msra.mxu0 %v896
    %1523 = vmatprep.subr.bf16.mxu0 0
    %1524 = vmatpush1.bf16.msra.mxu0 %v895
    %1525 = vmatprep.subr.bf16.mxu0 0
    %1526 = vmatpush1.bf16.msra.mxu0 %v894
    %1527 = vmatprep.subr.bf16.mxu0 0
    %1528 = vmatpush1.bf16.msra.mxu0 %v893
    %1529 = vmatprep.subr.bf16.mxu0 0
    %1530 = vmatpush2.bf16.msra.mxu0 %v908
    %1531 = vmatprep.subr.bf16.mxu0 0
    %1532 = vmatpush2.bf16.msra.mxu0 %v907
    %1533 = vmatprep.subr.bf16.mxu0 0
    %1534 = vmatpush2.bf16.msra.mxu0 %v906
    %1535 = vmatprep.subr.bf16.mxu0 0
    %1536 = vmatpush2.bf16.msra.mxu0 %v905
    %1537 = vmatprep.subr.bf16.mxu0 0
    %1538 = vmatpush2.bf16.msra.mxu0 %v904
    %1539 = vmatprep.subr.bf16.mxu0 0
    %1540 = vmatpush2.bf16.msra.mxu0 %v903
    %1541 = vmatprep.subr.bf16.mxu0 0
    %1542 = vmatpush2.bf16.msra.mxu0 %v902
    %1543 = vmatprep.subr.bf16.mxu0 0
    %1544 = vmatpush2.bf16.msra.mxu0 %v901
    %1545 = vmatprep.mubr.bf16.mxu0 %v1300
    %1546 = vmatmul.mubr.bf16.gmra.mxu0 %v1299
    %v1547 = vpop.f32.mrf.mxu0
    %v1548 = vadd.f32 %v1508, %v1547
    %v1549 = vpop.f32.mrf.mxu0
    %v1550 = vpop.f32.mrf.mxu0
    %v1551 = vpop.f32.mrf.mxu0
    %1552 = vdwg.mxu0
    %vm1553 = vcmp.gt.f32.partialorder %v1548, 0.0
    %v1554 = vmul.f32 %v1548, 0.01
    %v1555 = vsel %vm1553, %v1548, %v1554
    %v1556 = vpack.c.bf16 %v1555, %v1555
    %s1557 = scalar_lea.vmem [#allocation7], 64
    %v1558 = vld [vmem:[%s1557] sm:$0xf]
    %v1559 = vld [vmem:[%s1557 + $0x4] sm:$0xf]
    %v1560 = vld [vmem:[%s1557 + $0x8] sm:$0xf]
    %v1561 = vld [vmem:[%s1557 + $0xc] sm:$0xf]
    %v1562 = vld [vmem:[%s1557 + $0x10] sm:$0xf]
    %v1563 = vld [vmem:[%s1557 + $0x14] sm:$0xf]
    %v1564 = vld [vmem:[%s1557 + $0x18] sm:$0xf]
    %v1565 = vld [vmem:[%s1557 + $0x1c] sm:$0xf]
    %v1566 = vld [vmem:[%s1557 + $0x20] sm:$0xf]
    %v1567 = vld [vmem:[%s1557 + $0x24] sm:$0xf]
    %v1568 = vld [vmem:[%s1557 + $0x28] sm:$0xf]
    %v1569 = vld [vmem:[%s1557 + $0x2c] sm:$0xf]
    %v1570 = vld [vmem:[%s1557 + $0x30] sm:$0xf]
    %v1571 = vld [vmem:[%s1557 + $0x34] sm:$0xf]
    %v1572 = vld [vmem:[%s1557 + $0x38] sm:$0xf]
    %v1573 = vld [vmem:[%s1557 + $0x3c] sm:$0xf]
    %v1590 = vunpack.c.l.b16 %v1558
    %v1591 = vunpack.c.l.b16 %v1559
    %v1592 = vunpack.c.l.b16 %v1560
    %v1593 = vunpack.c.l.b16 %v1561
    %v1594 = vunpack.c.l.b16 %v1562
    %v1595 = vunpack.c.l.b16 %v1563
    %v1596 = vunpack.c.l.b16 %v1564
    %v1597 = vunpack.c.l.b16 %v1565
    %v1598 = vunpack.c.l.b16 %v1566
    %v1599 = vunpack.c.l.b16 %v1567
    %v1600 = vunpack.c.l.b16 %v1568
    %v1601 = vunpack.c.l.b16 %v1569
    %v1602 = vunpack.c.l.b16 %v1570
    %v1603 = vunpack.c.l.b16 %v1571
    %v1604 = vunpack.c.l.b16 %v1572
    %v1605 = vunpack.c.l.b16 %v1573
    %v1606 = vpack.c.b16 %v1591, %v1590
    %v1607 = vpack.c.b16 %v1593, %v1592
    %v1608 = vpack.c.b16 %v1595, %v1594
    %v1609 = vpack.c.b16 %v1597, %v1596
    %v1610 = vpack.c.b16 %v1599, %v1598
    %v1611 = vpack.c.b16 %v1601, %v1600
    %v1612 = vpack.c.b16 %v1603, %v1602
    %v1613 = vpack.c.b16 %v1605, %v1604
    %1622 = vmatprep.subr.bf16.mxu0 0
    %1623 = vmatpush1.bf16.msra.mxu0 %v1613
    %1624 = vmatprep.subr.bf16.mxu0 0
    %1625 = vmatpush1.bf16.msra.mxu0 %v1612
    %1626 = vmatprep.subr.bf16.mxu0 0
    %1627 = vmatpush1.bf16.msra.mxu0 %v1611
    %1628 = vmatprep.subr.bf16.mxu0 0
    %1629 = vmatpush1.bf16.msra.mxu0 %v1610
    %1630 = vmatprep.subr.bf16.mxu0 0
    %1631 = vmatpush1.bf16.msra.mxu0 %v1609
    %1632 = vmatprep.subr.bf16.mxu0 0
    %1633 = vmatpush1.bf16.msra.mxu0 %v1608
    %1634 = vmatprep.subr.bf16.mxu0 0
    %1635 = vmatpush1.bf16.msra.mxu0 %v1607
    %1636 = vmatprep.subr.bf16.mxu0 0
    %1637 = vmatpush1.bf16.msra.mxu0 %v1606
    %1638 = vmatprep.subr.bf16.mxu0 0
    %1639 = vmatpush2.bf16.msra.mxu0 0
    %1640 = vmatprep.subr.bf16.mxu0 0
    %1641 = vmatpush2.bf16.msra.mxu0 0
    %1642 = vmatprep.subr.bf16.mxu0 0
    %1643 = vmatpush2.bf16.msra.mxu0 0
    %1644 = vmatprep.subr.bf16.mxu0 0
    %1645 = vmatpush2.bf16.msra.mxu0 0
    %1646 = vmatprep.subr.bf16.mxu0 0
    %1647 = vmatpush2.bf16.msra.mxu0 0
    %1648 = vmatprep.subr.bf16.mxu0 0
    %1649 = vmatpush2.bf16.msra.mxu0 0
    %1650 = vmatprep.subr.bf16.mxu0 0
    %1651 = vmatpush2.bf16.msra.mxu0 0
    %1652 = vmatprep.subr.bf16.mxu0 0
    %1653 = vmatpush2.bf16.msra.mxu0 0
    %1654 = vmatprep.mubr.bf16.mxu0 0
    %1655 = vmatmul.mubr.bf16.gmra.mxu0 %v1556
    %v1656 = vpop.f32.mrf.mxu0
    %v1657 = vadd.f32 0.0, %v1656
    %v1658 = vpop.f32.mrf.mxu0
    %v1659 = vpop.f32.mrf.mxu0
    %v1660 = vpop.f32.mrf.mxu0
    %1661 = vdwg.mxu0
    %v1678 = vunpack.c.l.b16 %v1249
    %v1679 = vunpack.c.l.b16 %v1250
    %v1680 = vunpack.c.l.b16 %v1251
    %v1681 = vunpack.c.l.b16 %v1252
    %v1682 = vunpack.c.l.b16 %v1253
    %v1683 = vunpack.c.l.b16 %v1254
    %v1684 = vunpack.c.l.b16 %v1255
    %v1685 = vunpack.c.l.b16 %v1256
    %v1686 = vunpack.c.l.b16 %v1257
    %v1687 = vunpack.c.l.b16 %v1258
    %v1688 = vunpack.c.l.b16 %v1259
    %v1689 = vunpack.c.l.b16 %v1260
    %v1690 = vunpack.c.l.b16 %v1261
    %v1691 = vunpack.c.l.b16 %v1262
    %v1692 = vunpack.c.l.b16 %v1263
    %v1693 = vunpack.c.l.b16 %v1264
    %v1694 = vpack.c.b16 %v1679, %v1678
    %v1695 = vpack.c.b16 %v1681, %v1680
    %v1696 = vpack.c.b16 %v1683, %v1682
    %v1697 = vpack.c.b16 %v1685, %v1684
    %v1698 = vpack.c.b16 %v1687, %v1686
    %v1699 = vpack.c.b16 %v1689, %v1688
    %v1700 = vpack.c.b16 %v1691, %v1690
    %v1701 = vpack.c.b16 %v1693, %v1692
    %1710 = vmatprep.subr.bf16.mxu0 0
    %1711 = vmatpush1.bf16.msra.mxu0 %v1701
    %1712 = vmatprep.subr.bf16.mxu0 0
    %1713 = vmatpush1.bf16.msra.mxu0 %v1700
    %1714 = vmatprep.subr.bf16.mxu0 0
    %1715 = vmatpush1.bf16.msra.mxu0 %v1699
    %1716 = vmatprep.subr.bf16.mxu0 0
    %1717 = vmatpush1.bf16.msra.mxu0 %v1698
    %1718 = vmatprep.subr.bf16.mxu0 0
    %1719 = vmatpush1.bf16.msra.mxu0 %v1697
    %1720 = vmatprep.subr.bf16.mxu0 0
    %1721 = vmatpush1.bf16.msra.mxu0 %v1696
    %1722 = vmatprep.subr.bf16.mxu0 0
    %1723 = vmatpush1.bf16.msra.mxu0 %v1695
    %1724 = vmatprep.subr.bf16.mxu0 0
    %1725 = vmatpush1.bf16.msra.mxu0 %v1694
    %1726 = vmatprep.subr.bf16.mxu0 0
    %1727 = vmatpush2.bf16.msra.mxu0 0
    %1728 = vmatprep.subr.bf16.mxu0 0
    %1729 = vmatpush2.bf16.msra.mxu0 0
    %1730 = vmatprep.subr.bf16.mxu0 0
    %1731 = vmatpush2.bf16.msra.mxu0 0
    %1732 = vmatprep.subr.bf16.mxu0 0
    %1733 = vmatpush2.bf16.msra.mxu0 0
    %1734 = vmatprep.subr.bf16.mxu0 0
    %1735 = vmatpush2.bf16.msra.mxu0 0
    %1736 = vmatprep.subr.bf16.mxu0 0
    %1737 = vmatpush2.bf16.msra.mxu0 0
    %1738 = vmatprep.subr.bf16.mxu0 0
    %1739 = vmatpush2.bf16.msra.mxu0 0
    %1740 = vmatprep.subr.bf16.mxu0 0
    %1741 = vmatpush2.bf16.msra.mxu0 0
    %1742 = vmatprep.mubr.bf16.mxu0 0
    %1743 = vmatmul.mubr.bf16.gmra.mxu0 %v1248
    %v1744 = vpop.f32.mrf.mxu0
    %v1745 = vadd.f32 %v1657, %v1744
    %v1746 = vpop.f32.mrf.mxu0
    %v1747 = vpop.f32.mrf.mxu0
    %v1748 = vpop.f32.mrf.mxu0
    %1749 = vdwg.mxu0
    %v1750 = vld [vmem:[#allocation2 + $0x30] sm:$0xff]
    %v1751 = vld [vmem:[#allocation2 + $0x38] sm:$0xff]
    %v1752 = vld [vmem:[#allocation2 + $0x40] sm:$0xff]
    %v1753 = vld [vmem:[#allocation2 + $0x48] sm:$0xff]
    %v1754 = vld [vmem:[#allocation2 + $0x50] sm:$0xff]
    %v1755 = vld [vmem:[#allocation2 + $0x58] sm:$0xff]
    %v1762 = vunpack.c.l.b16 %v1750
    %v1763 = vunpack.c.h.b16 %v1750
    %v1764 = vunpack.c.l.b16 %v1751
    %v1765 = vunpack.c.h.b16 %v1751
    %v1766 = vunpack.c.l.b16 %v1752
    %v1767 = vunpack.c.h.b16 %v1752
    %v1768 = vunpack.c.l.b16 %v1753
    %v1769 = vunpack.c.h.b16 %v1753
    %v1770 = vunpack.c.l.b16 %v1754
    %v1771 = vunpack.c.h.b16 %v1754
    %v1772 = vunpack.c.l.b16 %v1755
    %v1773 = vunpack.c.h.b16 %v1755
    %v1774 = vpack.c.b16 %v1762, %v1762
    %v1775 = vpack.c.b16 %v1763, %v1763
    %v1776 = vpack.c.b16 %v1764, %v1764
    %v1777 = vpack.c.b16 %v1765, %v1765
    %v1778 = vpack.c.b16 %v1766, %v1766
    %v1779 = vpack.c.b16 %v1767, %v1767
    %v1780 = vpack.c.b16 %v1768, %v1768
    %v1781 = vpack.c.b16 %v1769, %v1769
    %v1782 = vpack.c.b16 %v1770, %v1770
    %v1783 = vpack.c.b16 %v1771, %v1771
    %v1784 = vpack.c.b16 %v1772, %v1772
    %v1785 = vpack.c.b16 %v1773, %v1773
    %1798 = vmatprep.subr.bf16.mxu0 0
    %1799 = vmatpush1.bf16.msra.mxu0 %v820
    %1800 = vmatprep.subr.bf16.mxu0 0
    %1801 = vmatpush1.bf16.msra.mxu0 %v819
    %1802 = vmatprep.subr.bf16.mxu0 0
    %1803 = vmatpush1.bf16.msra.mxu0 %v818
    %1804 = vmatprep.subr.bf16.mxu0 0
    %1805 = vmatpush1.bf16.msra.mxu0 %v817
    %1806 = vmatprep.subr.bf16.mxu0 0
    %1807 = vmatpush1.bf16.msra.mxu0 %v816
    %1808 = vmatprep.subr.bf16.mxu0 0
    %1809 = vmatpush1.bf16.msra.mxu0 %v815
    %1810 = vmatprep.subr.bf16.mxu0 0
    %1811 = vmatpush1.bf16.msra.mxu0 %v814
    %1812 = vmatprep.subr.bf16.mxu0 0
    %1813 = vmatpush1.bf16.msra.mxu0 %v813
    %1814 = vmatprep.subr.bf16.mxu0 0
    %1815 = vmatpush2.bf16.msra.mxu0 %v828
    %1816 = vmatprep.subr.bf16.mxu0 0
    %1817 = vmatpush2.bf16.msra.mxu0 %v827
    %1818 = vmatprep.subr.bf16.mxu0 0
    %1819 = vmatpush2.bf16.msra.mxu0 %v826
    %1820 = vmatprep.subr.bf16.mxu0 0
    %1821 = vmatpush2.bf16.msra.mxu0 %v825
    %1822 = vmatprep.subr.bf16.mxu0 0
    %1823 = vmatpush2.bf16.msra.mxu0 %v824
    %1824 = vmatprep.subr.bf16.mxu0 0
    %1825 = vmatpush2.bf16.msra.mxu0 %v823
    %1826 = vmatprep.subr.bf16.mxu0 0
    %1827 = vmatpush2.bf16.msra.mxu0 %v822
    %1828 = vmatprep.subr.bf16.mxu0 0
    %1829 = vmatpush2.bf16.msra.mxu0 %v821
    %1830 = vmatprep.mubr.bf16.mxu0 %v1775
    %1831 = vmatmul.mubr.bf16.gmra.mxu0 %v1774
    %v1832 = vpop.f32.mrf.mxu0
    %v1833 = vadd.f32 %v385, %v1832
    %v1834 = vpop.f32.mrf.mxu0
    %v1835 = vpop.f32.mrf.mxu0
    %v1836 = vpop.f32.mrf.mxu0
    %1837 = vdwg.mxu0
    %1838 = vmatprep.subr.bf16.mxu0 0
    %1839 = vmatpush1.bf16.msra.mxu0 %v836
    %1840 = vmatprep.subr.bf16.mxu0 0
    %1841 = vmatpush1.bf16.msra.mxu0 %v835
    %1842 = vmatprep.subr.bf16.mxu0 0
    %1843 = vmatpush1.bf16.msra.mxu0 %v834
    %1844 = vmatprep.subr.bf16.mxu0 0
    %1845 = vmatpush1.bf16.msra.mxu0 %v833
    %1846 = vmatprep.subr.bf16.mxu0 0
    %1847 = vmatpush1.bf16.msra.mxu0 %v832
    %1848 = vmatprep.subr.bf16.mxu0 0
    %1849 = vmatpush1.bf16.msra.mxu0 %v831
    %1850 = vmatprep.subr.bf16.mxu0 0
    %1851 = vmatpush1.bf16.msra.mxu0 %v830
    %1852 = vmatprep.subr.bf16.mxu0 0
    %1853 = vmatpush1.bf16.msra.mxu0 %v829
    %1854 = vmatprep.subr.bf16.mxu0 0
    %1855 = vmatpush2.bf16.msra.mxu0 %v844
    %1856 = vmatprep.subr.bf16.mxu0 0
    %1857 = vmatpush2.bf16.msra.mxu0 %v843
    %1858 = vmatprep.subr.bf16.mxu0 0
    %1859 = vmatpush2.bf16.msra.mxu0 %v842
    %1860 = vmatprep.subr.bf16.mxu0 0
    %1861 = vmatpush2.bf16.msra.mxu0 %v841
    %1862 = vmatprep.subr.bf16.mxu0 0
    %1863 = vmatpush2.bf16.msra.mxu0 %v840
    %1864 = vmatprep.subr.bf16.mxu0 0
    %1865 = vmatpush2.bf16.msra.mxu0 %v839
    %1866 = vmatprep.subr.bf16.mxu0 0
    %1867 = vmatpush2.bf16.msra.mxu0 %v838
    %1868 = vmatprep.subr.bf16.mxu0 0
    %1869 = vmatpush2.bf16.msra.mxu0 %v837
    %1870 = vmatprep.mubr.bf16.mxu0 %v1777
    %1871 = vmatmul.mubr.bf16.gmra.mxu0 %v1776
    %v1872 = vpop.f32.mrf.mxu0
    %v1873 = vadd.f32 %v1833, %v1872
    %v1874 = vpop.f32.mrf.mxu0
    %v1875 = vpop.f32.mrf.mxu0
    %v1876 = vpop.f32.mrf.mxu0
    %1877 = vdwg.mxu0
    %1878 = vmatprep.subr.bf16.mxu0 0
    %1879 = vmatpush1.bf16.msra.mxu0 %v852
    %1880 = vmatprep.subr.bf16.mxu0 0
    %1881 = vmatpush1.bf16.msra.mxu0 %v851
    %1882 = vmatprep.subr.bf16.mxu0 0
    %1883 = vmatpush1.bf16.msra.mxu0 %v850
    %1884 = vmatprep.subr.bf16.mxu0 0
    %1885 = vmatpush1.bf16.msra.mxu0 %v849
    %1886 = vmatprep.subr.bf16.mxu0 0
    %1887 = vmatpush1.bf16.msra.mxu0 %v848
    %1888 = vmatprep.subr.bf16.mxu0 0
    %1889 = vmatpush1.bf16.msra.mxu0 %v847
    %1890 = vmatprep.subr.bf16.mxu0 0
    %1891 = vmatpush1.bf16.msra.mxu0 %v846
    %1892 = vmatprep.subr.bf16.mxu0 0
    %1893 = vmatpush1.bf16.msra.mxu0 %v845
    %1894 = vmatprep.subr.bf16.mxu0 0
    %1895 = vmatpush2.bf16.msra.mxu0 %v860
    %1896 = vmatprep.subr.bf16.mxu0 0
    %1897 = vmatpush2.bf16.msra.mxu0 %v859
    %1898 = vmatprep.subr.bf16.mxu0 0
    %1899 = vmatpush2.bf16.msra.mxu0 %v858
    %1900 = vmatprep.subr.bf16.mxu0 0
    %1901 = vmatpush2.bf16.msra.mxu0 %v857
    %1902 = vmatprep.subr.bf16.mxu0 0
    %1903 = vmatpush2.bf16.msra.mxu0 %v856
    %1904 = vmatprep.subr.bf16.mxu0 0
    %1905 = vmatpush2.bf16.msra.mxu0 %v855
    %1906 = vmatprep.subr.bf16.mxu0 0
    %1907 = vmatpush2.bf16.msra.mxu0 %v854
    %1908 = vmatprep.subr.bf16.mxu0 0
    %1909 = vmatpush2.bf16.msra.mxu0 %v853
    %1910 = vmatprep.mubr.bf16.mxu0 %v1779
    %1911 = vmatmul.mubr.bf16.gmra.mxu0 %v1778
    %v1912 = vpop.f32.mrf.mxu0
    %v1913 = vadd.f32 %v1873, %v1912
    %v1914 = vpop.f32.mrf.mxu0
    %v1915 = vpop.f32.mrf.mxu0
    %v1916 = vpop.f32.mrf.mxu0
    %1917 = vdwg.mxu0
    %1918 = vmatprep.subr.bf16.mxu0 0
    %1919 = vmatpush1.bf16.msra.mxu0 %v868
    %1920 = vmatprep.subr.bf16.mxu0 0
    %1921 = vmatpush1.bf16.msra.mxu0 %v867
    %1922 = vmatprep.subr.bf16.mxu0 0
    %1923 = vmatpush1.bf16.msra.mxu0 %v866
    %1924 = vmatprep.subr.bf16.mxu0 0
    %1925 = vmatpush1.bf16.msra.mxu0 %v865
    %1926 = vmatprep.subr.bf16.mxu0 0
    %1927 = vmatpush1.bf16.msra.mxu0 %v864
    %1928 = vmatprep.subr.bf16.mxu0 0
    %1929 = vmatpush1.bf16.msra.mxu0 %v863
    %1930 = vmatprep.subr.bf16.mxu0 0
    %1931 = vmatpush1.bf16.msra.mxu0 %v862
    %1932 = vmatprep.subr.bf16.mxu0 0
    %1933 = vmatpush1.bf16.msra.mxu0 %v861
    %1934 = vmatprep.subr.bf16.mxu0 0
    %1935 = vmatpush2.bf16.msra.mxu0 %v876
    %1936 = vmatprep.subr.bf16.mxu0 0
    %1937 = vmatpush2.bf16.msra.mxu0 %v875
    %1938 = vmatprep.subr.bf16.mxu0 0
    %1939 = vmatpush2.bf16.msra.mxu0 %v874
    %1940 = vmatprep.subr.bf16.mxu0 0
    %1941 = vmatpush2.bf16.msra.mxu0 %v873
    %1942 = vmatprep.subr.bf16.mxu0 0
    %1943 = vmatpush2.bf16.msra.mxu0 %v872
    %1944 = vmatprep.subr.bf16.mxu0 0
    %1945 = vmatpush2.bf16.msra.mxu0 %v871
    %1946 = vmatprep.subr.bf16.mxu0 0
    %1947 = vmatpush2.bf16.msra.mxu0 %v870
    %1948 = vmatprep.subr.bf16.mxu0 0
    %1949 = vmatpush2.bf16.msra.mxu0 %v869
    %1950 = vmatprep.mubr.bf16.mxu0 %v1781
    %1951 = vmatmul.mubr.bf16.gmra.mxu0 %v1780
    %v1952 = vpop.f32.mrf.mxu0
    %v1953 = vadd.f32 %v1913, %v1952
    %v1954 = vpop.f32.mrf.mxu0
    %v1955 = vpop.f32.mrf.mxu0
    %v1956 = vpop.f32.mrf.mxu0
    %1957 = vdwg.mxu0
    %1958 = vmatprep.subr.bf16.mxu0 0
    %1959 = vmatpush1.bf16.msra.mxu0 %v884
    %1960 = vmatprep.subr.bf16.mxu0 0
    %1961 = vmatpush1.bf16.msra.mxu0 %v883
    %1962 = vmatprep.subr.bf16.mxu0 0
    %1963 = vmatpush1.bf16.msra.mxu0 %v882
    %1964 = vmatprep.subr.bf16.mxu0 0
    %1965 = vmatpush1.bf16.msra.mxu0 %v881
    %1966 = vmatprep.subr.bf16.mxu0 0
    %1967 = vmatpush1.bf16.msra.mxu0 %v880
    %1968 = vmatprep.subr.bf16.mxu0 0
    %1969 = vmatpush1.bf16.msra.mxu0 %v879
    %1970 = vmatprep.subr.bf16.mxu0 0
    %1971 = vmatpush1.bf16.msra.mxu0 %v878
    %1972 = vmatprep.subr.bf16.mxu0 0
    %1973 = vmatpush1.bf16.msra.mxu0 %v877
    %1974 = vmatprep.subr.bf16.mxu0 0
    %1975 = vmatpush2.bf16.msra.mxu0 %v892
    %1976 = vmatprep.subr.bf16.mxu0 0
    %1977 = vmatpush2.bf16.msra.mxu0 %v891
    %1978 = vmatprep.subr.bf16.mxu0 0
    %1979 = vmatpush2.bf16.msra.mxu0 %v890
    %1980 = vmatprep.subr.bf16.mxu0 0
    %1981 = vmatpush2.bf16.msra.mxu0 %v889
    %1982 = vmatprep.subr.bf16.mxu0 0
    %1983 = vmatpush2.bf16.msra.mxu0 %v888
    %1984 = vmatprep.subr.bf16.mxu0 0
    %1985 = vmatpush2.bf16.msra.mxu0 %v887
    %1986 = vmatprep.subr.bf16.mxu0 0
    %1987 = vmatpush2.bf16.msra.mxu0 %v886
    %1988 = vmatprep.subr.bf16.mxu0 0
    %1989 = vmatpush2.bf16.msra.mxu0 %v885
    %1990 = vmatprep.mubr.bf16.mxu0 %v1783
    %1991 = vmatmul.mubr.bf16.gmra.mxu0 %v1782
    %v1992 = vpop.f32.mrf.mxu0
    %v1993 = vadd.f32 %v1953, %v1992
    %v1994 = vpop.f32.mrf.mxu0
    %v1995 = vpop.f32.mrf.mxu0
    %v1996 = vpop.f32.mrf.mxu0
    %1997 = vdwg.mxu0
    %1998 = vmatprep.subr.bf16.mxu0 0
    %1999 = vmatpush1.bf16.msra.mxu0 %v900
    %2000 = vmatprep.subr.bf16.mxu0 0
    %2001 = vmatpush1.bf16.msra.mxu0 %v899
    %2002 = vmatprep.subr.bf16.mxu0 0
    %2003 = vmatpush1.bf16.msra.mxu0 %v898
    %2004 = vmatprep.subr.bf16.mxu0 0
    %2005 = vmatpush1.bf16.msra.mxu0 %v897
    %2006 = vmatprep.subr.bf16.mxu0 0
    %2007 = vmatpush1.bf16.msra.mxu0 %v896
    %2008 = vmatprep.subr.bf16.mxu0 0
    %2009 = vmatpush1.bf16.msra.mxu0 %v895
    %2010 = vmatprep.subr.bf16.mxu0 0
    %2011 = vmatpush1.bf16.msra.mxu0 %v894
    %2012 = vmatprep.subr.bf16.mxu0 0
    %2013 = vmatpush1.bf16.msra.mxu0 %v893
    %2014 = vmatprep.subr.bf16.mxu0 0
    %2015 = vmatpush2.bf16.msra.mxu0 %v908
    %2016 = vmatprep.subr.bf16.mxu0 0
    %2017 = vmatpush2.bf16.msra.mxu0 %v907
    %2018 = vmatprep.subr.bf16.mxu0 0
    %2019 = vmatpush2.bf16.msra.mxu0 %v906
    %2020 = vmatprep.subr.bf16.mxu0 0
    %2021 = vmatpush2.bf16.msra.mxu0 %v905
    %2022 = vmatprep.subr.bf16.mxu0 0
    %2023 = vmatpush2.bf16.msra.mxu0 %v904
    %2024 = vmatprep.subr.bf16.mxu0 0
    %2025 = vmatpush2.bf16.msra.mxu0 %v903
    %2026 = vmatprep.subr.bf16.mxu0 0
    %2027 = vmatpush2.bf16.msra.mxu0 %v902
    %2028 = vmatprep.subr.bf16.mxu0 0
    %2029 = vmatpush2.bf16.msra.mxu0 %v901
    %2030 = vmatprep.mubr.bf16.mxu0 %v1785
    %2031 = vmatmul.mubr.bf16.gmra.mxu0 %v1784
    %v2032 = vpop.f32.mrf.mxu0
    %v2033 = vadd.f32 %v1993, %v2032
    %v2034 = vpop.f32.mrf.mxu0
    %v2035 = vpop.f32.mrf.mxu0
    %v2036 = vpop.f32.mrf.mxu0
    %2037 = vdwg.mxu0
    %vm2038 = vcmp.gt.f32.partialorder %v2033, 0.0
    %v2039 = vmul.f32 %v2033, 0.01
    %v2040 = vsel %vm2038, %v2033, %v2039
    %v2041 = vpack.c.bf16 %v2040, %v2040
    %s2042 = scalar_lea.vmem [#allocation7], 128
    %v2043 = vld [vmem:[%s2042] sm:$0xf]
    %v2044 = vld [vmem:[%s2042 + $0x4] sm:$0xf]
    %v2045 = vld [vmem:[%s2042 + $0x8] sm:$0xf]
    %v2046 = vld [vmem:[%s2042 + $0xc] sm:$0xf]
    %v2047 = vld [vmem:[%s2042 + $0x10] sm:$0xf]
    %v2048 = vld [vmem:[%s2042 + $0x14] sm:$0xf]
    %v2049 = vld [vmem:[%s2042 + $0x18] sm:$0xf]
    %v2050 = vld [vmem:[%s2042 + $0x1c] sm:$0xf]
    %v2051 = vld [vmem:[%s2042 + $0x20] sm:$0xf]
    %v2052 = vld [vmem:[%s2042 + $0x24] sm:$0xf]
    %v2053 = vld [vmem:[%s2042 + $0x28] sm:$0xf]
    %v2054 = vld [vmem:[%s2042 + $0x2c] sm:$0xf]
    %v2055 = vld [vmem:[%s2042 + $0x30] sm:$0xf]
    %v2056 = vld [vmem:[%s2042 + $0x34] sm:$0xf]
    %v2057 = vld [vmem:[%s2042 + $0x38] sm:$0xf]
    %v2058 = vld [vmem:[%s2042 + $0x3c] sm:$0xf]
    %v2075 = vunpack.c.l.b16 %v2043
    %v2076 = vunpack.c.l.b16 %v2044
    %v2077 = vunpack.c.l.b16 %v2045
    %v2078 = vunpack.c.l.b16 %v2046
    %v2079 = vunpack.c.l.b16 %v2047
    %v2080 = vunpack.c.l.b16 %v2048
    %v2081 = vunpack.c.l.b16 %v2049
    %v2082 = vunpack.c.l.b16 %v2050
    %v2083 = vunpack.c.l.b16 %v2051
    %v2084 = vunpack.c.l.b16 %v2052
    %v2085 = vunpack.c.l.b16 %v2053
    %v2086 = vunpack.c.l.b16 %v2054
    %v2087 = vunpack.c.l.b16 %v2055
    %v2088 = vunpack.c.l.b16 %v2056
    %v2089 = vunpack.c.l.b16 %v2057
    %v2090 = vunpack.c.l.b16 %v2058
    %v2091 = vpack.c.b16 %v2076, %v2075
    %v2092 = vpack.c.b16 %v2078, %v2077
    %v2093 = vpack.c.b16 %v2080, %v2079
    %v2094 = vpack.c.b16 %v2082, %v2081
    %v2095 = vpack.c.b16 %v2084, %v2083
    %v2096 = vpack.c.b16 %v2086, %v2085
    %v2097 = vpack.c.b16 %v2088, %v2087
    %v2098 = vpack.c.b16 %v2090, %v2089
    %2107 = vmatprep.subr.bf16.mxu0 0
    %2108 = vmatpush1.bf16.msra.mxu0 %v2098
    %2109 = vmatprep.subr.bf16.mxu0 0
    %2110 = vmatpush1.bf16.msra.mxu0 %v2097
    %2111 = vmatprep.subr.bf16.mxu0 0
    %2112 = vmatpush1.bf16.msra.mxu0 %v2096
    %2113 = vmatprep.subr.bf16.mxu0 0
    %2114 = vmatpush1.bf16.msra.mxu0 %v2095
    %2115 = vmatprep.subr.bf16.mxu0 0
    %2116 = vmatpush1.bf16.msra.mxu0 %v2094
    %2117 = vmatprep.subr.bf16.mxu0 0
    %2118 = vmatpush1.bf16.msra.mxu0 %v2093
    %2119 = vmatprep.subr.bf16.mxu0 0
    %2120 = vmatpush1.bf16.msra.mxu0 %v2092
    %2121 = vmatprep.subr.bf16.mxu0 0
    %2122 = vmatpush1.bf16.msra.mxu0 %v2091
    %2123 = vmatprep.subr.bf16.mxu0 0
    %2124 = vmatpush2.bf16.msra.mxu0 0
    %2125 = vmatprep.subr.bf16.mxu0 0
    %2126 = vmatpush2.bf16.msra.mxu0 0
    %2127 = vmatprep.subr.bf16.mxu0 0
    %2128 = vmatpush2.bf16.msra.mxu0 0
    %2129 = vmatprep.subr.bf16.mxu0 0
    %2130 = vmatpush2.bf16.msra.mxu0 0
    %2131 = vmatprep.subr.bf16.mxu0 0
    %2132 = vmatpush2.bf16.msra.mxu0 0
    %2133 = vmatprep.subr.bf16.mxu0 0
    %2134 = vmatpush2.bf16.msra.mxu0 0
    %2135 = vmatprep.subr.bf16.mxu0 0
    %2136 = vmatpush2.bf16.msra.mxu0 0
    %2137 = vmatprep.subr.bf16.mxu0 0
    %2138 = vmatpush2.bf16.msra.mxu0 0
    %2139 = vmatprep.mubr.bf16.mxu0 0
    %2140 = vmatmul.mubr.bf16.gmra.mxu0 %v2041
    %v2141 = vpop.f32.mrf.mxu0
    %v2142 = vadd.f32 0.0, %v2141
    %v2143 = vpop.f32.mrf.mxu0
    %v2144 = vpop.f32.mrf.mxu0
    %v2145 = vpop.f32.mrf.mxu0
    %2146 = vdwg.mxu0
    %v2147 = vadd.f32 %v1745, %v2142
    %v2148 = vld [vmem:[#allocation2 + $0x48] sm:$0xff]
    %v2149 = vld [vmem:[#allocation2 + $0x50] sm:$0xff]
    %v2150 = vld [vmem:[#allocation2 + $0x58] sm:$0xff]
    %v2151 = vld [vmem:[#allocation2 + $0x60] sm:$0xff]
    %v2152 = vld [vmem:[#allocation2 + $0x68] sm:$0xff]
    %v2153 = vld [vmem:[#allocation2 + $0x70] sm:$0xff]
    %v2160 = vunpack.c.l.b16 %v2148
    %v2161 = vunpack.c.h.b16 %v2148
    %v2162 = vunpack.c.l.b16 %v2149
    %v2163 = vunpack.c.h.b16 %v2149
    %v2164 = vunpack.c.l.b16 %v2150
    %v2165 = vunpack.c.h.b16 %v2150
    %v2166 = vunpack.c.l.b16 %v2151
    %v2167 = vunpack.c.h.b16 %v2151
    %v2168 = vunpack.c.l.b16 %v2152
    %v2169 = vunpack.c.h.b16 %v2152
    %v2170 = vunpack.c.l.b16 %v2153
    %v2171 = vunpack.c.h.b16 %v2153
    %v2172 = vpack.c.b16 %v2160, %v2160
    %v2173 = vpack.c.b16 %v2161, %v2161
    %v2174 = vpack.c.b16 %v2162, %v2162
    %v2175 = vpack.c.b16 %v2163, %v2163
    %v2176 = vpack.c.b16 %v2164, %v2164
    %v2177 = vpack.c.b16 %v2165, %v2165
    %v2178 = vpack.c.b16 %v2166, %v2166
    %v2179 = vpack.c.b16 %v2167, %v2167
    %v2180 = vpack.c.b16 %v2168, %v2168
    %v2181 = vpack.c.b16 %v2169, %v2169
    %v2182 = vpack.c.b16 %v2170, %v2170
    %v2183 = vpack.c.b16 %v2171, %v2171
    %2196 = vmatprep.subr.bf16.mxu0 0
    %2197 = vmatpush1.bf16.msra.mxu0 %v820
    %2198 = vmatprep.subr.bf16.mxu0 0
    %2199 = vmatpush1.bf16.msra.mxu0 %v819
    %2200 = vmatprep.subr.bf16.mxu0 0
    %2201 = vmatpush1.bf16.msra.mxu0 %v818
    %2202 = vmatprep.subr.bf16.mxu0 0
    %2203 = vmatpush1.bf16.msra.mxu0 %v817
    %2204 = vmatprep.subr.bf16.mxu0 0
    %2205 = vmatpush1.bf16.msra.mxu0 %v816
    %2206 = vmatprep.subr.bf16.mxu0 0
    %2207 = vmatpush1.bf16.msra.mxu0 %v815
    %2208 = vmatprep.subr.bf16.mxu0 0
    %2209 = vmatpush1.bf16.msra.mxu0 %v814
    %2210 = vmatprep.subr.bf16.mxu0 0
    %2211 = vmatpush1.bf16.msra.mxu0 %v813
    %2212 = vmatprep.subr.bf16.mxu0 0
    %2213 = vmatpush2.bf16.msra.mxu0 %v828
    %2214 = vmatprep.subr.bf16.mxu0 0
    %2215 = vmatpush2.bf16.msra.mxu0 %v827
    %2216 = vmatprep.subr.bf16.mxu0 0
    %2217 = vmatpush2.bf16.msra.mxu0 %v826
    %2218 = vmatprep.subr.bf16.mxu0 0
    %2219 = vmatpush2.bf16.msra.mxu0 %v825
    %2220 = vmatprep.subr.bf16.mxu0 0
    %2221 = vmatpush2.bf16.msra.mxu0 %v824
    %2222 = vmatprep.subr.bf16.mxu0 0
    %2223 = vmatpush2.bf16.msra.mxu0 %v823
    %2224 = vmatprep.subr.bf16.mxu0 0
    %2225 = vmatpush2.bf16.msra.mxu0 %v822
    %2226 = vmatprep.subr.bf16.mxu0 0
    %2227 = vmatpush2.bf16.msra.mxu0 %v821
    %2228 = vmatprep.mubr.bf16.mxu0 %v2173
    %2229 = vmatmul.mubr.bf16.gmra.mxu0 %v2172
    %v2230 = vpop.f32.mrf.mxu0
    %v2231 = vadd.f32 %v385, %v2230
    %v2232 = vpop.f32.mrf.mxu0
    %v2233 = vpop.f32.mrf.mxu0
    %v2234 = vpop.f32.mrf.mxu0
    %2235 = vdwg.mxu0
    %2236 = vmatprep.subr.bf16.mxu0 0
    %2237 = vmatpush1.bf16.msra.mxu0 %v836
    %2238 = vmatprep.subr.bf16.mxu0 0
    %2239 = vmatpush1.bf16.msra.mxu0 %v835
    %2240 = vmatprep.subr.bf16.mxu0 0
    %2241 = vmatpush1.bf16.msra.mxu0 %v834
    %2242 = vmatprep.subr.bf16.mxu0 0
    %2243 = vmatpush1.bf16.msra.mxu0 %v833
    %2244 = vmatprep.subr.bf16.mxu0 0
    %2245 = vmatpush1.bf16.msra.mxu0 %v832
    %2246 = vmatprep.subr.bf16.mxu0 0
    %2247 = vmatpush1.bf16.msra.mxu0 %v831
    %2248 = vmatprep.subr.bf16.mxu0 0
    %2249 = vmatpush1.bf16.msra.mxu0 %v830
    %2250 = vmatprep.subr.bf16.mxu0 0
    %2251 = vmatpush1.bf16.msra.mxu0 %v829
    %2252 = vmatprep.subr.bf16.mxu0 0
    %2253 = vmatpush2.bf16.msra.mxu0 %v844
    %2254 = vmatprep.subr.bf16.mxu0 0
    %2255 = vmatpush2.bf16.msra.mxu0 %v843
    %2256 = vmatprep.subr.bf16.mxu0 0
    %2257 = vmatpush2.bf16.msra.mxu0 %v842
    %2258 = vmatprep.subr.bf16.mxu0 0
    %2259 = vmatpush2.bf16.msra.mxu0 %v841
    %2260 = vmatprep.subr.bf16.mxu0 0
    %2261 = vmatpush2.bf16.msra.mxu0 %v840
    %2262 = vmatprep.subr.bf16.mxu0 0
    %2263 = vmatpush2.bf16.msra.mxu0 %v839
    %2264 = vmatprep.subr.bf16.mxu0 0
    %2265 = vmatpush2.bf16.msra.mxu0 %v838
    %2266 = vmatprep.subr.bf16.mxu0 0
    %2267 = vmatpush2.bf16.msra.mxu0 %v837
    %2268 = vmatprep.mubr.bf16.mxu0 %v2175
    %2269 = vmatmul.mubr.bf16.gmra.mxu0 %v2174
    %v2270 = vpop.f32.mrf.mxu0
    %v2271 = vadd.f32 %v2231, %v2270
    %v2272 = vpop.f32.mrf.mxu0
    %v2273 = vpop.f32.mrf.mxu0
    %v2274 = vpop.f32.mrf.mxu0
    %2275 = vdwg.mxu0
    %2276 = vmatprep.subr.bf16.mxu0 0
    %2277 = vmatpush1.bf16.msra.mxu0 %v852
    %2278 = vmatprep.subr.bf16.mxu0 0
    %2279 = vmatpush1.bf16.msra.mxu0 %v851
    %2280 = vmatprep.subr.bf16.mxu0 0
    %2281 = vmatpush1.bf16.msra.mxu0 %v850
    %2282 = vmatprep.subr.bf16.mxu0 0
    %2283 = vmatpush1.bf16.msra.mxu0 %v849
    %2284 = vmatprep.subr.bf16.mxu0 0
    %2285 = vmatpush1.bf16.msra.mxu0 %v848
    %2286 = vmatprep.subr.bf16.mxu0 0
    %2287 = vmatpush1.bf16.msra.mxu0 %v847
    %2288 = vmatprep.subr.bf16.mxu0 0
    %2289 = vmatpush1.bf16.msra.mxu0 %v846
    %2290 = vmatprep.subr.bf16.mxu0 0
    %2291 = vmatpush1.bf16.msra.mxu0 %v845
    %2292 = vmatprep.subr.bf16.mxu0 0
    %2293 = vmatpush2.bf16.msra.mxu0 %v860
    %2294 = vmatprep.subr.bf16.mxu0 0
    %2295 = vmatpush2.bf16.msra.mxu0 %v859
    %2296 = vmatprep.subr.bf16.mxu0 0
    %2297 = vmatpush2.bf16.msra.mxu0 %v858
    %2298 = vmatprep.subr.bf16.mxu0 0
    %2299 = vmatpush2.bf16.msra.mxu0 %v857
    %2300 = vmatprep.subr.bf16.mxu0 0
    %2301 = vmatpush2.bf16.msra.mxu0 %v856
    %2302 = vmatprep.subr.bf16.mxu0 0
    %2303 = vmatpush2.bf16.msra.mxu0 %v855
    %2304 = vmatprep.subr.bf16.mxu0 0
    %2305 = vmatpush2.bf16.msra.mxu0 %v854
    %2306 = vmatprep.subr.bf16.mxu0 0
    %2307 = vmatpush2.bf16.msra.mxu0 %v853
    %2308 = vmatprep.mubr.bf16.mxu0 %v2177
    %2309 = vmatmul.mubr.bf16.gmra.mxu0 %v2176
    %v2310 = vpop.f32.mrf.mxu0
    %v2311 = vadd.f32 %v2271, %v2310
    %v2312 = vpop.f32.mrf.mxu0
    %v2313 = vpop.f32.mrf.mxu0
    %v2314 = vpop.f32.mrf.mxu0
    %2315 = vdwg.mxu0
    %2316 = vmatprep.subr.bf16.mxu0 0
    %2317 = vmatpush1.bf16.msra.mxu0 %v868
    %2318 = vmatprep.subr.bf16.mxu0 0
    %2319 = vmatpush1.bf16.msra.mxu0 %v867
    %2320 = vmatprep.subr.bf16.mxu0 0
    %2321 = vmatpush1.bf16.msra.mxu0 %v866
    %2322 = vmatprep.subr.bf16.mxu0 0
    %2323 = vmatpush1.bf16.msra.mxu0 %v865
    %2324 = vmatprep.subr.bf16.mxu0 0
    %2325 = vmatpush1.bf16.msra.mxu0 %v864
    %2326 = vmatprep.subr.bf16.mxu0 0
    %2327 = vmatpush1.bf16.msra.mxu0 %v863
    %2328 = vmatprep.subr.bf16.mxu0 0
    %2329 = vmatpush1.bf16.msra.mxu0 %v862
    %2330 = vmatprep.subr.bf16.mxu0 0
    %2331 = vmatpush1.bf16.msra.mxu0 %v861
    %2332 = vmatprep.subr.bf16.mxu0 0
    %2333 = vmatpush2.bf16.msra.mxu0 %v876
    %2334 = vmatprep.subr.bf16.mxu0 0
    %2335 = vmatpush2.bf16.msra.mxu0 %v875
    %2336 = vmatprep.subr.bf16.mxu0 0
    %2337 = vmatpush2.bf16.msra.mxu0 %v874
    %2338 = vmatprep.subr.bf16.mxu0 0
    %2339 = vmatpush2.bf16.msra.mxu0 %v873
    %2340 = vmatprep.subr.bf16.mxu0 0
    %2341 = vmatpush2.bf16.msra.mxu0 %v872
    %2342 = vmatprep.subr.bf16.mxu0 0
    %2343 = vmatpush2.bf16.msra.mxu0 %v871
    %2344 = vmatprep.subr.bf16.mxu0 0
    %2345 = vmatpush2.bf16.msra.mxu0 %v870
    %2346 = vmatprep.subr.bf16.mxu0 0
    %2347 = vmatpush2.bf16.msra.mxu0 %v869
    %2348 = vmatprep.mubr.bf16.mxu0 %v2179
    %2349 = vmatmul.mubr.bf16.gmra.mxu0 %v2178
    %v2350 = vpop.f32.mrf.mxu0
    %v2351 = vadd.f32 %v2311, %v2350
    %v2352 = vpop.f32.mrf.mxu0
    %v2353 = vpop.f32.mrf.mxu0
    %v2354 = vpop.f32.mrf.mxu0
    %2355 = vdwg.mxu0
    %2356 = vmatprep.subr.bf16.mxu0 0
    %2357 = vmatpush1.bf16.msra.mxu0 %v884
    %2358 = vmatprep.subr.bf16.mxu0 0
    %2359 = vmatpush1.bf16.msra.mxu0 %v883
    %2360 = vmatprep.subr.bf16.mxu0 0
    %2361 = vmatpush1.bf16.msra.mxu0 %v882
    %2362 = vmatprep.subr.bf16.mxu0 0
    %2363 = vmatpush1.bf16.msra.mxu0 %v881
    %2364 = vmatprep.subr.bf16.mxu0 0
    %2365 = vmatpush1.bf16.msra.mxu0 %v880
    %2366 = vmatprep.subr.bf16.mxu0 0
    %2367 = vmatpush1.bf16.msra.mxu0 %v879
    %2368 = vmatprep.subr.bf16.mxu0 0
    %2369 = vmatpush1.bf16.msra.mxu0 %v878
    %2370 = vmatprep.subr.bf16.mxu0 0
    %2371 = vmatpush1.bf16.msra.mxu0 %v877
    %2372 = vmatprep.subr.bf16.mxu0 0
    %2373 = vmatpush2.bf16.msra.mxu0 %v892
    %2374 = vmatprep.subr.bf16.mxu0 0
    %2375 = vmatpush2.bf16.msra.mxu0 %v891
    %2376 = vmatprep.subr.bf16.mxu0 0
    %2377 = vmatpush2.bf16.msra.mxu0 %v890
    %2378 = vmatprep.subr.bf16.mxu0 0
    %2379 = vmatpush2.bf16.msra.mxu0 %v889
    %2380 = vmatprep.subr.bf16.mxu0 0
    %2381 = vmatpush2.bf16.msra.mxu0 %v888
    %2382 = vmatprep.subr.bf16.mxu0 0
    %2383 = vmatpush2.bf16.msra.mxu0 %v887
    %2384 = vmatprep.subr.bf16.mxu0 0
    %2385 = vmatpush2.bf16.msra.mxu0 %v886
    %2386 = vmatprep.subr.bf16.mxu0 0
    %2387 = vmatpush2.bf16.msra.mxu0 %v885
    %2388 = vmatprep.mubr.bf16.mxu0 %v2181
    %2389 = vmatmul.mubr.bf16.gmra.mxu0 %v2180
    %v2390 = vpop.f32.mrf.mxu0
    %v2391 = vadd.f32 %v2351, %v2390
    %v2392 = vpop.f32.mrf.mxu0
    %v2393 = vpop.f32.mrf.mxu0
    %v2394 = vpop.f32.mrf.mxu0
    %2395 = vdwg.mxu0
    %2396 = vmatprep.subr.bf16.mxu0 0
    %2397 = vmatpush1.bf16.msra.mxu0 %v900
    %2398 = vmatprep.subr.bf16.mxu0 0
    %2399 = vmatpush1.bf16.msra.mxu0 %v899
    %2400 = vmatprep.subr.bf16.mxu0 0
    %2401 = vmatpush1.bf16.msra.mxu0 %v898
    %2402 = vmatprep.subr.bf16.mxu0 0
    %2403 = vmatpush1.bf16.msra.mxu0 %v897
    %2404 = vmatprep.subr.bf16.mxu0 0
    %2405 = vmatpush1.bf16.msra.mxu0 %v896
    %2406 = vmatprep.subr.bf16.mxu0 0
    %2407 = vmatpush1.bf16.msra.mxu0 %v895
    %2408 = vmatprep.subr.bf16.mxu0 0
    %2409 = vmatpush1.bf16.msra.mxu0 %v894
    %2410 = vmatprep.subr.bf16.mxu0 0
    %2411 = vmatpush1.bf16.msra.mxu0 %v893
    %2412 = vmatprep.subr.bf16.mxu0 0
    %2413 = vmatpush2.bf16.msra.mxu0 %v908
    %2414 = vmatprep.subr.bf16.mxu0 0
    %2415 = vmatpush2.bf16.msra.mxu0 %v907
    %2416 = vmatprep.subr.bf16.mxu0 0
    %2417 = vmatpush2.bf16.msra.mxu0 %v906
    %2418 = vmatprep.subr.bf16.mxu0 0
    %2419 = vmatpush2.bf16.msra.mxu0 %v905
    %2420 = vmatprep.subr.bf16.mxu0 0
    %2421 = vmatpush2.bf16.msra.mxu0 %v904
    %2422 = vmatprep.subr.bf16.mxu0 0
    %2423 = vmatpush2.bf16.msra.mxu0 %v903
    %2424 = vmatprep.subr.bf16.mxu0 0
    %2425 = vmatpush2.bf16.msra.mxu0 %v902
    %2426 = vmatprep.subr.bf16.mxu0 0
    %2427 = vmatpush2.bf16.msra.mxu0 %v901
    %2428 = vmatprep.mubr.bf16.mxu0 %v2183
    %2429 = vmatmul.mubr.bf16.gmra.mxu0 %v2182
    %v2430 = vpop.f32.mrf.mxu0
    %v2431 = vadd.f32 %v2391, %v2430
    %v2432 = vpop.f32.mrf.mxu0
    %v2433 = vpop.f32.mrf.mxu0
    %v2434 = vpop.f32.mrf.mxu0
    %2435 = vdwg.mxu0
    %vm2436 = vcmp.gt.f32.partialorder %v2431, 0.0
    %v2437 = vmul.f32 %v2431, 0.01
    %v2438 = vsel %vm2436, %v2431, %v2437
    %v2439 = vpack.c.bf16 %v2438, %v2438
    %s2440 = scalar_lea.vmem [#allocation7], 192
    %v2441 = vld [vmem:[%s2440] sm:$0xf]
    %v2442 = vld [vmem:[%s2440 + $0x4] sm:$0xf]
    %v2443 = vld [vmem:[%s2440 + $0x8] sm:$0xf]
    %v2444 = vld [vmem:[%s2440 + $0xc] sm:$0xf]
    %v2445 = vld [vmem:[%s2440 + $0x10] sm:$0xf]
    %v2446 = vld [vmem:[%s2440 + $0x14] sm:$0xf]
    %v2447 = vld [vmem:[%s2440 + $0x18] sm:$0xf]
    %v2448 = vld [vmem:[%s2440 + $0x1c] sm:$0xf]
    %v2449 = vld [vmem:[%s2440 + $0x20] sm:$0xf]
    %v2450 = vld [vmem:[%s2440 + $0x24] sm:$0xf]
    %v2451 = vld [vmem:[%s2440 + $0x28] sm:$0xf]
    %v2452 = vld [vmem:[%s2440 + $0x2c] sm:$0xf]
    %v2453 = vld [vmem:[%s2440 + $0x30] sm:$0xf]
    %v2454 = vld [vmem:[%s2440 + $0x34] sm:$0xf]
    %v2455 = vld [vmem:[%s2440 + $0x38] sm:$0xf]
    %v2456 = vld [vmem:[%s2440 + $0x3c] sm:$0xf]
    %v2473 = vunpack.c.l.b16 %v2441
    %v2474 = vunpack.c.l.b16 %v2442
    %v2475 = vunpack.c.l.b16 %v2443
    %v2476 = vunpack.c.l.b16 %v2444
    %v2477 = vunpack.c.l.b16 %v2445
    %v2478 = vunpack.c.l.b16 %v2446
    %v2479 = vunpack.c.l.b16 %v2447
    %v2480 = vunpack.c.l.b16 %v2448
    %v2481 = vunpack.c.l.b16 %v2449
    %v2482 = vunpack.c.l.b16 %v2450
    %v2483 = vunpack.c.l.b16 %v2451
    %v2484 = vunpack.c.l.b16 %v2452
    %v2485 = vunpack.c.l.b16 %v2453
    %v2486 = vunpack.c.l.b16 %v2454
    %v2487 = vunpack.c.l.b16 %v2455
    %v2488 = vunpack.c.l.b16 %v2456
    %v2489 = vpack.c.b16 %v2474, %v2473
    %v2490 = vpack.c.b16 %v2476, %v2475
    %v2491 = vpack.c.b16 %v2478, %v2477
    %v2492 = vpack.c.b16 %v2480, %v2479
    %v2493 = vpack.c.b16 %v2482, %v2481
    %v2494 = vpack.c.b16 %v2484, %v2483
    %v2495 = vpack.c.b16 %v2486, %v2485
    %v2496 = vpack.c.b16 %v2488, %v2487
    %2505 = vmatprep.subr.bf16.mxu0 0
    %2506 = vmatpush1.bf16.msra.mxu0 %v2496
    %2507 = vmatprep.subr.bf16.mxu0 0
    %2508 = vmatpush1.bf16.msra.mxu0 %v2495
    %2509 = vmatprep.subr.bf16.mxu0 0
    %2510 = vmatpush1.bf16.msra.mxu0 %v2494
    %2511 = vmatprep.subr.bf16.mxu0 0
    %2512 = vmatpush1.bf16.msra.mxu0 %v2493
    %2513 = vmatprep.subr.bf16.mxu0 0
    %2514 = vmatpush1.bf16.msra.mxu0 %v2492
    %2515 = vmatprep.subr.bf16.mxu0 0
    %2516 = vmatpush1.bf16.msra.mxu0 %v2491
    %2517 = vmatprep.subr.bf16.mxu0 0
    %2518 = vmatpush1.bf16.msra.mxu0 %v2490
    %2519 = vmatprep.subr.bf16.mxu0 0
    %2520 = vmatpush1.bf16.msra.mxu0 %v2489
    %2521 = vmatprep.subr.bf16.mxu0 0
    %2522 = vmatpush2.bf16.msra.mxu0 0
    %2523 = vmatprep.subr.bf16.mxu0 0
    %2524 = vmatpush2.bf16.msra.mxu0 0
    %2525 = vmatprep.subr.bf16.mxu0 0
    %2526 = vmatpush2.bf16.msra.mxu0 0
    %2527 = vmatprep.subr.bf16.mxu0 0
    %2528 = vmatpush2.bf16.msra.mxu0 0
    %2529 = vmatprep.subr.bf16.mxu0 0
    %2530 = vmatpush2.bf16.msra.mxu0 0
    %2531 = vmatprep.subr.bf16.mxu0 0
    %2532 = vmatpush2.bf16.msra.mxu0 0
    %2533 = vmatprep.subr.bf16.mxu0 0
    %2534 = vmatpush2.bf16.msra.mxu0 0
    %2535 = vmatprep.subr.bf16.mxu0 0
    %2536 = vmatpush2.bf16.msra.mxu0 0
    %2537 = vmatprep.mubr.bf16.mxu0 0
    %2538 = vmatmul.mubr.bf16.gmra.mxu0 %v2439
    %v2539 = vpop.f32.mrf.mxu0
    %v2540 = vadd.f32 0.0, %v2539
    %v2541 = vpop.f32.mrf.mxu0
    %v2542 = vpop.f32.mrf.mxu0
    %v2543 = vpop.f32.mrf.mxu0
    %2544 = vdwg.mxu0
    %v2545 = vadd.f32 %v2147, %v2540
    %v2546 = vld [vmem:[#allocation2 + $0x60] sm:$0xff]
    %v2547 = vld [vmem:[#allocation2 + $0x68] sm:$0xff]
    %v2548 = vld [vmem:[#allocation2 + $0x70] sm:$0xff]
    %v2549 = vld [vmem:[#allocation2 + $0x78] sm:$0xff]
    %v2550 = vld [vmem:[#allocation2 + $0x80] sm:$0xff]
    %v2551 = vld [vmem:[#allocation2 + $0x88] sm:$0xff]
    %v2558 = vunpack.c.l.b16 %v2546
    %v2559 = vunpack.c.h.b16 %v2546
    %v2560 = vunpack.c.l.b16 %v2547
    %v2561 = vunpack.c.h.b16 %v2547
    %v2562 = vunpack.c.l.b16 %v2548
    %v2563 = vunpack.c.h.b16 %v2548
    %v2564 = vunpack.c.l.b16 %v2549
    %v2565 = vunpack.c.h.b16 %v2549
    %v2566 = vunpack.c.l.b16 %v2550
    %v2567 = vunpack.c.h.b16 %v2550
    %v2568 = vunpack.c.l.b16 %v2551
    %v2569 = vunpack.c.h.b16 %v2551
    %v2570 = vpack.c.b16 %v2558, %v2558
    %v2571 = vpack.c.b16 %v2559, %v2559
    %v2572 = vpack.c.b16 %v2560, %v2560
    %v2573 = vpack.c.b16 %v2561, %v2561
    %v2574 = vpack.c.b16 %v2562, %v2562
    %v2575 = vpack.c.b16 %v2563, %v2563
    %v2576 = vpack.c.b16 %v2564, %v2564
    %v2577 = vpack.c.b16 %v2565, %v2565
    %v2578 = vpack.c.b16 %v2566, %v2566
    %v2579 = vpack.c.b16 %v2567, %v2567
    %v2580 = vpack.c.b16 %v2568, %v2568
    %v2581 = vpack.c.b16 %v2569, %v2569
    %2594 = vmatprep.subr.bf16.mxu0 0
    %2595 = vmatpush1.bf16.msra.mxu0 %v820
    %2596 = vmatprep.subr.bf16.mxu0 0
    %2597 = vmatpush1.bf16.msra.mxu0 %v819
    %2598 = vmatprep.subr.bf16.mxu0 0
    %2599 = vmatpush1.bf16.msra.mxu0 %v818
    %2600 = vmatprep.subr.bf16.mxu0 0
    %2601 = vmatpush1.bf16.msra.mxu0 %v817
    %2602 = vmatprep.subr.bf16.mxu0 0
    %2603 = vmatpush1.bf16.msra.mxu0 %v816
    %2604 = vmatprep.subr.bf16.mxu0 0
    %2605 = vmatpush1.bf16.msra.mxu0 %v815
    %2606 = vmatprep.subr.bf16.mxu0 0
    %2607 = vmatpush1.bf16.msra.mxu0 %v814
    %2608 = vmatprep.subr.bf16.mxu0 0
    %2609 = vmatpush1.bf16.msra.mxu0 %v813
    %2610 = vmatprep.subr.bf16.mxu0 0
    %2611 = vmatpush2.bf16.msra.mxu0 %v828
    %2612 = vmatprep.subr.bf16.mxu0 0
    %2613 = vmatpush2.bf16.msra.mxu0 %v827
    %2614 = vmatprep.subr.bf16.mxu0 0
    %2615 = vmatpush2.bf16.msra.mxu0 %v826
    %2616 = vmatprep.subr.bf16.mxu0 0
    %2617 = vmatpush2.bf16.msra.mxu0 %v825
    %2618 = vmatprep.subr.bf16.mxu0 0
    %2619 = vmatpush2.bf16.msra.mxu0 %v824
    %2620 = vmatprep.subr.bf16.mxu0 0
    %2621 = vmatpush2.bf16.msra.mxu0 %v823
    %2622 = vmatprep.subr.bf16.mxu0 0
    %2623 = vmatpush2.bf16.msra.mxu0 %v822
    %2624 = vmatprep.subr.bf16.mxu0 0
    %2625 = vmatpush2.bf16.msra.mxu0 %v821
    %2626 = vmatprep.mubr.bf16.mxu0 %v2571
    %2627 = vmatmul.mubr.bf16.gmra.mxu0 %v2570
    %v2628 = vpop.f32.mrf.mxu0
    %v2629 = vadd.f32 %v385, %v2628
    %v2630 = vpop.f32.mrf.mxu0
    %v2631 = vpop.f32.mrf.mxu0
    %v2632 = vpop.f32.mrf.mxu0
    %2633 = vdwg.mxu0
    %2634 = vmatprep.subr.bf16.mxu0 0
    %2635 = vmatpush1.bf16.msra.mxu0 %v836
    %2636 = vmatprep.subr.bf16.mxu0 0
    %2637 = vmatpush1.bf16.msra.mxu0 %v835
    %2638 = vmatprep.subr.bf16.mxu0 0
    %2639 = vmatpush1.bf16.msra.mxu0 %v834
    %2640 = vmatprep.subr.bf16.mxu0 0
    %2641 = vmatpush1.bf16.msra.mxu0 %v833
    %2642 = vmatprep.subr.bf16.mxu0 0
    %2643 = vmatpush1.bf16.msra.mxu0 %v832
    %2644 = vmatprep.subr.bf16.mxu0 0
    %2645 = vmatpush1.bf16.msra.mxu0 %v831
    %2646 = vmatprep.subr.bf16.mxu0 0
    %2647 = vmatpush1.bf16.msra.mxu0 %v830
    %2648 = vmatprep.subr.bf16.mxu0 0
    %2649 = vmatpush1.bf16.msra.mxu0 %v829
    %2650 = vmatprep.subr.bf16.mxu0 0
    %2651 = vmatpush2.bf16.msra.mxu0 %v844
    %2652 = vmatprep.subr.bf16.mxu0 0
    %2653 = vmatpush2.bf16.msra.mxu0 %v843
    %2654 = vmatprep.subr.bf16.mxu0 0
    %2655 = vmatpush2.bf16.msra.mxu0 %v842
    %2656 = vmatprep.subr.bf16.mxu0 0
    %2657 = vmatpush2.bf16.msra.mxu0 %v841
    %2658 = vmatprep.subr.bf16.mxu0 0
    %2659 = vmatpush2.bf16.msra.mxu0 %v840
    %2660 = vmatprep.subr.bf16.mxu0 0
    %2661 = vmatpush2.bf16.msra.mxu0 %v839
    %2662 = vmatprep.subr.bf16.mxu0 0
    %2663 = vmatpush2.bf16.msra.mxu0 %v838
    %2664 = vmatprep.subr.bf16.mxu0 0
    %2665 = vmatpush2.bf16.msra.mxu0 %v837
    %2666 = vmatprep.mubr.bf16.mxu0 %v2573
    %2667 = vmatmul.mubr.bf16.gmra.mxu0 %v2572
    %v2668 = vpop.f32.mrf.mxu0
    %v2669 = vadd.f32 %v2629, %v2668
    %v2670 = vpop.f32.mrf.mxu0
    %v2671 = vpop.f32.mrf.mxu0
    %v2672 = vpop.f32.mrf.mxu0
    %2673 = vdwg.mxu0
    %2674 = vmatprep.subr.bf16.mxu0 0
    %2675 = vmatpush1.bf16.msra.mxu0 %v852
    %2676 = vmatprep.subr.bf16.mxu0 0
    %2677 = vmatpush1.bf16.msra.mxu0 %v851
    %2678 = vmatprep.subr.bf16.mxu0 0
    %2679 = vmatpush1.bf16.msra.mxu0 %v850
    %2680 = vmatprep.subr.bf16.mxu0 0
    %2681 = vmatpush1.bf16.msra.mxu0 %v849
    %2682 = vmatprep.subr.bf16.mxu0 0
    %2683 = vmatpush1.bf16.msra.mxu0 %v848
    %2684 = vmatprep.subr.bf16.mxu0 0
    %2685 = vmatpush1.bf16.msra.mxu0 %v847
    %2686 = vmatprep.subr.bf16.mxu0 0
    %2687 = vmatpush1.bf16.msra.mxu0 %v846
    %2688 = vmatprep.subr.bf16.mxu0 0
    %2689 = vmatpush1.bf16.msra.mxu0 %v845
    %2690 = vmatprep.subr.bf16.mxu0 0
    %2691 = vmatpush2.bf16.msra.mxu0 %v860
    %2692 = vmatprep.subr.bf16.mxu0 0
    %2693 = vmatpush2.bf16.msra.mxu0 %v859
    %2694 = vmatprep.subr.bf16.mxu0 0
    %2695 = vmatpush2.bf16.msra.mxu0 %v858
    %2696 = vmatprep.subr.bf16.mxu0 0
    %2697 = vmatpush2.bf16.msra.mxu0 %v857
    %2698 = vmatprep.subr.bf16.mxu0 0
    %2699 = vmatpush2.bf16.msra.mxu0 %v856
    %2700 = vmatprep.subr.bf16.mxu0 0
    %2701 = vmatpush2.bf16.msra.mxu0 %v855
    %2702 = vmatprep.subr.bf16.mxu0 0
    %2703 = vmatpush2.bf16.msra.mxu0 %v854
    %2704 = vmatprep.subr.bf16.mxu0 0
    %2705 = vmatpush2.bf16.msra.mxu0 %v853
    %2706 = vmatprep.mubr.bf16.mxu0 %v2575
    %2707 = vmatmul.mubr.bf16.gmra.mxu0 %v2574
    %v2708 = vpop.f32.mrf.mxu0
    %v2709 = vadd.f32 %v2669, %v2708
    %v2710 = vpop.f32.mrf.mxu0
    %v2711 = vpop.f32.mrf.mxu0
    %v2712 = vpop.f32.mrf.mxu0
    %2713 = vdwg.mxu0
    %2714 = vmatprep.subr.bf16.mxu0 0
    %2715 = vmatpush1.bf16.msra.mxu0 %v868
    %2716 = vmatprep.subr.bf16.mxu0 0
    %2717 = vmatpush1.bf16.msra.mxu0 %v867
    %2718 = vmatprep.subr.bf16.mxu0 0
    %2719 = vmatpush1.bf16.msra.mxu0 %v866
    %2720 = vmatprep.subr.bf16.mxu0 0
    %2721 = vmatpush1.bf16.msra.mxu0 %v865
    %2722 = vmatprep.subr.bf16.mxu0 0
    %2723 = vmatpush1.bf16.msra.mxu0 %v864
    %2724 = vmatprep.subr.bf16.mxu0 0
    %2725 = vmatpush1.bf16.msra.mxu0 %v863
    %2726 = vmatprep.subr.bf16.mxu0 0
    %2727 = vmatpush1.bf16.msra.mxu0 %v862
    %2728 = vmatprep.subr.bf16.mxu0 0
    %2729 = vmatpush1.bf16.msra.mxu0 %v861
    %2730 = vmatprep.subr.bf16.mxu0 0
    %2731 = vmatpush2.bf16.msra.mxu0 %v876
    %2732 = vmatprep.subr.bf16.mxu0 0
    %2733 = vmatpush2.bf16.msra.mxu0 %v875
    %2734 = vmatprep.subr.bf16.mxu0 0
    %2735 = vmatpush2.bf16.msra.mxu0 %v874
    %2736 = vmatprep.subr.bf16.mxu0 0
    %2737 = vmatpush2.bf16.msra.mxu0 %v873
    %2738 = vmatprep.subr.bf16.mxu0 0
    %2739 = vmatpush2.bf16.msra.mxu0 %v872
    %2740 = vmatprep.subr.bf16.mxu0 0
    %2741 = vmatpush2.bf16.msra.mxu0 %v871
    %2742 = vmatprep.subr.bf16.mxu0 0
    %2743 = vmatpush2.bf16.msra.mxu0 %v870
    %2744 = vmatprep.subr.bf16.mxu0 0
    %2745 = vmatpush2.bf16.msra.mxu0 %v869
    %2746 = vmatprep.mubr.bf16.mxu0 %v2577
    %2747 = vmatmul.mubr.bf16.gmra.mxu0 %v2576
    %v2748 = vpop.f32.mrf.mxu0
    %v2749 = vadd.f32 %v2709, %v2748
    %v2750 = vpop.f32.mrf.mxu0
    %v2751 = vpop.f32.mrf.mxu0
    %v2752 = vpop.f32.mrf.mxu0
    %2753 = vdwg.mxu0
    %2754 = vmatprep.subr.bf16.mxu0 0
    %2755 = vmatpush1.bf16.msra.mxu0 %v884
    %2756 = vmatprep.subr.bf16.mxu0 0
    %2757 = vmatpush1.bf16.msra.mxu0 %v883
    %2758 = vmatprep.subr.bf16.mxu0 0
    %2759 = vmatpush1.bf16.msra.mxu0 %v882
    %2760 = vmatprep.subr.bf16.mxu0 0
    %2761 = vmatpush1.bf16.msra.mxu0 %v881
    %2762 = vmatprep.subr.bf16.mxu0 0
    %2763 = vmatpush1.bf16.msra.mxu0 %v880
    %2764 = vmatprep.subr.bf16.mxu0 0
    %2765 = vmatpush1.bf16.msra.mxu0 %v879
    %2766 = vmatprep.subr.bf16.mxu0 0
    %2767 = vmatpush1.bf16.msra.mxu0 %v878
    %2768 = vmatprep.subr.bf16.mxu0 0
    %2769 = vmatpush1.bf16.msra.mxu0 %v877
    %2770 = vmatprep.subr.bf16.mxu0 0
    %2771 = vmatpush2.bf16.msra.mxu0 %v892
    %2772 = vmatprep.subr.bf16.mxu0 0
    %2773 = vmatpush2.bf16.msra.mxu0 %v891
    %2774 = vmatprep.subr.bf16.mxu0 0
    %2775 = vmatpush2.bf16.msra.mxu0 %v890
    %2776 = vmatprep.subr.bf16.mxu0 0
    %2777 = vmatpush2.bf16.msra.mxu0 %v889
    %2778 = vmatprep.subr.bf16.mxu0 0
    %2779 = vmatpush2.bf16.msra.mxu0 %v888
    %2780 = vmatprep.subr.bf16.mxu0 0
    %2781 = vmatpush2.bf16.msra.mxu0 %v887
    %2782 = vmatprep.subr.bf16.mxu0 0
    %2783 = vmatpush2.bf16.msra.mxu0 %v886
    %2784 = vmatprep.subr.bf16.mxu0 0
    %2785 = vmatpush2.bf16.msra.mxu0 %v885
    %2786 = vmatprep.mubr.bf16.mxu0 %v2579
    %2787 = vmatmul.mubr.bf16.gmra.mxu0 %v2578
    %v2788 = vpop.f32.mrf.mxu0
    %v2789 = vadd.f32 %v2749, %v2788
    %v2790 = vpop.f32.mrf.mxu0
    %v2791 = vpop.f32.mrf.mxu0
    %v2792 = vpop.f32.mrf.mxu0
    %2793 = vdwg.mxu0
    %2794 = vmatprep.subr.bf16.mxu0 0
    %2795 = vmatpush1.bf16.msra.mxu0 %v900
    %2796 = vmatprep.subr.bf16.mxu0 0
    %2797 = vmatpush1.bf16.msra.mxu0 %v899
    %2798 = vmatprep.subr.bf16.mxu0 0
    %2799 = vmatpush1.bf16.msra.mxu0 %v898
    %2800 = vmatprep.subr.bf16.mxu0 0
    %2801 = vmatpush1.bf16.msra.mxu0 %v897
    %2802 = vmatprep.subr.bf16.mxu0 0
    %2803 = vmatpush1.bf16.msra.mxu0 %v896
    %2804 = vmatprep.subr.bf16.mxu0 0
    %2805 = vmatpush1.bf16.msra.mxu0 %v895
    %2806 = vmatprep.subr.bf16.mxu0 0
    %2807 = vmatpush1.bf16.msra.mxu0 %v894
    %2808 = vmatprep.subr.bf16.mxu0 0
    %2809 = vmatpush1.bf16.msra.mxu0 %v893
    %2810 = vmatprep.subr.bf16.mxu0 0
    %2811 = vmatpush2.bf16.msra.mxu0 %v908
    %2812 = vmatprep.subr.bf16.mxu0 0
    %2813 = vmatpush2.bf16.msra.mxu0 %v907
    %2814 = vmatprep.subr.bf16.mxu0 0
    %2815 = vmatpush2.bf16.msra.mxu0 %v906
    %2816 = vmatprep.subr.bf16.mxu0 0
    %2817 = vmatpush2.bf16.msra.mxu0 %v905
    %2818 = vmatprep.subr.bf16.mxu0 0
    %2819 = vmatpush2.bf16.msra.mxu0 %v904
    %2820 = vmatprep.subr.bf16.mxu0 0
    %2821 = vmatpush2.bf16.msra.mxu0 %v903
    %2822 = vmatprep.subr.bf16.mxu0 0
    %2823 = vmatpush2.bf16.msra.mxu0 %v902
    %2824 = vmatprep.subr.bf16.mxu0 0
    %2825 = vmatpush2.bf16.msra.mxu0 %v901
    %2826 = vmatprep.mubr.bf16.mxu0 %v2581
    %2827 = vmatmul.mubr.bf16.gmra.mxu0 %v2580
    %v2828 = vpop.f32.mrf.mxu0
    %v2829 = vadd.f32 %v2789, %v2828
    %v2830 = vpop.f32.mrf.mxu0
    %v2831 = vpop.f32.mrf.mxu0
    %v2832 = vpop.f32.mrf.mxu0
    %2833 = vdwg.mxu0
    %vm2834 = vcmp.gt.f32.partialorder %v2829, 0.0
    %v2835 = vmul.f32 %v2829, 0.01
    %v2836 = vsel %vm2834, %v2829, %v2835
    %v2837 = vpack.c.bf16 %v2836, %v2836
    %s2838 = scalar_lea.vmem [#allocation7], 256
    %v2839 = vld [vmem:[%s2838] sm:$0xf]
    %v2840 = vld [vmem:[%s2838 + $0x4] sm:$0xf]
    %v2841 = vld [vmem:[%s2838 + $0x8] sm:$0xf]
    %v2842 = vld [vmem:[%s2838 + $0xc] sm:$0xf]
    %v2843 = vld [vmem:[%s2838 + $0x10] sm:$0xf]
    %v2844 = vld [vmem:[%s2838 + $0x14] sm:$0xf]
    %v2845 = vld [vmem:[%s2838 + $0x18] sm:$0xf]
    %v2846 = vld [vmem:[%s2838 + $0x1c] sm:$0xf]
    %v2847 = vld [vmem:[%s2838 + $0x20] sm:$0xf]
    %v2848 = vld [vmem:[%s2838 + $0x24] sm:$0xf]
    %v2849 = vld [vmem:[%s2838 + $0x28] sm:$0xf]
    %v2850 = vld [vmem:[%s2838 + $0x2c] sm:$0xf]
    %v2851 = vld [vmem:[%s2838 + $0x30] sm:$0xf]
    %v2852 = vld [vmem:[%s2838 + $0x34] sm:$0xf]
    %v2853 = vld [vmem:[%s2838 + $0x38] sm:$0xf]
    %v2854 = vld [vmem:[%s2838 + $0x3c] sm:$0xf]
    %v2871 = vunpack.c.l.b16 %v2839
    %v2872 = vunpack.c.l.b16 %v2840
    %v2873 = vunpack.c.l.b16 %v2841
    %v2874 = vunpack.c.l.b16 %v2842
    %v2875 = vunpack.c.l.b16 %v2843
    %v2876 = vunpack.c.l.b16 %v2844
    %v2877 = vunpack.c.l.b16 %v2845
    %v2878 = vunpack.c.l.b16 %v2846
    %v2879 = vunpack.c.l.b16 %v2847
    %v2880 = vunpack.c.l.b16 %v2848
    %v2881 = vunpack.c.l.b16 %v2849
    %v2882 = vunpack.c.l.b16 %v2850
    %v2883 = vunpack.c.l.b16 %v2851
    %v2884 = vunpack.c.l.b16 %v2852
    %v2885 = vunpack.c.l.b16 %v2853
    %v2886 = vunpack.c.l.b16 %v2854
    %v2887 = vpack.c.b16 %v2872, %v2871
    %v2888 = vpack.c.b16 %v2874, %v2873
    %v2889 = vpack.c.b16 %v2876, %v2875
    %v2890 = vpack.c.b16 %v2878, %v2877
    %v2891 = vpack.c.b16 %v2880, %v2879
    %v2892 = vpack.c.b16 %v2882, %v2881
    %v2893 = vpack.c.b16 %v2884, %v2883
    %v2894 = vpack.c.b16 %v2886, %v2885
    %2903 = vmatprep.subr.bf16.mxu0 0
    %2904 = vmatpush1.bf16.msra.mxu0 %v2894
    %2905 = vmatprep.subr.bf16.mxu0 0
    %2906 = vmatpush1.bf16.msra.mxu0 %v2893
    %2907 = vmatprep.subr.bf16.mxu0 0
    %2908 = vmatpush1.bf16.msra.mxu0 %v2892
    %2909 = vmatprep.subr.bf16.mxu0 0
    %2910 = vmatpush1.bf16.msra.mxu0 %v2891
    %2911 = vmatprep.subr.bf16.mxu0 0
    %2912 = vmatpush1.bf16.msra.mxu0 %v2890
    %2913 = vmatprep.subr.bf16.mxu0 0
    %2914 = vmatpush1.bf16.msra.mxu0 %v2889
    %2915 = vmatprep.subr.bf16.mxu0 0
    %2916 = vmatpush1.bf16.msra.mxu0 %v2888
    %2917 = vmatprep.subr.bf16.mxu0 0
    %2918 = vmatpush1.bf16.msra.mxu0 %v2887
    %2919 = vmatprep.subr.bf16.mxu0 0
    %2920 = vmatpush2.bf16.msra.mxu0 0
    %2921 = vmatprep.subr.bf16.mxu0 0
    %2922 = vmatpush2.bf16.msra.mxu0 0
    %2923 = vmatprep.subr.bf16.mxu0 0
    %2924 = vmatpush2.bf16.msra.mxu0 0
    %2925 = vmatprep.subr.bf16.mxu0 0
    %2926 = vmatpush2.bf16.msra.mxu0 0
    %2927 = vmatprep.subr.bf16.mxu0 0
    %2928 = vmatpush2.bf16.msra.mxu0 0
    %2929 = vmatprep.subr.bf16.mxu0 0
    %2930 = vmatpush2.bf16.msra.mxu0 0
    %2931 = vmatprep.subr.bf16.mxu0 0
    %2932 = vmatpush2.bf16.msra.mxu0 0
    %2933 = vmatprep.subr.bf16.mxu0 0
    %2934 = vmatpush2.bf16.msra.mxu0 0
    %2935 = vmatprep.mubr.bf16.mxu0 0
    %2936 = vmatmul.mubr.bf16.gmra.mxu0 %v2837
    %v2937 = vpop.f32.mrf.mxu0
    %v2938 = vadd.f32 0.0, %v2937
    %v2939 = vpop.f32.mrf.mxu0
    %v2940 = vpop.f32.mrf.mxu0
    %v2941 = vpop.f32.mrf.mxu0
    %2942 = vdwg.mxu0
    %v2943 = vadd.f32 %v2545, %v2938
    %v2944 = vld [vmem:[#allocation2 + $0x78] sm:$0xff]
    %v2945 = vld [vmem:[#allocation2 + $0x80] sm:$0xff]
    %v2946 = vld [vmem:[#allocation2 + $0x88] sm:$0xff]
    %v2947 = vld [vmem:[#allocation2 + $0x90] sm:$0xff]
    %v2948 = vld [vmem:[#allocation2 + $0x98] sm:$0xff]
    %v2949 = vld [vmem:[#allocation2 + $0xa0] sm:$0xff]
    %v2956 = vunpack.c.l.b16 %v2944
    %v2957 = vunpack.c.h.b16 %v2944
    %v2958 = vunpack.c.l.b16 %v2945
    %v2959 = vunpack.c.h.b16 %v2945
    %v2960 = vunpack.c.l.b16 %v2946
    %v2961 = vunpack.c.h.b16 %v2946
    %v2962 = vunpack.c.l.b16 %v2947
    %v2963 = vunpack.c.h.b16 %v2947
    %v2964 = vunpack.c.l.b16 %v2948
    %v2965 = vunpack.c.h.b16 %v2948
    %v2966 = vunpack.c.l.b16 %v2949
    %v2967 = vunpack.c.h.b16 %v2949
    %v2968 = vpack.c.b16 %v2956, %v2956
    %v2969 = vpack.c.b16 %v2957, %v2957
    %v2970 = vpack.c.b16 %v2958, %v2958
    %v2971 = vpack.c.b16 %v2959, %v2959
    %v2972 = vpack.c.b16 %v2960, %v2960
    %v2973 = vpack.c.b16 %v2961, %v2961
    %v2974 = vpack.c.b16 %v2962, %v2962
    %v2975 = vpack.c.b16 %v2963, %v2963
    %v2976 = vpack.c.b16 %v2964, %v2964
    %v2977 = vpack.c.b16 %v2965, %v2965
    %v2978 = vpack.c.b16 %v2966, %v2966
    %v2979 = vpack.c.b16 %v2967, %v2967
    %2992 = vmatprep.subr.bf16.mxu0 0
    %2993 = vmatpush1.bf16.msra.mxu0 %v820
    %2994 = vmatprep.subr.bf16.mxu0 0
    %2995 = vmatpush1.bf16.msra.mxu0 %v819
    %2996 = vmatprep.subr.bf16.mxu0 0
    %2997 = vmatpush1.bf16.msra.mxu0 %v818
    %2998 = vmatprep.subr.bf16.mxu0 0
    %2999 = vmatpush1.bf16.msra.mxu0 %v817
    %3000 = vmatprep.subr.bf16.mxu0 0
    %3001 = vmatpush1.bf16.msra.mxu0 %v816
    %3002 = vmatprep.subr.bf16.mxu0 0
    %3003 = vmatpush1.bf16.msra.mxu0 %v815
    %3004 = vmatprep.subr.bf16.mxu0 0
    %3005 = vmatpush1.bf16.msra.mxu0 %v814
    %3006 = vmatprep.subr.bf16.mxu0 0
    %3007 = vmatpush1.bf16.msra.mxu0 %v813
    %3008 = vmatprep.subr.bf16.mxu0 0
    %3009 = vmatpush2.bf16.msra.mxu0 %v828
    %3010 = vmatprep.subr.bf16.mxu0 0
    %3011 = vmatpush2.bf16.msra.mxu0 %v827
    %3012 = vmatprep.subr.bf16.mxu0 0
    %3013 = vmatpush2.bf16.msra.mxu0 %v826
    %3014 = vmatprep.subr.bf16.mxu0 0
    %3015 = vmatpush2.bf16.msra.mxu0 %v825
    %3016 = vmatprep.subr.bf16.mxu0 0
    %3017 = vmatpush2.bf16.msra.mxu0 %v824
    %3018 = vmatprep.subr.bf16.mxu0 0
    %3019 = vmatpush2.bf16.msra.mxu0 %v823
    %3020 = vmatprep.subr.bf16.mxu0 0
    %3021 = vmatpush2.bf16.msra.mxu0 %v822
    %3022 = vmatprep.subr.bf16.mxu0 0
    %3023 = vmatpush2.bf16.msra.mxu0 %v821
    %3024 = vmatprep.mubr.bf16.mxu0 %v2969
    %3025 = vmatmul.mubr.bf16.gmra.mxu0 %v2968
    %v3026 = vpop.f32.mrf.mxu0
    %v3027 = vadd.f32 %v385, %v3026
    %v3028 = vpop.f32.mrf.mxu0
    %v3029 = vpop.f32.mrf.mxu0
    %v3030 = vpop.f32.mrf.mxu0
    %3031 = vdwg.mxu0
    %3032 = vmatprep.subr.bf16.mxu0 0
    %3033 = vmatpush1.bf16.msra.mxu0 %v836
    %3034 = vmatprep.subr.bf16.mxu0 0
    %3035 = vmatpush1.bf16.msra.mxu0 %v835
    %3036 = vmatprep.subr.bf16.mxu0 0
    %3037 = vmatpush1.bf16.msra.mxu0 %v834
    %3038 = vmatprep.subr.bf16.mxu0 0
    %3039 = vmatpush1.bf16.msra.mxu0 %v833
    %3040 = vmatprep.subr.bf16.mxu0 0
    %3041 = vmatpush1.bf16.msra.mxu0 %v832
    %3042 = vmatprep.subr.bf16.mxu0 0
    %3043 = vmatpush1.bf16.msra.mxu0 %v831
    %3044 = vmatprep.subr.bf16.mxu0 0
    %3045 = vmatpush1.bf16.msra.mxu0 %v830
    %3046 = vmatprep.subr.bf16.mxu0 0
    %3047 = vmatpush1.bf16.msra.mxu0 %v829
    %3048 = vmatprep.subr.bf16.mxu0 0
    %3049 = vmatpush2.bf16.msra.mxu0 %v844
    %3050 = vmatprep.subr.bf16.mxu0 0
    %3051 = vmatpush2.bf16.msra.mxu0 %v843
    %3052 = vmatprep.subr.bf16.mxu0 0
    %3053 = vmatpush2.bf16.msra.mxu0 %v842
    %3054 = vmatprep.subr.bf16.mxu0 0
    %3055 = vmatpush2.bf16.msra.mxu0 %v841
    %3056 = vmatprep.subr.bf16.mxu0 0
    %3057 = vmatpush2.bf16.msra.mxu0 %v840
    %3058 = vmatprep.subr.bf16.mxu0 0
    %3059 = vmatpush2.bf16.msra.mxu0 %v839
    %3060 = vmatprep.subr.bf16.mxu0 0
    %3061 = vmatpush2.bf16.msra.mxu0 %v838
    %3062 = vmatprep.subr.bf16.mxu0 0
    %3063 = vmatpush2.bf16.msra.mxu0 %v837
    %3064 = vmatprep.mubr.bf16.mxu0 %v2971
    %3065 = vmatmul.mubr.bf16.gmra.mxu0 %v2970
    %v3066 = vpop.f32.mrf.mxu0
    %v3067 = vadd.f32 %v3027, %v3066
    %v3068 = vpop.f32.mrf.mxu0
    %v3069 = vpop.f32.mrf.mxu0
    %v3070 = vpop.f32.mrf.mxu0
    %3071 = vdwg.mxu0
    %3072 = vmatprep.subr.bf16.mxu0 0
    %3073 = vmatpush1.bf16.msra.mxu0 %v852
    %3074 = vmatprep.subr.bf16.mxu0 0
    %3075 = vmatpush1.bf16.msra.mxu0 %v851
    %3076 = vmatprep.subr.bf16.mxu0 0
    %3077 = vmatpush1.bf16.msra.mxu0 %v850
    %3078 = vmatprep.subr.bf16.mxu0 0
    %3079 = vmatpush1.bf16.msra.mxu0 %v849
    %3080 = vmatprep.subr.bf16.mxu0 0
    %3081 = vmatpush1.bf16.msra.mxu0 %v848
    %3082 = vmatprep.subr.bf16.mxu0 0
    %3083 = vmatpush1.bf16.msra.mxu0 %v847
    %3084 = vmatprep.subr.bf16.mxu0 0
    %3085 = vmatpush1.bf16.msra.mxu0 %v846
    %3086 = vmatprep.subr.bf16.mxu0 0
    %3087 = vmatpush1.bf16.msra.mxu0 %v845
    %3088 = vmatprep.subr.bf16.mxu0 0
    %3089 = vmatpush2.bf16.msra.mxu0 %v860
    %3090 = vmatprep.subr.bf16.mxu0 0
    %3091 = vmatpush2.bf16.msra.mxu0 %v859
    %3092 = vmatprep.subr.bf16.mxu0 0
    %3093 = vmatpush2.bf16.msra.mxu0 %v858
    %3094 = vmatprep.subr.bf16.mxu0 0
    %3095 = vmatpush2.bf16.msra.mxu0 %v857
    %3096 = vmatprep.subr.bf16.mxu0 0
    %3097 = vmatpush2.bf16.msra.mxu0 %v856
    %3098 = vmatprep.subr.bf16.mxu0 0
    %3099 = vmatpush2.bf16.msra.mxu0 %v855
    %3100 = vmatprep.subr.bf16.mxu0 0
    %3101 = vmatpush2.bf16.msra.mxu0 %v854
    %3102 = vmatprep.subr.bf16.mxu0 0
    %3103 = vmatpush2.bf16.msra.mxu0 %v853
    %3104 = vmatprep.mubr.bf16.mxu0 %v2973
    %3105 = vmatmul.mubr.bf16.gmra.mxu0 %v2972
    %v3106 = vpop.f32.mrf.mxu0
    %v3107 = vadd.f32 %v3067, %v3106
    %v3108 = vpop.f32.mrf.mxu0
    %v3109 = vpop.f32.mrf.mxu0
    %v3110 = vpop.f32.mrf.mxu0
    %3111 = vdwg.mxu0
    %3112 = vmatprep.subr.bf16.mxu0 0
    %3113 = vmatpush1.bf16.msra.mxu0 %v868
    %3114 = vmatprep.subr.bf16.mxu0 0
    %3115 = vmatpush1.bf16.msra.mxu0 %v867
    %3116 = vmatprep.subr.bf16.mxu0 0
    %3117 = vmatpush1.bf16.msra.mxu0 %v866
    %3118 = vmatprep.subr.bf16.mxu0 0
    %3119 = vmatpush1.bf16.msra.mxu0 %v865
    %3120 = vmatprep.subr.bf16.mxu0 0
    %3121 = vmatpush1.bf16.msra.mxu0 %v864
    %3122 = vmatprep.subr.bf16.mxu0 0
    %3123 = vmatpush1.bf16.msra.mxu0 %v863
    %3124 = vmatprep.subr.bf16.mxu0 0
    %3125 = vmatpush1.bf16.msra.mxu0 %v862
    %3126 = vmatprep.subr.bf16.mxu0 0
    %3127 = vmatpush1.bf16.msra.mxu0 %v861
    %3128 = vmatprep.subr.bf16.mxu0 0
    %3129 = vmatpush2.bf16.msra.mxu0 %v876
    %3130 = vmatprep.subr.bf16.mxu0 0
    %3131 = vmatpush2.bf16.msra.mxu0 %v875
    %3132 = vmatprep.subr.bf16.mxu0 0
    %3133 = vmatpush2.bf16.msra.mxu0 %v874
    %3134 = vmatprep.subr.bf16.mxu0 0
    %3135 = vmatpush2.bf16.msra.mxu0 %v873
    %3136 = vmatprep.subr.bf16.mxu0 0
    %3137 = vmatpush2.bf16.msra.mxu0 %v872
    %3138 = vmatprep.subr.bf16.mxu0 0
    %3139 = vmatpush2.bf16.msra.mxu0 %v871
    %3140 = vmatprep.subr.bf16.mxu0 0
    %3141 = vmatpush2.bf16.msra.mxu0 %v870
    %3142 = vmatprep.subr.bf16.mxu0 0
    %3143 = vmatpush2.bf16.msra.mxu0 %v869
    %3144 = vmatprep.mubr.bf16.mxu0 %v2975
    %3145 = vmatmul.mubr.bf16.gmra.mxu0 %v2974
    %v3146 = vpop.f32.mrf.mxu0
    %v3147 = vadd.f32 %v3107, %v3146
    %v3148 = vpop.f32.mrf.mxu0
    %v3149 = vpop.f32.mrf.mxu0
    %v3150 = vpop.f32.mrf.mxu0
    %3151 = vdwg.mxu0
    %3152 = vmatprep.subr.bf16.mxu0 0
    %3153 = vmatpush1.bf16.msra.mxu0 %v884
    %3154 = vmatprep.subr.bf16.mxu0 0
    %3155 = vmatpush1.bf16.msra.mxu0 %v883
    %3156 = vmatprep.subr.bf16.mxu0 0
    %3157 = vmatpush1.bf16.msra.mxu0 %v882
    %3158 = vmatprep.subr.bf16.mxu0 0
    %3159 = vmatpush1.bf16.msra.mxu0 %v881
    %3160 = vmatprep.subr.bf16.mxu0 0
    %3161 = vmatpush1.bf16.msra.mxu0 %v880
    %3162 = vmatprep.subr.bf16.mxu0 0
    %3163 = vmatpush1.bf16.msra.mxu0 %v879
    %3164 = vmatprep.subr.bf16.mxu0 0
    %3165 = vmatpush1.bf16.msra.mxu0 %v878
    %3166 = vmatprep.subr.bf16.mxu0 0
    %3167 = vmatpush1.bf16.msra.mxu0 %v877
    %3168 = vmatprep.subr.bf16.mxu0 0
    %3169 = vmatpush2.bf16.msra.mxu0 %v892
    %3170 = vmatprep.subr.bf16.mxu0 0
    %3171 = vmatpush2.bf16.msra.mxu0 %v891
    %3172 = vmatprep.subr.bf16.mxu0 0
    %3173 = vmatpush2.bf16.msra.mxu0 %v890
    %3174 = vmatprep.subr.bf16.mxu0 0
    %3175 = vmatpush2.bf16.msra.mxu0 %v889
    %3176 = vmatprep.subr.bf16.mxu0 0
    %3177 = vmatpush2.bf16.msra.mxu0 %v888
    %3178 = vmatprep.subr.bf16.mxu0 0
    %3179 = vmatpush2.bf16.msra.mxu0 %v887
    %3180 = vmatprep.subr.bf16.mxu0 0
    %3181 = vmatpush2.bf16.msra.mxu0 %v886
    %3182 = vmatprep.subr.bf16.mxu0 0
    %3183 = vmatpush2.bf16.msra.mxu0 %v885
    %3184 = vmatprep.mubr.bf16.mxu0 %v2977
    %3185 = vmatmul.mubr.bf16.gmra.mxu0 %v2976
    %v3186 = vpop.f32.mrf.mxu0
    %v3187 = vadd.f32 %v3147, %v3186
    %v3188 = vpop.f32.mrf.mxu0
    %v3189 = vpop.f32.mrf.mxu0
    %v3190 = vpop.f32.mrf.mxu0
    %3191 = vdwg.mxu0
    %3192 = vmatprep.subr.bf16.mxu0 0
    %3193 = vmatpush1.bf16.msra.mxu0 %v900
    %3194 = vmatprep.subr.bf16.mxu0 0
    %3195 = vmatpush1.bf16.msra.mxu0 %v899
    %3196 = vmatprep.subr.bf16.mxu0 0
    %3197 = vmatpush1.bf16.msra.mxu0 %v898
    %3198 = vmatprep.subr.bf16.mxu0 0
    %3199 = vmatpush1.bf16.msra.mxu0 %v897
    %3200 = vmatprep.subr.bf16.mxu0 0
    %3201 = vmatpush1.bf16.msra.mxu0 %v896
    %3202 = vmatprep.subr.bf16.mxu0 0
    %3203 = vmatpush1.bf16.msra.mxu0 %v895
    %3204 = vmatprep.subr.bf16.mxu0 0
    %3205 = vmatpush1.bf16.msra.mxu0 %v894
    %3206 = vmatprep.subr.bf16.mxu0 0
    %3207 = vmatpush1.bf16.msra.mxu0 %v893
    %3208 = vmatprep.subr.bf16.mxu0 0
    %3209 = vmatpush2.bf16.msra.mxu0 %v908
    %3210 = vmatprep.subr.bf16.mxu0 0
    %3211 = vmatpush2.bf16.msra.mxu0 %v907
    %3212 = vmatprep.subr.bf16.mxu0 0
    %3213 = vmatpush2.bf16.msra.mxu0 %v906
    %3214 = vmatprep.subr.bf16.mxu0 0
    %3215 = vmatpush2.bf16.msra.mxu0 %v905
    %3216 = vmatprep.subr.bf16.mxu0 0
    %3217 = vmatpush2.bf16.msra.mxu0 %v904
    %3218 = vmatprep.subr.bf16.mxu0 0
    %3219 = vmatpush2.bf16.msra.mxu0 %v903
    %3220 = vmatprep.subr.bf16.mxu0 0
    %3221 = vmatpush2.bf16.msra.mxu0 %v902
    %3222 = vmatprep.subr.bf16.mxu0 0
    %3223 = vmatpush2.bf16.msra.mxu0 %v901
    %3224 = vmatprep.mubr.bf16.mxu0 %v2979
    %3225 = vmatmul.mubr.bf16.gmra.mxu0 %v2978
    %v3226 = vpop.f32.mrf.mxu0
    %v3227 = vadd.f32 %v3187, %v3226
    %v3228 = vpop.f32.mrf.mxu0
    %v3229 = vpop.f32.mrf.mxu0
    %v3230 = vpop.f32.mrf.mxu0
    %3231 = vdwg.mxu0
    %vm3232 = vcmp.gt.f32.partialorder %v3227, 0.0
    %v3233 = vmul.f32 %v3227, 0.01
    %v3234 = vsel %vm3232, %v3227, %v3233
    %v3235 = vpack.c.bf16 %v3234, %v3234
    %s3236 = scalar_lea.vmem [#allocation7], 320
    %v3237 = vld [vmem:[%s3236] sm:$0xf]
    %v3238 = vld [vmem:[%s3236 + $0x4] sm:$0xf]
    %v3239 = vld [vmem:[%s3236 + $0x8] sm:$0xf]
    %v3240 = vld [vmem:[%s3236 + $0xc] sm:$0xf]
    %v3241 = vld [vmem:[%s3236 + $0x10] sm:$0xf]
    %v3242 = vld [vmem:[%s3236 + $0x14] sm:$0xf]
    %v3243 = vld [vmem:[%s3236 + $0x18] sm:$0xf]
    %v3244 = vld [vmem:[%s3236 + $0x1c] sm:$0xf]
    %v3245 = vld [vmem:[%s3236 + $0x20] sm:$0xf]
    %v3246 = vld [vmem:[%s3236 + $0x24] sm:$0xf]
    %v3247 = vld [vmem:[%s3236 + $0x28] sm:$0xf]
    %v3248 = vld [vmem:[%s3236 + $0x2c] sm:$0xf]
    %v3249 = vld [vmem:[%s3236 + $0x30] sm:$0xf]
    %v3250 = vld [vmem:[%s3236 + $0x34] sm:$0xf]
    %v3251 = vld [vmem:[%s3236 + $0x38] sm:$0xf]
    %v3252 = vld [vmem:[%s3236 + $0x3c] sm:$0xf]
    %v3269 = vunpack.c.l.b16 %v3237
    %v3270 = vunpack.c.l.b16 %v3238
    %v3271 = vunpack.c.l.b16 %v3239
    %v3272 = vunpack.c.l.b16 %v3240
    %v3273 = vunpack.c.l.b16 %v3241
    %v3274 = vunpack.c.l.b16 %v3242
    %v3275 = vunpack.c.l.b16 %v3243
    %v3276 = vunpack.c.l.b16 %v3244
    %v3277 = vunpack.c.l.b16 %v3245
    %v3278 = vunpack.c.l.b16 %v3246
    %v3279 = vunpack.c.l.b16 %v3247
    %v3280 = vunpack.c.l.b16 %v3248
    %v3281 = vunpack.c.l.b16 %v3249
    %v3282 = vunpack.c.l.b16 %v3250
    %v3283 = vunpack.c.l.b16 %v3251
    %v3284 = vunpack.c.l.b16 %v3252
    %v3285 = vpack.c.b16 %v3270, %v3269
    %v3286 = vpack.c.b16 %v3272, %v3271
    %v3287 = vpack.c.b16 %v3274, %v3273
    %v3288 = vpack.c.b16 %v3276, %v3275
    %v3289 = vpack.c.b16 %v3278, %v3277
    %v3290 = vpack.c.b16 %v3280, %v3279
    %v3291 = vpack.c.b16 %v3282, %v3281
    %v3292 = vpack.c.b16 %v3284, %v3283
    %3301 = vmatprep.subr.bf16.mxu0 0
    %3302 = vmatpush1.bf16.msra.mxu0 %v3292
    %3303 = vmatprep.subr.bf16.mxu0 0
    %3304 = vmatpush1.bf16.msra.mxu0 %v3291
    %3305 = vmatprep.subr.bf16.mxu0 0
    %3306 = vmatpush1.bf16.msra.mxu0 %v3290
    %3307 = vmatprep.subr.bf16.mxu0 0
    %3308 = vmatpush1.bf16.msra.mxu0 %v3289
    %3309 = vmatprep.subr.bf16.mxu0 0
    %3310 = vmatpush1.bf16.msra.mxu0 %v3288
    %3311 = vmatprep.subr.bf16.mxu0 0
    %3312 = vmatpush1.bf16.msra.mxu0 %v3287
    %3313 = vmatprep.subr.bf16.mxu0 0
    %3314 = vmatpush1.bf16.msra.mxu0 %v3286
    %3315 = vmatprep.subr.bf16.mxu0 0
    %3316 = vmatpush1.bf16.msra.mxu0 %v3285
    %3317 = vmatprep.subr.bf16.mxu0 0
    %3318 = vmatpush2.bf16.msra.mxu0 0
    %3319 = vmatprep.subr.bf16.mxu0 0
    %3320 = vmatpush2.bf16.msra.mxu0 0
    %3321 = vmatprep.subr.bf16.mxu0 0
    %3322 = vmatpush2.bf16.msra.mxu0 0
    %3323 = vmatprep.subr.bf16.mxu0 0
    %3324 = vmatpush2.bf16.msra.mxu0 0
    %3325 = vmatprep.subr.bf16.mxu0 0
    %3326 = vmatpush2.bf16.msra.mxu0 0
    %3327 = vmatprep.subr.bf16.mxu0 0
    %3328 = vmatpush2.bf16.msra.mxu0 0
    %3329 = vmatprep.subr.bf16.mxu0 0
    %3330 = vmatpush2.bf16.msra.mxu0 0
    %3331 = vmatprep.subr.bf16.mxu0 0
    %3332 = vmatpush2.bf16.msra.mxu0 0
    %3333 = vmatprep.mubr.bf16.mxu0 0
    %3334 = vmatmul.mubr.bf16.gmra.mxu0 %v3235
    %v3335 = vpop.f32.mrf.mxu0
    %v3336 = vadd.f32 0.0, %v3335
    %v3337 = vpop.f32.mrf.mxu0
    %v3338 = vpop.f32.mrf.mxu0
    %v3339 = vpop.f32.mrf.mxu0
    %3340 = vdwg.mxu0
    %v3341 = vadd.f32 %v2943, %v3336
    %v3343 = vlaneseq
    %v3344 = vshrl.u32 %v3343, 7
    %v3345 = vsub.s32 0, %v3344
    %v3346 = vrot.slane %v374, %v3345
    %v3348 = vadd.f32 %v3341, %v3346
    %vm3349 = vcmp.gt.f32.partialorder %v3348, 0.0
    %v3350 = vmul.f32 %v3348, 0.01
    %v3351 = vsel %vm3349, %v3348, %v3350
    %v3352 = vpack.c.bf16 %v3351, %v3351
    %v3353 = vld [vmem:[#allocation8] sm:$0xf]
    %v3354 = vld [vmem:[#allocation8 + $0x4] sm:$0xf]
    %v3355 = vld [vmem:[#allocation8 + $0x8] sm:$0xf]
    %v3356 = vld [vmem:[#allocation8 + $0xc] sm:$0xf]
    %v3357 = vld [vmem:[#allocation8 + $0x10] sm:$0xf]
    %v3358 = vld [vmem:[#allocation8 + $0x14] sm:$0xf]
    %v3359 = vld [vmem:[#allocation8 + $0x18] sm:$0xf]
    %v3360 = vld [vmem:[#allocation8 + $0x1c] sm:$0xf]
    %v3361 = vld [vmem:[#allocation8 + $0x20] sm:$0xf]
    %v3362 = vld [vmem:[#allocation8 + $0x24] sm:$0xf]
    %v3363 = vld [vmem:[#allocation8 + $0x28] sm:$0xf]
    %v3364 = vld [vmem:[#allocation8 + $0x2c] sm:$0xf]
    %v3365 = vld [vmem:[#allocation8 + $0x30] sm:$0xf]
    %v3366 = vld [vmem:[#allocation8 + $0x34] sm:$0xf]
    %v3367 = vld [vmem:[#allocation8 + $0x38] sm:$0xf]
    %v3368 = vld [vmem:[#allocation8 + $0x3c] sm:$0xf]
    %v3369 = vld [vmem:[%s6] sm:$0x1]
    %v3371 = vlaneseq
    %v3372 = vshrl.u32 %v3371, 7
    %v3373 = vsub.s32 0, %v3372
    %v3374 = vrot.slane %v3369, %v3373
    %v3392 = vunpack.c.l.b16 %v3353
    %v3393 = vunpack.c.l.b16 %v3354
    %v3394 = vunpack.c.l.b16 %v3355
    %v3395 = vunpack.c.l.b16 %v3356
    %v3396 = vunpack.c.l.b16 %v3357
    %v3397 = vunpack.c.l.b16 %v3358
    %v3398 = vunpack.c.l.b16 %v3359
    %v3399 = vunpack.c.l.b16 %v3360
    %v3400 = vunpack.c.l.b16 %v3361
    %v3401 = vunpack.c.l.b16 %v3362
    %v3402 = vunpack.c.l.b16 %v3363
    %v3403 = vunpack.c.l.b16 %v3364
    %v3404 = vunpack.c.l.b16 %v3365
    %v3405 = vunpack.c.l.b16 %v3366
    %v3406 = vunpack.c.l.b16 %v3367
    %v3407 = vunpack.c.l.b16 %v3368
    %v3408 = vpack.c.b16 %v3393, %v3392
    %v3409 = vpack.c.b16 %v3395, %v3394
    %v3410 = vpack.c.b16 %v3397, %v3396
    %v3411 = vpack.c.b16 %v3399, %v3398
    %v3412 = vpack.c.b16 %v3401, %v3400
    %v3413 = vpack.c.b16 %v3403, %v3402
    %v3414 = vpack.c.b16 %v3405, %v3404
    %v3415 = vpack.c.b16 %v3407, %v3406
    %3424 = vmatprep.subr.bf16.mxu0 0
    %3425 = vmatpush1.bf16.msra.mxu0 %v3415
    %3426 = vmatprep.subr.bf16.mxu0 0
    %3427 = vmatpush1.bf16.msra.mxu0 %v3414
    %3428 = vmatprep.subr.bf16.mxu0 0
    %3429 = vmatpush1.bf16.msra.mxu0 %v3413
    %3430 = vmatprep.subr.bf16.mxu0 0
    %3431 = vmatpush1.bf16.msra.mxu0 %v3412
    %3432 = vmatprep.subr.bf16.mxu0 0
    %3433 = vmatpush1.bf16.msra.mxu0 %v3411
    %3434 = vmatprep.subr.bf16.mxu0 0
    %3435 = vmatpush1.bf16.msra.mxu0 %v3410
    %3436 = vmatprep.subr.bf16.mxu0 0
    %3437 = vmatpush1.bf16.msra.mxu0 %v3409
    %3438 = vmatprep.subr.bf16.mxu0 0
    %3439 = vmatpush1.bf16.msra.mxu0 %v3408
    %3440 = vmatprep.subr.bf16.mxu0 0
    %3441 = vmatpush2.bf16.msra.mxu0 0
    %3442 = vmatprep.subr.bf16.mxu0 0
    %3443 = vmatpush2.bf16.msra.mxu0 0
    %3444 = vmatprep.subr.bf16.mxu0 0
    %3445 = vmatpush2.bf16.msra.mxu0 0
    %3446 = vmatprep.subr.bf16.mxu0 0
    %3447 = vmatpush2.bf16.msra.mxu0 0
    %3448 = vmatprep.subr.bf16.mxu0 0
    %3449 = vmatpush2.bf16.msra.mxu0 0
    %3450 = vmatprep.subr.bf16.mxu0 0
    %3451 = vmatpush2.bf16.msra.mxu0 0
    %3452 = vmatprep.subr.bf16.mxu0 0
    %3453 = vmatpush2.bf16.msra.mxu0 0
    %3454 = vmatprep.subr.bf16.mxu0 0
    %3455 = vmatpush2.bf16.msra.mxu0 0
    %3456 = vmatprep.mubr.bf16.mxu0 0
    %3457 = vmatmul.mubr.bf16.gmra.mxu0 %v3352
    %v3458 = vpop.f32.mrf.mxu0
    %v3459 = vadd.f32 %v3374, %v3458
    %v3460 = vpop.f32.mrf.mxu0
    %v3461 = vpop.f32.mrf.mxu0
    %v3462 = vpop.f32.mrf.mxu0
    %3463 = vdwg.mxu0
    %v3464 = vmax.f32 %v3459, 0.0
    %v3465 = vpack.c.bf16 %v3464, %v3464
    %v3466 = vld [vmem:[#allocation10] sm:$0xf]
    %v3467 = vld [vmem:[#allocation10 + $0x4] sm:$0xf]
    %v3468 = vld [vmem:[#allocation10 + $0x8] sm:$0xf]
    %v3469 = vld [vmem:[#allocation10 + $0xc] sm:$0xf]
    %v3470 = vld [vmem:[#allocation10 + $0x10] sm:$0xf]
    %v3471 = vld [vmem:[#allocation10 + $0x14] sm:$0xf]
    %v3472 = vld [vmem:[#allocation10 + $0x18] sm:$0xf]
    %v3473 = vld [vmem:[#allocation10 + $0x1c] sm:$0xf]
    %v3474 = vld [vmem:[#allocation10 + $0x20] sm:$0xf]
    %v3475 = vld [vmem:[#allocation10 + $0x24] sm:$0xf]
    %v3476 = vld [vmem:[#allocation10 + $0x28] sm:$0xf]
    %v3477 = vld [vmem:[#allocation10 + $0x2c] sm:$0xf]
    %v3478 = vld [vmem:[#allocation10 + $0x30] sm:$0xf]
    %v3479 = vld [vmem:[#allocation10 + $0x34] sm:$0xf]
    %v3480 = vld [vmem:[#allocation10 + $0x38] sm:$0xf]
    %v3481 = vld [vmem:[#allocation10 + $0x3c] sm:$0xf]
    %v3482 = vld [vmem:[%s8] sm:$0x1]
    %v3484 = vlaneseq
    %v3485 = vshrl.u32 %v3484, 7
    %v3486 = vsub.s32 0, %v3485
    %v3487 = vrot.slane %v3482, %v3486
    %v3505 = vunpack.c.l.b16 %v3466
    %v3506 = vunpack.c.l.b16 %v3467
    %v3507 = vunpack.c.l.b16 %v3468
    %v3508 = vunpack.c.l.b16 %v3469
    %v3509 = vunpack.c.l.b16 %v3470
    %v3510 = vunpack.c.l.b16 %v3471
    %v3511 = vunpack.c.l.b16 %v3472
    %v3512 = vunpack.c.l.b16 %v3473
    %v3513 = vunpack.c.l.b16 %v3474
    %v3514 = vunpack.c.l.b16 %v3475
    %v3515 = vunpack.c.l.b16 %v3476
    %v3516 = vunpack.c.l.b16 %v3477
    %v3517 = vunpack.c.l.b16 %v3478
    %v3518 = vunpack.c.l.b16 %v3479
    %v3519 = vunpack.c.l.b16 %v3480
    %v3520 = vunpack.c.l.b16 %v3481
    %v3521 = vpack.c.b16 %v3506, %v3505
    %v3522 = vpack.c.b16 %v3508, %v3507
    %v3523 = vpack.c.b16 %v3510, %v3509
    %v3524 = vpack.c.b16 %v3512, %v3511
    %v3525 = vpack.c.b16 %v3514, %v3513
    %v3526 = vpack.c.b16 %v3516, %v3515
    %v3527 = vpack.c.b16 %v3518, %v3517
    %v3528 = vpack.c.b16 %v3520, %v3519
    %3537 = vmatprep.subr.bf16.mxu0 0
    %3538 = vmatpush1.bf16.msra.mxu0 %v3528
    %3539 = vmatprep.subr.bf16.mxu0 0
    %3540 = vmatpush1.bf16.msra.mxu0 %v3527
    %3541 = vmatprep.subr.bf16.mxu0 0
    %3542 = vmatpush1.bf16.msra.mxu0 %v3526
    %3543 = vmatprep.subr.bf16.mxu0 0
    %3544 = vmatpush1.bf16.msra.mxu0 %v3525
    %3545 = vmatprep.subr.bf16.mxu0 0
    %3546 = vmatpush1.bf16.msra.mxu0 %v3524
    %3547 = vmatprep.subr.bf16.mxu0 0
    %3548 = vmatpush1.bf16.msra.mxu0 %v3523
    %3549 = vmatprep.subr.bf16.mxu0 0
    %3550 = vmatpush1.bf16.msra.mxu0 %v3522
    %3551 = vmatprep.subr.bf16.mxu0 0
    %3552 = vmatpush1.bf16.msra.mxu0 %v3521
    %3553 = vmatprep.subr.bf16.mxu0 0
    %3554 = vmatpush2.bf16.msra.mxu0 0
    %3555 = vmatprep.subr.bf16.mxu0 0
    %3556 = vmatpush2.bf16.msra.mxu0 0
    %3557 = vmatprep.subr.bf16.mxu0 0
    %3558 = vmatpush2.bf16.msra.mxu0 0
    %3559 = vmatprep.subr.bf16.mxu0 0
    %3560 = vmatpush2.bf16.msra.mxu0 0
    %3561 = vmatprep.subr.bf16.mxu0 0
    %3562 = vmatpush2.bf16.msra.mxu0 0
    %3563 = vmatprep.subr.bf16.mxu0 0
    %3564 = vmatpush2.bf16.msra.mxu0 0
    %3565 = vmatprep.subr.bf16.mxu0 0
    %3566 = vmatpush2.bf16.msra.mxu0 0
    %3567 = vmatprep.subr.bf16.mxu0 0
    %3568 = vmatpush2.bf16.msra.mxu0 0
    %3569 = vmatprep.mubr.bf16.mxu0 0
    %3570 = vmatmul.mubr.bf16.gmra.mxu0 %v3465
    %v3571 = vpop.f32.mrf.mxu0
    %v3572 = vadd.f32 %v3487, %v3571
    %v3573 = vpop.f32.mrf.mxu0
    %v3574 = vpop.f32.mrf.mxu0
    %v3575 = vpop.f32.mrf.mxu0
    %3576 = vdwg.mxu0
    %v3577 = vmax.f32 %v3572, 0.0
    %v3578 = vpack.c.bf16 %v3577, %v3577
    %v3579 = vld [vmem:[#allocation11] sm:$0xf]
    %v3580 = vld [vmem:[#allocation11 + $0x4] sm:$0xf]
    %v3581 = vld [vmem:[#allocation11 + $0x8] sm:$0xf]
    %v3582 = vld [vmem:[#allocation11 + $0xc] sm:$0xf]
    %v3583 = vld [vmem:[#allocation11 + $0x10] sm:$0xf]
    %v3584 = vld [vmem:[#allocation11 + $0x14] sm:$0xf]
    %v3585 = vld [vmem:[#allocation11 + $0x18] sm:$0xf]
    %v3586 = vld [vmem:[#allocation11 + $0x1c] sm:$0xf]
    %v3587 = vld [vmem:[#allocation11 + $0x20] sm:$0xf]
    %v3588 = vld [vmem:[#allocation11 + $0x24] sm:$0xf]
    %v3589 = vld [vmem:[#allocation11 + $0x28] sm:$0xf]
    %v3590 = vld [vmem:[#allocation11 + $0x2c] sm:$0xf]
    %v3591 = vld [vmem:[#allocation11 + $0x30] sm:$0xf]
    %v3592 = vld [vmem:[#allocation11 + $0x34] sm:$0xf]
    %v3593 = vld [vmem:[#allocation11 + $0x38] sm:$0xf]
    %v3594 = vld [vmem:[#allocation11 + $0x3c] sm:$0xf]
    %v3595 = vld [vmem:[%s10] sm:$0x1]
    %v3597 = vlaneseq
    %v3598 = vshrl.u32 %v3597, 7
    %v3599 = vsub.s32 0, %v3598
    %v3600 = vrot.slane %v3595, %v3599
    %v3618 = vunpack.c.l.b16 %v3579
    %v3619 = vunpack.c.l.b16 %v3580
    %v3620 = vunpack.c.l.b16 %v3581
    %v3621 = vunpack.c.l.b16 %v3582
    %v3622 = vunpack.c.l.b16 %v3583
    %v3623 = vunpack.c.l.b16 %v3584
    %v3624 = vunpack.c.l.b16 %v3585
    %v3625 = vunpack.c.l.b16 %v3586
    %v3626 = vunpack.c.l.b16 %v3587
    %v3627 = vunpack.c.l.b16 %v3588
    %v3628 = vunpack.c.l.b16 %v3589
    %v3629 = vunpack.c.l.b16 %v3590
    %v3630 = vunpack.c.l.b16 %v3591
    %v3631 = vunpack.c.l.b16 %v3592
    %v3632 = vunpack.c.l.b16 %v3593
    %v3633 = vunpack.c.l.b16 %v3594
    %v3634 = vpack.c.b16 %v3619, %v3618
    %v3635 = vpack.c.b16 %v3621, %v3620
    %v3636 = vpack.c.b16 %v3623, %v3622
    %v3637 = vpack.c.b16 %v3625, %v3624
    %v3638 = vpack.c.b16 %v3627, %v3626
    %v3639 = vpack.c.b16 %v3629, %v3628
    %v3640 = vpack.c.b16 %v3631, %v3630
    %v3641 = vpack.c.b16 %v3633, %v3632
    %3650 = vmatprep.subr.bf16.mxu0 0
    %3651 = vmatpush1.bf16.msra.mxu0 %v3641
    %3652 = vmatprep.subr.bf16.mxu0 0
    %3653 = vmatpush1.bf16.msra.mxu0 %v3640
    %3654 = vmatprep.subr.bf16.mxu0 0
    %3655 = vmatpush1.bf16.msra.mxu0 %v3639
    %3656 = vmatprep.subr.bf16.mxu0 0
    %3657 = vmatpush1.bf16.msra.mxu0 %v3638
    %3658 = vmatprep.subr.bf16.mxu0 0
    %3659 = vmatpush1.bf16.msra.mxu0 %v3637
    %3660 = vmatprep.subr.bf16.mxu0 0
    %3661 = vmatpush1.bf16.msra.mxu0 %v3636
    %3662 = vmatprep.subr.bf16.mxu0 0
    %3663 = vmatpush1.bf16.msra.mxu0 %v3635
    %3664 = vmatprep.subr.bf16.mxu0 0
    %3665 = vmatpush1.bf16.msra.mxu0 %v3634
    %3666 = vmatprep.subr.bf16.mxu0 0
    %3667 = vmatpush2.bf16.msra.mxu0 0
    %3668 = vmatprep.subr.bf16.mxu0 0
    %3669 = vmatpush2.bf16.msra.mxu0 0
    %3670 = vmatprep.subr.bf16.mxu0 0
    %3671 = vmatpush2.bf16.msra.mxu0 0
    %3672 = vmatprep.subr.bf16.mxu0 0
    %3673 = vmatpush2.bf16.msra.mxu0 0
    %3674 = vmatprep.subr.bf16.mxu0 0
    %3675 = vmatpush2.bf16.msra.mxu0 0
    %3676 = vmatprep.subr.bf16.mxu0 0
    %3677 = vmatpush2.bf16.msra.mxu0 0
    %3678 = vmatprep.subr.bf16.mxu0 0
    %3679 = vmatpush2.bf16.msra.mxu0 0
    %3680 = vmatprep.subr.bf16.mxu0 0
    %3681 = vmatpush2.bf16.msra.mxu0 0
    %3682 = vmatprep.mubr.bf16.mxu0 0
    %3683 = vmatmul.mubr.bf16.gmra.mxu0 %v3578
    %v3684 = vpop.f32.mrf.mxu0
    %v3685 = vadd.f32 %v3600, %v3684
    %v3686 = vpop.f32.mrf.mxu0
    %v3687 = vpop.f32.mrf.mxu0
    %v3688 = vpop.f32.mrf.mxu0
    %3689 = vdwg.mxu0
    %3690 = vst [vmem:[#allocation17] sm:$0xff] %v3685
    %v3691 = vld [vmem:[#allocation13] sm:$0xf]
    %v3692 = vld [vmem:[#allocation13 + $0x4] sm:$0xf]
    %v3693 = vld [vmem:[#allocation13 + $0x8] sm:$0xf]
    %v3694 = vld [vmem:[#allocation13 + $0xc] sm:$0xf]
    %v3695 = vld [vmem:[#allocation13 + $0x10] sm:$0xf]
    %v3696 = vld [vmem:[#allocation13 + $0x14] sm:$0xf]
    %v3697 = vld [vmem:[#allocation13 + $0x18] sm:$0xf]
    %v3698 = vld [vmem:[#allocation13 + $0x1c] sm:$0xf]
    %v3699 = vld [vmem:[#allocation13 + $0x20] sm:$0xf]
    %v3700 = vld [vmem:[#allocation13 + $0x24] sm:$0xf]
    %v3701 = vld [vmem:[#allocation13 + $0x28] sm:$0xf]
    %v3702 = vld [vmem:[#allocation13 + $0x2c] sm:$0xf]
    %v3703 = vld [vmem:[#allocation13 + $0x30] sm:$0xf]
    %v3704 = vld [vmem:[#allocation13 + $0x34] sm:$0xf]
    %v3705 = vld [vmem:[#allocation13 + $0x38] sm:$0xf]
    %v3706 = vld [vmem:[#allocation13 + $0x3c] sm:$0xf]
    %v3707 = vld [vmem:[#allocation13 + $0x40] sm:$0xf]
    %v3708 = vld [vmem:[#allocation13 + $0x44] sm:$0xf]
    %v3709 = vld [vmem:[#allocation13 + $0x48] sm:$0xf]
    %v3710 = vld [vmem:[#allocation13 + $0x4c] sm:$0xf]
    %v3711 = vld [vmem:[#allocation13 + $0x50] sm:$0xf]
    %v3712 = vld [vmem:[#allocation13 + $0x54] sm:$0xf]
    %v3713 = vld [vmem:[#allocation13 + $0x58] sm:$0xf]
    %v3714 = vld [vmem:[#allocation13 + $0x5c] sm:$0xf]
    %v3715 = vld [vmem:[#allocation13 + $0x60] sm:$0xf]
    %v3716 = vld [vmem:[#allocation13 + $0x64] sm:$0xf]
    %v3717 = vld [vmem:[#allocation13 + $0x68] sm:$0xf]
    %v3718 = vld [vmem:[#allocation13 + $0x6c] sm:$0xf]
    %v3719 = vld [vmem:[#allocation13 + $0x70] sm:$0xf]
    %v3720 = vld [vmem:[#allocation13 + $0x74] sm:$0xf]
    %v3721 = vld [vmem:[#allocation13 + $0x78] sm:$0xf]
    %v3722 = vld [vmem:[#allocation13 + $0x7c] sm:$0xf]
    %v3723 = vld [vmem:[#allocation13 + $0x80] sm:$0xf]
    %v3724 = vld [vmem:[#allocation13 + $0x84] sm:$0xf]
    %v3725 = vld [vmem:[#allocation13 + $0x88] sm:$0xf]
    %v3726 = vld [vmem:[#allocation13 + $0x8c] sm:$0xf]
    %v3727 = vld [vmem:[#allocation13 + $0x90] sm:$0xf]
    %v3728 = vld [vmem:[#allocation13 + $0x94] sm:$0xf]
    %v3729 = vld [vmem:[#allocation13 + $0x98] sm:$0xf]
    %v3730 = vld [vmem:[#allocation13 + $0x9c] sm:$0xf]
    %v3731 = vld [vmem:[#allocation13 + $0xa0] sm:$0xf]
    %v3732 = vld [vmem:[#allocation13 + $0xa4] sm:$0xf]
    %v3733 = vld [vmem:[#allocation13 + $0xa8] sm:$0xf]
    %v3734 = vld [vmem:[#allocation13 + $0xac] sm:$0xf]
    %v3735 = vld [vmem:[#allocation13 + $0xb0] sm:$0xf]
    %v3736 = vld [vmem:[#allocation13 + $0xb4] sm:$0xf]
    %v3737 = vld [vmem:[#allocation13 + $0xb8] sm:$0xf]
    %v3738 = vld [vmem:[#allocation13 + $0xbc] sm:$0xf]
    %v3739 = vld [vmem:[#allocation13 + $0xc0] sm:$0xf]
    %v3740 = vld [vmem:[#allocation13 + $0xc4] sm:$0xf]
    %v3741 = vld [vmem:[#allocation13 + $0xc8] sm:$0xf]
    %v3742 = vld [vmem:[#allocation13 + $0xcc] sm:$0xf]
    %v3743 = vld [vmem:[#allocation13 + $0xd0] sm:$0xf]
    %v3744 = vld [vmem:[#allocation13 + $0xd4] sm:$0xf]
    %v3745 = vld [vmem:[#allocation13 + $0xd8] sm:$0xf]
    %v3746 = vld [vmem:[#allocation13 + $0xdc] sm:$0xf]
    %v3747 = vld [vmem:[#allocation13 + $0xe0] sm:$0xf]
    %v3748 = vld [vmem:[#allocation13 + $0xe4] sm:$0xf]
    %v3749 = vld [vmem:[#allocation13 + $0xe8] sm:$0xf]
    %v3750 = vld [vmem:[#allocation13 + $0xec] sm:$0xf]
    %v3751 = vld [vmem:[#allocation13 + $0xf0] sm:$0xf]
    %v3752 = vld [vmem:[#allocation13 + $0xf4] sm:$0xf]
    %v3753 = vld [vmem:[#allocation13 + $0xf8] sm:$0xf]
    %v3754 = vld [vmem:[#allocation13 + $0xfc] sm:$0xf]
    %v3755 = vld [vmem:[#allocation13 + $0x100] sm:$0xf]
    %v3756 = vld [vmem:[#allocation13 + $0x104] sm:$0xf]
    %v3757 = vld [vmem:[#allocation13 + $0x108] sm:$0xf]
    %v3758 = vld [vmem:[#allocation13 + $0x10c] sm:$0xf]
    %v3759 = vld [vmem:[#allocation13 + $0x110] sm:$0xf]
    %v3760 = vld [vmem:[#allocation13 + $0x114] sm:$0xf]
    %v3761 = vld [vmem:[#allocation13 + $0x118] sm:$0xf]
    %v3762 = vld [vmem:[#allocation13 + $0x11c] sm:$0xf]
    %v3763 = vld [vmem:[#allocation13 + $0x120] sm:$0xf]
    %v3764 = vld [vmem:[#allocation13 + $0x124] sm:$0xf]
    %v3765 = vld [vmem:[#allocation13 + $0x128] sm:$0xf]
    %v3766 = vld [vmem:[#allocation13 + $0x12c] sm:$0xf]
    %v3767 = vld [vmem:[#allocation13 + $0x130] sm:$0xf]
    %v3768 = vld [vmem:[#allocation13 + $0x134] sm:$0xf]
    %v3769 = vld [vmem:[#allocation13 + $0x138] sm:$0xf]
    %v3770 = vld [vmem:[#allocation13 + $0x13c] sm:$0xf]
    %v3771 = vld [vmem:[#allocation13 + $0x140] sm:$0xf]
    %v3772 = vld [vmem:[#allocation13 + $0x144] sm:$0xf]
    %v3773 = vld [vmem:[#allocation13 + $0x148] sm:$0xf]
    %v3774 = vld [vmem:[#allocation13 + $0x14c] sm:$0xf]
    %v3775 = vld [vmem:[#allocation13 + $0x150] sm:$0xf]
    %v3776 = vld [vmem:[#allocation13 + $0x154] sm:$0xf]
    %v3777 = vld [vmem:[#allocation13 + $0x158] sm:$0xf]
    %v3778 = vld [vmem:[#allocation13 + $0x15c] sm:$0xf]
    %v3779 = vld [vmem:[#allocation13 + $0x160] sm:$0xf]
    %v3780 = vld [vmem:[#allocation13 + $0x164] sm:$0xf]
    %v3781 = vld [vmem:[#allocation13 + $0x168] sm:$0xf]
    %v3782 = vld [vmem:[#allocation13 + $0x16c] sm:$0xf]
    %v3783 = vld [vmem:[#allocation13 + $0x170] sm:$0xf]
    %v3784 = vld [vmem:[#allocation13 + $0x174] sm:$0xf]
    %v3785 = vld [vmem:[#allocation13 + $0x178] sm:$0xf]
    %v3786 = vld [vmem:[#allocation13 + $0x17c] sm:$0xf]
    %v3787 = vld [vmem:[#allocation13 + $0x180] sm:$0xf]
    %v3788 = vld [vmem:[#allocation13 + $0x184] sm:$0xf]
    %v3789 = vld [vmem:[#allocation13 + $0x188] sm:$0xf]
    %v3790 = vld [vmem:[#allocation13 + $0x18c] sm:$0xf]
    %v3791 = vld [vmem:[#allocation13 + $0x190] sm:$0xf]
    %v3792 = vld [vmem:[#allocation13 + $0x194] sm:$0xf]
    %v3793 = vld [vmem:[#allocation13 + $0x198] sm:$0xf]
    %v3794 = vld [vmem:[#allocation13 + $0x19c] sm:$0xf]
    %v3795 = vld [vmem:[#allocation13 + $0x1a0] sm:$0xf]
    %v3796 = vld [vmem:[#allocation13 + $0x1a4] sm:$0xf]
    %v3797 = vld [vmem:[#allocation13 + $0x1a8] sm:$0xf]
    %v3798 = vld [vmem:[#allocation13 + $0x1ac] sm:$0xf]
    %v3799 = vld [vmem:[#allocation13 + $0x1b0] sm:$0xf]
    %v3800 = vld [vmem:[#allocation13 + $0x1b4] sm:$0xf]
    %v3801 = vld [vmem:[#allocation13 + $0x1b8] sm:$0xf]
    %v3802 = vld [vmem:[#allocation13 + $0x1bc] sm:$0xf]
    %v3803 = vld [vmem:[#allocation13 + $0x1c0] sm:$0xf]
    %v3804 = vld [vmem:[#allocation13 + $0x1c4] sm:$0xf]
    %v3805 = vld [vmem:[#allocation13 + $0x1c8] sm:$0xf]
    %v3806 = vld [vmem:[#allocation13 + $0x1cc] sm:$0xf]
    %v3807 = vld [vmem:[#allocation13 + $0x1d0] sm:$0xf]
    %v3808 = vld [vmem:[#allocation13 + $0x1d4] sm:$0xf]
    %v3809 = vld [vmem:[#allocation13 + $0x1d8] sm:$0xf]
    %v3810 = vld [vmem:[#allocation13 + $0x1dc] sm:$0xf]
    %v3811 = vld [vmem:[#allocation13 + $0x1e0] sm:$0xf]
    %v3812 = vld [vmem:[#allocation13 + $0x1e4] sm:$0xf]
    %v3813 = vld [vmem:[#allocation13 + $0x1e8] sm:$0xf]
    %v3814 = vld [vmem:[#allocation13 + $0x1ec] sm:$0xf]
    %v3815 = vld [vmem:[#allocation13 + $0x1f0] sm:$0xf]
    %v3816 = vld [vmem:[#allocation13 + $0x1f4] sm:$0xf]
    %v3817 = vld [vmem:[#allocation13 + $0x1f8] sm:$0xf]
    %v3818 = vld [vmem:[#allocation13 + $0x1fc] sm:$0xf]
    %v3819 = vld [vmem:[#allocation13 + $0x200] sm:$0xf]
    %v3820 = vld [vmem:[#allocation13 + $0x204] sm:$0xf]
    %v3821 = vld [vmem:[#allocation13 + $0x208] sm:$0xf]
    %v3822 = vld [vmem:[#allocation13 + $0x20c] sm:$0xf]
    %v3823 = vld [vmem:[#allocation13 + $0x210] sm:$0xf]
    %v3824 = vld [vmem:[#allocation13 + $0x214] sm:$0xf]
    %v3825 = vld [vmem:[#allocation13 + $0x218] sm:$0xf]
    %v3826 = vld [vmem:[#allocation13 + $0x21c] sm:$0xf]
    %v3827 = vld [vmem:[#allocation13 + $0x220] sm:$0xf]
    %v3828 = vld [vmem:[#allocation13 + $0x224] sm:$0xf]
    %v3829 = vld [vmem:[#allocation13 + $0x228] sm:$0xf]
    %v3830 = vld [vmem:[#allocation13 + $0x22c] sm:$0xf]
    %v3831 = vld [vmem:[#allocation13 + $0x230] sm:$0xf]
    %v3832 = vld [vmem:[#allocation13 + $0x234] sm:$0xf]
    %v3833 = vld [vmem:[#allocation13 + $0x238] sm:$0xf]
    %v3834 = vld [vmem:[#allocation13 + $0x23c] sm:$0xf]
    %v3835 = vld [vmem:[#allocation13 + $0x240] sm:$0xf]
    %v3836 = vld [vmem:[#allocation13 + $0x244] sm:$0xf]
    %v3837 = vld [vmem:[#allocation13 + $0x248] sm:$0xf]
    %v3838 = vld [vmem:[#allocation13 + $0x24c] sm:$0xf]
    %v3839 = vld [vmem:[#allocation13 + $0x250] sm:$0xf]
    %v3840 = vld [vmem:[#allocation13 + $0x254] sm:$0xf]
    %v3841 = vld [vmem:[#allocation13 + $0x258] sm:$0xf]
    %v3842 = vld [vmem:[#allocation13 + $0x25c] sm:$0xf]
    %v3843 = vld [vmem:[#allocation13 + $0x260] sm:$0xf]
    %v3844 = vld [vmem:[#allocation13 + $0x264] sm:$0xf]
    %v3845 = vld [vmem:[#allocation13 + $0x268] sm:$0xf]
    %v3846 = vld [vmem:[#allocation13 + $0x26c] sm:$0xf]
    %v3847 = vld [vmem:[#allocation13 + $0x270] sm:$0xf]
    %v3848 = vld [vmem:[#allocation13 + $0x274] sm:$0xf]
    %v3849 = vld [vmem:[#allocation13 + $0x278] sm:$0xf]
    %v3850 = vld [vmem:[#allocation13 + $0x27c] sm:$0xf]
    %v3851 = vld [vmem:[#allocation13 + $0x280] sm:$0xf]
    %v3852 = vld [vmem:[#allocation13 + $0x284] sm:$0xf]
    %v3853 = vld [vmem:[#allocation13 + $0x288] sm:$0xf]
    %v3854 = vld [vmem:[#allocation13 + $0x28c] sm:$0xf]
    %v3855 = vld [vmem:[#allocation13 + $0x290] sm:$0xf]
    %v3856 = vld [vmem:[#allocation13 + $0x294] sm:$0xf]
    %v3857 = vld [vmem:[#allocation13 + $0x298] sm:$0xf]
    %v3858 = vld [vmem:[#allocation13 + $0x29c] sm:$0xf]
    %v3859 = vld [vmem:[#allocation13 + $0x2a0] sm:$0xf]
    %v3860 = vld [vmem:[#allocation13 + $0x2a4] sm:$0xf]
    %v3861 = vld [vmem:[#allocation13 + $0x2a8] sm:$0xf]
    %v3862 = vld [vmem:[#allocation13 + $0x2ac] sm:$0xf]
    %v3863 = vld [vmem:[#allocation13 + $0x2b0] sm:$0xf]
    %v3864 = vld [vmem:[#allocation13 + $0x2b4] sm:$0xf]
    %v3865 = vld [vmem:[#allocation13 + $0x2b8] sm:$0xf]
    %v3866 = vld [vmem:[#allocation13 + $0x2bc] sm:$0xf]
    %v3867 = vld [vmem:[#allocation13 + $0x2c0] sm:$0xf]
    %v3868 = vld [vmem:[#allocation13 + $0x2c4] sm:$0xf]
    %v3869 = vld [vmem:[#allocation13 + $0x2c8] sm:$0xf]
    %v3870 = vld [vmem:[#allocation13 + $0x2cc] sm:$0xf]
    %v3871 = vld [vmem:[#allocation13 + $0x2d0] sm:$0xf]
    %v3872 = vld [vmem:[#allocation13 + $0x2d4] sm:$0xf]
    %v3873 = vld [vmem:[#allocation13 + $0x2d8] sm:$0xf]
    %v3874 = vld [vmem:[#allocation13 + $0x2dc] sm:$0xf]
    %v3875 = vld [vmem:[#allocation13 + $0x2e0] sm:$0xf]
    %v3876 = vld [vmem:[#allocation13 + $0x2e4] sm:$0xf]
    %v3877 = vld [vmem:[#allocation13 + $0x2e8] sm:$0xf]
    %v3878 = vld [vmem:[#allocation13 + $0x2ec] sm:$0xf]
    %v3879 = vld [vmem:[#allocation13 + $0x2f0] sm:$0xf]
    %v3880 = vld [vmem:[#allocation13 + $0x2f4] sm:$0xf]
    %v3881 = vld [vmem:[#allocation13 + $0x2f8] sm:$0xf]
    %v3882 = vld [vmem:[#allocation13 + $0x2fc] sm:$0xf]
    %v3883 = vld [vmem:[%s12] sm:$0x1]
    %v3884 = vld [vmem:[%s14] sm:$0x1]
    %v3885 = vld [vmem:[#allocation2] sm:$0xff]
    %v3886 = vld [vmem:[#allocation2 + $0x8] sm:$0xff]
    %v3887 = vld [vmem:[#allocation2 + $0x10] sm:$0xff]
    %v3888 = vld [vmem:[#allocation2 + $0x18] sm:$0xff]
    %v3889 = vld [vmem:[#allocation2 + $0x20] sm:$0xff]
    %v3890 = vld [vmem:[#allocation2 + $0x28] sm:$0xff]
    %v3892 = vlaneseq
    %v3893 = vshrl.u32 %v3892, 7
    %v3894 = vsub.s32 0, %v3893
    %v3895 = vrot.slane %v3883, %v3894
    %v3903 = vunpack.c.l.b16 %v3885
    %v3904 = vunpack.c.h.b16 %v3885
    %v3905 = vunpack.c.l.b16 %v3886
    %v3906 = vunpack.c.h.b16 %v3886
    %v3907 = vunpack.c.l.b16 %v3887
    %v3908 = vunpack.c.h.b16 %v3887
    %v3909 = vunpack.c.l.b16 %v3888
    %v3910 = vunpack.c.h.b16 %v3888
    %v3911 = vunpack.c.l.b16 %v3889
    %v3912 = vunpack.c.h.b16 %v3889
    %v3913 = vunpack.c.l.b16 %v3890
    %v3914 = vunpack.c.h.b16 %v3890
    %v3915 = vpack.c.b16 %v3903, %v3903
    %v3916 = vpack.c.b16 %v3904, %v3904
    %v3917 = vpack.c.b16 %v3905, %v3905
    %v3918 = vpack.c.b16 %v3906, %v3906
    %v3919 = vpack.c.b16 %v3907, %v3907
    %v3920 = vpack.c.b16 %v3908, %v3908
    %v3921 = vpack.c.b16 %v3909, %v3909
    %v3922 = vpack.c.b16 %v3910, %v3910
    %v3923 = vpack.c.b16 %v3911, %v3911
    %v3924 = vpack.c.b16 %v3912, %v3912
    %v3925 = vpack.c.b16 %v3913, %v3913
    %v3926 = vpack.c.b16 %v3914, %v3914
    %v4131 = vunpack.c.l.b16 %v3691
    %v4132 = vunpack.c.l.b16 %v3692
    %v4133 = vunpack.c.l.b16 %v3693
    %v4134 = vunpack.c.l.b16 %v3694
    %v4135 = vunpack.c.l.b16 %v3695
    %v4136 = vunpack.c.l.b16 %v3696
    %v4137 = vunpack.c.l.b16 %v3697
    %v4138 = vunpack.c.l.b16 %v3698
    %v4139 = vunpack.c.l.b16 %v3699
    %v4140 = vunpack.c.l.b16 %v3700
    %v4141 = vunpack.c.l.b16 %v3701
    %v4142 = vunpack.c.l.b16 %v3702
    %v4143 = vunpack.c.l.b16 %v3703
    %v4144 = vunpack.c.l.b16 %v3704
    %v4145 = vunpack.c.l.b16 %v3705
    %v4146 = vunpack.c.l.b16 %v3706
    %v4147 = vunpack.c.l.b16 %v3707
    %v4148 = vunpack.c.l.b16 %v3708
    %v4149 = vunpack.c.l.b16 %v3709
    %v4150 = vunpack.c.l.b16 %v3710
    %v4151 = vunpack.c.l.b16 %v3711
    %v4152 = vunpack.c.l.b16 %v3712
    %v4153 = vunpack.c.l.b16 %v3713
    %v4154 = vunpack.c.l.b16 %v3714
    %v4155 = vunpack.c.l.b16 %v3715
    %v4156 = vunpack.c.l.b16 %v3716
    %v4157 = vunpack.c.l.b16 %v3717
    %v4158 = vunpack.c.l.b16 %v3718
    %v4159 = vunpack.c.l.b16 %v3719
    %v4160 = vunpack.c.l.b16 %v3720
    %v4161 = vunpack.c.l.b16 %v3721
    %v4162 = vunpack.c.l.b16 %v3722
    %v4163 = vunpack.c.l.b16 %v3723
    %v4164 = vunpack.c.l.b16 %v3724
    %v4165 = vunpack.c.l.b16 %v3725
    %v4166 = vunpack.c.l.b16 %v3726
    %v4167 = vunpack.c.l.b16 %v3727
    %v4168 = vunpack.c.l.b16 %v3728
    %v4169 = vunpack.c.l.b16 %v3729
    %v4170 = vunpack.c.l.b16 %v3730
    %v4171 = vunpack.c.l.b16 %v3731
    %v4172 = vunpack.c.l.b16 %v3732
    %v4173 = vunpack.c.l.b16 %v3733
    %v4174 = vunpack.c.l.b16 %v3734
    %v4175 = vunpack.c.l.b16 %v3735
    %v4176 = vunpack.c.l.b16 %v3736
    %v4177 = vunpack.c.l.b16 %v3737
    %v4178 = vunpack.c.l.b16 %v3738
    %v4179 = vunpack.c.l.b16 %v3739
    %v4180 = vunpack.c.l.b16 %v3740
    %v4181 = vunpack.c.l.b16 %v3741
    %v4182 = vunpack.c.l.b16 %v3742
    %v4183 = vunpack.c.l.b16 %v3743
    %v4184 = vunpack.c.l.b16 %v3744
    %v4185 = vunpack.c.l.b16 %v3745
    %v4186 = vunpack.c.l.b16 %v3746
    %v4187 = vunpack.c.l.b16 %v3747
    %v4188 = vunpack.c.l.b16 %v3748
    %v4189 = vunpack.c.l.b16 %v3749
    %v4190 = vunpack.c.l.b16 %v3750
    %v4191 = vunpack.c.l.b16 %v3751
    %v4192 = vunpack.c.l.b16 %v3752
    %v4193 = vunpack.c.l.b16 %v3753
    %v4194 = vunpack.c.l.b16 %v3754
    %v4195 = vunpack.c.l.b16 %v3755
    %v4196 = vunpack.c.l.b16 %v3756
    %v4197 = vunpack.c.l.b16 %v3757
    %v4198 = vunpack.c.l.b16 %v3758
    %v4199 = vunpack.c.l.b16 %v3759
    %v4200 = vunpack.c.l.b16 %v3760
    %v4201 = vunpack.c.l.b16 %v3761
    %v4202 = vunpack.c.l.b16 %v3762
    %v4203 = vunpack.c.l.b16 %v3763
    %v4204 = vunpack.c.l.b16 %v3764
    %v4205 = vunpack.c.l.b16 %v3765
    %v4206 = vunpack.c.l.b16 %v3766
    %v4207 = vunpack.c.l.b16 %v3767
    %v4208 = vunpack.c.l.b16 %v3768
    %v4209 = vunpack.c.l.b16 %v3769
    %v4210 = vunpack.c.l.b16 %v3770
    %v4211 = vunpack.c.l.b16 %v3771
    %v4212 = vunpack.c.l.b16 %v3772
    %v4213 = vunpack.c.l.b16 %v3773
    %v4214 = vunpack.c.l.b16 %v3774
    %v4215 = vunpack.c.l.b16 %v3775
    %v4216 = vunpack.c.l.b16 %v3776
    %v4217 = vunpack.c.l.b16 %v3777
    %v4218 = vunpack.c.l.b16 %v3778
    %v4219 = vunpack.c.l.b16 %v3779
    %v4220 = vunpack.c.l.b16 %v3780
    %v4221 = vunpack.c.l.b16 %v3781
    %v4222 = vunpack.c.l.b16 %v3782
    %v4223 = vunpack.c.l.b16 %v3783
    %v4224 = vunpack.c.l.b16 %v3784
    %v4225 = vunpack.c.l.b16 %v3785
    %v4226 = vunpack.c.l.b16 %v3786
    %v4227 = vunpack.c.l.b16 %v3787
    %v4228 = vunpack.c.l.b16 %v3788
    %v4229 = vunpack.c.l.b16 %v3789
    %v4230 = vunpack.c.l.b16 %v3790
    %v4231 = vunpack.c.l.b16 %v3791
    %v4232 = vunpack.c.l.b16 %v3792
    %v4233 = vunpack.c.l.b16 %v3793
    %v4234 = vunpack.c.l.b16 %v3794
    %v4235 = vunpack.c.l.b16 %v3795
    %v4236 = vunpack.c.l.b16 %v3796
    %v4237 = vunpack.c.l.b16 %v3797
    %v4238 = vunpack.c.l.b16 %v3798
    %v4239 = vunpack.c.l.b16 %v3799
    %v4240 = vunpack.c.l.b16 %v3800
    %v4241 = vunpack.c.l.b16 %v3801
    %v4242 = vunpack.c.l.b16 %v3802
    %v4243 = vunpack.c.l.b16 %v3803
    %v4244 = vunpack.c.l.b16 %v3804
    %v4245 = vunpack.c.l.b16 %v3805
    %v4246 = vunpack.c.l.b16 %v3806
    %v4247 = vunpack.c.l.b16 %v3807
    %v4248 = vunpack.c.l.b16 %v3808
    %v4249 = vunpack.c.l.b16 %v3809
    %v4250 = vunpack.c.l.b16 %v3810
    %v4251 = vunpack.c.l.b16 %v3811
    %v4252 = vunpack.c.l.b16 %v3812
    %v4253 = vunpack.c.l.b16 %v3813
    %v4254 = vunpack.c.l.b16 %v3814
    %v4255 = vunpack.c.l.b16 %v3815
    %v4256 = vunpack.c.l.b16 %v3816
    %v4257 = vunpack.c.l.b16 %v3817
    %v4258 = vunpack.c.l.b16 %v3818
    %v4259 = vunpack.c.l.b16 %v3819
    %v4260 = vunpack.c.l.b16 %v3820
    %v4261 = vunpack.c.l.b16 %v3821
    %v4262 = vunpack.c.l.b16 %v3822
    %v4263 = vunpack.c.l.b16 %v3823
    %v4264 = vunpack.c.l.b16 %v3824
    %v4265 = vunpack.c.l.b16 %v3825
    %v4266 = vunpack.c.l.b16 %v3826
    %v4267 = vunpack.c.l.b16 %v3827
    %v4268 = vunpack.c.l.b16 %v3828
    %v4269 = vunpack.c.l.b16 %v3829
    %v4270 = vunpack.c.l.b16 %v3830
    %v4271 = vunpack.c.l.b16 %v3831
    %v4272 = vunpack.c.l.b16 %v3832
    %v4273 = vunpack.c.l.b16 %v3833
    %v4274 = vunpack.c.l.b16 %v3834
    %v4275 = vunpack.c.l.b16 %v3835
    %v4276 = vunpack.c.l.b16 %v3836
    %v4277 = vunpack.c.l.b16 %v3837
    %v4278 = vunpack.c.l.b16 %v3838
    %v4279 = vunpack.c.l.b16 %v3839
    %v4280 = vunpack.c.l.b16 %v3840
    %v4281 = vunpack.c.l.b16 %v3841
    %v4282 = vunpack.c.l.b16 %v3842
    %v4283 = vunpack.c.l.b16 %v3843
    %v4284 = vunpack.c.l.b16 %v3844
    %v4285 = vunpack.c.l.b16 %v3845
    %v4286 = vunpack.c.l.b16 %v3846
    %v4287 = vunpack.c.l.b16 %v3847
    %v4288 = vunpack.c.l.b16 %v3848
    %v4289 = vunpack.c.l.b16 %v3849
    %v4290 = vunpack.c.l.b16 %v3850
    %v4291 = vunpack.c.l.b16 %v3851
    %v4292 = vunpack.c.l.b16 %v3852
    %v4293 = vunpack.c.l.b16 %v3853
    %v4294 = vunpack.c.l.b16 %v3854
    %v4295 = vunpack.c.l.b16 %v3855
    %v4296 = vunpack.c.l.b16 %v3856
    %v4297 = vunpack.c.l.b16 %v3857
    %v4298 = vunpack.c.l.b16 %v3858
    %v4299 = vunpack.c.l.b16 %v3859
    %v4300 = vunpack.c.l.b16 %v3860
    %v4301 = vunpack.c.l.b16 %v3861
    %v4302 = vunpack.c.l.b16 %v3862
    %v4303 = vunpack.c.l.b16 %v3863
    %v4304 = vunpack.c.l.b16 %v3864
    %v4305 = vunpack.c.l.b16 %v3865
    %v4306 = vunpack.c.l.b16 %v3866
    %v4307 = vunpack.c.l.b16 %v3867
    %v4308 = vunpack.c.l.b16 %v3868
    %v4309 = vunpack.c.l.b16 %v3869
    %v4310 = vunpack.c.l.b16 %v3870
    %v4311 = vunpack.c.l.b16 %v3871
    %v4312 = vunpack.c.l.b16 %v3872
    %v4313 = vunpack.c.l.b16 %v3873
    %v4314 = vunpack.c.l.b16 %v3874
    %v4315 = vunpack.c.l.b16 %v3875
    %v4316 = vunpack.c.l.b16 %v3876
    %v4317 = vunpack.c.l.b16 %v3877
    %v4318 = vunpack.c.l.b16 %v3878
    %v4319 = vunpack.c.l.b16 %v3879
    %v4320 = vunpack.c.l.b16 %v3880
    %v4321 = vunpack.c.l.b16 %v3881
    %v4322 = vunpack.c.l.b16 %v3882
    %v4323 = vpack.c.b16 %v4132, %v4131
    %v4324 = vpack.c.b16 %v4134, %v4133
    %v4325 = vpack.c.b16 %v4136, %v4135
    %v4326 = vpack.c.b16 %v4138, %v4137
    %v4327 = vpack.c.b16 %v4140, %v4139
    %v4328 = vpack.c.b16 %v4142, %v4141
    %v4329 = vpack.c.b16 %v4144, %v4143
    %v4330 = vpack.c.b16 %v4146, %v4145
    %v4331 = vpack.c.b16 %v4148, %v4147
    %v4332 = vpack.c.b16 %v4150, %v4149
    %v4333 = vpack.c.b16 %v4152, %v4151
    %v4334 = vpack.c.b16 %v4154, %v4153
    %v4335 = vpack.c.b16 %v4156, %v4155
    %v4336 = vpack.c.b16 %v4158, %v4157
    %v4337 = vpack.c.b16 %v4160, %v4159
    %v4338 = vpack.c.b16 %v4162, %v4161
    %v4339 = vpack.c.b16 %v4164, %v4163
    %v4340 = vpack.c.b16 %v4166, %v4165
    %v4341 = vpack.c.b16 %v4168, %v4167
    %v4342 = vpack.c.b16 %v4170, %v4169
    %v4343 = vpack.c.b16 %v4172, %v4171
    %v4344 = vpack.c.b16 %v4174, %v4173
    %v4345 = vpack.c.b16 %v4176, %v4175
    %v4346 = vpack.c.b16 %v4178, %v4177
    %v4347 = vpack.c.b16 %v4180, %v4179
    %v4348 = vpack.c.b16 %v4182, %v4181
    %v4349 = vpack.c.b16 %v4184, %v4183
    %v4350 = vpack.c.b16 %v4186, %v4185
    %v4351 = vpack.c.b16 %v4188, %v4187
    %v4352 = vpack.c.b16 %v4190, %v4189
    %v4353 = vpack.c.b16 %v4192, %v4191
    %v4354 = vpack.c.b16 %v4194, %v4193
    %v4355 = vpack.c.b16 %v4196, %v4195
    %v4356 = vpack.c.b16 %v4198, %v4197
    %v4357 = vpack.c.b16 %v4200, %v4199
    %v4358 = vpack.c.b16 %v4202, %v4201
    %v4359 = vpack.c.b16 %v4204, %v4203
    %v4360 = vpack.c.b16 %v4206, %v4205
    %v4361 = vpack.c.b16 %v4208, %v4207
    %v4362 = vpack.c.b16 %v4210, %v4209
    %v4363 = vpack.c.b16 %v4212, %v4211
    %v4364 = vpack.c.b16 %v4214, %v4213
    %v4365 = vpack.c.b16 %v4216, %v4215
    %v4366 = vpack.c.b16 %v4218, %v4217
    %v4367 = vpack.c.b16 %v4220, %v4219
    %v4368 = vpack.c.b16 %v4222, %v4221
    %v4369 = vpack.c.b16 %v4224, %v4223
    %v4370 = vpack.c.b16 %v4226, %v4225
    %v4371 = vpack.c.b16 %v4228, %v4227
    %v4372 = vpack.c.b16 %v4230, %v4229
    %v4373 = vpack.c.b16 %v4232, %v4231
    %v4374 = vpack.c.b16 %v4234, %v4233
    %v4375 = vpack.c.b16 %v4236, %v4235
    %v4376 = vpack.c.b16 %v4238, %v4237
    %v4377 = vpack.c.b16 %v4240, %v4239
    %v4378 = vpack.c.b16 %v4242, %v4241
    %v4379 = vpack.c.b16 %v4244, %v4243
    %v4380 = vpack.c.b16 %v4246, %v4245
    %v4381 = vpack.c.b16 %v4248, %v4247
    %v4382 = vpack.c.b16 %v4250, %v4249
    %v4383 = vpack.c.b16 %v4252, %v4251
    %v4384 = vpack.c.b16 %v4254, %v4253
    %v4385 = vpack.c.b16 %v4256, %v4255
    %v4386 = vpack.c.b16 %v4258, %v4257
    %v4387 = vpack.c.b16 %v4260, %v4259
    %v4388 = vpack.c.b16 %v4262, %v4261
    %v4389 = vpack.c.b16 %v4264, %v4263
    %v4390 = vpack.c.b16 %v4266, %v4265
    %v4391 = vpack.c.b16 %v4268, %v4267
    %v4392 = vpack.c.b16 %v4270, %v4269
    %v4393 = vpack.c.b16 %v4272, %v4271
    %v4394 = vpack.c.b16 %v4274, %v4273
    %v4395 = vpack.c.b16 %v4276, %v4275
    %v4396 = vpack.c.b16 %v4278, %v4277
    %v4397 = vpack.c.b16 %v4280, %v4279
    %v4398 = vpack.c.b16 %v4282, %v4281
    %v4399 = vpack.c.b16 %v4284, %v4283
    %v4400 = vpack.c.b16 %v4286, %v4285
    %v4401 = vpack.c.b16 %v4288, %v4287
    %v4402 = vpack.c.b16 %v4290, %v4289
    %v4403 = vpack.c.b16 %v4292, %v4291
    %v4404 = vpack.c.b16 %v4294, %v4293
    %v4405 = vpack.c.b16 %v4296, %v4295
    %v4406 = vpack.c.b16 %v4298, %v4297
    %v4407 = vpack.c.b16 %v4300, %v4299
    %v4408 = vpack.c.b16 %v4302, %v4301
    %v4409 = vpack.c.b16 %v4304, %v4303
    %v4410 = vpack.c.b16 %v4306, %v4305
    %v4411 = vpack.c.b16 %v4308, %v4307
    %v4412 = vpack.c.b16 %v4310, %v4309
    %v4413 = vpack.c.b16 %v4312, %v4311
    %v4414 = vpack.c.b16 %v4314, %v4313
    %v4415 = vpack.c.b16 %v4316, %v4315
    %v4416 = vpack.c.b16 %v4318, %v4317
    %v4417 = vpack.c.b16 %v4320, %v4319
    %v4418 = vpack.c.b16 %v4322, %v4321
    %4515 = vmatprep.subr.bf16.mxu0 0
    %4516 = vmatpush1.bf16.msra.mxu0 %v4330
    %4517 = vmatprep.subr.bf16.mxu0 0
    %4518 = vmatpush1.bf16.msra.mxu0 %v4329
    %4519 = vmatprep.subr.bf16.mxu0 0
    %4520 = vmatpush1.bf16.msra.mxu0 %v4328
    %4521 = vmatprep.subr.bf16.mxu0 0
    %4522 = vmatpush1.bf16.msra.mxu0 %v4327
    %4523 = vmatprep.subr.bf16.mxu0 0
    %4524 = vmatpush1.bf16.msra.mxu0 %v4326
    %4525 = vmatprep.subr.bf16.mxu0 0
    %4526 = vmatpush1.bf16.msra.mxu0 %v4325
    %4527 = vmatprep.subr.bf16.mxu0 0
    %4528 = vmatpush1.bf16.msra.mxu0 %v4324
    %4529 = vmatprep.subr.bf16.mxu0 0
    %4530 = vmatpush1.bf16.msra.mxu0 %v4323
    %4531 = vmatprep.subr.bf16.mxu0 0
    %4532 = vmatpush2.bf16.msra.mxu0 %v4338
    %4533 = vmatprep.subr.bf16.mxu0 0
    %4534 = vmatpush2.bf16.msra.mxu0 %v4337
    %4535 = vmatprep.subr.bf16.mxu0 0
    %4536 = vmatpush2.bf16.msra.mxu0 %v4336
    %4537 = vmatprep.subr.bf16.mxu0 0
    %4538 = vmatpush2.bf16.msra.mxu0 %v4335
    %4539 = vmatprep.subr.bf16.mxu0 0
    %4540 = vmatpush2.bf16.msra.mxu0 %v4334
    %4541 = vmatprep.subr.bf16.mxu0 0
    %4542 = vmatpush2.bf16.msra.mxu0 %v4333
    %4543 = vmatprep.subr.bf16.mxu0 0
    %4544 = vmatpush2.bf16.msra.mxu0 %v4332
    %4545 = vmatprep.subr.bf16.mxu0 0
    %4546 = vmatpush2.bf16.msra.mxu0 %v4331
    %4547 = vmatprep.mubr.bf16.mxu0 %v3916
    %4548 = vmatmul.mubr.bf16.gmra.mxu0 %v3915
    %v4549 = vpop.f32.mrf.mxu0
    %v4550 = vadd.f32 %v3895, %v4549
    %v4551 = vpop.f32.mrf.mxu0
    %v4552 = vpop.f32.mrf.mxu0
    %v4553 = vpop.f32.mrf.mxu0
    %4554 = vdwg.mxu0
    %4555 = vmatprep.subr.bf16.mxu0 0
    %4556 = vmatpush1.bf16.msra.mxu0 %v4346
    %4557 = vmatprep.subr.bf16.mxu0 0
    %4558 = vmatpush1.bf16.msra.mxu0 %v4345
    %4559 = vmatprep.subr.bf16.mxu0 0
    %4560 = vmatpush1.bf16.msra.mxu0 %v4344
    %4561 = vmatprep.subr.bf16.mxu0 0
    %4562 = vmatpush1.bf16.msra.mxu0 %v4343
    %4563 = vmatprep.subr.bf16.mxu0 0
    %4564 = vmatpush1.bf16.msra.mxu0 %v4342
    %4565 = vmatprep.subr.bf16.mxu0 0
    %4566 = vmatpush1.bf16.msra.mxu0 %v4341
    %4567 = vmatprep.subr.bf16.mxu0 0
    %4568 = vmatpush1.bf16.msra.mxu0 %v4340
    %4569 = vmatprep.subr.bf16.mxu0 0
    %4570 = vmatpush1.bf16.msra.mxu0 %v4339
    %4571 = vmatprep.subr.bf16.mxu0 0
    %4572 = vmatpush2.bf16.msra.mxu0 %v4354
    %4573 = vmatprep.subr.bf16.mxu0 0
    %4574 = vmatpush2.bf16.msra.mxu0 %v4353
    %4575 = vmatprep.subr.bf16.mxu0 0
    %4576 = vmatpush2.bf16.msra.mxu0 %v4352
    %4577 = vmatprep.subr.bf16.mxu0 0
    %4578 = vmatpush2.bf16.msra.mxu0 %v4351
    %4579 = vmatprep.subr.bf16.mxu0 0
    %4580 = vmatpush2.bf16.msra.mxu0 %v4350
    %4581 = vmatprep.subr.bf16.mxu0 0
    %4582 = vmatpush2.bf16.msra.mxu0 %v4349
    %4583 = vmatprep.subr.bf16.mxu0 0
    %4584 = vmatpush2.bf16.msra.mxu0 %v4348
    %4585 = vmatprep.subr.bf16.mxu0 0
    %4586 = vmatpush2.bf16.msra.mxu0 %v4347
    %4587 = vmatprep.mubr.bf16.mxu0 %v3918
    %4588 = vmatmul.mubr.bf16.gmra.mxu0 %v3917
    %v4589 = vpop.f32.mrf.mxu0
    %v4590 = vadd.f32 %v4550, %v4589
    %v4591 = vpop.f32.mrf.mxu0
    %v4592 = vpop.f32.mrf.mxu0
    %v4593 = vpop.f32.mrf.mxu0
    %4594 = vdwg.mxu0
    %4595 = vmatprep.subr.bf16.mxu0 0
    %4596 = vmatpush1.bf16.msra.mxu0 %v4362
    %4597 = vmatprep.subr.bf16.mxu0 0
    %4598 = vmatpush1.bf16.msra.mxu0 %v4361
    %4599 = vmatprep.subr.bf16.mxu0 0
    %4600 = vmatpush1.bf16.msra.mxu0 %v4360
    %4601 = vmatprep.subr.bf16.mxu0 0
    %4602 = vmatpush1.bf16.msra.mxu0 %v4359
    %4603 = vmatprep.subr.bf16.mxu0 0
    %4604 = vmatpush1.bf16.msra.mxu0 %v4358
    %4605 = vmatprep.subr.bf16.mxu0 0
    %4606 = vmatpush1.bf16.msra.mxu0 %v4357
    %4607 = vmatprep.subr.bf16.mxu0 0
    %4608 = vmatpush1.bf16.msra.mxu0 %v4356
    %4609 = vmatprep.subr.bf16.mxu0 0
    %4610 = vmatpush1.bf16.msra.mxu0 %v4355
    %4611 = vmatprep.subr.bf16.mxu0 0
    %4612 = vmatpush2.bf16.msra.mxu0 %v4370
    %4613 = vmatprep.subr.bf16.mxu0 0
    %4614 = vmatpush2.bf16.msra.mxu0 %v4369
    %4615 = vmatprep.subr.bf16.mxu0 0
    %4616 = vmatpush2.bf16.msra.mxu0 %v4368
    %4617 = vmatprep.subr.bf16.mxu0 0
    %4618 = vmatpush2.bf16.msra.mxu0 %v4367
    %4619 = vmatprep.subr.bf16.mxu0 0
    %4620 = vmatpush2.bf16.msra.mxu0 %v4366
    %4621 = vmatprep.subr.bf16.mxu0 0
    %4622 = vmatpush2.bf16.msra.mxu0 %v4365
    %4623 = vmatprep.subr.bf16.mxu0 0
    %4624 = vmatpush2.bf16.msra.mxu0 %v4364
    %4625 = vmatprep.subr.bf16.mxu0 0
    %4626 = vmatpush2.bf16.msra.mxu0 %v4363
    %4627 = vmatprep.mubr.bf16.mxu0 %v3920
    %4628 = vmatmul.mubr.bf16.gmra.mxu0 %v3919
    %v4629 = vpop.f32.mrf.mxu0
    %v4630 = vadd.f32 %v4590, %v4629
    %v4631 = vpop.f32.mrf.mxu0
    %v4632 = vpop.f32.mrf.mxu0
    %v4633 = vpop.f32.mrf.mxu0
    %4634 = vdwg.mxu0
    %4635 = vmatprep.subr.bf16.mxu0 0
    %4636 = vmatpush1.bf16.msra.mxu0 %v4378
    %4637 = vmatprep.subr.bf16.mxu0 0
    %4638 = vmatpush1.bf16.msra.mxu0 %v4377
    %4639 = vmatprep.subr.bf16.mxu0 0
    %4640 = vmatpush1.bf16.msra.mxu0 %v4376
    %4641 = vmatprep.subr.bf16.mxu0 0
    %4642 = vmatpush1.bf16.msra.mxu0 %v4375
    %4643 = vmatprep.subr.bf16.mxu0 0
    %4644 = vmatpush1.bf16.msra.mxu0 %v4374
    %4645 = vmatprep.subr.bf16.mxu0 0
    %4646 = vmatpush1.bf16.msra.mxu0 %v4373
    %4647 = vmatprep.subr.bf16.mxu0 0
    %4648 = vmatpush1.bf16.msra.mxu0 %v4372
    %4649 = vmatprep.subr.bf16.mxu0 0
    %4650 = vmatpush1.bf16.msra.mxu0 %v4371
    %4651 = vmatprep.subr.bf16.mxu0 0
    %4652 = vmatpush2.bf16.msra.mxu0 %v4386
    %4653 = vmatprep.subr.bf16.mxu0 0
    %4654 = vmatpush2.bf16.msra.mxu0 %v4385
    %4655 = vmatprep.subr.bf16.mxu0 0
    %4656 = vmatpush2.bf16.msra.mxu0 %v4384
    %4657 = vmatprep.subr.bf16.mxu0 0
    %4658 = vmatpush2.bf16.msra.mxu0 %v4383
    %4659 = vmatprep.subr.bf16.mxu0 0
    %4660 = vmatpush2.bf16.msra.mxu0 %v4382
    %4661 = vmatprep.subr.bf16.mxu0 0
    %4662 = vmatpush2.bf16.msra.mxu0 %v4381
    %4663 = vmatprep.subr.bf16.mxu0 0
    %4664 = vmatpush2.bf16.msra.mxu0 %v4380
    %4665 = vmatprep.subr.bf16.mxu0 0
    %4666 = vmatpush2.bf16.msra.mxu0 %v4379
    %4667 = vmatprep.mubr.bf16.mxu0 %v3922
    %4668 = vmatmul.mubr.bf16.gmra.mxu0 %v3921
    %v4669 = vpop.f32.mrf.mxu0
    %v4670 = vadd.f32 %v4630, %v4669
    %v4671 = vpop.f32.mrf.mxu0
    %v4672 = vpop.f32.mrf.mxu0
    %v4673 = vpop.f32.mrf.mxu0
    %4674 = vdwg.mxu0
    %4675 = vmatprep.subr.bf16.mxu0 0
    %4676 = vmatpush1.bf16.msra.mxu0 %v4394
    %4677 = vmatprep.subr.bf16.mxu0 0
    %4678 = vmatpush1.bf16.msra.mxu0 %v4393
    %4679 = vmatprep.subr.bf16.mxu0 0
    %4680 = vmatpush1.bf16.msra.mxu0 %v4392
    %4681 = vmatprep.subr.bf16.mxu0 0
    %4682 = vmatpush1.bf16.msra.mxu0 %v4391
    %4683 = vmatprep.subr.bf16.mxu0 0
    %4684 = vmatpush1.bf16.msra.mxu0 %v4390
    %4685 = vmatprep.subr.bf16.mxu0 0
    %4686 = vmatpush1.bf16.msra.mxu0 %v4389
    %4687 = vmatprep.subr.bf16.mxu0 0
    %4688 = vmatpush1.bf16.msra.mxu0 %v4388
    %4689 = vmatprep.subr.bf16.mxu0 0
    %4690 = vmatpush1.bf16.msra.mxu0 %v4387
    %4691 = vmatprep.subr.bf16.mxu0 0
    %4692 = vmatpush2.bf16.msra.mxu0 %v4402
    %4693 = vmatprep.subr.bf16.mxu0 0
    %4694 = vmatpush2.bf16.msra.mxu0 %v4401
    %4695 = vmatprep.subr.bf16.mxu0 0
    %4696 = vmatpush2.bf16.msra.mxu0 %v4400
    %4697 = vmatprep.subr.bf16.mxu0 0
    %4698 = vmatpush2.bf16.msra.mxu0 %v4399
    %4699 = vmatprep.subr.bf16.mxu0 0
    %4700 = vmatpush2.bf16.msra.mxu0 %v4398
    %4701 = vmatprep.subr.bf16.mxu0 0
    %4702 = vmatpush2.bf16.msra.mxu0 %v4397
    %4703 = vmatprep.subr.bf16.mxu0 0
    %4704 = vmatpush2.bf16.msra.mxu0 %v4396
    %4705 = vmatprep.subr.bf16.mxu0 0
    %4706 = vmatpush2.bf16.msra.mxu0 %v4395
    %4707 = vmatprep.mubr.bf16.mxu0 %v3924
    %4708 = vmatmul.mubr.bf16.gmra.mxu0 %v3923
    %v4709 = vpop.f32.mrf.mxu0
    %v4710 = vadd.f32 %v4670, %v4709
    %v4711 = vpop.f32.mrf.mxu0
    %v4712 = vpop.f32.mrf.mxu0
    %v4713 = vpop.f32.mrf.mxu0
    %4714 = vdwg.mxu0
    %4715 = vmatprep.subr.bf16.mxu0 0
    %4716 = vmatpush1.bf16.msra.mxu0 %v4410
    %4717 = vmatprep.subr.bf16.mxu0 0
    %4718 = vmatpush1.bf16.msra.mxu0 %v4409
    %4719 = vmatprep.subr.bf16.mxu0 0
    %4720 = vmatpush1.bf16.msra.mxu0 %v4408
    %4721 = vmatprep.subr.bf16.mxu0 0
    %4722 = vmatpush1.bf16.msra.mxu0 %v4407
    %4723 = vmatprep.subr.bf16.mxu0 0
    %4724 = vmatpush1.bf16.msra.mxu0 %v4406
    %4725 = vmatprep.subr.bf16.mxu0 0
    %4726 = vmatpush1.bf16.msra.mxu0 %v4405
    %4727 = vmatprep.subr.bf16.mxu0 0
    %4728 = vmatpush1.bf16.msra.mxu0 %v4404
    %4729 = vmatprep.subr.bf16.mxu0 0
    %4730 = vmatpush1.bf16.msra.mxu0 %v4403
    %4731 = vmatprep.subr.bf16.mxu0 0
    %4732 = vmatpush2.bf16.msra.mxu0 %v4418
    %4733 = vmatprep.subr.bf16.mxu0 0
    %4734 = vmatpush2.bf16.msra.mxu0 %v4417
    %4735 = vmatprep.subr.bf16.mxu0 0
    %4736 = vmatpush2.bf16.msra.mxu0 %v4416
    %4737 = vmatprep.subr.bf16.mxu0 0
    %4738 = vmatpush2.bf16.msra.mxu0 %v4415
    %4739 = vmatprep.subr.bf16.mxu0 0
    %4740 = vmatpush2.bf16.msra.mxu0 %v4414
    %4741 = vmatprep.subr.bf16.mxu0 0
    %4742 = vmatpush2.bf16.msra.mxu0 %v4413
    %4743 = vmatprep.subr.bf16.mxu0 0
    %4744 = vmatpush2.bf16.msra.mxu0 %v4412
    %4745 = vmatprep.subr.bf16.mxu0 0
    %4746 = vmatpush2.bf16.msra.mxu0 %v4411
    %4747 = vmatprep.mubr.bf16.mxu0 %v3926
    %4748 = vmatmul.mubr.bf16.gmra.mxu0 %v3925
    %v4749 = vpop.f32.mrf.mxu0
    %v4750 = vadd.f32 %v4710, %v4749
    %v4751 = vpop.f32.mrf.mxu0
    %v4752 = vpop.f32.mrf.mxu0
    %v4753 = vpop.f32.mrf.mxu0
    %4754 = vdwg.mxu0
    %vm4755 = vcmp.gt.f32.partialorder %v4750, 0.0
    %v4756 = vmul.f32 %v4750, 0.01
    %v4757 = vsel %vm4755, %v4750, %v4756
    %v4758 = vpack.c.bf16 %v4757, %v4757
    %v4759 = vld [vmem:[#allocation14] sm:$0xf]
    %v4760 = vld [vmem:[#allocation14 + $0x4] sm:$0xf]
    %v4761 = vld [vmem:[#allocation14 + $0x8] sm:$0xf]
    %v4762 = vld [vmem:[#allocation14 + $0xc] sm:$0xf]
    %v4763 = vld [vmem:[#allocation14 + $0x10] sm:$0xf]
    %v4764 = vld [vmem:[#allocation14 + $0x14] sm:$0xf]
    %v4765 = vld [vmem:[#allocation14 + $0x18] sm:$0xf]
    %v4766 = vld [vmem:[#allocation14 + $0x1c] sm:$0xf]
    %v4767 = vld [vmem:[#allocation14 + $0x20] sm:$0xf]
    %v4768 = vld [vmem:[#allocation14 + $0x24] sm:$0xf]
    %v4769 = vld [vmem:[#allocation14 + $0x28] sm:$0xf]
    %v4770 = vld [vmem:[#allocation14 + $0x2c] sm:$0xf]
    %v4771 = vld [vmem:[#allocation14 + $0x30] sm:$0xf]
    %v4772 = vld [vmem:[#allocation14 + $0x34] sm:$0xf]
    %v4773 = vld [vmem:[#allocation14 + $0x38] sm:$0xf]
    %v4774 = vld [vmem:[#allocation14 + $0x3c] sm:$0xf]
    %v4775 = vld [vmem:[#allocation2 + $0x18] sm:$0xff]
    %v4776 = vld [vmem:[#allocation2 + $0x20] sm:$0xff]
    %v4777 = vld [vmem:[#allocation2 + $0x28] sm:$0xff]
    %v4778 = vld [vmem:[#allocation2 + $0x30] sm:$0xff]
    %v4779 = vld [vmem:[#allocation2 + $0x38] sm:$0xff]
    %v4780 = vld [vmem:[#allocation2 + $0x40] sm:$0xff]
    %v4787 = vunpack.c.l.b16 %v4775
    %v4788 = vunpack.c.h.b16 %v4775
    %v4789 = vunpack.c.l.b16 %v4776
    %v4790 = vunpack.c.h.b16 %v4776
    %v4791 = vunpack.c.l.b16 %v4777
    %v4792 = vunpack.c.h.b16 %v4777
    %v4793 = vunpack.c.l.b16 %v4778
    %v4794 = vunpack.c.h.b16 %v4778
    %v4795 = vunpack.c.l.b16 %v4779
    %v4796 = vunpack.c.h.b16 %v4779
    %v4797 = vunpack.c.l.b16 %v4780
    %v4798 = vunpack.c.h.b16 %v4780
    %v4799 = vpack.c.b16 %v4787, %v4787
    %v4800 = vpack.c.b16 %v4788, %v4788
    %v4801 = vpack.c.b16 %v4789, %v4789
    %v4802 = vpack.c.b16 %v4790, %v4790
    %v4803 = vpack.c.b16 %v4791, %v4791
    %v4804 = vpack.c.b16 %v4792, %v4792
    %v4805 = vpack.c.b16 %v4793, %v4793
    %v4806 = vpack.c.b16 %v4794, %v4794
    %v4807 = vpack.c.b16 %v4795, %v4795
    %v4808 = vpack.c.b16 %v4796, %v4796
    %v4809 = vpack.c.b16 %v4797, %v4797
    %v4810 = vpack.c.b16 %v4798, %v4798
    %4823 = vmatprep.subr.bf16.mxu0 0
    %4824 = vmatpush1.bf16.msra.mxu0 %v4330
    %4825 = vmatprep.subr.bf16.mxu0 0
    %4826 = vmatpush1.bf16.msra.mxu0 %v4329
    %4827 = vmatprep.subr.bf16.mxu0 0
    %4828 = vmatpush1.bf16.msra.mxu0 %v4328
    %4829 = vmatprep.subr.bf16.mxu0 0
    %4830 = vmatpush1.bf16.msra.mxu0 %v4327
    %4831 = vmatprep.subr.bf16.mxu0 0
    %4832 = vmatpush1.bf16.msra.mxu0 %v4326
    %4833 = vmatprep.subr.bf16.mxu0 0
    %4834 = vmatpush1.bf16.msra.mxu0 %v4325
    %4835 = vmatprep.subr.bf16.mxu0 0
    %4836 = vmatpush1.bf16.msra.mxu0 %v4324
    %4837 = vmatprep.subr.bf16.mxu0 0
    %4838 = vmatpush1.bf16.msra.mxu0 %v4323
    %4839 = vmatprep.subr.bf16.mxu0 0
    %4840 = vmatpush2.bf16.msra.mxu0 %v4338
    %4841 = vmatprep.subr.bf16.mxu0 0
    %4842 = vmatpush2.bf16.msra.mxu0 %v4337
    %4843 = vmatprep.subr.bf16.mxu0 0
    %4844 = vmatpush2.bf16.msra.mxu0 %v4336
    %4845 = vmatprep.subr.bf16.mxu0 0
    %4846 = vmatpush2.bf16.msra.mxu0 %v4335
    %4847 = vmatprep.subr.bf16.mxu0 0
    %4848 = vmatpush2.bf16.msra.mxu0 %v4334
    %4849 = vmatprep.subr.bf16.mxu0 0
    %4850 = vmatpush2.bf16.msra.mxu0 %v4333
    %4851 = vmatprep.subr.bf16.mxu0 0
    %4852 = vmatpush2.bf16.msra.mxu0 %v4332
    %4853 = vmatprep.subr.bf16.mxu0 0
    %4854 = vmatpush2.bf16.msra.mxu0 %v4331
    %4855 = vmatprep.mubr.bf16.mxu0 %v4800
    %4856 = vmatmul.mubr.bf16.gmra.mxu0 %v4799
    %v4857 = vpop.f32.mrf.mxu0
    %v4858 = vadd.f32 %v3895, %v4857
    %v4859 = vpop.f32.mrf.mxu0
    %v4860 = vpop.f32.mrf.mxu0
    %v4861 = vpop.f32.mrf.mxu0
    %4862 = vdwg.mxu0
    %4863 = vmatprep.subr.bf16.mxu0 0
    %4864 = vmatpush1.bf16.msra.mxu0 %v4346
    %4865 = vmatprep.subr.bf16.mxu0 0
    %4866 = vmatpush1.bf16.msra.mxu0 %v4345
    %4867 = vmatprep.subr.bf16.mxu0 0
    %4868 = vmatpush1.bf16.msra.mxu0 %v4344
    %4869 = vmatprep.subr.bf16.mxu0 0
    %4870 = vmatpush1.bf16.msra.mxu0 %v4343
    %4871 = vmatprep.subr.bf16.mxu0 0
    %4872 = vmatpush1.bf16.msra.mxu0 %v4342
    %4873 = vmatprep.subr.bf16.mxu0 0
    %4874 = vmatpush1.bf16.msra.mxu0 %v4341
    %4875 = vmatprep.subr.bf16.mxu0 0
    %4876 = vmatpush1.bf16.msra.mxu0 %v4340
    %4877 = vmatprep.subr.bf16.mxu0 0
    %4878 = vmatpush1.bf16.msra.mxu0 %v4339
    %4879 = vmatprep.subr.bf16.mxu0 0
    %4880 = vmatpush2.bf16.msra.mxu0 %v4354
    %4881 = vmatprep.subr.bf16.mxu0 0
    %4882 = vmatpush2.bf16.msra.mxu0 %v4353
    %4883 = vmatprep.subr.bf16.mxu0 0
    %4884 = vmatpush2.bf16.msra.mxu0 %v4352
    %4885 = vmatprep.subr.bf16.mxu0 0
    %4886 = vmatpush2.bf16.msra.mxu0 %v4351
    %4887 = vmatprep.subr.bf16.mxu0 0
    %4888 = vmatpush2.bf16.msra.mxu0 %v4350
    %4889 = vmatprep.subr.bf16.mxu0 0
    %4890 = vmatpush2.bf16.msra.mxu0 %v4349
    %4891 = vmatprep.subr.bf16.mxu0 0
    %4892 = vmatpush2.bf16.msra.mxu0 %v4348
    %4893 = vmatprep.subr.bf16.mxu0 0
    %4894 = vmatpush2.bf16.msra.mxu0 %v4347
    %4895 = vmatprep.mubr.bf16.mxu0 %v4802
    %4896 = vmatmul.mubr.bf16.gmra.mxu0 %v4801
    %v4897 = vpop.f32.mrf.mxu0
    %v4898 = vadd.f32 %v4858, %v4897
    %v4899 = vpop.f32.mrf.mxu0
    %v4900 = vpop.f32.mrf.mxu0
    %v4901 = vpop.f32.mrf.mxu0
    %4902 = vdwg.mxu0
    %4903 = vmatprep.subr.bf16.mxu0 0
    %4904 = vmatpush1.bf16.msra.mxu0 %v4362
    %4905 = vmatprep.subr.bf16.mxu0 0
    %4906 = vmatpush1.bf16.msra.mxu0 %v4361
    %4907 = vmatprep.subr.bf16.mxu0 0
    %4908 = vmatpush1.bf16.msra.mxu0 %v4360
    %4909 = vmatprep.subr.bf16.mxu0 0
    %4910 = vmatpush1.bf16.msra.mxu0 %v4359
    %4911 = vmatprep.subr.bf16.mxu0 0
    %4912 = vmatpush1.bf16.msra.mxu0 %v4358
    %4913 = vmatprep.subr.bf16.mxu0 0
    %4914 = vmatpush1.bf16.msra.mxu0 %v4357
    %4915 = vmatprep.subr.bf16.mxu0 0
    %4916 = vmatpush1.bf16.msra.mxu0 %v4356
    %4917 = vmatprep.subr.bf16.mxu0 0
    %4918 = vmatpush1.bf16.msra.mxu0 %v4355
    %4919 = vmatprep.subr.bf16.mxu0 0
    %4920 = vmatpush2.bf16.msra.mxu0 %v4370
    %4921 = vmatprep.subr.bf16.mxu0 0
    %4922 = vmatpush2.bf16.msra.mxu0 %v4369
    %4923 = vmatprep.subr.bf16.mxu0 0
    %4924 = vmatpush2.bf16.msra.mxu0 %v4368
    %4925 = vmatprep.subr.bf16.mxu0 0
    %4926 = vmatpush2.bf16.msra.mxu0 %v4367
    %4927 = vmatprep.subr.bf16.mxu0 0
    %4928 = vmatpush2.bf16.msra.mxu0 %v4366
    %4929 = vmatprep.subr.bf16.mxu0 0
    %4930 = vmatpush2.bf16.msra.mxu0 %v4365
    %4931 = vmatprep.subr.bf16.mxu0 0
    %4932 = vmatpush2.bf16.msra.mxu0 %v4364
    %4933 = vmatprep.subr.bf16.mxu0 0
    %4934 = vmatpush2.bf16.msra.mxu0 %v4363
    %4935 = vmatprep.mubr.bf16.mxu0 %v4804
    %4936 = vmatmul.mubr.bf16.gmra.mxu0 %v4803
    %v4937 = vpop.f32.mrf.mxu0
    %v4938 = vadd.f32 %v4898, %v4937
    %v4939 = vpop.f32.mrf.mxu0
    %v4940 = vpop.f32.mrf.mxu0
    %v4941 = vpop.f32.mrf.mxu0
    %4942 = vdwg.mxu0
    %4943 = vmatprep.subr.bf16.mxu0 0
    %4944 = vmatpush1.bf16.msra.mxu0 %v4378
    %4945 = vmatprep.subr.bf16.mxu0 0
    %4946 = vmatpush1.bf16.msra.mxu0 %v4377
    %4947 = vmatprep.subr.bf16.mxu0 0
    %4948 = vmatpush1.bf16.msra.mxu0 %v4376
    %4949 = vmatprep.subr.bf16.mxu0 0
    %4950 = vmatpush1.bf16.msra.mxu0 %v4375
    %4951 = vmatprep.subr.bf16.mxu0 0
    %4952 = vmatpush1.bf16.msra.mxu0 %v4374
    %4953 = vmatprep.subr.bf16.mxu0 0
    %4954 = vmatpush1.bf16.msra.mxu0 %v4373
    %4955 = vmatprep.subr.bf16.mxu0 0
    %4956 = vmatpush1.bf16.msra.mxu0 %v4372
    %4957 = vmatprep.subr.bf16.mxu0 0
    %4958 = vmatpush1.bf16.msra.mxu0 %v4371
    %4959 = vmatprep.subr.bf16.mxu0 0
    %4960 = vmatpush2.bf16.msra.mxu0 %v4386
    %4961 = vmatprep.subr.bf16.mxu0 0
    %4962 = vmatpush2.bf16.msra.mxu0 %v4385
    %4963 = vmatprep.subr.bf16.mxu0 0
    %4964 = vmatpush2.bf16.msra.mxu0 %v4384
    %4965 = vmatprep.subr.bf16.mxu0 0
    %4966 = vmatpush2.bf16.msra.mxu0 %v4383
    %4967 = vmatprep.subr.bf16.mxu0 0
    %4968 = vmatpush2.bf16.msra.mxu0 %v4382
    %4969 = vmatprep.subr.bf16.mxu0 0
    %4970 = vmatpush2.bf16.msra.mxu0 %v4381
    %4971 = vmatprep.subr.bf16.mxu0 0
    %4972 = vmatpush2.bf16.msra.mxu0 %v4380
    %4973 = vmatprep.subr.bf16.mxu0 0
    %4974 = vmatpush2.bf16.msra.mxu0 %v4379
    %4975 = vmatprep.mubr.bf16.mxu0 %v4806
    %4976 = vmatmul.mubr.bf16.gmra.mxu0 %v4805
    %v4977 = vpop.f32.mrf.mxu0
    %v4978 = vadd.f32 %v4938, %v4977
    %v4979 = vpop.f32.mrf.mxu0
    %v4980 = vpop.f32.mrf.mxu0
    %v4981 = vpop.f32.mrf.mxu0
    %4982 = vdwg.mxu0
    %4983 = vmatprep.subr.bf16.mxu0 0
    %4984 = vmatpush1.bf16.msra.mxu0 %v4394
    %4985 = vmatprep.subr.bf16.mxu0 0
    %4986 = vmatpush1.bf16.msra.mxu0 %v4393
    %4987 = vmatprep.subr.bf16.mxu0 0
    %4988 = vmatpush1.bf16.msra.mxu0 %v4392
    %4989 = vmatprep.subr.bf16.mxu0 0
    %4990 = vmatpush1.bf16.msra.mxu0 %v4391
    %4991 = vmatprep.subr.bf16.mxu0 0
    %4992 = vmatpush1.bf16.msra.mxu0 %v4390
    %4993 = vmatprep.subr.bf16.mxu0 0
    %4994 = vmatpush1.bf16.msra.mxu0 %v4389
    %4995 = vmatprep.subr.bf16.mxu0 0
    %4996 = vmatpush1.bf16.msra.mxu0 %v4388
    %4997 = vmatprep.subr.bf16.mxu0 0
    %4998 = vmatpush1.bf16.msra.mxu0 %v4387
    %4999 = vmatprep.subr.bf16.mxu0 0
    %5000 = vmatpush2.bf16.msra.mxu0 %v4402
    %5001 = vmatprep.subr.bf16.mxu0 0
    %5002 = vmatpush2.bf16.msra.mxu0 %v4401
    %5003 = vmatprep.subr.bf16.mxu0 0
    %5004 = vmatpush2.bf16.msra.mxu0 %v4400
    %5005 = vmatprep.subr.bf16.mxu0 0
    %5006 = vmatpush2.bf16.msra.mxu0 %v4399
    %5007 = vmatprep.subr.bf16.mxu0 0
    %5008 = vmatpush2.bf16.msra.mxu0 %v4398
    %5009 = vmatprep.subr.bf16.mxu0 0
    %5010 = vmatpush2.bf16.msra.mxu0 %v4397
    %5011 = vmatprep.subr.bf16.mxu0 0
    %5012 = vmatpush2.bf16.msra.mxu0 %v4396
    %5013 = vmatprep.subr.bf16.mxu0 0
    %5014 = vmatpush2.bf16.msra.mxu0 %v4395
    %5015 = vmatprep.mubr.bf16.mxu0 %v4808
    %5016 = vmatmul.mubr.bf16.gmra.mxu0 %v4807
    %v5017 = vpop.f32.mrf.mxu0
    %v5018 = vadd.f32 %v4978, %v5017
    %v5019 = vpop.f32.mrf.mxu0
    %v5020 = vpop.f32.mrf.mxu0
    %v5021 = vpop.f32.mrf.mxu0
    %5022 = vdwg.mxu0
    %5023 = vmatprep.subr.bf16.mxu0 0
    %5024 = vmatpush1.bf16.msra.mxu0 %v4410
    %5025 = vmatprep.subr.bf16.mxu0 0
    %5026 = vmatpush1.bf16.msra.mxu0 %v4409
    %5027 = vmatprep.subr.bf16.mxu0 0
    %5028 = vmatpush1.bf16.msra.mxu0 %v4408
    %5029 = vmatprep.subr.bf16.mxu0 0
    %5030 = vmatpush1.bf16.msra.mxu0 %v4407
    %5031 = vmatprep.subr.bf16.mxu0 0
    %5032 = vmatpush1.bf16.msra.mxu0 %v4406
    %5033 = vmatprep.subr.bf16.mxu0 0
    %5034 = vmatpush1.bf16.msra.mxu0 %v4405
    %5035 = vmatprep.subr.bf16.mxu0 0
    %5036 = vmatpush1.bf16.msra.mxu0 %v4404
    %5037 = vmatprep.subr.bf16.mxu0 0
    %5038 = vmatpush1.bf16.msra.mxu0 %v4403
    %5039 = vmatprep.subr.bf16.mxu0 0
    %5040 = vmatpush2.bf16.msra.mxu0 %v4418
    %5041 = vmatprep.subr.bf16.mxu0 0
    %5042 = vmatpush2.bf16.msra.mxu0 %v4417
    %5043 = vmatprep.subr.bf16.mxu0 0
    %5044 = vmatpush2.bf16.msra.mxu0 %v4416
    %5045 = vmatprep.subr.bf16.mxu0 0
    %5046 = vmatpush2.bf16.msra.mxu0 %v4415
    %5047 = vmatprep.subr.bf16.mxu0 0
    %5048 = vmatpush2.bf16.msra.mxu0 %v4414
    %5049 = vmatprep.subr.bf16.mxu0 0
    %5050 = vmatpush2.bf16.msra.mxu0 %v4413
    %5051 = vmatprep.subr.bf16.mxu0 0
    %5052 = vmatpush2.bf16.msra.mxu0 %v4412
    %5053 = vmatprep.subr.bf16.mxu0 0
    %5054 = vmatpush2.bf16.msra.mxu0 %v4411
    %5055 = vmatprep.mubr.bf16.mxu0 %v4810
    %5056 = vmatmul.mubr.bf16.gmra.mxu0 %v4809
    %v5057 = vpop.f32.mrf.mxu0
    %v5058 = vadd.f32 %v5018, %v5057
    %v5059 = vpop.f32.mrf.mxu0
    %v5060 = vpop.f32.mrf.mxu0
    %v5061 = vpop.f32.mrf.mxu0
    %5062 = vdwg.mxu0
    %vm5063 = vcmp.gt.f32.partialorder %v5058, 0.0
    %v5064 = vmul.f32 %v5058, 0.01
    %v5065 = vsel %vm5063, %v5058, %v5064
    %v5066 = vpack.c.bf16 %v5065, %v5065
    %s5067 = scalar_lea.vmem [#allocation14], 64
    %v5068 = vld [vmem:[%s5067] sm:$0xf]
    %v5069 = vld [vmem:[%s5067 + $0x4] sm:$0xf]
    %v5070 = vld [vmem:[%s5067 + $0x8] sm:$0xf]
    %v5071 = vld [vmem:[%s5067 + $0xc] sm:$0xf]
    %v5072 = vld [vmem:[%s5067 + $0x10] sm:$0xf]
    %v5073 = vld [vmem:[%s5067 + $0x14] sm:$0xf]
    %v5074 = vld [vmem:[%s5067 + $0x18] sm:$0xf]
    %v5075 = vld [vmem:[%s5067 + $0x1c] sm:$0xf]
    %v5076 = vld [vmem:[%s5067 + $0x20] sm:$0xf]
    %v5077 = vld [vmem:[%s5067 + $0x24] sm:$0xf]
    %v5078 = vld [vmem:[%s5067 + $0x28] sm:$0xf]
    %v5079 = vld [vmem:[%s5067 + $0x2c] sm:$0xf]
    %v5080 = vld [vmem:[%s5067 + $0x30] sm:$0xf]
    %v5081 = vld [vmem:[%s5067 + $0x34] sm:$0xf]
    %v5082 = vld [vmem:[%s5067 + $0x38] sm:$0xf]
    %v5083 = vld [vmem:[%s5067 + $0x3c] sm:$0xf]
    %v5100 = vunpack.c.l.b16 %v5068
    %v5101 = vunpack.c.l.b16 %v5069
    %v5102 = vunpack.c.l.b16 %v5070
    %v5103 = vunpack.c.l.b16 %v5071
    %v5104 = vunpack.c.l.b16 %v5072
    %v5105 = vunpack.c.l.b16 %v5073
    %v5106 = vunpack.c.l.b16 %v5074
    %v5107 = vunpack.c.l.b16 %v5075
    %v5108 = vunpack.c.l.b16 %v5076
    %v5109 = vunpack.c.l.b16 %v5077
    %v5110 = vunpack.c.l.b16 %v5078
    %v5111 = vunpack.c.l.b16 %v5079
    %v5112 = vunpack.c.l.b16 %v5080
    %v5113 = vunpack.c.l.b16 %v5081
    %v5114 = vunpack.c.l.b16 %v5082
    %v5115 = vunpack.c.l.b16 %v5083
    %v5116 = vpack.c.b16 %v5101, %v5100
    %v5117 = vpack.c.b16 %v5103, %v5102
    %v5118 = vpack.c.b16 %v5105, %v5104
    %v5119 = vpack.c.b16 %v5107, %v5106
    %v5120 = vpack.c.b16 %v5109, %v5108
    %v5121 = vpack.c.b16 %v5111, %v5110
    %v5122 = vpack.c.b16 %v5113, %v5112
    %v5123 = vpack.c.b16 %v5115, %v5114
    %5132 = vmatprep.subr.bf16.mxu0 0
    %5133 = vmatpush1.bf16.msra.mxu0 %v5123
    %5134 = vmatprep.subr.bf16.mxu0 0
    %5135 = vmatpush1.bf16.msra.mxu0 %v5122
    %5136 = vmatprep.subr.bf16.mxu0 0
    %5137 = vmatpush1.bf16.msra.mxu0 %v5121
    %5138 = vmatprep.subr.bf16.mxu0 0
    %5139 = vmatpush1.bf16.msra.mxu0 %v5120
    %5140 = vmatprep.subr.bf16.mxu0 0
    %5141 = vmatpush1.bf16.msra.mxu0 %v5119
    %5142 = vmatprep.subr.bf16.mxu0 0
    %5143 = vmatpush1.bf16.msra.mxu0 %v5118
    %5144 = vmatprep.subr.bf16.mxu0 0
    %5145 = vmatpush1.bf16.msra.mxu0 %v5117
    %5146 = vmatprep.subr.bf16.mxu0 0
    %5147 = vmatpush1.bf16.msra.mxu0 %v5116
    %5148 = vmatprep.subr.bf16.mxu0 0
    %5149 = vmatpush2.bf16.msra.mxu0 0
    %5150 = vmatprep.subr.bf16.mxu0 0
    %5151 = vmatpush2.bf16.msra.mxu0 0
    %5152 = vmatprep.subr.bf16.mxu0 0
    %5153 = vmatpush2.bf16.msra.mxu0 0
    %5154 = vmatprep.subr.bf16.mxu0 0
    %5155 = vmatpush2.bf16.msra.mxu0 0
    %5156 = vmatprep.subr.bf16.mxu0 0
    %5157 = vmatpush2.bf16.msra.mxu0 0
    %5158 = vmatprep.subr.bf16.mxu0 0
    %5159 = vmatpush2.bf16.msra.mxu0 0
    %5160 = vmatprep.subr.bf16.mxu0 0
    %5161 = vmatpush2.bf16.msra.mxu0 0
    %5162 = vmatprep.subr.bf16.mxu0 0
    %5163 = vmatpush2.bf16.msra.mxu0 0
    %5164 = vmatprep.mubr.bf16.mxu0 0
    %5165 = vmatmul.mubr.bf16.gmra.mxu0 %v5066
    %v5166 = vpop.f32.mrf.mxu0
    %v5167 = vadd.f32 0.0, %v5166
    %v5168 = vpop.f32.mrf.mxu0
    %v5169 = vpop.f32.mrf.mxu0
    %v5170 = vpop.f32.mrf.mxu0
    %5171 = vdwg.mxu0
    %v5188 = vunpack.c.l.b16 %v4759
    %v5189 = vunpack.c.l.b16 %v4760
    %v5190 = vunpack.c.l.b16 %v4761
    %v5191 = vunpack.c.l.b16 %v4762
    %v5192 = vunpack.c.l.b16 %v4763
    %v5193 = vunpack.c.l.b16 %v4764
    %v5194 = vunpack.c.l.b16 %v4765
    %v5195 = vunpack.c.l.b16 %v4766
    %v5196 = vunpack.c.l.b16 %v4767
    %v5197 = vunpack.c.l.b16 %v4768
    %v5198 = vunpack.c.l.b16 %v4769
    %v5199 = vunpack.c.l.b16 %v4770
    %v5200 = vunpack.c.l.b16 %v4771
    %v5201 = vunpack.c.l.b16 %v4772
    %v5202 = vunpack.c.l.b16 %v4773
    %v5203 = vunpack.c.l.b16 %v4774
    %v5204 = vpack.c.b16 %v5189, %v5188
    %v5205 = vpack.c.b16 %v5191, %v5190
    %v5206 = vpack.c.b16 %v5193, %v5192
    %v5207 = vpack.c.b16 %v5195, %v5194
    %v5208 = vpack.c.b16 %v5197, %v5196
    %v5209 = vpack.c.b16 %v5199, %v5198
    %v5210 = vpack.c.b16 %v5201, %v5200
    %v5211 = vpack.c.b16 %v5203, %v5202
    %5220 = vmatprep.subr.bf16.mxu0 0
    %5221 = vmatpush1.bf16.msra.mxu0 %v5211
    %5222 = vmatprep.subr.bf16.mxu0 0
    %5223 = vmatpush1.bf16.msra.mxu0 %v5210
    %5224 = vmatprep.subr.bf16.mxu0 0
    %5225 = vmatpush1.bf16.msra.mxu0 %v5209
    %5226 = vmatprep.subr.bf16.mxu0 0
    %5227 = vmatpush1.bf16.msra.mxu0 %v5208
    %5228 = vmatprep.subr.bf16.mxu0 0
    %5229 = vmatpush1.bf16.msra.mxu0 %v5207
    %5230 = vmatprep.subr.bf16.mxu0 0
    %5231 = vmatpush1.bf16.msra.mxu0 %v5206
    %5232 = vmatprep.subr.bf16.mxu0 0
    %5233 = vmatpush1.bf16.msra.mxu0 %v5205
    %5234 = vmatprep.subr.bf16.mxu0 0
    %5235 = vmatpush1.bf16.msra.mxu0 %v5204
    %5236 = vmatprep.subr.bf16.mxu0 0
    %5237 = vmatpush2.bf16.msra.mxu0 0
    %5238 = vmatprep.subr.bf16.mxu0 0
    %5239 = vmatpush2.bf16.msra.mxu0 0
    %5240 = vmatprep.subr.bf16.mxu0 0
    %5241 = vmatpush2.bf16.msra.mxu0 0
    %5242 = vmatprep.subr.bf16.mxu0 0
    %5243 = vmatpush2.bf16.msra.mxu0 0
    %5244 = vmatprep.subr.bf16.mxu0 0
    %5245 = vmatpush2.bf16.msra.mxu0 0
    %5246 = vmatprep.subr.bf16.mxu0 0
    %5247 = vmatpush2.bf16.msra.mxu0 0
    %5248 = vmatprep.subr.bf16.mxu0 0
    %5249 = vmatpush2.bf16.msra.mxu0 0
    %5250 = vmatprep.subr.bf16.mxu0 0
    %5251 = vmatpush2.bf16.msra.mxu0 0
    %5252 = vmatprep.mubr.bf16.mxu0 0
    %5253 = vmatmul.mubr.bf16.gmra.mxu0 %v4758
    %v5254 = vpop.f32.mrf.mxu0
    %v5255 = vadd.f32 %v5167, %v5254
    %v5256 = vpop.f32.mrf.mxu0
    %v5257 = vpop.f32.mrf.mxu0
    %v5258 = vpop.f32.mrf.mxu0
    %5259 = vdwg.mxu0
    %v5260 = vld [vmem:[#allocation2 + $0x30] sm:$0xff]
    %v5261 = vld [vmem:[#allocation2 + $0x38] sm:$0xff]
    %v5262 = vld [vmem:[#allocation2 + $0x40] sm:$0xff]
    %v5263 = vld [vmem:[#allocation2 + $0x48] sm:$0xff]
    %v5264 = vld [vmem:[#allocation2 + $0x50] sm:$0xff]
    %v5265 = vld [vmem:[#allocation2 + $0x58] sm:$0xff]
    %v5272 = vunpack.c.l.b16 %v5260
    %v5273 = vunpack.c.h.b16 %v5260
    %v5274 = vunpack.c.l.b16 %v5261
    %v5275 = vunpack.c.h.b16 %v5261
    %v5276 = vunpack.c.l.b16 %v5262
    %v5277 = vunpack.c.h.b16 %v5262
    %v5278 = vunpack.c.l.b16 %v5263
    %v5279 = vunpack.c.h.b16 %v5263
    %v5280 = vunpack.c.l.b16 %v5264
    %v5281 = vunpack.c.h.b16 %v5264
    %v5282 = vunpack.c.l.b16 %v5265
    %v5283 = vunpack.c.h.b16 %v5265
    %v5284 = vpack.c.b16 %v5272, %v5272
    %v5285 = vpack.c.b16 %v5273, %v5273
    %v5286 = vpack.c.b16 %v5274, %v5274
    %v5287 = vpack.c.b16 %v5275, %v5275
    %v5288 = vpack.c.b16 %v5276, %v5276
    %v5289 = vpack.c.b16 %v5277, %v5277
    %v5290 = vpack.c.b16 %v5278, %v5278
    %v5291 = vpack.c.b16 %v5279, %v5279
    %v5292 = vpack.c.b16 %v5280, %v5280
    %v5293 = vpack.c.b16 %v5281, %v5281
    %v5294 = vpack.c.b16 %v5282, %v5282
    %v5295 = vpack.c.b16 %v5283, %v5283
    %5308 = vmatprep.subr.bf16.mxu0 0
    %5309 = vmatpush1.bf16.msra.mxu0 %v4330
    %5310 = vmatprep.subr.bf16.mxu0 0
    %5311 = vmatpush1.bf16.msra.mxu0 %v4329
    %5312 = vmatprep.subr.bf16.mxu0 0
    %5313 = vmatpush1.bf16.msra.mxu0 %v4328
    %5314 = vmatprep.subr.bf16.mxu0 0
    %5315 = vmatpush1.bf16.msra.mxu0 %v4327
    %5316 = vmatprep.subr.bf16.mxu0 0
    %5317 = vmatpush1.bf16.msra.mxu0 %v4326
    %5318 = vmatprep.subr.bf16.mxu0 0
    %5319 = vmatpush1.bf16.msra.mxu0 %v4325
    %5320 = vmatprep.subr.bf16.mxu0 0
    %5321 = vmatpush1.bf16.msra.mxu0 %v4324
    %5322 = vmatprep.subr.bf16.mxu0 0
    %5323 = vmatpush1.bf16.msra.mxu0 %v4323
    %5324 = vmatprep.subr.bf16.mxu0 0
    %5325 = vmatpush2.bf16.msra.mxu0 %v4338
    %5326 = vmatprep.subr.bf16.mxu0 0
    %5327 = vmatpush2.bf16.msra.mxu0 %v4337
    %5328 = vmatprep.subr.bf16.mxu0 0
    %5329 = vmatpush2.bf16.msra.mxu0 %v4336
    %5330 = vmatprep.subr.bf16.mxu0 0
    %5331 = vmatpush2.bf16.msra.mxu0 %v4335
    %5332 = vmatprep.subr.bf16.mxu0 0
    %5333 = vmatpush2.bf16.msra.mxu0 %v4334
    %5334 = vmatprep.subr.bf16.mxu0 0
    %5335 = vmatpush2.bf16.msra.mxu0 %v4333
    %5336 = vmatprep.subr.bf16.mxu0 0
    %5337 = vmatpush2.bf16.msra.mxu0 %v4332
    %5338 = vmatprep.subr.bf16.mxu0 0
    %5339 = vmatpush2.bf16.msra.mxu0 %v4331
    %5340 = vmatprep.mubr.bf16.mxu0 %v5285
    %5341 = vmatmul.mubr.bf16.gmra.mxu0 %v5284
    %v5342 = vpop.f32.mrf.mxu0
    %v5343 = vadd.f32 %v3895, %v5342
    %v5344 = vpop.f32.mrf.mxu0
    %v5345 = vpop.f32.mrf.mxu0
    %v5346 = vpop.f32.mrf.mxu0
    %5347 = vdwg.mxu0
    %5348 = vmatprep.subr.bf16.mxu0 0
    %5349 = vmatpush1.bf16.msra.mxu0 %v4346
    %5350 = vmatprep.subr.bf16.mxu0 0
    %5351 = vmatpush1.bf16.msra.mxu0 %v4345
    %5352 = vmatprep.subr.bf16.mxu0 0
    %5353 = vmatpush1.bf16.msra.mxu0 %v4344
    %5354 = vmatprep.subr.bf16.mxu0 0
    %5355 = vmatpush1.bf16.msra.mxu0 %v4343
    %5356 = vmatprep.subr.bf16.mxu0 0
    %5357 = vmatpush1.bf16.msra.mxu0 %v4342
    %5358 = vmatprep.subr.bf16.mxu0 0
    %5359 = vmatpush1.bf16.msra.mxu0 %v4341
    %5360 = vmatprep.subr.bf16.mxu0 0
    %5361 = vmatpush1.bf16.msra.mxu0 %v4340
    %5362 = vmatprep.subr.bf16.mxu0 0
    %5363 = vmatpush1.bf16.msra.mxu0 %v4339
    %5364 = vmatprep.subr.bf16.mxu0 0
    %5365 = vmatpush2.bf16.msra.mxu0 %v4354
    %5366 = vmatprep.subr.bf16.mxu0 0
    %5367 = vmatpush2.bf16.msra.mxu0 %v4353
    %5368 = vmatprep.subr.bf16.mxu0 0
    %5369 = vmatpush2.bf16.msra.mxu0 %v4352
    %5370 = vmatprep.subr.bf16.mxu0 0
    %5371 = vmatpush2.bf16.msra.mxu0 %v4351
    %5372 = vmatprep.subr.bf16.mxu0 0
    %5373 = vmatpush2.bf16.msra.mxu0 %v4350
    %5374 = vmatprep.subr.bf16.mxu0 0
    %5375 = vmatpush2.bf16.msra.mxu0 %v4349
    %5376 = vmatprep.subr.bf16.mxu0 0
    %5377 = vmatpush2.bf16.msra.mxu0 %v4348
    %5378 = vmatprep.subr.bf16.mxu0 0
    %5379 = vmatpush2.bf16.msra.mxu0 %v4347
    %5380 = vmatprep.mubr.bf16.mxu0 %v5287
    %5381 = vmatmul.mubr.bf16.gmra.mxu0 %v5286
    %v5382 = vpop.f32.mrf.mxu0
    %v5383 = vadd.f32 %v5343, %v5382
    %v5384 = vpop.f32.mrf.mxu0
    %v5385 = vpop.f32.mrf.mxu0
    %v5386 = vpop.f32.mrf.mxu0
    %5387 = vdwg.mxu0
    %5388 = vmatprep.subr.bf16.mxu0 0
    %5389 = vmatpush1.bf16.msra.mxu0 %v4362
    %5390 = vmatprep.subr.bf16.mxu0 0
    %5391 = vmatpush1.bf16.msra.mxu0 %v4361
    %5392 = vmatprep.subr.bf16.mxu0 0
    %5393 = vmatpush1.bf16.msra.mxu0 %v4360
    %5394 = vmatprep.subr.bf16.mxu0 0
    %5395 = vmatpush1.bf16.msra.mxu0 %v4359
    %5396 = vmatprep.subr.bf16.mxu0 0
    %5397 = vmatpush1.bf16.msra.mxu0 %v4358
    %5398 = vmatprep.subr.bf16.mxu0 0
    %5399 = vmatpush1.bf16.msra.mxu0 %v4357
    %5400 = vmatprep.subr.bf16.mxu0 0
    %5401 = vmatpush1.bf16.msra.mxu0 %v4356
    %5402 = vmatprep.subr.bf16.mxu0 0
    %5403 = vmatpush1.bf16.msra.mxu0 %v4355
    %5404 = vmatprep.subr.bf16.mxu0 0
    %5405 = vmatpush2.bf16.msra.mxu0 %v4370
    %5406 = vmatprep.subr.bf16.mxu0 0
    %5407 = vmatpush2.bf16.msra.mxu0 %v4369
    %5408 = vmatprep.subr.bf16.mxu0 0
    %5409 = vmatpush2.bf16.msra.mxu0 %v4368
    %5410 = vmatprep.subr.bf16.mxu0 0
    %5411 = vmatpush2.bf16.msra.mxu0 %v4367
    %5412 = vmatprep.subr.bf16.mxu0 0
    %5413 = vmatpush2.bf16.msra.mxu0 %v4366
    %5414 = vmatprep.subr.bf16.mxu0 0
    %5415 = vmatpush2.bf16.msra.mxu0 %v4365
    %5416 = vmatprep.subr.bf16.mxu0 0
    %5417 = vmatpush2.bf16.msra.mxu0 %v4364
    %5418 = vmatprep.subr.bf16.mxu0 0
    %5419 = vmatpush2.bf16.msra.mxu0 %v4363
    %5420 = vmatprep.mubr.bf16.mxu0 %v5289
    %5421 = vmatmul.mubr.bf16.gmra.mxu0 %v5288
    %v5422 = vpop.f32.mrf.mxu0
    %v5423 = vadd.f32 %v5383, %v5422
    %v5424 = vpop.f32.mrf.mxu0
    %v5425 = vpop.f32.mrf.mxu0
    %v5426 = vpop.f32.mrf.mxu0
    %5427 = vdwg.mxu0
    %5428 = vmatprep.subr.bf16.mxu0 0
    %5429 = vmatpush1.bf16.msra.mxu0 %v4378
    %5430 = vmatprep.subr.bf16.mxu0 0
    %5431 = vmatpush1.bf16.msra.mxu0 %v4377
    %5432 = vmatprep.subr.bf16.mxu0 0
    %5433 = vmatpush1.bf16.msra.mxu0 %v4376
    %5434 = vmatprep.subr.bf16.mxu0 0
    %5435 = vmatpush1.bf16.msra.mxu0 %v4375
    %5436 = vmatprep.subr.bf16.mxu0 0
    %5437 = vmatpush1.bf16.msra.mxu0 %v4374
    %5438 = vmatprep.subr.bf16.mxu0 0
    %5439 = vmatpush1.bf16.msra.mxu0 %v4373
    %5440 = vmatprep.subr.bf16.mxu0 0
    %5441 = vmatpush1.bf16.msra.mxu0 %v4372
    %5442 = vmatprep.subr.bf16.mxu0 0
    %5443 = vmatpush1.bf16.msra.mxu0 %v4371
    %5444 = vmatprep.subr.bf16.mxu0 0
    %5445 = vmatpush2.bf16.msra.mxu0 %v4386
    %5446 = vmatprep.subr.bf16.mxu0 0
    %5447 = vmatpush2.bf16.msra.mxu0 %v4385
    %5448 = vmatprep.subr.bf16.mxu0 0
    %5449 = vmatpush2.bf16.msra.mxu0 %v4384
    %5450 = vmatprep.subr.bf16.mxu0 0
    %5451 = vmatpush2.bf16.msra.mxu0 %v4383
    %5452 = vmatprep.subr.bf16.mxu0 0
    %5453 = vmatpush2.bf16.msra.mxu0 %v4382
    %5454 = vmatprep.subr.bf16.mxu0 0
    %5455 = vmatpush2.bf16.msra.mxu0 %v4381
    %5456 = vmatprep.subr.bf16.mxu0 0
    %5457 = vmatpush2.bf16.msra.mxu0 %v4380
    %5458 = vmatprep.subr.bf16.mxu0 0
    %5459 = vmatpush2.bf16.msra.mxu0 %v4379
    %5460 = vmatprep.mubr.bf16.mxu0 %v5291
    %5461 = vmatmul.mubr.bf16.gmra.mxu0 %v5290
    %v5462 = vpop.f32.mrf.mxu0
    %v5463 = vadd.f32 %v5423, %v5462
    %v5464 = vpop.f32.mrf.mxu0
    %v5465 = vpop.f32.mrf.mxu0
    %v5466 = vpop.f32.mrf.mxu0
    %5467 = vdwg.mxu0
    %5468 = vmatprep.subr.bf16.mxu0 0
    %5469 = vmatpush1.bf16.msra.mxu0 %v4394
    %5470 = vmatprep.subr.bf16.mxu0 0
    %5471 = vmatpush1.bf16.msra.mxu0 %v4393
    %5472 = vmatprep.subr.bf16.mxu0 0
    %5473 = vmatpush1.bf16.msra.mxu0 %v4392
    %5474 = vmatprep.subr.bf16.mxu0 0
    %5475 = vmatpush1.bf16.msra.mxu0 %v4391
    %5476 = vmatprep.subr.bf16.mxu0 0
    %5477 = vmatpush1.bf16.msra.mxu0 %v4390
    %5478 = vmatprep.subr.bf16.mxu0 0
    %5479 = vmatpush1.bf16.msra.mxu0 %v4389
    %5480 = vmatprep.subr.bf16.mxu0 0
    %5481 = vmatpush1.bf16.msra.mxu0 %v4388
    %5482 = vmatprep.subr.bf16.mxu0 0
    %5483 = vmatpush1.bf16.msra.mxu0 %v4387
    %5484 = vmatprep.subr.bf16.mxu0 0
    %5485 = vmatpush2.bf16.msra.mxu0 %v4402
    %5486 = vmatprep.subr.bf16.mxu0 0
    %5487 = vmatpush2.bf16.msra.mxu0 %v4401
    %5488 = vmatprep.subr.bf16.mxu0 0
    %5489 = vmatpush2.bf16.msra.mxu0 %v4400
    %5490 = vmatprep.subr.bf16.mxu0 0
    %5491 = vmatpush2.bf16.msra.mxu0 %v4399
    %5492 = vmatprep.subr.bf16.mxu0 0
    %5493 = vmatpush2.bf16.msra.mxu0 %v4398
    %5494 = vmatprep.subr.bf16.mxu0 0
    %5495 = vmatpush2.bf16.msra.mxu0 %v4397
    %5496 = vmatprep.subr.bf16.mxu0 0
    %5497 = vmatpush2.bf16.msra.mxu0 %v4396
    %5498 = vmatprep.subr.bf16.mxu0 0
    %5499 = vmatpush2.bf16.msra.mxu0 %v4395
    %5500 = vmatprep.mubr.bf16.mxu0 %v5293
    %5501 = vmatmul.mubr.bf16.gmra.mxu0 %v5292
    %v5502 = vpop.f32.mrf.mxu0
    %v5503 = vadd.f32 %v5463, %v5502
    %v5504 = vpop.f32.mrf.mxu0
    %v5505 = vpop.f32.mrf.mxu0
    %v5506 = vpop.f32.mrf.mxu0
    %5507 = vdwg.mxu0
    %5508 = vmatprep.subr.bf16.mxu0 0
    %5509 = vmatpush1.bf16.msra.mxu0 %v4410
    %5510 = vmatprep.subr.bf16.mxu0 0
    %5511 = vmatpush1.bf16.msra.mxu0 %v4409
    %5512 = vmatprep.subr.bf16.mxu0 0
    %5513 = vmatpush1.bf16.msra.mxu0 %v4408
    %5514 = vmatprep.subr.bf16.mxu0 0
    %5515 = vmatpush1.bf16.msra.mxu0 %v4407
    %5516 = vmatprep.subr.bf16.mxu0 0
    %5517 = vmatpush1.bf16.msra.mxu0 %v4406
    %5518 = vmatprep.subr.bf16.mxu0 0
    %5519 = vmatpush1.bf16.msra.mxu0 %v4405
    %5520 = vmatprep.subr.bf16.mxu0 0
    %5521 = vmatpush1.bf16.msra.mxu0 %v4404
    %5522 = vmatprep.subr.bf16.mxu0 0
    %5523 = vmatpush1.bf16.msra.mxu0 %v4403
    %5524 = vmatprep.subr.bf16.mxu0 0
    %5525 = vmatpush2.bf16.msra.mxu0 %v4418
    %5526 = vmatprep.subr.bf16.mxu0 0
    %5527 = vmatpush2.bf16.msra.mxu0 %v4417
    %5528 = vmatprep.subr.bf16.mxu0 0
    %5529 = vmatpush2.bf16.msra.mxu0 %v4416
    %5530 = vmatprep.subr.bf16.mxu0 0
    %5531 = vmatpush2.bf16.msra.mxu0 %v4415
    %5532 = vmatprep.subr.bf16.mxu0 0
    %5533 = vmatpush2.bf16.msra.mxu0 %v4414
    %5534 = vmatprep.subr.bf16.mxu0 0
    %5535 = vmatpush2.bf16.msra.mxu0 %v4413
    %5536 = vmatprep.subr.bf16.mxu0 0
    %5537 = vmatpush2.bf16.msra.mxu0 %v4412
    %5538 = vmatprep.subr.bf16.mxu0 0
    %5539 = vmatpush2.bf16.msra.mxu0 %v4411
    %5540 = vmatprep.mubr.bf16.mxu0 %v5295
    %5541 = vmatmul.mubr.bf16.gmra.mxu0 %v5294
    %v5542 = vpop.f32.mrf.mxu0
    %v5543 = vadd.f32 %v5503, %v5542
    %v5544 = vpop.f32.mrf.mxu0
    %v5545 = vpop.f32.mrf.mxu0
    %v5546 = vpop.f32.mrf.mxu0
    %5547 = vdwg.mxu0
    %vm5548 = vcmp.gt.f32.partialorder %v5543, 0.0
    %v5549 = vmul.f32 %v5543, 0.01
    %v5550 = vsel %vm5548, %v5543, %v5549
    %v5551 = vpack.c.bf16 %v5550, %v5550
    %s5552 = scalar_lea.vmem [#allocation14], 128
    %v5553 = vld [vmem:[%s5552] sm:$0xf]
    %v5554 = vld [vmem:[%s5552 + $0x4] sm:$0xf]
    %v5555 = vld [vmem:[%s5552 + $0x8] sm:$0xf]
    %v5556 = vld [vmem:[%s5552 + $0xc] sm:$0xf]
    %v5557 = vld [vmem:[%s5552 + $0x10] sm:$0xf]
    %v5558 = vld [vmem:[%s5552 + $0x14] sm:$0xf]
    %v5559 = vld [vmem:[%s5552 + $0x18] sm:$0xf]
    %v5560 = vld [vmem:[%s5552 + $0x1c] sm:$0xf]
    %v5561 = vld [vmem:[%s5552 + $0x20] sm:$0xf]
    %v5562 = vld [vmem:[%s5552 + $0x24] sm:$0xf]
    %v5563 = vld [vmem:[%s5552 + $0x28] sm:$0xf]
    %v5564 = vld [vmem:[%s5552 + $0x2c] sm:$0xf]
    %v5565 = vld [vmem:[%s5552 + $0x30] sm:$0xf]
    %v5566 = vld [vmem:[%s5552 + $0x34] sm:$0xf]
    %v5567 = vld [vmem:[%s5552 + $0x38] sm:$0xf]
    %v5568 = vld [vmem:[%s5552 + $0x3c] sm:$0xf]
    %v5585 = vunpack.c.l.b16 %v5553
    %v5586 = vunpack.c.l.b16 %v5554
    %v5587 = vunpack.c.l.b16 %v5555
    %v5588 = vunpack.c.l.b16 %v5556
    %v5589 = vunpack.c.l.b16 %v5557
    %v5590 = vunpack.c.l.b16 %v5558
    %v5591 = vunpack.c.l.b16 %v5559
    %v5592 = vunpack.c.l.b16 %v5560
    %v5593 = vunpack.c.l.b16 %v5561
    %v5594 = vunpack.c.l.b16 %v5562
    %v5595 = vunpack.c.l.b16 %v5563
    %v5596 = vunpack.c.l.b16 %v5564
    %v5597 = vunpack.c.l.b16 %v5565
    %v5598 = vunpack.c.l.b16 %v5566
    %v5599 = vunpack.c.l.b16 %v5567
    %v5600 = vunpack.c.l.b16 %v5568
    %v5601 = vpack.c.b16 %v5586, %v5585
    %v5602 = vpack.c.b16 %v5588, %v5587
    %v5603 = vpack.c.b16 %v5590, %v5589
    %v5604 = vpack.c.b16 %v5592, %v5591
    %v5605 = vpack.c.b16 %v5594, %v5593
    %v5606 = vpack.c.b16 %v5596, %v5595
    %v5607 = vpack.c.b16 %v5598, %v5597
    %v5608 = vpack.c.b16 %v5600, %v5599
    %5617 = vmatprep.subr.bf16.mxu0 0
    %5618 = vmatpush1.bf16.msra.mxu0 %v5608
    %5619 = vmatprep.subr.bf16.mxu0 0
    %5620 = vmatpush1.bf16.msra.mxu0 %v5607
    %5621 = vmatprep.subr.bf16.mxu0 0
    %5622 = vmatpush1.bf16.msra.mxu0 %v5606
    %5623 = vmatprep.subr.bf16.mxu0 0
    %5624 = vmatpush1.bf16.msra.mxu0 %v5605
    %5625 = vmatprep.subr.bf16.mxu0 0
    %5626 = vmatpush1.bf16.msra.mxu0 %v5604
    %5627 = vmatprep.subr.bf16.mxu0 0
    %5628 = vmatpush1.bf16.msra.mxu0 %v5603
    %5629 = vmatprep.subr.bf16.mxu0 0
    %5630 = vmatpush1.bf16.msra.mxu0 %v5602
    %5631 = vmatprep.subr.bf16.mxu0 0
    %5632 = vmatpush1.bf16.msra.mxu0 %v5601
    %5633 = vmatprep.subr.bf16.mxu0 0
    %5634 = vmatpush2.bf16.msra.mxu0 0
    %5635 = vmatprep.subr.bf16.mxu0 0
    %5636 = vmatpush2.bf16.msra.mxu0 0
    %5637 = vmatprep.subr.bf16.mxu0 0
    %5638 = vmatpush2.bf16.msra.mxu0 0
    %5639 = vmatprep.subr.bf16.mxu0 0
    %5640 = vmatpush2.bf16.msra.mxu0 0
    %5641 = vmatprep.subr.bf16.mxu0 0
    %5642 = vmatpush2.bf16.msra.mxu0 0
    %5643 = vmatprep.subr.bf16.mxu0 0
    %5644 = vmatpush2.bf16.msra.mxu0 0
    %5645 = vmatprep.subr.bf16.mxu0 0
    %5646 = vmatpush2.bf16.msra.mxu0 0
    %5647 = vmatprep.subr.bf16.mxu0 0
    %5648 = vmatpush2.bf16.msra.mxu0 0
    %5649 = vmatprep.mubr.bf16.mxu0 0
    %5650 = vmatmul.mubr.bf16.gmra.mxu0 %v5551
    %v5651 = vpop.f32.mrf.mxu0
    %v5652 = vadd.f32 0.0, %v5651
    %v5653 = vpop.f32.mrf.mxu0
    %v5654 = vpop.f32.mrf.mxu0
    %v5655 = vpop.f32.mrf.mxu0
    %5656 = vdwg.mxu0
    %v5657 = vadd.f32 %v5255, %v5652
    %v5658 = vld [vmem:[#allocation2 + $0x48] sm:$0xff]
    %v5659 = vld [vmem:[#allocation2 + $0x50] sm:$0xff]
    %v5660 = vld [vmem:[#allocation2 + $0x58] sm:$0xff]
    %v5661 = vld [vmem:[#allocation2 + $0x60] sm:$0xff]
    %v5662 = vld [vmem:[#allocation2 + $0x68] sm:$0xff]
    %v5663 = vld [vmem:[#allocation2 + $0x70] sm:$0xff]
    %v5670 = vunpack.c.l.b16 %v5658
    %v5671 = vunpack.c.h.b16 %v5658
    %v5672 = vunpack.c.l.b16 %v5659
    %v5673 = vunpack.c.h.b16 %v5659
    %v5674 = vunpack.c.l.b16 %v5660
    %v5675 = vunpack.c.h.b16 %v5660
    %v5676 = vunpack.c.l.b16 %v5661
    %v5677 = vunpack.c.h.b16 %v5661
    %v5678 = vunpack.c.l.b16 %v5662
    %v5679 = vunpack.c.h.b16 %v5662
    %v5680 = vunpack.c.l.b16 %v5663
    %v5681 = vunpack.c.h.b16 %v5663
    %v5682 = vpack.c.b16 %v5670, %v5670
    %v5683 = vpack.c.b16 %v5671, %v5671
    %v5684 = vpack.c.b16 %v5672, %v5672
    %v5685 = vpack.c.b16 %v5673, %v5673
    %v5686 = vpack.c.b16 %v5674, %v5674
    %v5687 = vpack.c.b16 %v5675, %v5675
    %v5688 = vpack.c.b16 %v5676, %v5676
    %v5689 = vpack.c.b16 %v5677, %v5677
    %v5690 = vpack.c.b16 %v5678, %v5678
    %v5691 = vpack.c.b16 %v5679, %v5679
    %v5692 = vpack.c.b16 %v5680, %v5680
    %v5693 = vpack.c.b16 %v5681, %v5681
    %5706 = vmatprep.subr.bf16.mxu0 0
    %5707 = vmatpush1.bf16.msra.mxu0 %v4330
    %5708 = vmatprep.subr.bf16.mxu0 0
    %5709 = vmatpush1.bf16.msra.mxu0 %v4329
    %5710 = vmatprep.subr.bf16.mxu0 0
    %5711 = vmatpush1.bf16.msra.mxu0 %v4328
    %5712 = vmatprep.subr.bf16.mxu0 0
    %5713 = vmatpush1.bf16.msra.mxu0 %v4327
    %5714 = vmatprep.subr.bf16.mxu0 0
    %5715 = vmatpush1.bf16.msra.mxu0 %v4326
    %5716 = vmatprep.subr.bf16.mxu0 0
    %5717 = vmatpush1.bf16.msra.mxu0 %v4325
    %5718 = vmatprep.subr.bf16.mxu0 0
    %5719 = vmatpush1.bf16.msra.mxu0 %v4324
    %5720 = vmatprep.subr.bf16.mxu0 0
    %5721 = vmatpush1.bf16.msra.mxu0 %v4323
    %5722 = vmatprep.subr.bf16.mxu0 0
    %5723 = vmatpush2.bf16.msra.mxu0 %v4338
    %5724 = vmatprep.subr.bf16.mxu0 0
    %5725 = vmatpush2.bf16.msra.mxu0 %v4337
    %5726 = vmatprep.subr.bf16.mxu0 0
    %5727 = vmatpush2.bf16.msra.mxu0 %v4336
    %5728 = vmatprep.subr.bf16.mxu0 0
    %5729 = vmatpush2.bf16.msra.mxu0 %v4335
    %5730 = vmatprep.subr.bf16.mxu0 0
    %5731 = vmatpush2.bf16.msra.mxu0 %v4334
    %5732 = vmatprep.subr.bf16.mxu0 0
    %5733 = vmatpush2.bf16.msra.mxu0 %v4333
    %5734 = vmatprep.subr.bf16.mxu0 0
    %5735 = vmatpush2.bf16.msra.mxu0 %v4332
    %5736 = vmatprep.subr.bf16.mxu0 0
    %5737 = vmatpush2.bf16.msra.mxu0 %v4331
    %5738 = vmatprep.mubr.bf16.mxu0 %v5683
    %5739 = vmatmul.mubr.bf16.gmra.mxu0 %v5682
    %v5740 = vpop.f32.mrf.mxu0
    %v5741 = vadd.f32 %v3895, %v5740
    %v5742 = vpop.f32.mrf.mxu0
    %v5743 = vpop.f32.mrf.mxu0
    %v5744 = vpop.f32.mrf.mxu0
    %5745 = vdwg.mxu0
    %5746 = vmatprep.subr.bf16.mxu0 0
    %5747 = vmatpush1.bf16.msra.mxu0 %v4346
    %5748 = vmatprep.subr.bf16.mxu0 0
    %5749 = vmatpush1.bf16.msra.mxu0 %v4345
    %5750 = vmatprep.subr.bf16.mxu0 0
    %5751 = vmatpush1.bf16.msra.mxu0 %v4344
    %5752 = vmatprep.subr.bf16.mxu0 0
    %5753 = vmatpush1.bf16.msra.mxu0 %v4343
    %5754 = vmatprep.subr.bf16.mxu0 0
    %5755 = vmatpush1.bf16.msra.mxu0 %v4342
    %5756 = vmatprep.subr.bf16.mxu0 0
    %5757 = vmatpush1.bf16.msra.mxu0 %v4341
    %5758 = vmatprep.subr.bf16.mxu0 0
    %5759 = vmatpush1.bf16.msra.mxu0 %v4340
    %5760 = vmatprep.subr.bf16.mxu0 0
    %5761 = vmatpush1.bf16.msra.mxu0 %v4339
    %5762 = vmatprep.subr.bf16.mxu0 0
    %5763 = vmatpush2.bf16.msra.mxu0 %v4354
    %5764 = vmatprep.subr.bf16.mxu0 0
    %5765 = vmatpush2.bf16.msra.mxu0 %v4353
    %5766 = vmatprep.subr.bf16.mxu0 0
    %5767 = vmatpush2.bf16.msra.mxu0 %v4352
    %5768 = vmatprep.subr.bf16.mxu0 0
    %5769 = vmatpush2.bf16.msra.mxu0 %v4351
    %5770 = vmatprep.subr.bf16.mxu0 0
    %5771 = vmatpush2.bf16.msra.mxu0 %v4350
    %5772 = vmatprep.subr.bf16.mxu0 0
    %5773 = vmatpush2.bf16.msra.mxu0 %v4349
    %5774 = vmatprep.subr.bf16.mxu0 0
    %5775 = vmatpush2.bf16.msra.mxu0 %v4348
    %5776 = vmatprep.subr.bf16.mxu0 0
    %5777 = vmatpush2.bf16.msra.mxu0 %v4347
    %5778 = vmatprep.mubr.bf16.mxu0 %v5685
    %5779 = vmatmul.mubr.bf16.gmra.mxu0 %v5684
    %v5780 = vpop.f32.mrf.mxu0
    %v5781 = vadd.f32 %v5741, %v5780
    %v5782 = vpop.f32.mrf.mxu0
    %v5783 = vpop.f32.mrf.mxu0
    %v5784 = vpop.f32.mrf.mxu0
    %5785 = vdwg.mxu0
    %5786 = vmatprep.subr.bf16.mxu0 0
    %5787 = vmatpush1.bf16.msra.mxu0 %v4362
    %5788 = vmatprep.subr.bf16.mxu0 0
    %5789 = vmatpush1.bf16.msra.mxu0 %v4361
    %5790 = vmatprep.subr.bf16.mxu0 0
    %5791 = vmatpush1.bf16.msra.mxu0 %v4360
    %5792 = vmatprep.subr.bf16.mxu0 0
    %5793 = vmatpush1.bf16.msra.mxu0 %v4359
    %5794 = vmatprep.subr.bf16.mxu0 0
    %5795 = vmatpush1.bf16.msra.mxu0 %v4358
    %5796 = vmatprep.subr.bf16.mxu0 0
    %5797 = vmatpush1.bf16.msra.mxu0 %v4357
    %5798 = vmatprep.subr.bf16.mxu0 0
    %5799 = vmatpush1.bf16.msra.mxu0 %v4356
    %5800 = vmatprep.subr.bf16.mxu0 0
    %5801 = vmatpush1.bf16.msra.mxu0 %v4355
    %5802 = vmatprep.subr.bf16.mxu0 0
    %5803 = vmatpush2.bf16.msra.mxu0 %v4370
    %5804 = vmatprep.subr.bf16.mxu0 0
    %5805 = vmatpush2.bf16.msra.mxu0 %v4369
    %5806 = vmatprep.subr.bf16.mxu0 0
    %5807 = vmatpush2.bf16.msra.mxu0 %v4368
    %5808 = vmatprep.subr.bf16.mxu0 0
    %5809 = vmatpush2.bf16.msra.mxu0 %v4367
    %5810 = vmatprep.subr.bf16.mxu0 0
    %5811 = vmatpush2.bf16.msra.mxu0 %v4366
    %5812 = vmatprep.subr.bf16.mxu0 0
    %5813 = vmatpush2.bf16.msra.mxu0 %v4365
    %5814 = vmatprep.subr.bf16.mxu0 0
    %5815 = vmatpush2.bf16.msra.mxu0 %v4364
    %5816 = vmatprep.subr.bf16.mxu0 0
    %5817 = vmatpush2.bf16.msra.mxu0 %v4363
    %5818 = vmatprep.mubr.bf16.mxu0 %v5687
    %5819 = vmatmul.mubr.bf16.gmra.mxu0 %v5686
    %v5820 = vpop.f32.mrf.mxu0
    %v5821 = vadd.f32 %v5781, %v5820
    %v5822 = vpop.f32.mrf.mxu0
    %v5823 = vpop.f32.mrf.mxu0
    %v5824 = vpop.f32.mrf.mxu0
    %5825 = vdwg.mxu0
    %5826 = vmatprep.subr.bf16.mxu0 0
    %5827 = vmatpush1.bf16.msra.mxu0 %v4378
    %5828 = vmatprep.subr.bf16.mxu0 0
    %5829 = vmatpush1.bf16.msra.mxu0 %v4377
    %5830 = vmatprep.subr.bf16.mxu0 0
    %5831 = vmatpush1.bf16.msra.mxu0 %v4376
    %5832 = vmatprep.subr.bf16.mxu0 0
    %5833 = vmatpush1.bf16.msra.mxu0 %v4375
    %5834 = vmatprep.subr.bf16.mxu0 0
    %5835 = vmatpush1.bf16.msra.mxu0 %v4374
    %5836 = vmatprep.subr.bf16.mxu0 0
    %5837 = vmatpush1.bf16.msra.mxu0 %v4373
    %5838 = vmatprep.subr.bf16.mxu0 0
    %5839 = vmatpush1.bf16.msra.mxu0 %v4372
    %5840 = vmatprep.subr.bf16.mxu0 0
    %5841 = vmatpush1.bf16.msra.mxu0 %v4371
    %5842 = vmatprep.subr.bf16.mxu0 0
    %5843 = vmatpush2.bf16.msra.mxu0 %v4386
    %5844 = vmatprep.subr.bf16.mxu0 0
    %5845 = vmatpush2.bf16.msra.mxu0 %v4385
    %5846 = vmatprep.subr.bf16.mxu0 0
    %5847 = vmatpush2.bf16.msra.mxu0 %v4384
    %5848 = vmatprep.subr.bf16.mxu0 0
    %5849 = vmatpush2.bf16.msra.mxu0 %v4383
    %5850 = vmatprep.subr.bf16.mxu0 0
    %5851 = vmatpush2.bf16.msra.mxu0 %v4382
    %5852 = vmatprep.subr.bf16.mxu0 0
    %5853 = vmatpush2.bf16.msra.mxu0 %v4381
    %5854 = vmatprep.subr.bf16.mxu0 0
    %5855 = vmatpush2.bf16.msra.mxu0 %v4380
    %5856 = vmatprep.subr.bf16.mxu0 0
    %5857 = vmatpush2.bf16.msra.mxu0 %v4379
    %5858 = vmatprep.mubr.bf16.mxu0 %v5689
    %5859 = vmatmul.mubr.bf16.gmra.mxu0 %v5688
    %v5860 = vpop.f32.mrf.mxu0
    %v5861 = vadd.f32 %v5821, %v5860
    %v5862 = vpop.f32.mrf.mxu0
    %v5863 = vpop.f32.mrf.mxu0
    %v5864 = vpop.f32.mrf.mxu0
    %5865 = vdwg.mxu0
    %5866 = vmatprep.subr.bf16.mxu0 0
    %5867 = vmatpush1.bf16.msra.mxu0 %v4394
    %5868 = vmatprep.subr.bf16.mxu0 0
    %5869 = vmatpush1.bf16.msra.mxu0 %v4393
    %5870 = vmatprep.subr.bf16.mxu0 0
    %5871 = vmatpush1.bf16.msra.mxu0 %v4392
    %5872 = vmatprep.subr.bf16.mxu0 0
    %5873 = vmatpush1.bf16.msra.mxu0 %v4391
    %5874 = vmatprep.subr.bf16.mxu0 0
    %5875 = vmatpush1.bf16.msra.mxu0 %v4390
    %5876 = vmatprep.subr.bf16.mxu0 0
    %5877 = vmatpush1.bf16.msra.mxu0 %v4389
    %5878 = vmatprep.subr.bf16.mxu0 0
    %5879 = vmatpush1.bf16.msra.mxu0 %v4388
    %5880 = vmatprep.subr.bf16.mxu0 0
    %5881 = vmatpush1.bf16.msra.mxu0 %v4387
    %5882 = vmatprep.subr.bf16.mxu0 0
    %5883 = vmatpush2.bf16.msra.mxu0 %v4402
    %5884 = vmatprep.subr.bf16.mxu0 0
    %5885 = vmatpush2.bf16.msra.mxu0 %v4401
    %5886 = vmatprep.subr.bf16.mxu0 0
    %5887 = vmatpush2.bf16.msra.mxu0 %v4400
    %5888 = vmatprep.subr.bf16.mxu0 0
    %5889 = vmatpush2.bf16.msra.mxu0 %v4399
    %5890 = vmatprep.subr.bf16.mxu0 0
    %5891 = vmatpush2.bf16.msra.mxu0 %v4398
    %5892 = vmatprep.subr.bf16.mxu0 0
    %5893 = vmatpush2.bf16.msra.mxu0 %v4397
    %5894 = vmatprep.subr.bf16.mxu0 0
    %5895 = vmatpush2.bf16.msra.mxu0 %v4396
    %5896 = vmatprep.subr.bf16.mxu0 0
    %5897 = vmatpush2.bf16.msra.mxu0 %v4395
    %5898 = vmatprep.mubr.bf16.mxu0 %v5691
    %5899 = vmatmul.mubr.bf16.gmra.mxu0 %v5690
    %v5900 = vpop.f32.mrf.mxu0
    %v5901 = vadd.f32 %v5861, %v5900
    %v5902 = vpop.f32.mrf.mxu0
    %v5903 = vpop.f32.mrf.mxu0
    %v5904 = vpop.f32.mrf.mxu0
    %5905 = vdwg.mxu0
    %5906 = vmatprep.subr.bf16.mxu0 0
    %5907 = vmatpush1.bf16.msra.mxu0 %v4410
    %5908 = vmatprep.subr.bf16.mxu0 0
    %5909 = vmatpush1.bf16.msra.mxu0 %v4409
    %5910 = vmatprep.subr.bf16.mxu0 0
    %5911 = vmatpush1.bf16.msra.mxu0 %v4408
    %5912 = vmatprep.subr.bf16.mxu0 0
    %5913 = vmatpush1.bf16.msra.mxu0 %v4407
    %5914 = vmatprep.subr.bf16.mxu0 0
    %5915 = vmatpush1.bf16.msra.mxu0 %v4406
    %5916 = vmatprep.subr.bf16.mxu0 0
    %5917 = vmatpush1.bf16.msra.mxu0 %v4405
    %5918 = vmatprep.subr.bf16.mxu0 0
    %5919 = vmatpush1.bf16.msra.mxu0 %v4404
    %5920 = vmatprep.subr.bf16.mxu0 0
    %5921 = vmatpush1.bf16.msra.mxu0 %v4403
    %5922 = vmatprep.subr.bf16.mxu0 0
    %5923 = vmatpush2.bf16.msra.mxu0 %v4418
    %5924 = vmatprep.subr.bf16.mxu0 0
    %5925 = vmatpush2.bf16.msra.mxu0 %v4417
    %5926 = vmatprep.subr.bf16.mxu0 0
    %5927 = vmatpush2.bf16.msra.mxu0 %v4416
    %5928 = vmatprep.subr.bf16.mxu0 0
    %5929 = vmatpush2.bf16.msra.mxu0 %v4415
    %5930 = vmatprep.subr.bf16.mxu0 0
    %5931 = vmatpush2.bf16.msra.mxu0 %v4414
    %5932 = vmatprep.subr.bf16.mxu0 0
    %5933 = vmatpush2.bf16.msra.mxu0 %v4413
    %5934 = vmatprep.subr.bf16.mxu0 0
    %5935 = vmatpush2.bf16.msra.mxu0 %v4412
    %5936 = vmatprep.subr.bf16.mxu0 0
    %5937 = vmatpush2.bf16.msra.mxu0 %v4411
    %5938 = vmatprep.mubr.bf16.mxu0 %v5693
    %5939 = vmatmul.mubr.bf16.gmra.mxu0 %v5692
    %v5940 = vpop.f32.mrf.mxu0
    %v5941 = vadd.f32 %v5901, %v5940
    %v5942 = vpop.f32.mrf.mxu0
    %v5943 = vpop.f32.mrf.mxu0
    %v5944 = vpop.f32.mrf.mxu0
    %5945 = vdwg.mxu0
    %vm5946 = vcmp.gt.f32.partialorder %v5941, 0.0
    %v5947 = vmul.f32 %v5941, 0.01
    %v5948 = vsel %vm5946, %v5941, %v5947
    %v5949 = vpack.c.bf16 %v5948, %v5948
    %s5950 = scalar_lea.vmem [#allocation14], 192
    %v5951 = vld [vmem:[%s5950] sm:$0xf]
    %v5952 = vld [vmem:[%s5950 + $0x4] sm:$0xf]
    %v5953 = vld [vmem:[%s5950 + $0x8] sm:$0xf]
    %v5954 = vld [vmem:[%s5950 + $0xc] sm:$0xf]
    %v5955 = vld [vmem:[%s5950 + $0x10] sm:$0xf]
    %v5956 = vld [vmem:[%s5950 + $0x14] sm:$0xf]
    %v5957 = vld [vmem:[%s5950 + $0x18] sm:$0xf]
    %v5958 = vld [vmem:[%s5950 + $0x1c] sm:$0xf]
    %v5959 = vld [vmem:[%s5950 + $0x20] sm:$0xf]
    %v5960 = vld [vmem:[%s5950 + $0x24] sm:$0xf]
    %v5961 = vld [vmem:[%s5950 + $0x28] sm:$0xf]
    %v5962 = vld [vmem:[%s5950 + $0x2c] sm:$0xf]
    %v5963 = vld [vmem:[%s5950 + $0x30] sm:$0xf]
    %v5964 = vld [vmem:[%s5950 + $0x34] sm:$0xf]
    %v5965 = vld [vmem:[%s5950 + $0x38] sm:$0xf]
    %v5966 = vld [vmem:[%s5950 + $0x3c] sm:$0xf]
    %v5983 = vunpack.c.l.b16 %v5951
    %v5984 = vunpack.c.l.b16 %v5952
    %v5985 = vunpack.c.l.b16 %v5953
    %v5986 = vunpack.c.l.b16 %v5954
    %v5987 = vunpack.c.l.b16 %v5955
    %v5988 = vunpack.c.l.b16 %v5956
    %v5989 = vunpack.c.l.b16 %v5957
    %v5990 = vunpack.c.l.b16 %v5958
    %v5991 = vunpack.c.l.b16 %v5959
    %v5992 = vunpack.c.l.b16 %v5960
    %v5993 = vunpack.c.l.b16 %v5961
    %v5994 = vunpack.c.l.b16 %v5962
    %v5995 = vunpack.c.l.b16 %v5963
    %v5996 = vunpack.c.l.b16 %v5964
    %v5997 = vunpack.c.l.b16 %v5965
    %v5998 = vunpack.c.l.b16 %v5966
    %v5999 = vpack.c.b16 %v5984, %v5983
    %v6000 = vpack.c.b16 %v5986, %v5985
    %v6001 = vpack.c.b16 %v5988, %v5987
    %v6002 = vpack.c.b16 %v5990, %v5989
    %v6003 = vpack.c.b16 %v5992, %v5991
    %v6004 = vpack.c.b16 %v5994, %v5993
    %v6005 = vpack.c.b16 %v5996, %v5995
    %v6006 = vpack.c.b16 %v5998, %v5997
    %6015 = vmatprep.subr.bf16.mxu0 0
    %6016 = vmatpush1.bf16.msra.mxu0 %v6006
    %6017 = vmatprep.subr.bf16.mxu0 0
    %6018 = vmatpush1.bf16.msra.mxu0 %v6005
    %6019 = vmatprep.subr.bf16.mxu0 0
    %6020 = vmatpush1.bf16.msra.mxu0 %v6004
    %6021 = vmatprep.subr.bf16.mxu0 0
    %6022 = vmatpush1.bf16.msra.mxu0 %v6003
    %6023 = vmatprep.subr.bf16.mxu0 0
    %6024 = vmatpush1.bf16.msra.mxu0 %v6002
    %6025 = vmatprep.subr.bf16.mxu0 0
    %6026 = vmatpush1.bf16.msra.mxu0 %v6001
    %6027 = vmatprep.subr.bf16.mxu0 0
    %6028 = vmatpush1.bf16.msra.mxu0 %v6000
    %6029 = vmatprep.subr.bf16.mxu0 0
    %6030 = vmatpush1.bf16.msra.mxu0 %v5999
    %6031 = vmatprep.subr.bf16.mxu0 0
    %6032 = vmatpush2.bf16.msra.mxu0 0
    %6033 = vmatprep.subr.bf16.mxu0 0
    %6034 = vmatpush2.bf16.msra.mxu0 0
    %6035 = vmatprep.subr.bf16.mxu0 0
    %6036 = vmatpush2.bf16.msra.mxu0 0
    %6037 = vmatprep.subr.bf16.mxu0 0
    %6038 = vmatpush2.bf16.msra.mxu0 0
    %6039 = vmatprep.subr.bf16.mxu0 0
    %6040 = vmatpush2.bf16.msra.mxu0 0
    %6041 = vmatprep.subr.bf16.mxu0 0
    %6042 = vmatpush2.bf16.msra.mxu0 0
    %6043 = vmatprep.subr.bf16.mxu0 0
    %6044 = vmatpush2.bf16.msra.mxu0 0
    %6045 = vmatprep.subr.bf16.mxu0 0
    %6046 = vmatpush2.bf16.msra.mxu0 0
    %6047 = vmatprep.mubr.bf16.mxu0 0
    %6048 = vmatmul.mubr.bf16.gmra.mxu0 %v5949
    %v6049 = vpop.f32.mrf.mxu0
    %v6050 = vadd.f32 0.0, %v6049
    %v6051 = vpop.f32.mrf.mxu0
    %v6052 = vpop.f32.mrf.mxu0
    %v6053 = vpop.f32.mrf.mxu0
    %6054 = vdwg.mxu0
    %v6055 = vadd.f32 %v5657, %v6050
    %v6056 = vld [vmem:[#allocation2 + $0x60] sm:$0xff]
    %v6057 = vld [vmem:[#allocation2 + $0x68] sm:$0xff]
    %v6058 = vld [vmem:[#allocation2 + $0x70] sm:$0xff]
    %v6059 = vld [vmem:[#allocation2 + $0x78] sm:$0xff]
    %v6060 = vld [vmem:[#allocation2 + $0x80] sm:$0xff]
    %v6061 = vld [vmem:[#allocation2 + $0x88] sm:$0xff]
    %v6068 = vunpack.c.l.b16 %v6056
    %v6069 = vunpack.c.h.b16 %v6056
    %v6070 = vunpack.c.l.b16 %v6057
    %v6071 = vunpack.c.h.b16 %v6057
    %v6072 = vunpack.c.l.b16 %v6058
    %v6073 = vunpack.c.h.b16 %v6058
    %v6074 = vunpack.c.l.b16 %v6059
    %v6075 = vunpack.c.h.b16 %v6059
    %v6076 = vunpack.c.l.b16 %v6060
    %v6077 = vunpack.c.h.b16 %v6060
    %v6078 = vunpack.c.l.b16 %v6061
    %v6079 = vunpack.c.h.b16 %v6061
    %v6080 = vpack.c.b16 %v6068, %v6068
    %v6081 = vpack.c.b16 %v6069, %v6069
    %v6082 = vpack.c.b16 %v6070, %v6070
    %v6083 = vpack.c.b16 %v6071, %v6071
    %v6084 = vpack.c.b16 %v6072, %v6072
    %v6085 = vpack.c.b16 %v6073, %v6073
    %v6086 = vpack.c.b16 %v6074, %v6074
    %v6087 = vpack.c.b16 %v6075, %v6075
    %v6088 = vpack.c.b16 %v6076, %v6076
    %v6089 = vpack.c.b16 %v6077, %v6077
    %v6090 = vpack.c.b16 %v6078, %v6078
    %v6091 = vpack.c.b16 %v6079, %v6079
    %6104 = vmatprep.subr.bf16.mxu0 0
    %6105 = vmatpush1.bf16.msra.mxu0 %v4330
    %6106 = vmatprep.subr.bf16.mxu0 0
    %6107 = vmatpush1.bf16.msra.mxu0 %v4329
    %6108 = vmatprep.subr.bf16.mxu0 0
    %6109 = vmatpush1.bf16.msra.mxu0 %v4328
    %6110 = vmatprep.subr.bf16.mxu0 0
    %6111 = vmatpush1.bf16.msra.mxu0 %v4327
    %6112 = vmatprep.subr.bf16.mxu0 0
    %6113 = vmatpush1.bf16.msra.mxu0 %v4326
    %6114 = vmatprep.subr.bf16.mxu0 0
    %6115 = vmatpush1.bf16.msra.mxu0 %v4325
    %6116 = vmatprep.subr.bf16.mxu0 0
    %6117 = vmatpush1.bf16.msra.mxu0 %v4324
    %6118 = vmatprep.subr.bf16.mxu0 0
    %6119 = vmatpush1.bf16.msra.mxu0 %v4323
    %6120 = vmatprep.subr.bf16.mxu0 0
    %6121 = vmatpush2.bf16.msra.mxu0 %v4338
    %6122 = vmatprep.subr.bf16.mxu0 0
    %6123 = vmatpush2.bf16.msra.mxu0 %v4337
    %6124 = vmatprep.subr.bf16.mxu0 0
    %6125 = vmatpush2.bf16.msra.mxu0 %v4336
    %6126 = vmatprep.subr.bf16.mxu0 0
    %6127 = vmatpush2.bf16.msra.mxu0 %v4335
    %6128 = vmatprep.subr.bf16.mxu0 0
    %6129 = vmatpush2.bf16.msra.mxu0 %v4334
    %6130 = vmatprep.subr.bf16.mxu0 0
    %6131 = vmatpush2.bf16.msra.mxu0 %v4333
    %6132 = vmatprep.subr.bf16.mxu0 0
    %6133 = vmatpush2.bf16.msra.mxu0 %v4332
    %6134 = vmatprep.subr.bf16.mxu0 0
    %6135 = vmatpush2.bf16.msra.mxu0 %v4331
    %6136 = vmatprep.mubr.bf16.mxu0 %v6081
    %6137 = vmatmul.mubr.bf16.gmra.mxu0 %v6080
    %v6138 = vpop.f32.mrf.mxu0
    %v6139 = vadd.f32 %v3895, %v6138
    %v6140 = vpop.f32.mrf.mxu0
    %v6141 = vpop.f32.mrf.mxu0
    %v6142 = vpop.f32.mrf.mxu0
    %6143 = vdwg.mxu0
    %6144 = vmatprep.subr.bf16.mxu0 0
    %6145 = vmatpush1.bf16.msra.mxu0 %v4346
    %6146 = vmatprep.subr.bf16.mxu0 0
    %6147 = vmatpush1.bf16.msra.mxu0 %v4345
    %6148 = vmatprep.subr.bf16.mxu0 0
    %6149 = vmatpush1.bf16.msra.mxu0 %v4344
    %6150 = vmatprep.subr.bf16.mxu0 0
    %6151 = vmatpush1.bf16.msra.mxu0 %v4343
    %6152 = vmatprep.subr.bf16.mxu0 0
    %6153 = vmatpush1.bf16.msra.mxu0 %v4342
    %6154 = vmatprep.subr.bf16.mxu0 0
    %6155 = vmatpush1.bf16.msra.mxu0 %v4341
    %6156 = vmatprep.subr.bf16.mxu0 0
    %6157 = vmatpush1.bf16.msra.mxu0 %v4340
    %6158 = vmatprep.subr.bf16.mxu0 0
    %6159 = vmatpush1.bf16.msra.mxu0 %v4339
    %6160 = vmatprep.subr.bf16.mxu0 0
    %6161 = vmatpush2.bf16.msra.mxu0 %v4354
    %6162 = vmatprep.subr.bf16.mxu0 0
    %6163 = vmatpush2.bf16.msra.mxu0 %v4353
    %6164 = vmatprep.subr.bf16.mxu0 0
    %6165 = vmatpush2.bf16.msra.mxu0 %v4352
    %6166 = vmatprep.subr.bf16.mxu0 0
    %6167 = vmatpush2.bf16.msra.mxu0 %v4351
    %6168 = vmatprep.subr.bf16.mxu0 0
    %6169 = vmatpush2.bf16.msra.mxu0 %v4350
    %6170 = vmatprep.subr.bf16.mxu0 0
    %6171 = vmatpush2.bf16.msra.mxu0 %v4349
    %6172 = vmatprep.subr.bf16.mxu0 0
    %6173 = vmatpush2.bf16.msra.mxu0 %v4348
    %6174 = vmatprep.subr.bf16.mxu0 0
    %6175 = vmatpush2.bf16.msra.mxu0 %v4347
    %6176 = vmatprep.mubr.bf16.mxu0 %v6083
    %6177 = vmatmul.mubr.bf16.gmra.mxu0 %v6082
    %v6178 = vpop.f32.mrf.mxu0
    %v6179 = vadd.f32 %v6139, %v6178
    %v6180 = vpop.f32.mrf.mxu0
    %v6181 = vpop.f32.mrf.mxu0
    %v6182 = vpop.f32.mrf.mxu0
    %6183 = vdwg.mxu0
    %6184 = vmatprep.subr.bf16.mxu0 0
    %6185 = vmatpush1.bf16.msra.mxu0 %v4362
    %6186 = vmatprep.subr.bf16.mxu0 0
    %6187 = vmatpush1.bf16.msra.mxu0 %v4361
    %6188 = vmatprep.subr.bf16.mxu0 0
    %6189 = vmatpush1.bf16.msra.mxu0 %v4360
    %6190 = vmatprep.subr.bf16.mxu0 0
    %6191 = vmatpush1.bf16.msra.mxu0 %v4359
    %6192 = vmatprep.subr.bf16.mxu0 0
    %6193 = vmatpush1.bf16.msra.mxu0 %v4358
    %6194 = vmatprep.subr.bf16.mxu0 0
    %6195 = vmatpush1.bf16.msra.mxu0 %v4357
    %6196 = vmatprep.subr.bf16.mxu0 0
    %6197 = vmatpush1.bf16.msra.mxu0 %v4356
    %6198 = vmatprep.subr.bf16.mxu0 0
    %6199 = vmatpush1.bf16.msra.mxu0 %v4355
    %6200 = vmatprep.subr.bf16.mxu0 0
    %6201 = vmatpush2.bf16.msra.mxu0 %v4370
    %6202 = vmatprep.subr.bf16.mxu0 0
    %6203 = vmatpush2.bf16.msra.mxu0 %v4369
    %6204 = vmatprep.subr.bf16.mxu0 0
    %6205 = vmatpush2.bf16.msra.mxu0 %v4368
    %6206 = vmatprep.subr.bf16.mxu0 0
    %6207 = vmatpush2.bf16.msra.mxu0 %v4367
    %6208 = vmatprep.subr.bf16.mxu0 0
    %6209 = vmatpush2.bf16.msra.mxu0 %v4366
    %6210 = vmatprep.subr.bf16.mxu0 0
    %6211 = vmatpush2.bf16.msra.mxu0 %v4365
    %6212 = vmatprep.subr.bf16.mxu0 0
    %6213 = vmatpush2.bf16.msra.mxu0 %v4364
    %6214 = vmatprep.subr.bf16.mxu0 0
    %6215 = vmatpush2.bf16.msra.mxu0 %v4363
    %6216 = vmatprep.mubr.bf16.mxu0 %v6085
    %6217 = vmatmul.mubr.bf16.gmra.mxu0 %v6084
    %v6218 = vpop.f32.mrf.mxu0
    %v6219 = vadd.f32 %v6179, %v6218
    %v6220 = vpop.f32.mrf.mxu0
    %v6221 = vpop.f32.mrf.mxu0
    %v6222 = vpop.f32.mrf.mxu0
    %6223 = vdwg.mxu0
    %6224 = vmatprep.subr.bf16.mxu0 0
    %6225 = vmatpush1.bf16.msra.mxu0 %v4378
    %6226 = vmatprep.subr.bf16.mxu0 0
    %6227 = vmatpush1.bf16.msra.mxu0 %v4377
    %6228 = vmatprep.subr.bf16.mxu0 0
    %6229 = vmatpush1.bf16.msra.mxu0 %v4376
    %6230 = vmatprep.subr.bf16.mxu0 0
    %6231 = vmatpush1.bf16.msra.mxu0 %v4375
    %6232 = vmatprep.subr.bf16.mxu0 0
    %6233 = vmatpush1.bf16.msra.mxu0 %v4374
    %6234 = vmatprep.subr.bf16.mxu0 0
    %6235 = vmatpush1.bf16.msra.mxu0 %v4373
    %6236 = vmatprep.subr.bf16.mxu0 0
    %6237 = vmatpush1.bf16.msra.mxu0 %v4372
    %6238 = vmatprep.subr.bf16.mxu0 0
    %6239 = vmatpush1.bf16.msra.mxu0 %v4371
    %6240 = vmatprep.subr.bf16.mxu0 0
    %6241 = vmatpush2.bf16.msra.mxu0 %v4386
    %6242 = vmatprep.subr.bf16.mxu0 0
    %6243 = vmatpush2.bf16.msra.mxu0 %v4385
    %6244 = vmatprep.subr.bf16.mxu0 0
    %6245 = vmatpush2.bf16.msra.mxu0 %v4384
    %6246 = vmatprep.subr.bf16.mxu0 0
    %6247 = vmatpush2.bf16.msra.mxu0 %v4383
    %6248 = vmatprep.subr.bf16.mxu0 0
    %6249 = vmatpush2.bf16.msra.mxu0 %v4382
    %6250 = vmatprep.subr.bf16.mxu0 0
    %6251 = vmatpush2.bf16.msra.mxu0 %v4381
    %6252 = vmatprep.subr.bf16.mxu0 0
    %6253 = vmatpush2.bf16.msra.mxu0 %v4380
    %6254 = vmatprep.subr.bf16.mxu0 0
    %6255 = vmatpush2.bf16.msra.mxu0 %v4379
    %6256 = vmatprep.mubr.bf16.mxu0 %v6087
    %6257 = vmatmul.mubr.bf16.gmra.mxu0 %v6086
    %v6258 = vpop.f32.mrf.mxu0
    %v6259 = vadd.f32 %v6219, %v6258
    %v6260 = vpop.f32.mrf.mxu0
    %v6261 = vpop.f32.mrf.mxu0
    %v6262 = vpop.f32.mrf.mxu0
    %6263 = vdwg.mxu0
    %6264 = vmatprep.subr.bf16.mxu0 0
    %6265 = vmatpush1.bf16.msra.mxu0 %v4394
    %6266 = vmatprep.subr.bf16.mxu0 0
    %6267 = vmatpush1.bf16.msra.mxu0 %v4393
    %6268 = vmatprep.subr.bf16.mxu0 0
    %6269 = vmatpush1.bf16.msra.mxu0 %v4392
    %6270 = vmatprep.subr.bf16.mxu0 0
    %6271 = vmatpush1.bf16.msra.mxu0 %v4391
    %6272 = vmatprep.subr.bf16.mxu0 0
    %6273 = vmatpush1.bf16.msra.mxu0 %v4390
    %6274 = vmatprep.subr.bf16.mxu0 0
    %6275 = vmatpush1.bf16.msra.mxu0 %v4389
    %6276 = vmatprep.subr.bf16.mxu0 0
    %6277 = vmatpush1.bf16.msra.mxu0 %v4388
    %6278 = vmatprep.subr.bf16.mxu0 0
    %6279 = vmatpush1.bf16.msra.mxu0 %v4387
    %6280 = vmatprep.subr.bf16.mxu0 0
    %6281 = vmatpush2.bf16.msra.mxu0 %v4402
    %6282 = vmatprep.subr.bf16.mxu0 0
    %6283 = vmatpush2.bf16.msra.mxu0 %v4401
    %6284 = vmatprep.subr.bf16.mxu0 0
    %6285 = vmatpush2.bf16.msra.mxu0 %v4400
    %6286 = vmatprep.subr.bf16.mxu0 0
    %6287 = vmatpush2.bf16.msra.mxu0 %v4399
    %6288 = vmatprep.subr.bf16.mxu0 0
    %6289 = vmatpush2.bf16.msra.mxu0 %v4398
    %6290 = vmatprep.subr.bf16.mxu0 0
    %6291 = vmatpush2.bf16.msra.mxu0 %v4397
    %6292 = vmatprep.subr.bf16.mxu0 0
    %6293 = vmatpush2.bf16.msra.mxu0 %v4396
    %6294 = vmatprep.subr.bf16.mxu0 0
    %6295 = vmatpush2.bf16.msra.mxu0 %v4395
    %6296 = vmatprep.mubr.bf16.mxu0 %v6089
    %6297 = vmatmul.mubr.bf16.gmra.mxu0 %v6088
    %v6298 = vpop.f32.mrf.mxu0
    %v6299 = vadd.f32 %v6259, %v6298
    %v6300 = vpop.f32.mrf.mxu0
    %v6301 = vpop.f32.mrf.mxu0
    %v6302 = vpop.f32.mrf.mxu0
    %6303 = vdwg.mxu0
    %6304 = vmatprep.subr.bf16.mxu0 0
    %6305 = vmatpush1.bf16.msra.mxu0 %v4410
    %6306 = vmatprep.subr.bf16.mxu0 0
    %6307 = vmatpush1.bf16.msra.mxu0 %v4409
    %6308 = vmatprep.subr.bf16.mxu0 0
    %6309 = vmatpush1.bf16.msra.mxu0 %v4408
    %6310 = vmatprep.subr.bf16.mxu0 0
    %6311 = vmatpush1.bf16.msra.mxu0 %v4407
    %6312 = vmatprep.subr.bf16.mxu0 0
    %6313 = vmatpush1.bf16.msra.mxu0 %v4406
    %6314 = vmatprep.subr.bf16.mxu0 0
    %6315 = vmatpush1.bf16.msra.mxu0 %v4405
    %6316 = vmatprep.subr.bf16.mxu0 0
    %6317 = vmatpush1.bf16.msra.mxu0 %v4404
    %6318 = vmatprep.subr.bf16.mxu0 0
    %6319 = vmatpush1.bf16.msra.mxu0 %v4403
    %6320 = vmatprep.subr.bf16.mxu0 0
    %6321 = vmatpush2.bf16.msra.mxu0 %v4418
    %6322 = vmatprep.subr.bf16.mxu0 0
    %6323 = vmatpush2.bf16.msra.mxu0 %v4417
    %6324 = vmatprep.subr.bf16.mxu0 0
    %6325 = vmatpush2.bf16.msra.mxu0 %v4416
    %6326 = vmatprep.subr.bf16.mxu0 0
    %6327 = vmatpush2.bf16.msra.mxu0 %v4415
    %6328 = vmatprep.subr.bf16.mxu0 0
    %6329 = vmatpush2.bf16.msra.mxu0 %v4414
    %6330 = vmatprep.subr.bf16.mxu0 0
    %6331 = vmatpush2.bf16.msra.mxu0 %v4413
    %6332 = vmatprep.subr.bf16.mxu0 0
    %6333 = vmatpush2.bf16.msra.mxu0 %v4412
    %6334 = vmatprep.subr.bf16.mxu0 0
    %6335 = vmatpush2.bf16.msra.mxu0 %v4411
    %6336 = vmatprep.mubr.bf16.mxu0 %v6091
    %6337 = vmatmul.mubr.bf16.gmra.mxu0 %v6090
    %v6338 = vpop.f32.mrf.mxu0
    %v6339 = vadd.f32 %v6299, %v6338
    %v6340 = vpop.f32.mrf.mxu0
    %v6341 = vpop.f32.mrf.mxu0
    %v6342 = vpop.f32.mrf.mxu0
    %6343 = vdwg.mxu0
    %vm6344 = vcmp.gt.f32.partialorder %v6339, 0.0
    %v6345 = vmul.f32 %v6339, 0.01
    %v6346 = vsel %vm6344, %v6339, %v6345
    %v6347 = vpack.c.bf16 %v6346, %v6346
    %s6348 = scalar_lea.vmem [#allocation14], 256
    %v6349 = vld [vmem:[%s6348] sm:$0xf]
    %v6350 = vld [vmem:[%s6348 + $0x4] sm:$0xf]
    %v6351 = vld [vmem:[%s6348 + $0x8] sm:$0xf]
    %v6352 = vld [vmem:[%s6348 + $0xc] sm:$0xf]
    %v6353 = vld [vmem:[%s6348 + $0x10] sm:$0xf]
    %v6354 = vld [vmem:[%s6348 + $0x14] sm:$0xf]
    %v6355 = vld [vmem:[%s6348 + $0x18] sm:$0xf]
    %v6356 = vld [vmem:[%s6348 + $0x1c] sm:$0xf]
    %v6357 = vld [vmem:[%s6348 + $0x20] sm:$0xf]
    %v6358 = vld [vmem:[%s6348 + $0x24] sm:$0xf]
    %v6359 = vld [vmem:[%s6348 + $0x28] sm:$0xf]
    %v6360 = vld [vmem:[%s6348 + $0x2c] sm:$0xf]
    %v6361 = vld [vmem:[%s6348 + $0x30] sm:$0xf]
    %v6362 = vld [vmem:[%s6348 + $0x34] sm:$0xf]
    %v6363 = vld [vmem:[%s6348 + $0x38] sm:$0xf]
    %v6364 = vld [vmem:[%s6348 + $0x3c] sm:$0xf]
    %v6381 = vunpack.c.l.b16 %v6349
    %v6382 = vunpack.c.l.b16 %v6350
    %v6383 = vunpack.c.l.b16 %v6351
    %v6384 = vunpack.c.l.b16 %v6352
    %v6385 = vunpack.c.l.b16 %v6353
    %v6386 = vunpack.c.l.b16 %v6354
    %v6387 = vunpack.c.l.b16 %v6355
    %v6388 = vunpack.c.l.b16 %v6356
    %v6389 = vunpack.c.l.b16 %v6357
    %v6390 = vunpack.c.l.b16 %v6358
    %v6391 = vunpack.c.l.b16 %v6359
    %v6392 = vunpack.c.l.b16 %v6360
    %v6393 = vunpack.c.l.b16 %v6361
    %v6394 = vunpack.c.l.b16 %v6362
    %v6395 = vunpack.c.l.b16 %v6363
    %v6396 = vunpack.c.l.b16 %v6364
    %v6397 = vpack.c.b16 %v6382, %v6381
    %v6398 = vpack.c.b16 %v6384, %v6383
    %v6399 = vpack.c.b16 %v6386, %v6385
    %v6400 = vpack.c.b16 %v6388, %v6387
    %v6401 = vpack.c.b16 %v6390, %v6389
    %v6402 = vpack.c.b16 %v6392, %v6391
    %v6403 = vpack.c.b16 %v6394, %v6393
    %v6404 = vpack.c.b16 %v6396, %v6395
    %6413 = vmatprep.subr.bf16.mxu0 0
    %6414 = vmatpush1.bf16.msra.mxu0 %v6404
    %6415 = vmatprep.subr.bf16.mxu0 0
    %6416 = vmatpush1.bf16.msra.mxu0 %v6403
    %6417 = vmatprep.subr.bf16.mxu0 0
    %6418 = vmatpush1.bf16.msra.mxu0 %v6402
    %6419 = vmatprep.subr.bf16.mxu0 0
    %6420 = vmatpush1.bf16.msra.mxu0 %v6401
    %6421 = vmatprep.subr.bf16.mxu0 0
    %6422 = vmatpush1.bf16.msra.mxu0 %v6400
    %6423 = vmatprep.subr.bf16.mxu0 0
    %6424 = vmatpush1.bf16.msra.mxu0 %v6399
    %6425 = vmatprep.subr.bf16.mxu0 0
    %6426 = vmatpush1.bf16.msra.mxu0 %v6398
    %6427 = vmatprep.subr.bf16.mxu0 0
    %6428 = vmatpush1.bf16.msra.mxu0 %v6397
    %6429 = vmatprep.subr.bf16.mxu0 0
    %6430 = vmatpush2.bf16.msra.mxu0 0
    %6431 = vmatprep.subr.bf16.mxu0 0
    %6432 = vmatpush2.bf16.msra.mxu0 0
    %6433 = vmatprep.subr.bf16.mxu0 0
    %6434 = vmatpush2.bf16.msra.mxu0 0
    %6435 = vmatprep.subr.bf16.mxu0 0
    %6436 = vmatpush2.bf16.msra.mxu0 0
    %6437 = vmatprep.subr.bf16.mxu0 0
    %6438 = vmatpush2.bf16.msra.mxu0 0
    %6439 = vmatprep.subr.bf16.mxu0 0
    %6440 = vmatpush2.bf16.msra.mxu0 0
    %6441 = vmatprep.subr.bf16.mxu0 0
    %6442 = vmatpush2.bf16.msra.mxu0 0
    %6443 = vmatprep.subr.bf16.mxu0 0
    %6444 = vmatpush2.bf16.msra.mxu0 0
    %6445 = vmatprep.mubr.bf16.mxu0 0
    %6446 = vmatmul.mubr.bf16.gmra.mxu0 %v6347
    %v6447 = vpop.f32.mrf.mxu0
    %v6448 = vadd.f32 0.0, %v6447
    %v6449 = vpop.f32.mrf.mxu0
    %v6450 = vpop.f32.mrf.mxu0
    %v6451 = vpop.f32.mrf.mxu0
    %6452 = vdwg.mxu0
    %v6453 = vadd.f32 %v6055, %v6448
    %v6454 = vld [vmem:[#allocation2 + $0x78] sm:$0xff]
    %v6455 = vld [vmem:[#allocation2 + $0x80] sm:$0xff]
    %v6456 = vld [vmem:[#allocation2 + $0x88] sm:$0xff]
    %v6457 = vld [vmem:[#allocation2 + $0x90] sm:$0xff]
    %v6458 = vld [vmem:[#allocation2 + $0x98] sm:$0xff]
    %v6459 = vld [vmem:[#allocation2 + $0xa0] sm:$0xff]
    %v6466 = vunpack.c.l.b16 %v6454
    %v6467 = vunpack.c.h.b16 %v6454
    %v6468 = vunpack.c.l.b16 %v6455
    %v6469 = vunpack.c.h.b16 %v6455
    %v6470 = vunpack.c.l.b16 %v6456
    %v6471 = vunpack.c.h.b16 %v6456
    %v6472 = vunpack.c.l.b16 %v6457
    %v6473 = vunpack.c.h.b16 %v6457
    %v6474 = vunpack.c.l.b16 %v6458
    %v6475 = vunpack.c.h.b16 %v6458
    %v6476 = vunpack.c.l.b16 %v6459
    %v6477 = vunpack.c.h.b16 %v6459
    %v6478 = vpack.c.b16 %v6466, %v6466
    %v6479 = vpack.c.b16 %v6467, %v6467
    %v6480 = vpack.c.b16 %v6468, %v6468
    %v6481 = vpack.c.b16 %v6469, %v6469
    %v6482 = vpack.c.b16 %v6470, %v6470
    %v6483 = vpack.c.b16 %v6471, %v6471
    %v6484 = vpack.c.b16 %v6472, %v6472
    %v6485 = vpack.c.b16 %v6473, %v6473
    %v6486 = vpack.c.b16 %v6474, %v6474
    %v6487 = vpack.c.b16 %v6475, %v6475
    %v6488 = vpack.c.b16 %v6476, %v6476
    %v6489 = vpack.c.b16 %v6477, %v6477
    %6502 = vmatprep.subr.bf16.mxu0 0
    %6503 = vmatpush1.bf16.msra.mxu0 %v4330
    %6504 = vmatprep.subr.bf16.mxu0 0
    %6505 = vmatpush1.bf16.msra.mxu0 %v4329
    %6506 = vmatprep.subr.bf16.mxu0 0
    %6507 = vmatpush1.bf16.msra.mxu0 %v4328
    %6508 = vmatprep.subr.bf16.mxu0 0
    %6509 = vmatpush1.bf16.msra.mxu0 %v4327
    %6510 = vmatprep.subr.bf16.mxu0 0
    %6511 = vmatpush1.bf16.msra.mxu0 %v4326
    %6512 = vmatprep.subr.bf16.mxu0 0
    %6513 = vmatpush1.bf16.msra.mxu0 %v4325
    %6514 = vmatprep.subr.bf16.mxu0 0
    %6515 = vmatpush1.bf16.msra.mxu0 %v4324
    %6516 = vmatprep.subr.bf16.mxu0 0
    %6517 = vmatpush1.bf16.msra.mxu0 %v4323
    %6518 = vmatprep.subr.bf16.mxu0 0
    %6519 = vmatpush2.bf16.msra.mxu0 %v4338
    %6520 = vmatprep.subr.bf16.mxu0 0
    %6521 = vmatpush2.bf16.msra.mxu0 %v4337
    %6522 = vmatprep.subr.bf16.mxu0 0
    %6523 = vmatpush2.bf16.msra.mxu0 %v4336
    %6524 = vmatprep.subr.bf16.mxu0 0
    %6525 = vmatpush2.bf16.msra.mxu0 %v4335
    %6526 = vmatprep.subr.bf16.mxu0 0
    %6527 = vmatpush2.bf16.msra.mxu0 %v4334
    %6528 = vmatprep.subr.bf16.mxu0 0
    %6529 = vmatpush2.bf16.msra.mxu0 %v4333
    %6530 = vmatprep.subr.bf16.mxu0 0
    %6531 = vmatpush2.bf16.msra.mxu0 %v4332
    %6532 = vmatprep.subr.bf16.mxu0 0
    %6533 = vmatpush2.bf16.msra.mxu0 %v4331
    %6534 = vmatprep.mubr.bf16.mxu0 %v6479
    %6535 = vmatmul.mubr.bf16.gmra.mxu0 %v6478
    %v6536 = vpop.f32.mrf.mxu0
    %v6537 = vadd.f32 %v3895, %v6536
    %v6538 = vpop.f32.mrf.mxu0
    %v6539 = vpop.f32.mrf.mxu0
    %v6540 = vpop.f32.mrf.mxu0
    %6541 = vdwg.mxu0
    %6542 = vmatprep.subr.bf16.mxu0 0
    %6543 = vmatpush1.bf16.msra.mxu0 %v4346
    %6544 = vmatprep.subr.bf16.mxu0 0
    %6545 = vmatpush1.bf16.msra.mxu0 %v4345
    %6546 = vmatprep.subr.bf16.mxu0 0
    %6547 = vmatpush1.bf16.msra.mxu0 %v4344
    %6548 = vmatprep.subr.bf16.mxu0 0
    %6549 = vmatpush1.bf16.msra.mxu0 %v4343
    %6550 = vmatprep.subr.bf16.mxu0 0
    %6551 = vmatpush1.bf16.msra.mxu0 %v4342
    %6552 = vmatprep.subr.bf16.mxu0 0
    %6553 = vmatpush1.bf16.msra.mxu0 %v4341
    %6554 = vmatprep.subr.bf16.mxu0 0
    %6555 = vmatpush1.bf16.msra.mxu0 %v4340
    %6556 = vmatprep.subr.bf16.mxu0 0
    %6557 = vmatpush1.bf16.msra.mxu0 %v4339
    %6558 = vmatprep.subr.bf16.mxu0 0
    %6559 = vmatpush2.bf16.msra.mxu0 %v4354
    %6560 = vmatprep.subr.bf16.mxu0 0
    %6561 = vmatpush2.bf16.msra.mxu0 %v4353
    %6562 = vmatprep.subr.bf16.mxu0 0
    %6563 = vmatpush2.bf16.msra.mxu0 %v4352
    %6564 = vmatprep.subr.bf16.mxu0 0
    %6565 = vmatpush2.bf16.msra.mxu0 %v4351
    %6566 = vmatprep.subr.bf16.mxu0 0
    %6567 = vmatpush2.bf16.msra.mxu0 %v4350
    %6568 = vmatprep.subr.bf16.mxu0 0
    %6569 = vmatpush2.bf16.msra.mxu0 %v4349
    %6570 = vmatprep.subr.bf16.mxu0 0
    %6571 = vmatpush2.bf16.msra.mxu0 %v4348
    %6572 = vmatprep.subr.bf16.mxu0 0
    %6573 = vmatpush2.bf16.msra.mxu0 %v4347
    %6574 = vmatprep.mubr.bf16.mxu0 %v6481
    %6575 = vmatmul.mubr.bf16.gmra.mxu0 %v6480
    %v6576 = vpop.f32.mrf.mxu0
    %v6577 = vadd.f32 %v6537, %v6576
    %v6578 = vpop.f32.mrf.mxu0
    %v6579 = vpop.f32.mrf.mxu0
    %v6580 = vpop.f32.mrf.mxu0
    %6581 = vdwg.mxu0
    %6582 = vmatprep.subr.bf16.mxu0 0
    %6583 = vmatpush1.bf16.msra.mxu0 %v4362
    %6584 = vmatprep.subr.bf16.mxu0 0
    %6585 = vmatpush1.bf16.msra.mxu0 %v4361
    %6586 = vmatprep.subr.bf16.mxu0 0
    %6587 = vmatpush1.bf16.msra.mxu0 %v4360
    %6588 = vmatprep.subr.bf16.mxu0 0
    %6589 = vmatpush1.bf16.msra.mxu0 %v4359
    %6590 = vmatprep.subr.bf16.mxu0 0
    %6591 = vmatpush1.bf16.msra.mxu0 %v4358
    %6592 = vmatprep.subr.bf16.mxu0 0
    %6593 = vmatpush1.bf16.msra.mxu0 %v4357
    %6594 = vmatprep.subr.bf16.mxu0 0
    %6595 = vmatpush1.bf16.msra.mxu0 %v4356
    %6596 = vmatprep.subr.bf16.mxu0 0
    %6597 = vmatpush1.bf16.msra.mxu0 %v4355
    %6598 = vmatprep.subr.bf16.mxu0 0
    %6599 = vmatpush2.bf16.msra.mxu0 %v4370
    %6600 = vmatprep.subr.bf16.mxu0 0
    %6601 = vmatpush2.bf16.msra.mxu0 %v4369
    %6602 = vmatprep.subr.bf16.mxu0 0
    %6603 = vmatpush2.bf16.msra.mxu0 %v4368
    %6604 = vmatprep.subr.bf16.mxu0 0
    %6605 = vmatpush2.bf16.msra.mxu0 %v4367
    %6606 = vmatprep.subr.bf16.mxu0 0
    %6607 = vmatpush2.bf16.msra.mxu0 %v4366
    %6608 = vmatprep.subr.bf16.mxu0 0
    %6609 = vmatpush2.bf16.msra.mxu0 %v4365
    %6610 = vmatprep.subr.bf16.mxu0 0
    %6611 = vmatpush2.bf16.msra.mxu0 %v4364
    %6612 = vmatprep.subr.bf16.mxu0 0
    %6613 = vmatpush2.bf16.msra.mxu0 %v4363
    %6614 = vmatprep.mubr.bf16.mxu0 %v6483
    %6615 = vmatmul.mubr.bf16.gmra.mxu0 %v6482
    %v6616 = vpop.f32.mrf.mxu0
    %v6617 = vadd.f32 %v6577, %v6616
    %v6618 = vpop.f32.mrf.mxu0
    %v6619 = vpop.f32.mrf.mxu0
    %v6620 = vpop.f32.mrf.mxu0
    %6621 = vdwg.mxu0
    %6622 = vmatprep.subr.bf16.mxu0 0
    %6623 = vmatpush1.bf16.msra.mxu0 %v4378
    %6624 = vmatprep.subr.bf16.mxu0 0
    %6625 = vmatpush1.bf16.msra.mxu0 %v4377
    %6626 = vmatprep.subr.bf16.mxu0 0
    %6627 = vmatpush1.bf16.msra.mxu0 %v4376
    %6628 = vmatprep.subr.bf16.mxu0 0
    %6629 = vmatpush1.bf16.msra.mxu0 %v4375
    %6630 = vmatprep.subr.bf16.mxu0 0
    %6631 = vmatpush1.bf16.msra.mxu0 %v4374
    %6632 = vmatprep.subr.bf16.mxu0 0
    %6633 = vmatpush1.bf16.msra.mxu0 %v4373
    %6634 = vmatprep.subr.bf16.mxu0 0
    %6635 = vmatpush1.bf16.msra.mxu0 %v4372
    %6636 = vmatprep.subr.bf16.mxu0 0
    %6637 = vmatpush1.bf16.msra.mxu0 %v4371
    %6638 = vmatprep.subr.bf16.mxu0 0
    %6639 = vmatpush2.bf16.msra.mxu0 %v4386
    %6640 = vmatprep.subr.bf16.mxu0 0
    %6641 = vmatpush2.bf16.msra.mxu0 %v4385
    %6642 = vmatprep.subr.bf16.mxu0 0
    %6643 = vmatpush2.bf16.msra.mxu0 %v4384
    %6644 = vmatprep.subr.bf16.mxu0 0
    %6645 = vmatpush2.bf16.msra.mxu0 %v4383
    %6646 = vmatprep.subr.bf16.mxu0 0
    %6647 = vmatpush2.bf16.msra.mxu0 %v4382
    %6648 = vmatprep.subr.bf16.mxu0 0
    %6649 = vmatpush2.bf16.msra.mxu0 %v4381
    %6650 = vmatprep.subr.bf16.mxu0 0
    %6651 = vmatpush2.bf16.msra.mxu0 %v4380
    %6652 = vmatprep.subr.bf16.mxu0 0
    %6653 = vmatpush2.bf16.msra.mxu0 %v4379
    %6654 = vmatprep.mubr.bf16.mxu0 %v6485
    %6655 = vmatmul.mubr.bf16.gmra.mxu0 %v6484
    %v6656 = vpop.f32.mrf.mxu0
    %v6657 = vadd.f32 %v6617, %v6656
    %v6658 = vpop.f32.mrf.mxu0
    %v6659 = vpop.f32.mrf.mxu0
    %v6660 = vpop.f32.mrf.mxu0
    %6661 = vdwg.mxu0
    %6662 = vmatprep.subr.bf16.mxu0 0
    %6663 = vmatpush1.bf16.msra.mxu0 %v4394
    %6664 = vmatprep.subr.bf16.mxu0 0
    %6665 = vmatpush1.bf16.msra.mxu0 %v4393
    %6666 = vmatprep.subr.bf16.mxu0 0
    %6667 = vmatpush1.bf16.msra.mxu0 %v4392
    %6668 = vmatprep.subr.bf16.mxu0 0
    %6669 = vmatpush1.bf16.msra.mxu0 %v4391
    %6670 = vmatprep.subr.bf16.mxu0 0
    %6671 = vmatpush1.bf16.msra.mxu0 %v4390
    %6672 = vmatprep.subr.bf16.mxu0 0
    %6673 = vmatpush1.bf16.msra.mxu0 %v4389
    %6674 = vmatprep.subr.bf16.mxu0 0
    %6675 = vmatpush1.bf16.msra.mxu0 %v4388
    %6676 = vmatprep.subr.bf16.mxu0 0
    %6677 = vmatpush1.bf16.msra.mxu0 %v4387
    %6678 = vmatprep.subr.bf16.mxu0 0
    %6679 = vmatpush2.bf16.msra.mxu0 %v4402
    %6680 = vmatprep.subr.bf16.mxu0 0
    %6681 = vmatpush2.bf16.msra.mxu0 %v4401
    %6682 = vmatprep.subr.bf16.mxu0 0
    %6683 = vmatpush2.bf16.msra.mxu0 %v4400
    %6684 = vmatprep.subr.bf16.mxu0 0
    %6685 = vmatpush2.bf16.msra.mxu0 %v4399
    %6686 = vmatprep.subr.bf16.mxu0 0
    %6687 = vmatpush2.bf16.msra.mxu0 %v4398
    %6688 = vmatprep.subr.bf16.mxu0 0
    %6689 = vmatpush2.bf16.msra.mxu0 %v4397
    %6690 = vmatprep.subr.bf16.mxu0 0
    %6691 = vmatpush2.bf16.msra.mxu0 %v4396
    %6692 = vmatprep.subr.bf16.mxu0 0
    %6693 = vmatpush2.bf16.msra.mxu0 %v4395
    %6694 = vmatprep.mubr.bf16.mxu0 %v6487
    %6695 = vmatmul.mubr.bf16.gmra.mxu0 %v6486
    %v6696 = vpop.f32.mrf.mxu0
    %v6697 = vadd.f32 %v6657, %v6696
    %v6698 = vpop.f32.mrf.mxu0
    %v6699 = vpop.f32.mrf.mxu0
    %v6700 = vpop.f32.mrf.mxu0
    %6701 = vdwg.mxu0
    %6702 = vmatprep.subr.bf16.mxu0 0
    %6703 = vmatpush1.bf16.msra.mxu0 %v4410
    %6704 = vmatprep.subr.bf16.mxu0 0
    %6705 = vmatpush1.bf16.msra.mxu0 %v4409
    %6706 = vmatprep.subr.bf16.mxu0 0
    %6707 = vmatpush1.bf16.msra.mxu0 %v4408
    %6708 = vmatprep.subr.bf16.mxu0 0
    %6709 = vmatpush1.bf16.msra.mxu0 %v4407
    %6710 = vmatprep.subr.bf16.mxu0 0
    %6711 = vmatpush1.bf16.msra.mxu0 %v4406
    %6712 = vmatprep.subr.bf16.mxu0 0
    %6713 = vmatpush1.bf16.msra.mxu0 %v4405
    %6714 = vmatprep.subr.bf16.mxu0 0
    %6715 = vmatpush1.bf16.msra.mxu0 %v4404
    %6716 = vmatprep.subr.bf16.mxu0 0
    %6717 = vmatpush1.bf16.msra.mxu0 %v4403
    %6718 = vmatprep.subr.bf16.mxu0 0
    %6719 = vmatpush2.bf16.msra.mxu0 %v4418
    %6720 = vmatprep.subr.bf16.mxu0 0
    %6721 = vmatpush2.bf16.msra.mxu0 %v4417
    %6722 = vmatprep.subr.bf16.mxu0 0
    %6723 = vmatpush2.bf16.msra.mxu0 %v4416
    %6724 = vmatprep.subr.bf16.mxu0 0
    %6725 = vmatpush2.bf16.msra.mxu0 %v4415
    %6726 = vmatprep.subr.bf16.mxu0 0
    %6727 = vmatpush2.bf16.msra.mxu0 %v4414
    %6728 = vmatprep.subr.bf16.mxu0 0
    %6729 = vmatpush2.bf16.msra.mxu0 %v4413
    %6730 = vmatprep.subr.bf16.mxu0 0
    %6731 = vmatpush2.bf16.msra.mxu0 %v4412
    %6732 = vmatprep.subr.bf16.mxu0 0
    %6733 = vmatpush2.bf16.msra.mxu0 %v4411
    %6734 = vmatprep.mubr.bf16.mxu0 %v6489
    %6735 = vmatmul.mubr.bf16.gmra.mxu0 %v6488
    %v6736 = vpop.f32.mrf.mxu0
    %v6737 = vadd.f32 %v6697, %v6736
    %v6738 = vpop.f32.mrf.mxu0
    %v6739 = vpop.f32.mrf.mxu0
    %v6740 = vpop.f32.mrf.mxu0
    %6741 = vdwg.mxu0
    %vm6742 = vcmp.gt.f32.partialorder %v6737, 0.0
    %v6743 = vmul.f32 %v6737, 0.01
    %v6744 = vsel %vm6742, %v6737, %v6743
    %v6745 = vpack.c.bf16 %v6744, %v6744
    %s6746 = scalar_lea.vmem [#allocation14], 320
    %v6747 = vld [vmem:[%s6746] sm:$0xf]
    %v6748 = vld [vmem:[%s6746 + $0x4] sm:$0xf]
    %v6749 = vld [vmem:[%s6746 + $0x8] sm:$0xf]
    %v6750 = vld [vmem:[%s6746 + $0xc] sm:$0xf]
    %v6751 = vld [vmem:[%s6746 + $0x10] sm:$0xf]
    %v6752 = vld [vmem:[%s6746 + $0x14] sm:$0xf]
    %v6753 = vld [vmem:[%s6746 + $0x18] sm:$0xf]
    %v6754 = vld [vmem:[%s6746 + $0x1c] sm:$0xf]
    %v6755 = vld [vmem:[%s6746 + $0x20] sm:$0xf]
    %v6756 = vld [vmem:[%s6746 + $0x24] sm:$0xf]
    %v6757 = vld [vmem:[%s6746 + $0x28] sm:$0xf]
    %v6758 = vld [vmem:[%s6746 + $0x2c] sm:$0xf]
    %v6759 = vld [vmem:[%s6746 + $0x30] sm:$0xf]
    %v6760 = vld [vmem:[%s6746 + $0x34] sm:$0xf]
    %v6761 = vld [vmem:[%s6746 + $0x38] sm:$0xf]
    %v6762 = vld [vmem:[%s6746 + $0x3c] sm:$0xf]
    %v6779 = vunpack.c.l.b16 %v6747
    %v6780 = vunpack.c.l.b16 %v6748
    %v6781 = vunpack.c.l.b16 %v6749
    %v6782 = vunpack.c.l.b16 %v6750
    %v6783 = vunpack.c.l.b16 %v6751
    %v6784 = vunpack.c.l.b16 %v6752
    %v6785 = vunpack.c.l.b16 %v6753
    %v6786 = vunpack.c.l.b16 %v6754
    %v6787 = vunpack.c.l.b16 %v6755
    %v6788 = vunpack.c.l.b16 %v6756
    %v6789 = vunpack.c.l.b16 %v6757
    %v6790 = vunpack.c.l.b16 %v6758
    %v6791 = vunpack.c.l.b16 %v6759
    %v6792 = vunpack.c.l.b16 %v6760
    %v6793 = vunpack.c.l.b16 %v6761
    %v6794 = vunpack.c.l.b16 %v6762
    %v6795 = vpack.c.b16 %v6780, %v6779
    %v6796 = vpack.c.b16 %v6782, %v6781
    %v6797 = vpack.c.b16 %v6784, %v6783
    %v6798 = vpack.c.b16 %v6786, %v6785
    %v6799 = vpack.c.b16 %v6788, %v6787
    %v6800 = vpack.c.b16 %v6790, %v6789
    %v6801 = vpack.c.b16 %v6792, %v6791
    %v6802 = vpack.c.b16 %v6794, %v6793
    %6811 = vmatprep.subr.bf16.mxu0 0
    %6812 = vmatpush1.bf16.msra.mxu0 %v6802
    %6813 = vmatprep.subr.bf16.mxu0 0
    %6814 = vmatpush1.bf16.msra.mxu0 %v6801
    %6815 = vmatprep.subr.bf16.mxu0 0
    %6816 = vmatpush1.bf16.msra.mxu0 %v6800
    %6817 = vmatprep.subr.bf16.mxu0 0
    %6818 = vmatpush1.bf16.msra.mxu0 %v6799
    %6819 = vmatprep.subr.bf16.mxu0 0
    %6820 = vmatpush1.bf16.msra.mxu0 %v6798
    %6821 = vmatprep.subr.bf16.mxu0 0
    %6822 = vmatpush1.bf16.msra.mxu0 %v6797
    %6823 = vmatprep.subr.bf16.mxu0 0
    %6824 = vmatpush1.bf16.msra.mxu0 %v6796
    %6825 = vmatprep.subr.bf16.mxu0 0
    %6826 = vmatpush1.bf16.msra.mxu0 %v6795
    %6827 = vmatprep.subr.bf16.mxu0 0
    %6828 = vmatpush2.bf16.msra.mxu0 0
    %6829 = vmatprep.subr.bf16.mxu0 0
    %6830 = vmatpush2.bf16.msra.mxu0 0
    %6831 = vmatprep.subr.bf16.mxu0 0
    %6832 = vmatpush2.bf16.msra.mxu0 0
    %6833 = vmatprep.subr.bf16.mxu0 0
    %6834 = vmatpush2.bf16.msra.mxu0 0
    %6835 = vmatprep.subr.bf16.mxu0 0
    %6836 = vmatpush2.bf16.msra.mxu0 0
    %6837 = vmatprep.subr.bf16.mxu0 0
    %6838 = vmatpush2.bf16.msra.mxu0 0
    %6839 = vmatprep.subr.bf16.mxu0 0
    %6840 = vmatpush2.bf16.msra.mxu0 0
    %6841 = vmatprep.subr.bf16.mxu0 0
    %6842 = vmatpush2.bf16.msra.mxu0 0
    %6843 = vmatprep.mubr.bf16.mxu0 0
    %6844 = vmatmul.mubr.bf16.gmra.mxu0 %v6745
    %v6845 = vpop.f32.mrf.mxu0
    %v6846 = vadd.f32 0.0, %v6845
    %v6847 = vpop.f32.mrf.mxu0
    %v6848 = vpop.f32.mrf.mxu0
    %v6849 = vpop.f32.mrf.mxu0
    %6850 = vdwg.mxu0
    %v6851 = vadd.f32 %v6453, %v6846
    %v6853 = vlaneseq
    %v6854 = vshrl.u32 %v6853, 7
    %v6855 = vsub.s32 0, %v6854
    %v6856 = vrot.slane %v3884, %v6855
    %v6858 = vadd.f32 %v6851, %v6856
    %vm6859 = vcmp.gt.f32.partialorder %v6858, 0.0
    %v6860 = vmul.f32 %v6858, 0.01
    %v6861 = vsel %vm6859, %v6858, %v6860
    %v6862 = vpack.c.bf16 %v6861, %v6861
    %v6863 = vld [vmem:[#allocation16] sm:$0xf]
    %v6864 = vld [vmem:[#allocation16 + $0x4] sm:$0xf]
    %v6865 = vld [vmem:[#allocation16 + $0x8] sm:$0xf]
    %v6866 = vld [vmem:[#allocation16 + $0xc] sm:$0xf]
    %v6867 = vld [vmem:[#allocation16 + $0x10] sm:$0xf]
    %v6868 = vld [vmem:[#allocation16 + $0x14] sm:$0xf]
    %v6869 = vld [vmem:[#allocation16 + $0x18] sm:$0xf]
    %v6870 = vld [vmem:[#allocation16 + $0x1c] sm:$0xf]
    %v6871 = vld [vmem:[#allocation16 + $0x20] sm:$0xf]
    %v6872 = vld [vmem:[#allocation16 + $0x24] sm:$0xf]
    %v6873 = vld [vmem:[#allocation16 + $0x28] sm:$0xf]
    %v6874 = vld [vmem:[#allocation16 + $0x2c] sm:$0xf]
    %v6875 = vld [vmem:[#allocation16 + $0x30] sm:$0xf]
    %v6876 = vld [vmem:[#allocation16 + $0x34] sm:$0xf]
    %v6877 = vld [vmem:[#allocation16 + $0x38] sm:$0xf]
    %v6878 = vld [vmem:[#allocation16 + $0x3c] sm:$0xf]
    %v6879 = vld [vmem:[%s16] sm:$0x1]
    %v6881 = vlaneseq
    %v6882 = vshrl.u32 %v6881, 7
    %v6883 = vsub.s32 0, %v6882
    %v6884 = vrot.slane %v6879, %v6883
    %v6902 = vunpack.c.l.b16 %v6863
    %v6903 = vunpack.c.l.b16 %v6864
    %v6904 = vunpack.c.l.b16 %v6865
    %v6905 = vunpack.c.l.b16 %v6866
    %v6906 = vunpack.c.l.b16 %v6867
    %v6907 = vunpack.c.l.b16 %v6868
    %v6908 = vunpack.c.l.b16 %v6869
    %v6909 = vunpack.c.l.b16 %v6870
    %v6910 = vunpack.c.l.b16 %v6871
    %v6911 = vunpack.c.l.b16 %v6872
    %v6912 = vunpack.c.l.b16 %v6873
    %v6913 = vunpack.c.l.b16 %v6874
    %v6914 = vunpack.c.l.b16 %v6875
    %v6915 = vunpack.c.l.b16 %v6876
    %v6916 = vunpack.c.l.b16 %v6877
    %v6917 = vunpack.c.l.b16 %v6878
    %v6918 = vpack.c.b16 %v6903, %v6902
    %v6919 = vpack.c.b16 %v6905, %v6904
    %v6920 = vpack.c.b16 %v6907, %v6906
    %v6921 = vpack.c.b16 %v6909, %v6908
    %v6922 = vpack.c.b16 %v6911, %v6910
    %v6923 = vpack.c.b16 %v6913, %v6912
    %v6924 = vpack.c.b16 %v6915, %v6914
    %v6925 = vpack.c.b16 %v6917, %v6916
    %6934 = vmatprep.subr.bf16.mxu0 0
    %6935 = vmatpush1.bf16.msra.mxu0 %v6925
    %6936 = vmatprep.subr.bf16.mxu0 0
    %6937 = vmatpush1.bf16.msra.mxu0 %v6924
    %6938 = vmatprep.subr.bf16.mxu0 0
    %6939 = vmatpush1.bf16.msra.mxu0 %v6923
    %6940 = vmatprep.subr.bf16.mxu0 0
    %6941 = vmatpush1.bf16.msra.mxu0 %v6922
    %6942 = vmatprep.subr.bf16.mxu0 0
    %6943 = vmatpush1.bf16.msra.mxu0 %v6921
    %6944 = vmatprep.subr.bf16.mxu0 0
    %6945 = vmatpush1.bf16.msra.mxu0 %v6920
    %6946 = vmatprep.subr.bf16.mxu0 0
    %6947 = vmatpush1.bf16.msra.mxu0 %v6919
    %6948 = vmatprep.subr.bf16.mxu0 0
    %6949 = vmatpush1.bf16.msra.mxu0 %v6918
    %6950 = vmatprep.subr.bf16.mxu0 0
    %6951 = vmatpush2.bf16.msra.mxu0 0
    %6952 = vmatprep.subr.bf16.mxu0 0
    %6953 = vmatpush2.bf16.msra.mxu0 0
    %6954 = vmatprep.subr.bf16.mxu0 0
    %6955 = vmatpush2.bf16.msra.mxu0 0
    %6956 = vmatprep.subr.bf16.mxu0 0
    %6957 = vmatpush2.bf16.msra.mxu0 0
    %6958 = vmatprep.subr.bf16.mxu0 0
    %6959 = vmatpush2.bf16.msra.mxu0 0
    %6960 = vmatprep.subr.bf16.mxu0 0
    %6961 = vmatpush2.bf16.msra.mxu0 0
    %6962 = vmatprep.subr.bf16.mxu0 0
    %6963 = vmatpush2.bf16.msra.mxu0 0
    %6964 = vmatprep.subr.bf16.mxu0 0
    %6965 = vmatpush2.bf16.msra.mxu0 0
    %6966 = vmatprep.mubr.bf16.mxu0 0
    %6967 = vmatmul.mubr.bf16.gmra.mxu0 %v6862
    %v6968 = vpop.f32.mrf.mxu0
    %v6969 = vadd.f32 %v6884, %v6968
    %v6970 = vpop.f32.mrf.mxu0
    %v6971 = vpop.f32.mrf.mxu0
    %v6972 = vpop.f32.mrf.mxu0
    %6973 = vdwg.mxu0
    %6974 = vst [vmem:[#allocation18] sm:$0xff] %v6969
    // Predicated region
    $region106: #{tpu_custom_call.1} parent=1 // pred_check
      _
    $region107: #{tpu_custom_call.1} parent=1 // pred_check_branch
      %6976 = sbr.rel (0) target = $region109
    $region108: #{tpu_custom_call.1} parent=1 // pred_region
      %s6978 = ssub.s32 128, 128
      %6979 = vsyncadd [#allocation4], %s6978
      %s6981 = sshll.u32 [#allocation17], 4
      %s6982 = int_to_ptr.vmem [resolvable:$true] %s6981
      %6984 = dma.vmem_to_hbm [thread:$0]  %s6982, 128, %s17, [#allocation4]
    $region109: #{tpu_custom_call.1} parent=1 // pred_fallthru
      _
    // Predicated region
    $region110: #{tpu_custom_call.1} parent=1 // pred_check
      _
    $region111: #{tpu_custom_call.1} parent=1 // pred_check_branch
      %6986 = sbr.rel (0) target = $region113
    $region112: #{tpu_custom_call.1} parent=1 // pred_region
      %s6988 = ssub.s32 128, 128
      %6989 = vsyncadd [#allocation19], %s6988
      %s6991 = sshll.u32 [#allocation18], 4
      %s6992 = int_to_ptr.vmem [resolvable:$true] %s6991
      %6994 = dma.vmem_to_hbm [thread:$0]  %s6992, 128, %s18, [#allocation19]
    $region113: #{tpu_custom_call.1} parent=1 // pred_fallthru
      _
    // Predicated region
    $region114: #{tpu_custom_call.1} parent=1 // pred_check
      _
    $region115: #{tpu_custom_call.1} parent=1 // pred_check_branch
      %6996 = sbr.rel (0) target = $region117
    $region116: #{tpu_custom_call.1} parent=1 // pred_region
      %6997 = dma.done [#allocation4], 128
    $region117: #{tpu_custom_call.1} parent=1 // pred_fallthru
      _
    // Predicated region
    $region118: #{tpu_custom_call.1} parent=1 // pred_check
      _
    $region119: #{tpu_custom_call.1} parent=1 // pred_check_branch
      %6999 = sbr.rel (0) target = $region121
    $region120: #{tpu_custom_call.1} parent=1 // pred_region
      %7000 = dma.done [#allocation19], 128
    $region121: #{tpu_custom_call.1} parent=1 // pred_fallthru
      _
    %7001 = vsyncpa [#allocation3], 1
    %7002 = vsyncpa [#allocation6], 1
    %7003 = vsyncpa [#allocation9], 1
    %7004 = vsyncpa [#allocation12], 1
    %7005 = vsyncpa [#allocation15], 1
    %7006 = vsyncpa [#allocation4], 1
    %7007 = vsyncpa [#allocation19], 1

</llo_original>
